<compile_context>
chip_gen: v5e
topology: v5e:2x2
jax: 0.10.0
libtpu: 0.0.40
codegen_flags: <defaults>
</compile_context>

<pallas_src>
import jax
import jax.numpy as jnp
from jax import lax
from jax.experimental import pallas as pl
from jax.experimental.pallas import tpu as pltpu

_NEG_BIG = -1e30  # finite "minus infinity" used inside softmax masking


# -----------------------------------------------------------------------------
# Kernel 1: AlignQuestionEmbedding fused with the ctx/align concatenation.
#   stacked = [ctx; qtn] (rows)  ->  relu(stacked @ W + b)  (ONE projection)
#   scores = c @ q^T  -> masked softmax over question -> @ qtn
#   output block = [ctx_embed | align_embed]  (B, Lc, 2E)
# -----------------------------------------------------------------------------
def align_attention(ctx_embed, ques_embed, question_mask, w, b):
    B, Lc, E = ctx_embed.shape
    Lq = ques_embed.shape[1]
    cq = jnp.concatenate([ctx_embed, ques_embed], axis=1)        # (B, Lc+Lq, E)
    qmask = question_mask.reshape(B, 1, Lq).astype(jnp.float32)  # lane-major mask

    def kernel(cq_ref, w_ref, b_ref, qmask_ref, out_ref):
        cq_ = cq_ref[0]                                          # (Lc+Lq, E)
        proj = jnp.maximum(
            jnp.dot(cq_, w_ref[...], preferred_element_type=jnp.float32)
            + b_ref[...], 0.0)                                   # single matmul for ctx+qtn
        c = proj[0:Lc, :]                                        # (Lc, E)
        q = proj[Lc:Lc + Lq, :]                                  # (Lq, E)
        scores = lax.dot_general(c, q, (((1,), (1,)), ((), ())),
                                 preferred_element_type=jnp.float32)   # (Lc, Lq)
        scores = jnp.where(qmask_ref[0] == 1.0, _NEG_BIG, scores)
        m = jnp.max(scores, axis=-1, keepdims=True)
        e = jnp.exp(scores - m)
        alpha = e * pl.reciprocal(jnp.sum(e, axis=-1, keepdims=True), approx=True)
        align = jnp.dot(alpha, cq_[Lc:Lc + Lq, :],
                        preferred_element_type=jnp.float32)      # (Lc, E)
        # emit the concatenated BiLSTM input directly: [ctx_embed | align]
        out_ref[0, :, 0:E] = cq_[0:Lc, :]
        out_ref[0, :, E:2 * E] = align

    return pl.pallas_call(
        kernel,
        out_shape=jax.ShapeDtypeStruct((B, Lc, 2 * E), jnp.float32),
        grid=(B,),
        in_specs=[
            pl.BlockSpec((1, Lc + Lq, E), lambda bb: (bb, 0, 0)),
            pl.BlockSpec((E, E), lambda bb: (0, 0)),
            pl.BlockSpec((1, E), lambda bb: (0, 0)),
            pl.BlockSpec((1, 1, Lq), lambda bb: (bb, 0, 0)),
        ],
        out_specs=pl.BlockSpec((1, Lc, 2 * E), lambda bb: (bb, 0, 0)),
        compiler_params=pltpu.CompilerParams(dimension_semantics=("parallel",)),
    )(cq, w, b, qmask)


# -----------------------------------------------------------------------------
# Kernel 2: fused 2-layer bidirectional LSTM stack (one pallas_call per stream)
#
# Packed weight layout (see pack_bilstm_layer):
#   wih : (Din, 8H)  gate columns [i_f i_b f_f f_b g_f g_b o_f o_b]
#   whh : (2H, 8H)   rows [h_f ; h_b], block diagonal per direction
#   b   : (1, 8H)    b_ih + b_hh per direction, same column order
# State h = [h_fwd | h_bwd] (Bp, 2H); gate slices are contiguous 64-lane chunks.
# -----------------------------------------------------------------------------
def pack_bilstm_layer(wih_f, whh_f, b_f, wih_b, whh_b, b_b):
    """Pack per-direction LSTM weights (PyTorch i|f|g|o gate order, already
    transposed so gates = x @ W_ih + h @ W_hh + b, with b = b_ih + b_hh)."""
    H = whh_f.shape[0]

    def interleave(a_f, a_b):
        parts = []
        for g in range(4):
            parts.append(a_f[:, g * H:(g + 1) * H])
            parts.append(a_b[:, g * H:(g + 1) * H])
        return jnp.concatenate(parts, axis=1)

    wih = interleave(wih_f, wih_b)
    b = interleave(b_f, b_b)
    whh = jnp.concatenate(
        [interleave(whh_f, jnp.zeros_like(whh_f)),
         interleave(jnp.zeros_like(whh_b), whh_b)], axis=0)
    return dict(wih=wih, whh=whh, b=b)


def stacked_bilstm(x, layer1, layer2):
    """Two stacked bidirectional LSTM layers fused in one Pallas kernel.
    x: (B, L, Din) -> (B, L, 4H) = concat([layer1_out, layer2_out], -1)."""
    B, L, Din = x.shape
    H = layer1["whh"].shape[0] // 2
    Bp = max(8, ((B + 7) // 8) * 8)   # pad batch to a full sublane tile (free on MXU/VPU)

    # time-major rows: row = t * Bp + b  (padded rows are zeros, dropped at the end)
    xp = jnp.zeros((Bp, L, Din), jnp.float32).at[:B].set(x.astype(jnp.float32))
    x2d = xp.transpose(1, 0, 2).reshape(L * Bp, Din)

    def kernel(x_ref, wih1_ref, whh1_ref, b1_ref, wih2_ref, whh2_ref, b2_ref,
               out_ref, gx_ref, o1_ref):
        # Direction-select mask (hoisted out of all loops): within each 2H gate
        # group the first H lanes are the forward cell, the last H the backward.
        lane = lax.broadcasted_iota(jnp.int32, (Bp, 8 * H), 1)
        is_fwd = (lane % (2 * H)) < H

        def run_layer(whh_ref_, emit):
            whh = whh_ref_[...]
            h = jnp.zeros((Bp, 2 * H), jnp.float32)
            c = jnp.zeros((Bp, 2 * H), jnp.float32)
            for s in range(L):  # fully unrolled: static trip count, LLO sees across steps
                ga = gx_ref[s * Bp:(s + 1) * Bp, :]             # x[s]      projection
                gb = gx_ref[(L - 1 - s) * Bp:(L - s) * Bp, :]   # x[L-1-s]  projection
                gates = jnp.where(is_fwd, ga, gb) + jnp.dot(
                    h, whh, preferred_element_type=jnp.float32)  # 256-wide MXU call
                i = jax.nn.sigmoid(gates[:, 0:2 * H])
                f = jax.nn.sigmoid(gates[:, 2 * H:4 * H])
                g = jnp.tanh(gates[:, 4 * H:6 * H])
                o = jax.nn.sigmoid(gates[:, 6 * H:8 * H])
                c = f * c + i * g
                h = o * jnp.tanh(c)
                emit(s, h)

        # ---- layer 1: hoisted input projection as ONE matmul ----
        gx_ref[...] = jnp.dot(x_ref[...], wih1_ref[...],
                              preferred_element_type=jnp.float32) + b1_ref[...]

        def emit1(s, h):
            o1_ref[s * Bp:(s + 1) * Bp, 0:H] = h[:, 0:H]                     # fwd -> t = s
            o1_ref[(L - 1 - s) * Bp:(L - s) * Bp, H:2 * H] = h[:, H:2 * H]   # bwd -> t = L-1-s

        run_layer(whh1_ref, emit1)

        # ---- layer 2: input = layer-1 bidirectional output (stays in VMEM) ----
        gx_ref[...] = jnp.dot(o1_ref[...], wih2_ref[...],
                              preferred_element_type=jnp.float32) + b2_ref[...]

        def emit2(s, h):
            out_ref[s * Bp:(s + 1) * Bp, 2 * H:3 * H] = h[:, 0:H]
            out_ref[(L - 1 - s) * Bp:(L - s) * Bp, 3 * H:4 * H] = h[:, H:2 * H]

        run_layer(whh2_ref, emit2)

        out_ref[:, 0:2 * H] = o1_ref[...]   # final output = [layer1 | layer2]

    # TODO(synk): on v7x (2 TensorCores) shard the two streams / directions over
    # cores with a size-2 'parallel' leading grid axis; at realistic DrQA sizes
    # (Lc~500, H=128) replace the whole-sequence single block with an L-chunked
    # pipeline (pltpu.emit_pipeline) carrying h/c in VMEM scratch and set
    # vmem_limit_bytes explicitly.
    out2d = pl.pallas_call(
        kernel,
        out_shape=jax.ShapeDtypeStruct((L * Bp, 4 * H), jnp.float32),
        grid=(1,),
        in_specs=[
            pl.BlockSpec((L * Bp, Din), lambda i: (0, 0)),
            pl.BlockSpec((Din, 8 * H), lambda i: (0, 0)),
            pl.BlockSpec((2 * H, 8 * H), lambda i: (0, 0)),
            pl.BlockSpec((1, 8 * H), lambda i: (0, 0)),
            pl.BlockSpec((2 * H, 8 * H), lambda i: (0, 0)),
            pl.BlockSpec((2 * H, 8 * H), lambda i: (0, 0)),
            pl.BlockSpec((1, 8 * H), lambda i: (0, 0)),
        ],
        out_specs=pl.BlockSpec((L * Bp, 4 * H), lambda i: (0, 0)),
        scratch_shapes=[
            pltpu.VMEM((L * Bp, 8 * H), jnp.float32),   # hoisted gate projections
            pltpu.VMEM((L * Bp, 2 * H), jnp.float32),   # layer-1 bidirectional output
        ],
        compiler_params=pltpu.CompilerParams(dimension_semantics=("arbitrary",)),
    )(x2d, layer1["wih"], layer1["whh"], layer1["b"],
      layer2["wih"], layer2["whh"], layer2["b"])

    return out2d.reshape(L, Bp, 4 * H)[:, :B, :].transpose(1, 0, 2)   # (B, L, 4H)


# -----------------------------------------------------------------------------
# Kernel 3: LinearAttentionLayer + weighted_average + both BilinearAttention
#           layers, lane-dense (B, 2, Lc) output.
#   w_se = [Ws^T | We^T]  (Hq, 2Hq),  b_se = [bs | be]  (1, 2Hq)
# -----------------------------------------------------------------------------
def output_attention(qtn_out, ctx_out, question_mask, context_mask,
                     wlin, blin, w_se, b_se):
    B, Lq, Hq = qtn_out.shape
    Lc = ctx_out.shape[1]
    qmask = question_mask.reshape(B, 1, Lq).astype(jnp.float32)
    cmask = context_mask.reshape(B, 1, Lc).astype(jnp.float32)

    def kernel(qout_ref, cout_ref, wlin_ref, blin_ref, wse_ref, bse_ref,
               qmask_ref, cmask_ref, out_ref):
        qout = qout_ref[0]                        # (Lq, Hq)
        cout = cout_ref[0]                        # (Lc, Hq)
        # linear attention over question positions, lane-major (1, Lq)
        s = lax.dot_general(wlin_ref[...], qout, (((1,), (1,)), ((), ())),
                            preferred_element_type=jnp.float32) + blin_ref[...]
        s = jnp.where(qmask_ref[0] == 1.0, _NEG_BIG, s)
        m = jnp.max(s, axis=-1, keepdims=True)
        e = jnp.exp(s - m)
        alpha = e * pl.reciprocal(jnp.sum(e, axis=-1, keepdims=True), approx=True)
        qw = jnp.dot(alpha, qout, preferred_element_type=jnp.float32)   # (1, Hq)

        # start/end bilinear projections in ONE (1,Hq)x(Hq,2Hq) matmul
        proj = jnp.dot(qw, wse_ref[...],
                       preferred_element_type=jnp.float32) + bse_ref[...]   # (1, 2Hq)
        ss = lax.dot_general(proj[:, 0:Hq], cout, (((1,), (1,)), ((), ())),
                             preferred_element_type=jnp.float32)            # (1, Lc)
        se = lax.dot_general(proj[:, Hq:2 * Hq], cout, (((1,), (1,)), ((), ())),
                             preferred_element_type=jnp.float32)            # (1, Lc)
        neg_inf = jnp.float32(-jnp.inf)
        cm = cmask_ref[0]                         # (1, Lc)
        out_ref[0, 0:1, :] = jnp.where(cm == 1.0, neg_inf, ss)
        out_ref[0, 1:2, :] = jnp.where(cm == 1.0, neg_inf, se)

    scores = pl.pallas_call(
        kernel,
        out_shape=jax.ShapeDtypeStruct((B, 2, Lc), jnp.float32),
        grid=(B,),
        in_specs=[
            pl.BlockSpec((1, Lq, Hq), lambda bb: (bb, 0, 0)),
            pl.BlockSpec((1, Lc, Hq), lambda bb: (bb, 0, 0)),
            pl.BlockSpec((1, Hq), lambda bb: (0, 0)),
            pl.BlockSpec((1, 1), lambda bb: (0, 0)),
            pl.BlockSpec((Hq, 2 * Hq), lambda bb: (0, 0)),
            pl.BlockSpec((1, 2 * Hq), lambda bb: (0, 0)),
            pl.BlockSpec((1, 1, Lq), lambda bb: (bb, 0, 0)),
            pl.BlockSpec((1, 1, Lc), lambda bb: (bb, 0, 0)),
        ],
        out_specs=pl.BlockSpec((1, 2, Lc), lambda bb: (bb, 0, 0)),
        compiler_params=pltpu.CompilerParams(dimension_semantics=("parallel",)),
    )(qtn_out, ctx_out, wlin, blin, w_se, b_se, qmask, cmask)
    return scores[:, 0, :], scores[:, 1, :]


# -----------------------------------------------------------------------------
# Full QuAModel forward
# -----------------------------------------------------------------------------
def qua_forward(params, context_ids, question_ids, context_mask, question_mask):
    emb = params["emb"]
    ctx_embed = emb[context_ids]                 # (B, Lc, E) -- gather kept in JAX glue
    ques_embed = emb[question_ids]               # (B, Lq, E)
    # dropout(p=0) == identity

    # align attention, already concatenated with ctx_embed -> (B, Lc, 2E)
    ctx_in = align_attention(ctx_embed, ques_embed, question_mask,
                             params["align_w"], params["align_b"])

    ctx_out = stacked_bilstm(ctx_in, params["ctx_rnn"][0], params["ctx_rnn"][1])   # (B, Lc, 4H)
    qtn_out = stacked_bilstm(ques_embed, params["q_rnn"][0], params["q_rnn"][1])   # (B, Lq, 4H)

    return output_attention(qtn_out, ctx_out, question_mask, context_mask,
                            params["wlin"], params["blin"],
                            params["w_se"], params["b_se"])


# -----------------------------------------------------------------------------
# Deterministic synthetic parameters (stand-in for GloVe / LSTM checkpoints)
# -----------------------------------------------------------------------------
def init_bilstm_layer(key, din, h, scale=0.1):
    # per-direction weights in PyTorch i|f|g|o order, pre-transposed so
    # gates = x @ W_ih + h @ W_hh + b ;  b stands for (b_ih + b_hh) pre-summed.
    ks = jax.random.split(key, 6)
    return pack_bilstm_layer(
        jax.random.normal(ks[0], (din, 4 * h), jnp.float32) * scale,
        jax.random.normal(ks[1], (h, 4 * h), jnp.float32) * scale,
        jax.random.normal(ks[2], (1, 4 * h), jnp.float32) * scale,
        jax.random.normal(ks[3], (din, 4 * h), jnp.float32) * scale,
        jax.random.normal(ks[4], (h, 4 * h), jnp.float32) * scale,
        jax.random.normal(ks[5], (1, 4 * h), jnp.float32) * scale,
    )


if __name__ == "__main__":
    # Small deterministic shapes consistent with the module
    B, Lc, Lq = 2, 16, 8
    E, H, NUM_LAYERS, NUM_DIRECTIONS = 32, 32, 2, 2
    DROPOUT = 0.0                     # dropout == identity -> exact deterministic semantics
    VOCAB = 100
    Hq = H * NUM_LAYERS * NUM_DIRECTIONS   # 128

    key = jax.random.PRNGKey(0)
    ks = jax.random.split(key, 20)

    # BilinearAttentionLayer weights in torch layout, packed for the fused kernel
    Ws = jax.random.normal(ks[8], (Hq, Hq), jnp.float32) * 0.05
    bs = jax.random.normal(ks[9], (Hq,), jnp.float32) * 0.05
    We = jax.random.normal(ks[10], (Hq, Hq), jnp.float32) * 0.05
    be = jax.random.normal(ks[11], (Hq,), jnp.float32) * 0.05

    params = dict(
        emb=jax.random.normal(ks[0], (VOCAB, E), jnp.float32) * 0.1,   # synthetic GloVe matrix
        # AlignQuestionEmbedding linear (torch weight (E,E) -> pass transposed)
        align_w=(jax.random.normal(ks[1], (E, E), jnp.float32) * 0.1).T,
        align_b=(jax.random.normal(ks[2], (E,), jnp.float32) * 0.1).reshape(1, E),
        ctx_rnn=[init_bilstm_layer(ks[3], 2 * E, H),
                 init_bilstm_layer(ks[4], 2 * H, H)],
        q_rnn=[init_bilstm_layer(ks[5], E, H),
               init_bilstm_layer(ks[6], 2 * H, H)],
        # LinearAttentionLayer: Linear(Hq, 1) torch weight layout (1, Hq)
        wlin=jax.random.normal(ks[7], (1, Hq), jnp.float32) * 0.1,
        blin=jnp.full((1, 1), 0.01, jnp.float32),
        # fused start/end bilinear weights
        w_se=jnp.concatenate([Ws.T, We.T], axis=1),              # (Hq, 2Hq)
        b_se=jnp.concatenate([bs, be]).reshape(1, 2 * Hq),
    )

    context_ids = jax.random.randint(ks[12], (B, Lc), 0, VOCAB)
    question_ids = jax.random.randint(ks[13], (B, Lq), 0, VOCAB)
    # masks: 1 == padding (masked_fill(-inf)), last two positions padded
    context_mask = jnp.zeros((B, Lc), jnp.int32).at[:, Lc - 2:].set(1)
    question_mask = jnp.zeros((B, Lq), jnp.int32).at[:, Lq - 2:].set(1)

    fwd = jax.jit(qua_forward)
    start_scores, end_scores = fwd(params, context_ids, question_ids,
                                   context_mask, question_mask)
    jax.block_until_ready((start_scores, end_scores))

    assert start_scores.shape == (B, Lc) and end_scores.shape == (B, Lc)
    # unmasked positions finite; masked positions are -inf (matching masked_fill)
    assert bool(jnp.all(jnp.isfinite(start_scores[:, :Lc - 2])))
    assert bool(jnp.all(jnp.isfinite(end_scores[:, :Lc - 2])))
    assert bool(jnp.all(jnp.isneginf(start_scores[:, Lc - 2:])))
    assert bool(jnp.all(jnp.isneginf(end_scores[:, Lc - 2:])))
    print("KERNEL_OK")
</pallas_src>

<mosaic_0001>
module attributes {stable_mosaic.version = 11 : i64} {
  func.func @kernel(%arg0: i32, %arg1: memref<1x24x32xf32, #tpu.memory_space<vmem>>, %arg2: memref<32x32xf32, #tpu.memory_space<vmem>>, %arg3: memref<1x32xf32, #tpu.memory_space<vmem>>, %arg4: memref<1x1x8xf32, #tpu.memory_space<vmem>>, %arg5: memref<1x16x64xf32, #tpu.memory_space<vmem>>) attributes {dimension_semantics = [#tpu.dimension_semantics<parallel>], iteration_bounds = array<i64: 2>, scalar_prefetch = 0 : i64, scratch_operands = 0 : i64, tpu.core_type = #tpu.core_type<tc>, window_params = [{transform_indices = @transform_0, window_bounds = array<i64: 1, 24, 32>}, {pipeline_mode = #tpu.pipeline_mode<synchronous>, transform_indices = @transform_1, window_bounds = array<i64: 32, 32>}, {pipeline_mode = #tpu.pipeline_mode<synchronous>, transform_indices = @transform_2, window_bounds = array<i64: 1, 32>}, {transform_indices = @transform_3, window_bounds = array<i64: 1, 1, 8>}, {transform_indices = @transform_4, window_bounds = array<i64: 1, 16, 64>}]} {
    %c0 = arith.constant 0 : index
    %c0_0 = arith.constant 0 : index
    %c0_1 = arith.constant 0 : index
    %0 = vector.load %arg1[%c0, %c0_0, %c0_1] : memref<1x24x32xf32, #tpu.memory_space<vmem>>, vector<1x24x32xf32>
    %1 = vector.shape_cast %0 : vector<1x24x32xf32> to vector<24x32xf32>
    %c0_2 = arith.constant 0 : index
    %c0_3 = arith.constant 0 : index
    %2 = vector.load %arg2[%c0_2, %c0_3] : memref<32x32xf32, #tpu.memory_space<vmem>>, vector<32x32xf32>
    %cst = arith.constant dense<0.000000e+00> : vector<24x32xf32>
    %3 = tpu.matmul %1, %2, %cst {dimension_numbers = #tpu.dot_dimension_numbers<[1], [0], [0], [1], [0, 0, 1, 1], [], []>} : vector<24x32xf32>, vector<32x32xf32>, vector<24x32xf32> -> vector<24x32xf32>
    %c0_4 = arith.constant 0 : index
    %c0_5 = arith.constant 0 : index
    %4 = vector.load %arg3[%c0_4, %c0_5] : memref<1x32xf32, #tpu.memory_space<vmem>>, vector<1x32xf32>
    %5 = vector.broadcast %4 : vector<1x32xf32> to vector<24x32xf32>
    %6 = arith.addf %3, %5 : vector<24x32xf32>
    %cst_6 = arith.constant 0.000000e+00 : f32
    %7 = vector.broadcast %cst_6 : f32 to vector<24x32xf32>
    %8 = arith.maximumf %6, %7 : vector<24x32xf32>
    %9 = vector.extract_strided_slice %8 {offsets = [0, 0], sizes = [16, 32], strides = [1, 1]} : vector<24x32xf32> to vector<16x32xf32>
    %10 = vector.extract_strided_slice %8 {offsets = [16, 0], sizes = [8, 32], strides = [1, 1]} : vector<24x32xf32> to vector<8x32xf32>
    %cst_7 = arith.constant dense<0.000000e+00> : vector<16x8xf32>
    %11 = tpu.matmul %9, %10, %cst_7 {dimension_numbers = #tpu.dot_dimension_numbers<[1], [1], [0], [0], [0, 0, 1, 0], [], []>} : vector<16x32xf32>, vector<8x32xf32>, vector<16x8xf32> -> vector<16x8xf32>
    %c0_8 = arith.constant 0 : index
    %c0_9 = arith.constant 0 : index
    %c0_10 = arith.constant 0 : index
    %12 = vector.load %arg4[%c0_8, %c0_9, %c0_10] : memref<1x1x8xf32, #tpu.memory_space<vmem>>, vector<1x1x8xf32>
    %13 = vector.shape_cast %12 : vector<1x1x8xf32> to vector<1x8xf32>
    %cst_11 = arith.constant 1.000000e+00 : f32
    %14 = vector.broadcast %cst_11 : f32 to vector<1x8xf32>
    %15 = arith.cmpf oeq, %13, %14 : vector<1x8xf32>
    %cst_12 = arith.constant -1.000000e+30 : f32
    %16 = vector.shape_cast %15 : vector<1x8xi1> to vector<1x8xi1>
    %17 = vector.broadcast %16 : vector<1x8xi1> to vector<16x8xi1>
    %18 = vector.broadcast %cst_12 : f32 to vector<16x8xf32>
    %19 = arith.select %17, %18, %11 : vector<16x8xi1>, vector<16x8xf32>
    %cst_13 = arith.constant dense<0xFF800000> : vector<16xf32>
    %20 = vector.multi_reduction <maximumf>, %19, %cst_13 [1] : vector<16x8xf32> to vector<16xf32>
    %21 = vector.shape_cast %20 : vector<16xf32> to vector<16x1xf32>
    %22 = vector.broadcast %21 : vector<16x1xf32> to vector<16x8xf32>
    %23 = arith.subf %19, %22 : vector<16x8xf32>
    %24 = math.exp %23 : vector<16x8xf32>
    %cst_14 = arith.constant dense<0.000000e+00> : vector<16xf32>
    %25 = vector.multi_reduction <add>, %24, %cst_14 [1] : vector<16x8xf32> to vector<16xf32>
    %26 = vector.shape_cast %25 : vector<16xf32> to vector<16x1xf32>
    %27 = tpu.reciprocal %26 {approx = true} : vector<16x1xf32> -> vector<16x1xf32>
    %28 = vector.broadcast %27 : vector<16x1xf32> to vector<16x8xf32>
    %29 = arith.mulf %24, %28 : vector<16x8xf32>
    %30 = vector.extract_strided_slice %1 {offsets = [16, 0], sizes = [8, 32], strides = [1, 1]} : vector<24x32xf32> to vector<8x32xf32>
    %cst_15 = arith.constant dense<0.000000e+00> : vector<16x32xf32>
    %31 = tpu.matmul %29, %30, %cst_15 {dimension_numbers = #tpu.dot_dimension_numbers<[1], [0], [0], [1], [0, 0, 1, 1], [], []>} : vector<16x8xf32>, vector<8x32xf32>, vector<16x32xf32> -> vector<16x32xf32>
    %32 = vector.extract_strided_slice %1 {offsets = [0, 0], sizes = [16, 32], strides = [1, 1]} : vector<24x32xf32> to vector<16x32xf32>
    %c0_16 = arith.constant 0 : index
    %c0_17 = arith.constant 0 : index
    %c0_18 = arith.constant 0 : index
    %33 = vector.load %arg5[%c0_16, %c0_17, %c0_18] : memref<1x16x64xf32, #tpu.memory_space<vmem>>, vector<1x16x32xf32>
    %34 = vector.shape_cast %33 : vector<1x16x32xf32> to vector<16x32xf32>
    %35 = vector.shape_cast %32 : vector<16x32xf32> to vector<1x16x32xf32>
    tpu.vector_store %arg5[%c0_16, %c0_17, %c0_18], %35 {strides = array<i32>} : memref<1x16x64xf32, #tpu.memory_space<vmem>>, vector<1x16x32xf32>,
    %c0_19 = arith.constant 0 : index
    %c0_20 = arith.constant 0 : index
    %c32 = arith.constant 32 : index
    %36 = vector.load %arg5[%c0_19, %c0_20, %c32] : memref<1x16x64xf32, #tpu.memory_space<vmem>>, vector<1x16x32xf32>
    %37 = vector.shape_cast %36 : vector<1x16x32xf32> to vector<16x32xf32>
    %38 = vector.shape_cast %31 : vector<16x32xf32> to vector<1x16x32xf32>
    tpu.vector_store %arg5[%c0_19, %c0_20, %c32], %38 {strides = array<i32>} : memref<1x16x64xf32, #tpu.memory_space<vmem>>, vector<1x16x32xf32>,
    return
  }
  func.func @transform_0(%arg0: i32) -> (i32, i32, i32) {
    %c0_i32 = arith.constant 0 : i32
    %c0_i32_0 = arith.constant 0 : i32
    %c0_i32_1 = arith.constant 0 : i32
    return %arg0, %c0_i32, %c0_i32_0 : i32, i32, i32
  }
  func.func @transform_1(%arg0: i32) -> (i32, i32) {
    %c0_i32 = arith.constant 0 : i32
    %c0_i32_0 = arith.constant 0 : i32
    %c0_i32_1 = arith.constant 0 : i32
    return %c0_i32, %c0_i32_0 : i32, i32
  }
  func.func @transform_2(%arg0: i32) -> (i32, i32) {
    %c0_i32 = arith.constant 0 : i32
    %c0_i32_0 = arith.constant 0 : i32
    %c0_i32_1 = arith.constant 0 : i32
    return %c0_i32, %c0_i32_0 : i32, i32
  }
  func.func @transform_3(%arg0: i32) -> (i32, i32, i32) {
    %c0_i32 = arith.constant 0 : i32
    %c0_i32_0 = arith.constant 0 : i32
    %c0_i32_1 = arith.constant 0 : i32
    return %arg0, %c0_i32, %c0_i32_0 : i32, i32, i32
  }
  func.func @transform_4(%arg0: i32) -> (i32, i32, i32) {
    %c0_i32 = arith.constant 0 : i32
    %c0_i32_0 = arith.constant 0 : i32
    %c0_i32_1 = arith.constant 0 : i32
    return %arg0, %c0_i32, %c0_i32_0 : i32, i32, i32
  }
}

module attributes {stable_mosaic.version = 11 : i64} {
  func.func @kernel(%arg0: i32, %arg1: memref<1x8x128xf32, #tpu.memory_space<vmem>>, %arg2: memref<1x16x128xf32, #tpu.memory_space<vmem>>, %arg3: memref<1x128xf32, #tpu.memory_space<vmem>>, %arg4: memref<1x1xf32, #tpu.memory_space<vmem>>, %arg5: memref<128x256xf32, #tpu.memory_space<vmem>>, %arg6: memref<1x256xf32, #tpu.memory_space<vmem>>, %arg7: memref<1x1x8xf32, #tpu.memory_space<vmem>>, %arg8: memref<1x1x16xf32, #tpu.memory_space<vmem>>, %arg9: memref<1x2x16xf32, #tpu.memory_space<vmem>>) attributes {dimension_semantics = [#tpu.dimension_semantics<parallel>], iteration_bounds = array<i64: 2>, scalar_prefetch = 0 : i64, scratch_operands = 0 : i64, tpu.core_type = #tpu.core_type<tc>, window_params = [{transform_indices = @transform_0, window_bounds = array<i64: 1, 8, 128>}, {transform_indices = @transform_1, window_bounds = array<i64: 1, 16, 128>}, {pipeline_mode = #tpu.pipeline_mode<synchronous>, transform_indices = @transform_2, window_bounds = array<i64: 1, 128>}, {pipeline_mode = #tpu.pipeline_mode<synchronous>, transform_indices = @transform_3, window_bounds = array<i64: 1, 1>}, {pipeline_mode = #tpu.pipeline_mode<synchronous>, transform_indices = @transform_4, window_bounds = array<i64: 128, 256>}, {pipeline_mode = #tpu.pipeline_mode<synchronous>, transform_indices = @transform_5, window_bounds = array<i64: 1, 256>}, {transform_indices = @transform_6, window_bounds = array<i64: 1, 1, 8>}, {transform_indices = @transform_7, window_bounds = array<i64: 1, 1, 16>}, {transform_indices = @transform_8, window_bounds = array<i64: 1, 2, 16>}]} {
    %c0 = arith.constant 0 : index
    %c0_0 = arith.constant 0 : index
    %c0_1 = arith.constant 0 : index
    %0 = vector.load %arg1[%c0, %c0_0, %c0_1] : memref<1x8x128xf32, #tpu.memory_space<vmem>>, vector<1x8x128xf32>
    %1 = vector.shape_cast %0 : vector<1x8x128xf32> to vector<8x128xf32>
    %c0_2 = arith.constant 0 : index
    %c0_3 = arith.constant 0 : index
    %c0_4 = arith.constant 0 : index
    %2 = vector.load %arg2[%c0_2, %c0_3, %c0_4] : memref<1x16x128xf32, #tpu.memory_space<vmem>>, vector<1x16x128xf32>
    %3 = vector.shape_cast %2 : vector<1x16x128xf32> to vector<16x128xf32>
    %c0_5 = arith.constant 0 : index
    %c0_6 = arith.constant 0 : index
    %4 = vector.load %arg3[%c0_5, %c0_6] : memref<1x128xf32, #tpu.memory_space<vmem>>, vector<1x128xf32>
    %cst = arith.constant dense<0.000000e+00> : vector<1x8xf32>
    %5 = tpu.matmul %4, %1, %cst {dimension_numbers = #tpu.dot_dimension_numbers<[1], [1], [0], [0], [0, 0, 1, 0], [], []>} : vector<1x128xf32>, vector<8x128xf32>, vector<1x8xf32> -> vector<1x8xf32>
    %c0_7 = arith.constant 0 : index
    %c0_8 = arith.constant 0 : index
    %6 = vector.load %arg4[%c0_7, %c0_8] : memref<1x1xf32, #tpu.memory_space<vmem>>, vector<1x1xf32>
    %7 = vector.broadcast %6 : vector<1x1xf32> to vector<1x8xf32>
    %8 = arith.addf %5, %7 : vector<1x8xf32>
    %c0_9 = arith.constant 0 : index
    %c0_10 = arith.constant 0 : index
    %c0_11 = arith.constant 0 : index
    %9 = vector.load %arg7[%c0_9, %c0_10, %c0_11] : memref<1x1x8xf32, #tpu.memory_space<vmem>>, vector<1x1x8xf32>
    %10 = vector.shape_cast %9 : vector<1x1x8xf32> to vector<1x8xf32>
    %cst_12 = arith.constant 1.000000e+00 : f32
    %11 = vector.broadcast %cst_12 : f32 to vector<1x8xf32>
    %12 = arith.cmpf oeq, %10, %11 : vector<1x8xf32>
    %cst_13 = arith.constant -1.000000e+30 : f32
    %13 = vector.broadcast %cst_13 : f32 to vector<1x8xf32>
    %14 = arith.select %12, %13, %8 : vector<1x8xi1>, vector<1x8xf32>
    %cst_14 = arith.constant dense<0xFF800000> : vector<1xf32>
    %15 = vector.multi_reduction <maximumf>, %14, %cst_14 [1] : vector<1x8xf32> to vector<1xf32>
    %16 = vector.shape_cast %15 : vector<1xf32> to vector<1x1xf32>
    %17 = vector.broadcast %16 : vector<1x1xf32> to vector<1x8xf32>
    %18 = arith.subf %14, %17 : vector<1x8xf32>
    %19 = math.exp %18 : vector<1x8xf32>
    %cst_15 = arith.constant dense<0.000000e+00> : vector<1xf32>
    %20 = vector.multi_reduction <add>, %19, %cst_15 [1] : vector<1x8xf32> to vector<1xf32>
    %21 = vector.shape_cast %20 : vector<1xf32> to vector<1x1xf32>
    %22 = tpu.reciprocal %21 {approx = true} : vector<1x1xf32> -> vector<1x1xf32>
    %23 = vector.broadcast %22 : vector<1x1xf32> to vector<1x8xf32>
    %24 = arith.mulf %19, %23 : vector<1x8xf32>
    %cst_16 = arith.constant dense<0.000000e+00> : vector<1x128xf32>
    %25 = tpu.matmul %24, %1, %cst_16 {dimension_numbers = #tpu.dot_dimension_numbers<[1], [0], [0], [1], [0, 0, 1, 1], [], []>} : vector<1x8xf32>, vector<8x128xf32>, vector<1x128xf32> -> vector<1x128xf32>
    %c0_17 = arith.constant 0 : index
    %c0_18 = arith.constant 0 : index
    %26 = vector.load %arg5[%c0_17, %c0_18] : memref<128x256xf32, #tpu.memory_space<vmem>>, vector<128x256xf32>
    %cst_19 = arith.constant dense<0.000000e+00> : vector<1x256xf32>
    %27 = tpu.matmul %25, %26, %cst_19 {dimension_numbers = #tpu.dot_dimension_numbers<[1], [0], [0], [1], [0, 0, 1, 1], [], []>} : vector<1x128xf32>, vector<128x256xf32>, vector<1x256xf32> -> vector<1x256xf32>
    %c0_20 = arith.constant 0 : index
    %c0_21 = arith.constant 0 : index
    %28 = vector.load %arg6[%c0_20, %c0_21] : memref<1x256xf32, #tpu.memory_space<vmem>>, vector<1x256xf32>
    %29 = arith.addf %27, %28 : vector<1x256xf32>
    %30 = vector.extract_strided_slice %29 {offsets = [0, 0], sizes = [1, 128], strides = [1, 1]} : vector<1x256xf32> to vector<1x128xf32>
    %cst_22 = arith.constant dense<0.000000e+00> : vector<1x16xf32>
    %31 = tpu.matmul %30, %3, %cst_22 {dimension_numbers = #tpu.dot_dimension_numbers<[1], [1], [0], [0], [0, 0, 1, 0], [], []>} : vector<1x128xf32>, vector<16x128xf32>, vector<1x16xf32> -> vector<1x16xf32>
    %32 = vector.extract_strided_slice %29 {offsets = [0, 128], sizes = [1, 128], strides = [1, 1]} : vector<1x256xf32> to vector<1x128xf32>
    %cst_23 = arith.constant dense<0.000000e+00> : vector<1x16xf32>
    %33 = tpu.matmul %32, %3, %cst_23 {dimension_numbers = #tpu.dot_dimension_numbers<[1], [1], [0], [0], [0, 0, 1, 0], [], []>} : vector<1x128xf32>, vector<16x128xf32>, vector<1x16xf32> -> vector<1x16xf32>
    %c0_24 = arith.constant 0 : index
    %c0_25 = arith.constant 0 : index
    %c0_26 = arith.constant 0 : index
    %34 = vector.load %arg8[%c0_24, %c0_25, %c0_26] : memref<1x1x16xf32, #tpu.memory_space<vmem>>, vector<1x1x16xf32>
    %35 = vector.shape_cast %34 : vector<1x1x16xf32> to vector<1x16xf32>
    %cst_27 = arith.constant 1.000000e+00 : f32
    %36 = vector.broadcast %cst_27 : f32 to vector<1x16xf32>
    %37 = arith.cmpf oeq, %35, %36 : vector<1x16xf32>
    %cst_28 = arith.constant 0xFF800000 : f32
    %38 = vector.broadcast %cst_28 : f32 to vector<1x16xf32>
    %39 = arith.select %37, %38, %31 : vector<1x16xi1>, vector<1x16xf32>
    %c0_29 = arith.constant 0 : index
    %c0_30 = arith.constant 0 : index
    %c0_31 = arith.constant 0 : index
    %40 = vector.load %arg9[%c0_29, %c0_30, %c0_31] : memref<1x2x16xf32, #tpu.memory_space<vmem>>, vector<1x1x16xf32>
    %41 = vector.shape_cast %40 : vector<1x1x16xf32> to vector<1x16xf32>
    %42 = vector.shape_cast %39 : vector<1x16xf32> to vector<1x1x16xf32>
    tpu.vector_store %arg9[%c0_29, %c0_30, %c0_31], %42 {strides = array<i32>} : memref<1x2x16xf32, #tpu.memory_space<vmem>>, vector<1x1x16xf32>,
    %cst_32 = arith.constant 1.000000e+00 : f32
    %43 = vector.broadcast %cst_32 : f32 to vector<1x16xf32>
    %44 = arith.cmpf oeq, %35, %43 : vector<1x16xf32>
    %cst_33 = arith.constant 0xFF800000 : f32
    %45 = vector.broadcast %cst_33 : f32 to vector<1x16xf32>
    %46 = arith.select %44, %45, %33 : vector<1x16xi1>, vector<1x16xf32>
    %c0_34 = arith.constant 0 : index
    %c1 = arith.constant 1 : index
    %c0_35 = arith.constant 0 : index
    %47 = vector.load %arg9[%c0_34, %c1, %c0_35] : memref<1x2x16xf32, #tpu.memory_space<vmem>>, vector<1x1x16xf32>
    %48 = vector.shape_cast %47 : vector<1x1x16xf32> to vector<1x16xf32>
    %49 = vector.shape_cast %46 : vector<1x16xf32> to vector<1x1x16xf32>
    tpu.vector_store %arg9[%c0_34, %c1, %c0_35], %49 {strides = array<i32>} : memref<1x2x16xf32, #tpu.memory_space<vmem>>, vector<1x1x16xf32>,
    return
  }
  func.func @transform_0(%arg0: i32) -> (i32, i32, i32) {
    %c0_i32 = arith.constant 0 : i32
    %c0_i32_0 = arith.constant 0 : i32
    %c0_i32_1 = arith.constant 0 : i32
    return %arg0, %c0_i32, %c0_i32_0 : i32, i32, i32
  }
  func.func @transform_1(%arg0: i32) -> (i32, i32, i32) {
    %c0_i32 = arith.constant 0 : i32
    %c0_i32_0 = arith.constant 0 : i32
    %c0_i32_1 = arith.constant 0 : i32
    return %arg0, %c0_i32, %c0_i32_0 : i32, i32, i32
  }
  func.func @transform_2(%arg0: i32) -> (i32, i32) {
    %c0_i32 = arith.constant 0 : i32
    %c0_i32_0 = arith.constant 0 : i32
    %c0_i32_1 = arith.constant 0 : i32
    return %c0_i32, %c0_i32_0 : i32, i32
  }
  func.func @transform_3(%arg0: i32) -> (i32, i32) {
    %c0_i32 = arith.constant 0 : i32
    %c0_i32_0 = arith.constant 0 : i32
    %c0_i32_1 = arith.constant 0 : i32
    return %c0_i32, %c0_i32_0 : i32, i32
  }
  func.func @transform_4(%arg0: i32) -> (i32, i32) {
    %c0_i32 = arith.constant 0 : i32
    %c0_i32_0 = arith.constant 0 : i32
    %c0_i32_1 = arith.constant 0 : i32
    return %c0_i32, %c0_i32_0 : i32, i32
  }
  func.func @transform_5(%arg0: i32) -> (i32, i32) {
    %c0_i32 = arith.constant 0 : i32
    %c0_i32_0 = arith.constant 0 : i32
    %c0_i32_1 = arith.constant 0 : i32
    return %c0_i32, %c0_i32_0 : i32, i32
  }
  func.func @transform_6(%arg0: i32) -> (i32, i32, i32) {
    %c0_i32 = arith.constant 0 : i32
    %c0_i32_0 = arith.constant 0 : i32
    %c0_i32_1 = arith.constant 0 : i32
    return %arg0, %c0_i32, %c0_i32_0 : i32, i32, i32
  }
  func.func @transform_7(%arg0: i32) -> (i32, i32, i32) {
    %c0_i32 = arith.constant 0 : i32
    %c0_i32_0 = arith.constant 0 : i32
    %c0_i32_1 = arith.constant 0 : i32
    return %arg0, %c0_i32, %c0_i32_0 : i32, i32, i32
  }
  func.func @transform_8(%arg0: i32) -> (i32, i32, i32) {
    %c0_i32 = arith.constant 0 : i32
    %c0_i32_0 = arith.constant 0 : i32
    %c0_i32_1 = arith.constant 0 : i32
    return %arg0, %c0_i32, %c0_i32_0 : i32, i32, i32
  }
}

module attributes {stable_mosaic.version = 11 : i64} {
  func.func @kernel(%arg0: i32, %arg1: memref<64x32xf32, #tpu.memory_space<vmem>>, %arg2: memref<32x256xf32, #tpu.memory_space<vmem>>, %arg3: memref<64x256xf32, #tpu.memory_space<vmem>>, %arg4: memref<1x256xf32, #tpu.memory_space<vmem>>, %arg5: memref<64x256xf32, #tpu.memory_space<vmem>>, %arg6: memref<64x256xf32, #tpu.memory_space<vmem>>, %arg7: memref<1x256xf32, #tpu.memory_space<vmem>>, %arg8: memref<64x128xf32, #tpu.memory_space<vmem>>, %arg9: memref<64x256xf32, #tpu.memory_space<vmem>>, %arg10: memref<64x64xf32, #tpu.memory_space<vmem>>) attributes {dimension_semantics = [#tpu.dimension_semantics<arbitrary>], iteration_bounds = array<i64: 1>, scalar_prefetch = 0 : i64, scratch_operands = 2 : i64, tpu.core_type = #tpu.core_type<tc>, window_params = [{pipeline_mode = #tpu.pipeline_mode<synchronous>, transform_indices = @transform_0, window_bounds = array<i64: 64, 32>}, {pipeline_mode = #tpu.pipeline_mode<synchronous>, transform_indices = @transform_1, window_bounds = array<i64: 32, 256>}, {pipeline_mode = #tpu.pipeline_mode<synchronous>, transform_indices = @transform_2, window_bounds = array<i64: 64, 256>}, {pipeline_mode = #tpu.pipeline_mode<synchronous>, transform_indices = @transform_3, window_bounds = array<i64: 1, 256>}, {pipeline_mode = #tpu.pipeline_mode<synchronous>, transform_indices = @transform_4, window_bounds = array<i64: 64, 256>}, {pipeline_mode = #tpu.pipeline_mode<synchronous>, transform_indices = @transform_5, window_bounds = array<i64: 64, 256>}, {pipeline_mode = #tpu.pipeline_mode<synchronous>, transform_indices = @transform_6, window_bounds = array<i64: 1, 256>}, {pipeline_mode = #tpu.pipeline_mode<synchronous>, transform_indices = @transform_7, window_bounds = array<i64: 64, 128>}]} {
    %0 = tpu.iota {dimensions = array<i32: 1>} : vector<8x256xi32>
    %c64_i32 = arith.constant 64 : i32
    %c0_i32 = arith.constant 0 : i32
    %1 = arith.cmpi eq, %c64_i32, %c0_i32 : i32
    %c1_i32 = arith.constant 1 : i32
    %2 = arith.select %1, %c1_i32, %c64_i32 : i32
    %3 = vector.broadcast %2 : i32 to vector<8x256xi32>
    %4 = arith.remsi %0, %3 : vector<8x256xi32>
    %c0_i32_0 = arith.constant 0 : i32
    %5 = vector.broadcast %c0_i32_0 : i32 to vector<8x256xi32>
    %6 = arith.cmpi ne, %4, %5 : vector<8x256xi32>
    %c0_i32_1 = arith.constant 0 : i32
    %7 = vector.broadcast %c0_i32_1 : i32 to vector<8x256xi32>
    %8 = arith.cmpi slt, %4, %7 : vector<8x256xi32>
    %c0_i32_2 = arith.constant 0 : i32
    %9 = arith.cmpi slt, %2, %c0_i32_2 : i32
    %10 = vector.broadcast %9 : i1 to vector<8x256xi1>
    %11 = vector.broadcast %10 : vector<8x256xi1> to vector<8x256xi1>
    %12 = arith.xori %8, %11 : vector<8x256xi1>
    %13 = arith.andi %12, %6 : vector<8x256xi1>
    %14 = vector.broadcast %2 : i32 to vector<8x256xi32>
    %15 = arith.addi %4, %14 : vector<8x256xi32>
    %16 = arith.select %13, %15, %4 : vector<8x256xi1>, vector<8x256xi32>
    %c32_i32 = arith.constant 32 : i32
    %17 = vector.broadcast %c32_i32 : i32 to vector<8x256xi32>
    %18 = arith.cmpi slt, %16, %17 : vector<8x256xi32>
    %c0 = arith.constant 0 : index
    %c0_3 = arith.constant 0 : index
    %19 = vector.load %arg1[%c0, %c0_3] : memref<64x32xf32, #tpu.memory_space<vmem>>, vector<64x32xf32>
    %c0_4 = arith.constant 0 : index
    %c0_5 = arith.constant 0 : index
    %20 = vector.load %arg2[%c0_4, %c0_5] : memref<32x256xf32, #tpu.memory_space<vmem>>, vector<32x256xf32>
    %cst = arith.constant dense<0.000000e+00> : vector<64x256xf32>
    %21 = tpu.matmul %19, %20, %cst {dimension_numbers = #tpu.dot_dimension_numbers<[1], [0], [0], [1], [0, 0, 1, 1], [], []>} : vector<64x32xf32>, vector<32x256xf32>, vector<64x256xf32> -> vector<64x256xf32>
    %c0_6 = arith.constant 0 : index
    %c0_7 = arith.constant 0 : index
    %22 = vector.load %arg4[%c0_6, %c0_7] : memref<1x256xf32, #tpu.memory_space<vmem>>, vector<1x256xf32>
    %23 = vector.broadcast %22 : vector<1x256xf32> to vector<64x256xf32>
    %24 = arith.addf %21, %23 : vector<64x256xf32>
    %c0_8 = arith.constant 0 : index
    %c0_9 = arith.constant 0 : index
    %25 = vector.load %arg9[%c0_8, %c0_9] : memref<64x256xf32, #tpu.memory_space<vmem>>, vector<64x256xf32>
    tpu.vector_store %arg9[%c0_8, %c0_9], %24 {strides = array<i32>} : memref<64x256xf32, #tpu.memory_space<vmem>>, vector<64x256xf32>,
    %c0_10 = arith.constant 0 : index
    %c0_11 = arith.constant 0 : index
    %26 = vector.load %arg3[%c0_10, %c0_11] : memref<64x256xf32, #tpu.memory_space<vmem>>, vector<64x256xf32>
    %cst_12 = arith.constant 0.000000e+00 : f32
    %27 = vector.broadcast %cst_12 : f32 to vector<8x64xf32>
    %cst_13 = arith.constant 0.000000e+00 : f32
    %28 = vector.broadcast %cst_13 : f32 to vector<8x64xf32>
    %c0_14 = arith.constant 0 : index
    %c0_15 = arith.constant 0 : index
    %29 = vector.load %arg9[%c0_14, %c0_15] : memref<64x256xf32, #tpu.memory_space<vmem>>, vector<8x256xf32>
    %c56 = arith.constant 56 : index
    %c0_16 = arith.constant 0 : index
    %30 = vector.load %arg9[%c56, %c0_16] : memref<64x256xf32, #tpu.memory_space<vmem>>, vector<8x256xf32>
    %31 = arith.select %18, %29, %30 : vector<8x256xi1>, vector<8x256xf32>
    %cst_17 = arith.constant dense<0.000000e+00> : vector<8x256xf32>
    %32 = tpu.matmul %27, %26, %cst_17 {dimension_numbers = #tpu.dot_dimension_numbers<[1], [0], [0], [1], [0, 0, 1, 1], [], []>} : vector<8x64xf32>, vector<64x256xf32>, vector<8x256xf32> -> vector<8x256xf32>
    %33 = arith.addf %31, %32 : vector<8x256xf32>
    %34 = vector.extract_strided_slice %33 {offsets = [0, 0], sizes = [8, 64], strides = [1, 1]} : vector<8x256xf32> to vector<8x64xf32>
    %35 = arith.negf %34 : vector<8x64xf32>
    %36 = math.exp %35 : vector<8x64xf32>
    %cst_18 = arith.constant 1.000000e+00 : f32
    %37 = vector.broadcast %cst_18 : f32 to vector<8x64xf32>
    %38 = arith.addf %37, %36 : vector<8x64xf32>
    %39 = arith.divf %37, %38 : vector<8x64xf32>
    %40 = vector.extract_strided_slice %33 {offsets = [0, 64], sizes = [8, 64], strides = [1, 1]} : vector<8x256xf32> to vector<8x64xf32>
    %41 = arith.negf %40 : vector<8x64xf32>
    %42 = math.exp %41 : vector<8x64xf32>
    %cst_19 = arith.constant 1.000000e+00 : f32
    %43 = vector.broadcast %cst_19 : f32 to vector<8x64xf32>
    %44 = arith.addf %43, %42 : vector<8x64xf32>
    %45 = arith.divf %43, %44 : vector<8x64xf32>
    %46 = vector.extract_strided_slice %33 {offsets = [0, 128], sizes = [8, 64], strides = [1, 1]} : vector<8x256xf32> to vector<8x64xf32>
    %47 = math.tanh %46 : vector<8x64xf32>
    %48 = vector.extract_strided_slice %33 {offsets = [0, 192], sizes = [8, 64], strides = [1, 1]} : vector<8x256xf32> to vector<8x64xf32>
    %49 = arith.negf %48 : vector<8x64xf32>
    %50 = math.exp %49 : vector<8x64xf32>
    %cst_20 = arith.constant 1.000000e+00 : f32
    %51 = vector.broadcast %cst_20 : f32 to vector<8x64xf32>
    %52 = arith.addf %51, %50 : vector<8x64xf32>
    %53 = arith.divf %51, %52 : vector<8x64xf32>
    %54 = arith.mulf %45, %28 : vector<8x64xf32>
    %55 = arith.mulf %39, %47 : vector<8x64xf32>
    %56 = arith.addf %54, %55 : vector<8x64xf32>
    %57 = math.tanh %56 : vector<8x64xf32>
    %58 = arith.mulf %53, %57 : vector<8x64xf32>
    %59 = vector.extract_strided_slice %58 {offsets = [0, 0], sizes = [8, 32], strides = [1, 1]} : vector<8x64xf32> to vector<8x32xf32>
    %c0_21 = arith.constant 0 : index
    %c0_22 = arith.constant 0 : index
    %60 = vector.load %arg10[%c0_21, %c0_22] : memref<64x64xf32, #tpu.memory_space<vmem>>, vector<8x32xf32>
    tpu.vector_store %arg10[%c0_21, %c0_22], %59 {strides = array<i32>} : memref<64x64xf32, #tpu.memory_space<vmem>>, vector<8x32xf32>,
    %61 = vector.extract_strided_slice %58 {offsets = [0, 32], sizes = [8, 32], strides = [1, 1]} : vector<8x64xf32> to vector<8x32xf32>
    %c56_23 = arith.constant 56 : index
    %c32 = arith.constant 32 : index
    %62 = vector.load %arg10[%c56_23, %c32] : memref<64x64xf32, #tpu.memory_space<vmem>>, vector<8x32xf32>
    tpu.vector_store %arg10[%c56_23, %c32], %61 {strides = array<i32>} : memref<64x64xf32, #tpu.memory_space<vmem>>, vector<8x32xf32>,
    %c8 = arith.constant 8 : index
    %c0_24 = arith.constant 0 : index
    %63 = vector.load %arg9[%c8, %c0_24] : memref<64x256xf32, #tpu.memory_space<vmem>>, vector<8x256xf32>
    %c48 = arith.constant 48 : index
    %c0_25 = arith.constant 0 : index
    %64 = vector.load %arg9[%c48, %c0_25] : memref<64x256xf32, #tpu.memory_space<vmem>>, vector<8x256xf32>
    %65 = arith.select %18, %63, %64 : vector<8x256xi1>, vector<8x256xf32>
    %cst_26 = arith.constant dense<0.000000e+00> : vector<8x256xf32>
    %66 = tpu.matmul %58, %26, %cst_26 {dimension_numbers = #tpu.dot_dimension_numbers<[1], [0], [0], [1], [0, 0, 1, 1], [], []>} : vector<8x64xf32>, vector<64x256xf32>, vector<8x256xf32> -> vector<8x256xf32>
    %67 = arith.addf %65, %66 : vector<8x256xf32>
    %68 = vector.extract_strided_slice %67 {offsets = [0, 0], sizes = [8, 64], strides = [1, 1]} : vector<8x256xf32> to vector<8x64xf32>
    %69 = arith.negf %68 : vector<8x64xf32>
    %70 = math.exp %69 : vector<8x64xf32>
    %cst_27 = arith.constant 1.000000e+00 : f32
    %71 = vector.broadcast %cst_27 : f32 to vector<8x64xf32>
    %72 = arith.addf %71, %70 : vector<8x64xf32>
    %73 = arith.divf %71, %72 : vector<8x64xf32>
    %74 = vector.extract_strided_slice %67 {offsets = [0, 64], sizes = [8, 64], strides = [1, 1]} : vector<8x256xf32> to vector<8x64xf32>
    %75 = arith.negf %74 : vector<8x64xf32>
    %76 = math.exp %75 : vector<8x64xf32>
    %cst_28 = arith.constant 1.000000e+00 : f32
    %77 = vector.broadcast %cst_28 : f32 to vector<8x64xf32>
    %78 = arith.addf %77, %76 : vector<8x64xf32>
    %79 = arith.divf %77, %78 : vector<8x64xf32>
    %80 = vector.extract_strided_slice %67 {offsets = [0, 128], sizes = [8, 64], strides = [1, 1]} : vector<8x256xf32> to vector<8x64xf32>
    %81 = math.tanh %80 : vector<8x64xf32>
    %82 = vector.extract_strided_slice %67 {offsets = [0, 192], sizes = [8, 64], strides = [1, 1]} : vector<8x256xf32> to vector<8x64xf32>
    %83 = arith.negf %82 : vector<8x64xf32>
    %84 = math.exp %83 : vector<8x64xf32>
    %cst_29 = arith.constant 1.000000e+00 : f32
    %85 = vector.broadcast %cst_29 : f32 to vector<8x64xf32>
    %86 = arith.addf %85, %84 : vector<8x64xf32>
    %87 = arith.divf %85, %86 : vector<8x64xf32>
    %88 = arith.mulf %79, %56 : vector<8x64xf32>
    %89 = arith.mulf %73, %81 : vector<8x64xf32>
    %90 = arith.addf %88, %89 : vector<8x64xf32>
    %91 = math.tanh %90 : vector<8x64xf32>
    %92 = arith.mulf %87, %91 : vector<8x64xf32>
    %93 = vector.extract_strided_slice %92 {offsets = [0, 0], sizes = [8, 32], strides = [1, 1]} : vector<8x64xf32> to vector<8x32xf32>
    %c8_30 = arith.constant 8 : index
    %c0_31 = arith.constant 0 : index
    %94 = vector.load %arg10[%c8_30, %c0_31] : memref<64x64xf32, #tpu.memory_space<vmem>>, vector<8x32xf32>
    tpu.vector_store %arg10[%c8_30, %c0_31], %93 {strides = array<i32>} : memref<64x64xf32, #tpu.memory_space<vmem>>, vector<8x32xf32>,
    %95 = vector.extract_strided_slice %92 {offsets = [0, 32], sizes = [8, 32], strides = [1, 1]} : vector<8x64xf32> to vector<8x32xf32>
    %c48_32 = arith.constant 48 : index
    %c32_33 = arith.constant 32 : index
    %96 = vector.load %arg10[%c48_32, %c32_33] : memref<64x64xf32, #tpu.memory_space<vmem>>, vector<8x32xf32>
    tpu.vector_store %arg10[%c48_32, %c32_33], %95 {strides = array<i32>} : memref<64x64xf32, #tpu.memory_space<vmem>>, vector<8x32xf32>,
    %c16 = arith.constant 16 : index
    %c0_34 = arith.constant 0 : index
    %97 = vector.load %arg9[%c16, %c0_34] : memref<64x256xf32, #tpu.memory_space<vmem>>, vector<8x256xf32>
    %c40 = arith.constant 40 : index
    %c0_35 = arith.constant 0 : index
    %98 = vector.load %arg9[%c40, %c0_35] : memref<64x256xf32, #tpu.memory_space<vmem>>, vector<8x256xf32>
    %99 = arith.select %18, %97, %98 : vector<8x256xi1>, vector<8x256xf32>
    %cst_36 = arith.constant dense<0.000000e+00> : vector<8x256xf32>
    %100 = tpu.matmul %92, %26, %cst_36 {dimension_numbers = #tpu.dot_dimension_numbers<[1], [0], [0], [1], [0, 0, 1, 1], [], []>} : vector<8x64xf32>, vector<64x256xf32>, vector<8x256xf32> -> vector<8x256xf32>
    %101 = arith.addf %99, %100 : vector<8x256xf32>
    %102 = vector.extract_strided_slice %101 {offsets = [0, 0], sizes = [8, 64], strides = [1, 1]} : vector<8x256xf32> to vector<8x64xf32>
    %103 = arith.negf %102 : vector<8x64xf32>
    %104 = math.exp %103 : vector<8x64xf32>
    %cst_37 = arith.constant 1.000000e+00 : f32
    %105 = vector.broadcast %cst_37 : f32 to vector<8x64xf32>
    %106 = arith.addf %105, %104 : vector<8x64xf32>
    %107 = arith.divf %105, %106 : vector<8x64xf32>
    %108 = vector.extract_strided_slice %101 {offsets = [0, 64], sizes = [8, 64], strides = [1, 1]} : vector<8x256xf32> to vector<8x64xf32>
    %109 = arith.negf %108 : vector<8x64xf32>
    %110 = math.exp %109 : vector<8x64xf32>
    %cst_38 = arith.constant 1.000000e+00 : f32
    %111 = vector.broadcast %cst_38 : f32 to vector<8x64xf32>
    %112 = arith.addf %111, %110 : vector<8x64xf32>
    %113 = arith.divf %111, %112 : vector<8x64xf32>
    %114 = vector.extract_strided_slice %101 {offsets = [0, 128], sizes = [8, 64], strides = [1, 1]} : vector<8x256xf32> to vector<8x64xf32>
    %115 = math.tanh %114 : vector<8x64xf32>
    %116 = vector.extract_strided_slice %101 {offsets = [0, 192], sizes = [8, 64], strides = [1, 1]} : vector<8x256xf32> to vector<8x64xf32>
    %117 = arith.negf %116 : vector<8x64xf32>
    %118 = math.exp %117 : vector<8x64xf32>
    %cst_39 = arith.constant 1.000000e+00 : f32
    %119 = vector.broadcast %cst_39 : f32 to vector<8x64xf32>
    %120 = arith.addf %119, %118 : vector<8x64xf32>
    %121 = arith.divf %119, %120 : vector<8x64xf32>
    %122 = arith.mulf %113, %90 : vector<8x64xf32>
    %123 = arith.mulf %107, %115 : vector<8x64xf32>
    %124 = arith.addf %122, %123 : vector<8x64xf32>
    %125 = math.tanh %124 : vector<8x64xf32>
    %126 = arith.mulf %121, %125 : vector<8x64xf32>
    %127 = vector.extract_strided_slice %126 {offsets = [0, 0], sizes = [8, 32], strides = [1, 1]} : vector<8x64xf32> to vector<8x32xf32>
    %c16_40 = arith.constant 16 : index
    %c0_41 = arith.constant 0 : index
    %128 = vector.load %arg10[%c16_40, %c0_41] : memref<64x64xf32, #tpu.memory_space<vmem>>, vector<8x32xf32>
    tpu.vector_store %arg10[%c16_40, %c0_41], %127 {strides = array<i32>} : memref<64x64xf32, #tpu.memory_space<vmem>>, vector<8x32xf32>,
    %129 = vector.extract_strided_slice %126 {offsets = [0, 32], sizes = [8, 32], strides = [1, 1]} : vector<8x64xf32> to vector<8x32xf32>
    %c40_42 = arith.constant 40 : index
    %c32_43 = arith.constant 32 : index
    %130 = vector.load %arg10[%c40_42, %c32_43] : memref<64x64xf32, #tpu.memory_space<vmem>>, vector<8x32xf32>
    tpu.vector_store %arg10[%c40_42, %c32_43], %129 {strides = array<i32>} : memref<64x64xf32, #tpu.memory_space<vmem>>, vector<8x32xf32>,
    %c24 = arith.constant 24 : index
    %c0_44 = arith.constant 0 : index
    %131 = vector.load %arg9[%c24, %c0_44] : memref<64x256xf32, #tpu.memory_space<vmem>>, vector<8x256xf32>
    %c32_45 = arith.constant 32 : index
    %c0_46 = arith.constant 0 : index
    %132 = vector.load %arg9[%c32_45, %c0_46] : memref<64x256xf32, #tpu.memory_space<vmem>>, vector<8x256xf32>
    %133 = arith.select %18, %131, %132 : vector<8x256xi1>, vector<8x256xf32>
    %cst_47 = arith.constant dense<0.000000e+00> : vector<8x256xf32>
    %134 = tpu.matmul %126, %26, %cst_47 {dimension_numbers = #tpu.dot_dimension_numbers<[1], [0], [0], [1], [0, 0, 1, 1], [], []>} : vector<8x64xf32>, vector<64x256xf32>, vector<8x256xf32> -> vector<8x256xf32>
    %135 = arith.addf %133, %134 : vector<8x256xf32>
    %136 = vector.extract_strided_slice %135 {offsets = [0, 0], sizes = [8, 64], strides = [1, 1]} : vector<8x256xf32> to vector<8x64xf32>
    %137 = arith.negf %136 : vector<8x64xf32>
    %138 = math.exp %137 : vector<8x64xf32>
    %cst_48 = arith.constant 1.000000e+00 : f32
    %139 = vector.broadcast %cst_48 : f32 to vector<8x64xf32>
    %140 = arith.addf %139, %138 : vector<8x64xf32>
    %141 = arith.divf %139, %140 : vector<8x64xf32>
    %142 = vector.extract_strided_slice %135 {offsets = [0, 64], sizes = [8, 64], strides = [1, 1]} : vector<8x256xf32> to vector<8x64xf32>
    %143 = arith.negf %142 : vector<8x64xf32>
    %144 = math.exp %143 : vector<8x64xf32>
    %cst_49 = arith.constant 1.000000e+00 : f32
    %145 = vector.broadcast %cst_49 : f32 to vector<8x64xf32>
    %146 = arith.addf %145, %144 : vector<8x64xf32>
    %147 = arith.divf %145, %146 : vector<8x64xf32>
    %148 = vector.extract_strided_slice %135 {offsets = [0, 128], sizes = [8, 64], strides = [1, 1]} : vector<8x256xf32> to vector<8x64xf32>
    %149 = math.tanh %148 : vector<8x64xf32>
    %150 = vector.extract_strided_slice %135 {offsets = [0, 192], sizes = [8, 64], strides = [1, 1]} : vector<8x256xf32> to vector<8x64xf32>
    %151 = arith.negf %150 : vector<8x64xf32>
    %152 = math.exp %151 : vector<8x64xf32>
    %cst_50 = arith.constant 1.000000e+00 : f32
    %153 = vector.broadcast %cst_50 : f32 to vector<8x64xf32>
    %154 = arith.addf %153, %152 : vector<8x64xf32>
    %155 = arith.divf %153, %154 : vector<8x64xf32>
    %156 = arith.mulf %147, %124 : vector<8x64xf32>
    %157 = arith.mulf %141, %149 : vector<8x64xf32>
    %158 = arith.addf %156, %157 : vector<8x64xf32>
    %159 = math.tanh %158 : vector<8x64xf32>
    %160 = arith.mulf %155, %159 : vector<8x64xf32>
    %161 = vector.extract_strided_slice %160 {offsets = [0, 0], sizes = [8, 32], strides = [1, 1]} : vector<8x64xf32> to vector<8x32xf32>
    %c24_51 = arith.constant 24 : index
    %c0_52 = arith.constant 0 : index
    %162 = vector.load %arg10[%c24_51, %c0_52] : memref<64x64xf32, #tpu.memory_space<vmem>>, vector<8x32xf32>
    tpu.vector_store %arg10[%c24_51, %c0_52], %161 {strides = array<i32>} : memref<64x64xf32, #tpu.memory_space<vmem>>, vector<8x32xf32>,
    %163 = vector.extract_strided_slice %160 {offsets = [0, 32], sizes = [8, 32], strides = [1, 1]} : vector<8x64xf32> to vector<8x32xf32>
    %c32_53 = arith.constant 32 : index
    %c32_54 = arith.constant 32 : index
    %164 = vector.load %arg10[%c32_53, %c32_54] : memref<64x64xf32, #tpu.memory_space<vmem>>, vector<8x32xf32>
    tpu.vector_store %arg10[%c32_53, %c32_54], %163 {strides = array<i32>} : memref<64x64xf32, #tpu.memory_space<vmem>>, vector<8x32xf32>,
    %c32_55 = arith.constant 32 : index
    %c0_56 = arith.constant 0 : index
    %165 = vector.load %arg9[%c32_55, %c0_56] : memref<64x256xf32, #tpu.memory_space<vmem>>, vector<8x256xf32>
    %c24_57 = arith.constant 24 : index
    %c0_58 = arith.constant 0 : index
    %166 = vector.load %arg9[%c24_57, %c0_58] : memref<64x256xf32, #tpu.memory_space<vmem>>, vector<8x256xf32>
    %167 = arith.select %18, %165, %166 : vector<8x256xi1>, vector<8x256xf32>
    %cst_59 = arith.constant dense<0.000000e+00> : vector<8x256xf32>
    %168 = tpu.matmul %160, %26, %cst_59 {dimension_numbers = #tpu.dot_dimension_numbers<[1], [0], [0], [1], [0, 0, 1, 1], [], []>} : vector<8x64xf32>, vector<64x256xf32>, vector<8x256xf32> -> vector<8x256xf32>
    %169 = arith.addf %167, %168 : vector<8x256xf32>
    %170 = vector.extract_strided_slice %169 {offsets = [0, 0], sizes = [8, 64], strides = [1, 1]} : vector<8x256xf32> to vector<8x64xf32>
    %171 = arith.negf %170 : vector<8x64xf32>
    %172 = math.exp %171 : vector<8x64xf32>
    %cst_60 = arith.constant 1.000000e+00 : f32
    %173 = vector.broadcast %cst_60 : f32 to vector<8x64xf32>
    %174 = arith.addf %173, %172 : vector<8x64xf32>
    %175 = arith.divf %173, %174 : vector<8x64xf32>
    %176 = vector.extract_strided_slice %169 {offsets = [0, 64], sizes = [8, 64], strides = [1, 1]} : vector<8x256xf32> to vector<8x64xf32>
    %177 = arith.negf %176 : vector<8x64xf32>
    %178 = math.exp %177 : vector<8x64xf32>
    %cst_61 = arith.constant 1.000000e+00 : f32
    %179 = vector.broadcast %cst_61 : f32 to vector<8x64xf32>
    %180 = arith.addf %179, %178 : vector<8x64xf32>
    %181 = arith.divf %179, %180 : vector<8x64xf32>
    %182 = vector.extract_strided_slice %169 {offsets = [0, 128], sizes = [8, 64], strides = [1, 1]} : vector<8x256xf32> to vector<8x64xf32>
    %183 = math.tanh %182 : vector<8x64xf32>
    %184 = vector.extract_strided_slice %169 {offsets = [0, 192], sizes = [8, 64], strides = [1, 1]} : vector<8x256xf32> to vector<8x64xf32>
    %185 = arith.negf %184 : vector<8x64xf32>
    %186 = math.exp %185 : vector<8x64xf32>
    %cst_62 = arith.constant 1.000000e+00 : f32
    %187 = vector.broadcast %cst_62 : f32 to vector<8x64xf32>
    %188 = arith.addf %187, %186 : vector<8x64xf32>
    %189 = arith.divf %187, %188 : vector<8x64xf32>
    %190 = arith.mulf %181, %158 : vector<8x64xf32>
    %191 = arith.mulf %175, %183 : vector<8x64xf32>
    %192 = arith.addf %190, %191 : vector<8x64xf32>
    %193 = math.tanh %192 : vector<8x64xf32>
    %194 = arith.mulf %189, %193 : vector<8x64xf32>
    %195 = vector.extract_strided_slice %194 {offsets = [0, 0], sizes = [8, 32], strides = [1, 1]} : vector<8x64xf32> to vector<8x32xf32>
    %c32_63 = arith.constant 32 : index
    %c0_64 = arith.constant 0 : index
    %196 = vector.load %arg10[%c32_63, %c0_64] : memref<64x64xf32, #tpu.memory_space<vmem>>, vector<8x32xf32>
    tpu.vector_store %arg10[%c32_63, %c0_64], %195 {strides = array<i32>} : memref<64x64xf32, #tpu.memory_space<vmem>>, vector<8x32xf32>,
    %197 = vector.extract_strided_slice %194 {offsets = [0, 32], sizes = [8, 32], strides = [1, 1]} : vector<8x64xf32> to vector<8x32xf32>
    %c24_65 = arith.constant 24 : index
    %c32_66 = arith.constant 32 : index
    %198 = vector.load %arg10[%c24_65, %c32_66] : memref<64x64xf32, #tpu.memory_space<vmem>>, vector<8x32xf32>
    tpu.vector_store %arg10[%c24_65, %c32_66], %197 {strides = array<i32>} : memref<64x64xf32, #tpu.memory_space<vmem>>, vector<8x32xf32>,
    %c40_67 = arith.constant 40 : index
    %c0_68 = arith.constant 0 : index
    %199 = vector.load %arg9[%c40_67, %c0_68] : memref<64x256xf32, #tpu.memory_space<vmem>>, vector<8x256xf32>
    %c16_69 = arith.constant 16 : index
    %c0_70 = arith.constant 0 : index
    %200 = vector.load %arg9[%c16_69, %c0_70] : memref<64x256xf32, #tpu.memory_space<vmem>>, vector<8x256xf32>
    %201 = arith.select %18, %199, %200 : vector<8x256xi1>, vector<8x256xf32>
    %cst_71 = arith.constant dense<0.000000e+00> : vector<8x256xf32>
    %202 = tpu.matmul %194, %26, %cst_71 {dimension_numbers = #tpu.dot_dimension_numbers<[1], [0], [0], [1], [0, 0, 1, 1], [], []>} : vector<8x64xf32>, vector<64x256xf32>, vector<8x256xf32> -> vector<8x256xf32>
    %203 = arith.addf %201, %202 : vector<8x256xf32>
    %204 = vector.extract_strided_slice %203 {offsets = [0, 0], sizes = [8, 64], strides = [1, 1]} : vector<8x256xf32> to vector<8x64xf32>
    %205 = arith.negf %204 : vector<8x64xf32>
    %206 = math.exp %205 : vector<8x64xf32>
    %cst_72 = arith.constant 1.000000e+00 : f32
    %207 = vector.broadcast %cst_72 : f32 to vector<8x64xf32>
    %208 = arith.addf %207, %206 : vector<8x64xf32>
    %209 = arith.divf %207, %208 : vector<8x64xf32>
    %210 = vector.extract_strided_slice %203 {offsets = [0, 64], sizes = [8, 64], strides = [1, 1]} : vector<8x256xf32> to vector<8x64xf32>
    %211 = arith.negf %210 : vector<8x64xf32>
    %212 = math.exp %211 : vector<8x64xf32>
    %cst_73 = arith.constant 1.000000e+00 : f32
    %213 = vector.broadcast %cst_73 : f32 to vector<8x64xf32>
    %214 = arith.addf %213, %212 : vector<8x64xf32>
    %215 = arith.divf %213, %214 : vector<8x64xf32>
    %216 = vector.extract_strided_slice %203 {offsets = [0, 128], sizes = [8, 64], strides = [1, 1]} : vector<8x256xf32> to vector<8x64xf32>
    %217 = math.tanh %216 : vector<8x64xf32>
    %218 = vector.extract_strided_slice %203 {offsets = [0, 192], sizes = [8, 64], strides = [1, 1]} : vector<8x256xf32> to vector<8x64xf32>
    %219 = arith.negf %218 : vector<8x64xf32>
    %220 = math.exp %219 : vector<8x64xf32>
    %cst_74 = arith.constant 1.000000e+00 : f32
    %221 = vector.broadcast %cst_74 : f32 to vector<8x64xf32>
    %222 = arith.addf %221, %220 : vector<8x64xf32>
    %223 = arith.divf %221, %222 : vector<8x64xf32>
    %224 = arith.mulf %215, %192 : vector<8x64xf32>
    %225 = arith.mulf %209, %217 : vector<8x64xf32>
    %226 = arith.addf %224, %225 : vector<8x64xf32>
    %227 = math.tanh %226 : vector<8x64xf32>
    %228 = arith.mulf %223, %227 : vector<8x64xf32>
    %229 = vector.extract_strided_slice %228 {offsets = [0, 0], sizes = [8, 32], strides = [1, 1]} : vector<8x64xf32> to vector<8x32xf32>
    %c40_75 = arith.constant 40 : index
    %c0_76 = arith.constant 0 : index
    %230 = vector.load %arg10[%c40_75, %c0_76] : memref<64x64xf32, #tpu.memory_space<vmem>>, vector<8x32xf32>
    tpu.vector_store %arg10[%c40_75, %c0_76], %229 {strides = array<i32>} : memref<64x64xf32, #tpu.memory_space<vmem>>, vector<8x32xf32>,
    %231 = vector.extract_strided_slice %228 {offsets = [0, 32], sizes = [8, 32], strides = [1, 1]} : vector<8x64xf32> to vector<8x32xf32>
    %c16_77 = arith.constant 16 : index
    %c32_78 = arith.constant 32 : index
    %232 = vector.load %arg10[%c16_77, %c32_78] : memref<64x64xf32, #tpu.memory_space<vmem>>, vector<8x32xf32>
    tpu.vector_store %arg10[%c16_77, %c32_78], %231 {strides = array<i32>} : memref<64x64xf32, #tpu.memory_space<vmem>>, vector<8x32xf32>,
    %c48_79 = arith.constant 48 : index
    %c0_80 = arith.constant 0 : index
    %233 = vector.load %arg9[%c48_79, %c0_80] : memref<64x256xf32, #tpu.memory_space<vmem>>, vector<8x256xf32>
    %c8_81 = arith.constant 8 : index
    %c0_82 = arith.constant 0 : index
    %234 = vector.load %arg9[%c8_81, %c0_82] : memref<64x256xf32, #tpu.memory_space<vmem>>, vector<8x256xf32>
    %235 = arith.select %18, %233, %234 : vector<8x256xi1>, vector<8x256xf32>
    %cst_83 = arith.constant dense<0.000000e+00> : vector<8x256xf32>
    %236 = tpu.matmul %228, %26, %cst_83 {dimension_numbers = #tpu.dot_dimension_numbers<[1], [0], [0], [1], [0, 0, 1, 1], [], []>} : vector<8x64xf32>, vector<64x256xf32>, vector<8x256xf32> -> vector<8x256xf32>
    %237 = arith.addf %235, %236 : vector<8x256xf32>
    %238 = vector.extract_strided_slice %237 {offsets = [0, 0], sizes = [8, 64], strides = [1, 1]} : vector<8x256xf32> to vector<8x64xf32>
    %239 = arith.negf %238 : vector<8x64xf32>
    %240 = math.exp %239 : vector<8x64xf32>
    %cst_84 = arith.constant 1.000000e+00 : f32
    %241 = vector.broadcast %cst_84 : f32 to vector<8x64xf32>
    %242 = arith.addf %241, %240 : vector<8x64xf32>
    %243 = arith.divf %241, %242 : vector<8x64xf32>
    %244 = vector.extract_strided_slice %237 {offsets = [0, 64], sizes = [8, 64], strides = [1, 1]} : vector<8x256xf32> to vector<8x64xf32>
    %245 = arith.negf %244 : vector<8x64xf32>
    %246 = math.exp %245 : vector<8x64xf32>
    %cst_85 = arith.constant 1.000000e+00 : f32
    %247 = vector.broadcast %cst_85 : f32 to vector<8x64xf32>
    %248 = arith.addf %247, %246 : vector<8x64xf32>
    %249 = arith.divf %247, %248 : vector<8x64xf32>
    %250 = vector.extract_strided_slice %237 {offsets = [0, 128], sizes = [8, 64], strides = [1, 1]} : vector<8x256xf32> to vector<8x64xf32>
    %251 = math.tanh %250 : vector<8x64xf32>
    %252 = vector.extract_strided_slice %237 {offsets = [0, 192], sizes = [8, 64], strides = [1, 1]} : vector<8x256xf32> to vector<8x64xf32>
    %253 = arith.negf %252 : vector<8x64xf32>
    %254 = math.exp %253 : vector<8x64xf32>
    %cst_86 = arith.constant 1.000000e+00 : f32
    %255 = vector.broadcast %cst_86 : f32 to vector<8x64xf32>
    %256 = arith.addf %255, %254 : vector<8x64xf32>
    %257 = arith.divf %255, %256 : vector<8x64xf32>
    %258 = arith.mulf %249, %226 : vector<8x64xf32>
    %259 = arith.mulf %243, %251 : vector<8x64xf32>
    %260 = arith.addf %258, %259 : vector<8x64xf32>
    %261 = math.tanh %260 : vector<8x64xf32>
    %262 = arith.mulf %257, %261 : vector<8x64xf32>
    %263 = vector.extract_strided_slice %262 {offsets = [0, 0], sizes = [8, 32], strides = [1, 1]} : vector<8x64xf32> to vector<8x32xf32>
    %c48_87 = arith.constant 48 : index
    %c0_88 = arith.constant 0 : index
    %264 = vector.load %arg10[%c48_87, %c0_88] : memref<64x64xf32, #tpu.memory_space<vmem>>, vector<8x32xf32>
    tpu.vector_store %arg10[%c48_87, %c0_88], %263 {strides = array<i32>} : memref<64x64xf32, #tpu.memory_space<vmem>>, vector<8x32xf32>,
    %265 = vector.extract_strided_slice %262 {offsets = [0, 32], sizes = [8, 32], strides = [1, 1]} : vector<8x64xf32> to vector<8x32xf32>
    %c8_89 = arith.constant 8 : index
    %c32_90 = arith.constant 32 : index
    %266 = vector.load %arg10[%c8_89, %c32_90] : memref<64x64xf32, #tpu.memory_space<vmem>>, vector<8x32xf32>
    tpu.vector_store %arg10[%c8_89, %c32_90], %265 {strides = array<i32>} : memref<64x64xf32, #tpu.memory_space<vmem>>, vector<8x32xf32>,
    %c56_91 = arith.constant 56 : index
    %c0_92 = arith.constant 0 : index
    %267 = vector.load %arg9[%c56_91, %c0_92] : memref<64x256xf32, #tpu.memory_space<vmem>>, vector<8x256xf32>
    %c0_93 = arith.constant 0 : index
    %c0_94 = arith.constant 0 : index
    %268 = vector.load %arg9[%c0_93, %c0_94] : memref<64x256xf32, #tpu.memory_space<vmem>>, vector<8x256xf32>
    %269 = arith.select %18, %267, %268 : vector<8x256xi1>, vector<8x256xf32>
    %cst_95 = arith.constant dense<0.000000e+00> : vector<8x256xf32>
    %270 = tpu.matmul %262, %26, %cst_95 {dimension_numbers = #tpu.dot_dimension_numbers<[1], [0], [0], [1], [0, 0, 1, 1], [], []>} : vector<8x64xf32>, vector<64x256xf32>, vector<8x256xf32> -> vector<8x256xf32>
    %271 = arith.addf %269, %270 : vector<8x256xf32>
    %272 = vector.extract_strided_slice %271 {offsets = [0, 0], sizes = [8, 64], strides = [1, 1]} : vector<8x256xf32> to vector<8x64xf32>
    %273 = arith.negf %272 : vector<8x64xf32>
    %274 = math.exp %273 : vector<8x64xf32>
    %cst_96 = arith.constant 1.000000e+00 : f32
    %275 = vector.broadcast %cst_96 : f32 to vector<8x64xf32>
    %276 = arith.addf %275, %274 : vector<8x64xf32>
    %277 = arith.divf %275, %276 : vector<8x64xf32>
    %278 = vector.extract_strided_slice %271 {offsets = [0, 64], sizes = [8, 64], strides = [1, 1]} : vector<8x256xf32> to vector<8x64xf32>
    %279 = arith.negf %278 : vector<8x64xf32>
    %280 = math.exp %279 : vector<8x64xf32>
    %cst_97 = arith.constant 1.000000e+00 : f32
    %281 = vector.broadcast %cst_97 : f32 to vector<8x64xf32>
    %282 = arith.addf %281, %280 : vector<8x64xf32>
    %283 = arith.divf %281, %282 : vector<8x64xf32>
    %284 = vector.extract_strided_slice %271 {offsets = [0, 128], sizes = [8, 64], strides = [1, 1]} : vector<8x256xf32> to vector<8x64xf32>
    %285 = math.tanh %284 : vector<8x64xf32>
    %286 = vector.extract_strided_slice %271 {offsets = [0, 192], sizes = [8, 64], strides = [1, 1]} : vector<8x256xf32> to vector<8x64xf32>
    %287 = arith.negf %286 : vector<8x64xf32>
    %288 = math.exp %287 : vector<8x64xf32>
    %cst_98 = arith.constant 1.000000e+00 : f32
    %289 = vector.broadcast %cst_98 : f32 to vector<8x64xf32>
    %290 = arith.addf %289, %288 : vector<8x64xf32>
    %291 = arith.divf %289, %290 : vector<8x64xf32>
    %292 = arith.mulf %283, %260 : vector<8x64xf32>
    %293 = arith.mulf %277, %285 : vector<8x64xf32>
    %294 = arith.addf %292, %293 : vector<8x64xf32>
    %295 = math.tanh %294 : vector<8x64xf32>
    %296 = arith.mulf %291, %295 : vector<8x64xf32>
    %297 = vector.extract_strided_slice %296 {offsets = [0, 0], sizes = [8, 32], strides = [1, 1]} : vector<8x64xf32> to vector<8x32xf32>
    %c56_99 = arith.constant 56 : index
    %c0_100 = arith.constant 0 : index
    %298 = vector.load %arg10[%c56_99, %c0_100] : memref<64x64xf32, #tpu.memory_space<vmem>>, vector<8x32xf32>
    tpu.vector_store %arg10[%c56_99, %c0_100], %297 {strides = array<i32>} : memref<64x64xf32, #tpu.memory_space<vmem>>, vector<8x32xf32>,
    %299 = vector.extract_strided_slice %296 {offsets = [0, 32], sizes = [8, 32], strides = [1, 1]} : vector<8x64xf32> to vector<8x32xf32>
    %c0_101 = arith.constant 0 : index
    %c32_102 = arith.constant 32 : index
    %300 = vector.load %arg10[%c0_101, %c32_102] : memref<64x64xf32, #tpu.memory_space<vmem>>, vector<8x32xf32>
    tpu.vector_store %arg10[%c0_101, %c32_102], %299 {strides = array<i32>} : memref<64x64xf32, #tpu.memory_space<vmem>>, vector<8x32xf32>,
    %c0_103 = arith.constant 0 : index
    %c0_104 = arith.constant 0 : index
    %301 = vector.load %arg10[%c0_103, %c0_104] : memref<64x64xf32, #tpu.memory_space<vmem>>, vector<64x64xf32>
    %c0_105 = arith.constant 0 : index
    %c0_106 = arith.constant 0 : index
    %302 = vector.load %arg5[%c0_105, %c0_106] : memref<64x256xf32, #tpu.memory_space<vmem>>, vector<64x256xf32>
    %cst_107 = arith.constant dense<0.000000e+00> : vector<64x256xf32>
    %303 = tpu.matmul %301, %302, %cst_107 {dimension_numbers = #tpu.dot_dimension_numbers<[1], [0], [0], [1], [0, 0, 1, 1], [], []>} : vector<64x64xf32>, vector<64x256xf32>, vector<64x256xf32> -> vector<64x256xf32>
    %c0_108 = arith.constant 0 : index
    %c0_109 = arith.constant 0 : index
    %304 = vector.load %arg7[%c0_108, %c0_109] : memref<1x256xf32, #tpu.memory_space<vmem>>, vector<1x256xf32>
    %305 = vector.broadcast %304 : vector<1x256xf32> to vector<64x256xf32>
    %306 = arith.addf %303, %305 : vector<64x256xf32>
    %c0_110 = arith.constant 0 : index
    %c0_111 = arith.constant 0 : index
    %307 = vector.load %arg9[%c0_110, %c0_111] : memref<64x256xf32, #tpu.memory_space<vmem>>, vector<64x256xf32>
    tpu.vector_store %arg9[%c0_110, %c0_111], %306 {strides = array<i32>} : memref<64x256xf32, #tpu.memory_space<vmem>>, vector<64x256xf32>,
    %c0_112 = arith.constant 0 : index
    %c0_113 = arith.constant 0 : index
    %308 = vector.load %arg6[%c0_112, %c0_113] : memref<64x256xf32, #tpu.memory_space<vmem>>, vector<64x256xf32>
    %cst_114 = arith.constant 0.000000e+00 : f32
    %309 = vector.broadcast %cst_114 : f32 to vector<8x64xf32>
    %cst_115 = arith.constant 0.000000e+00 : f32
    %310 = vector.broadcast %cst_115 : f32 to vector<8x64xf32>
    %c0_116 = arith.constant 0 : index
    %c0_117 = arith.constant 0 : index
    %311 = vector.load %arg9[%c0_116, %c0_117] : memref<64x256xf32, #tpu.memory_space<vmem>>, vector<8x256xf32>
    %c56_118 = arith.constant 56 : index
    %c0_119 = arith.constant 0 : index
    %312 = vector.load %arg9[%c56_118, %c0_119] : memref<64x256xf32, #tpu.memory_space<vmem>>, vector<8x256xf32>
    %313 = arith.select %18, %311, %312 : vector<8x256xi1>, vector<8x256xf32>
    %cst_120 = arith.constant dense<0.000000e+00> : vector<8x256xf32>
    %314 = tpu.matmul %309, %308, %cst_120 {dimension_numbers = #tpu.dot_dimension_numbers<[1], [0], [0], [1], [0, 0, 1, 1], [], []>} : vector<8x64xf32>, vector<64x256xf32>, vector<8x256xf32> -> vector<8x256xf32>
    %315 = arith.addf %313, %314 : vector<8x256xf32>
    %316 = vector.extract_strided_slice %315 {offsets = [0, 0], sizes = [8, 64], strides = [1, 1]} : vector<8x256xf32> to vector<8x64xf32>
    %317 = arith.negf %316 : vector<8x64xf32>
    %318 = math.exp %317 : vector<8x64xf32>
    %cst_121 = arith.constant 1.000000e+00 : f32
    %319 = vector.broadcast %cst_121 : f32 to vector<8x64xf32>
    %320 = arith.addf %319, %318 : vector<8x64xf32>
    %321 = arith.divf %319, %320 : vector<8x64xf32>
    %322 = vector.extract_strided_slice %315 {offsets = [0, 64], sizes = [8, 64], strides = [1, 1]} : vector<8x256xf32> to vector<8x64xf32>
    %323 = arith.negf %322 : vector<8x64xf32>
    %324 = math.exp %323 : vector<8x64xf32>
    %cst_122 = arith.constant 1.000000e+00 : f32
    %325 = vector.broadcast %cst_122 : f32 to vector<8x64xf32>
    %326 = arith.addf %325, %324 : vector<8x64xf32>
    %327 = arith.divf %325, %326 : vector<8x64xf32>
    %328 = vector.extract_strided_slice %315 {offsets = [0, 128], sizes = [8, 64], strides = [1, 1]} : vector<8x256xf32> to vector<8x64xf32>
    %329 = math.tanh %328 : vector<8x64xf32>
    %330 = vector.extract_strided_slice %315 {offsets = [0, 192], sizes = [8, 64], strides = [1, 1]} : vector<8x256xf32> to vector<8x64xf32>
    %331 = arith.negf %330 : vector<8x64xf32>
    %332 = math.exp %331 : vector<8x64xf32>
    %cst_123 = arith.constant 1.000000e+00 : f32
    %333 = vector.broadcast %cst_123 : f32 to vector<8x64xf32>
    %334 = arith.addf %333, %332 : vector<8x64xf32>
    %335 = arith.divf %333, %334 : vector<8x64xf32>
    %336 = arith.mulf %327, %310 : vector<8x64xf32>
    %337 = arith.mulf %321, %329 : vector<8x64xf32>
    %338 = arith.addf %336, %337 : vector<8x64xf32>
    %339 = math.tanh %338 : vector<8x64xf32>
    %340 = arith.mulf %335, %339 : vector<8x64xf32>
    %341 = vector.extract_strided_slice %340 {offsets = [0, 0], sizes = [8, 32], strides = [1, 1]} : vector<8x64xf32> to vector<8x32xf32>
    %c0_124 = arith.constant 0 : index
    %c64 = arith.constant 64 : index
    %342 = vector.load %arg8[%c0_124, %c64] : memref<64x128xf32, #tpu.memory_space<vmem>>, vector<8x32xf32>
    tpu.vector_store %arg8[%c0_124, %c64], %341 {strides = array<i32>} : memref<64x128xf32, #tpu.memory_space<vmem>>, vector<8x32xf32>,
    %343 = vector.extract_strided_slice %340 {offsets = [0, 32], sizes = [8, 32], strides = [1, 1]} : vector<8x64xf32> to vector<8x32xf32>
    %c56_125 = arith.constant 56 : index
    %c96 = arith.constant 96 : index
    %344 = vector.load %arg8[%c56_125, %c96] : memref<64x128xf32, #tpu.memory_space<vmem>>, vector<8x32xf32>
    tpu.vector_store %arg8[%c56_125, %c96], %343 {strides = array<i32>} : memref<64x128xf32, #tpu.memory_space<vmem>>, vector<8x32xf32>,
    %c8_126 = arith.constant 8 : index
    %c0_127 = arith.constant 0 : index
    %345 = vector.load %arg9[%c8_126, %c0_127] : memref<64x256xf32, #tpu.memory_space<vmem>>, vector<8x256xf32>
    %c48_128 = arith.constant 48 : index
    %c0_129 = arith.constant 0 : index
    %346 = vector.load %arg9[%c48_128, %c0_129] : memref<64x256xf32, #tpu.memory_space<vmem>>, vector<8x256xf32>
    %347 = arith.select %18, %345, %346 : vector<8x256xi1>, vector<8x256xf32>
    %cst_130 = arith.constant dense<0.000000e+00> : vector<8x256xf32>
    %348 = tpu.matmul %340, %308, %cst_130 {dimension_numbers = #tpu.dot_dimension_numbers<[1], [0], [0], [1], [0, 0, 1, 1], [], []>} : vector<8x64xf32>, vector<64x256xf32>, vector<8x256xf32> -> vector<8x256xf32>
    %349 = arith.addf %347, %348 : vector<8x256xf32>
    %350 = vector.extract_strided_slice %349 {offsets = [0, 0], sizes = [8, 64], strides = [1, 1]} : vector<8x256xf32> to vector<8x64xf32>
    %351 = arith.negf %350 : vector<8x64xf32>
    %352 = math.exp %351 : vector<8x64xf32>
    %cst_131 = arith.constant 1.000000e+00 : f32
    %353 = vector.broadcast %cst_131 : f32 to vector<8x64xf32>
    %354 = arith.addf %353, %352 : vector<8x64xf32>
    %355 = arith.divf %353, %354 : vector<8x64xf32>
    %356 = vector.extract_strided_slice %349 {offsets = [0, 64], sizes = [8, 64], strides = [1, 1]} : vector<8x256xf32> to vector<8x64xf32>
    %357 = arith.negf %356 : vector<8x64xf32>
    %358 = math.exp %357 : vector<8x64xf32>
    %cst_132 = arith.constant 1.000000e+00 : f32
    %359 = vector.broadcast %cst_132 : f32 to vector<8x64xf32>
    %360 = arith.addf %359, %358 : vector<8x64xf32>
    %361 = arith.divf %359, %360 : vector<8x64xf32>
    %362 = vector.extract_strided_slice %349 {offsets = [0, 128], sizes = [8, 64], strides = [1, 1]} : vector<8x256xf32> to vector<8x64xf32>
    %363 = math.tanh %362 : vector<8x64xf32>
    %364 = vector.extract_strided_slice %349 {offsets = [0, 192], sizes = [8, 64], strides = [1, 1]} : vector<8x256xf32> to vector<8x64xf32>
    %365 = arith.negf %364 : vector<8x64xf32>
    %366 = math.exp %365 : vector<8x64xf32>
    %cst_133 = arith.constant 1.000000e+00 : f32
    %367 = vector.broadcast %cst_133 : f32 to vector<8x64xf32>
    %368 = arith.addf %367, %366 : vector<8x64xf32>
    %369 = arith.divf %367, %368 : vector<8x64xf32>
    %370 = arith.mulf %361, %338 : vector<8x64xf32>
    %371 = arith.mulf %355, %363 : vector<8x64xf32>
    %372 = arith.addf %370, %371 : vector<8x64xf32>
    %373 = math.tanh %372 : vector<8x64xf32>
    %374 = arith.mulf %369, %373 : vector<8x64xf32>
    %375 = vector.extract_strided_slice %374 {offsets = [0, 0], sizes = [8, 32], strides = [1, 1]} : vector<8x64xf32> to vector<8x32xf32>
    %c8_134 = arith.constant 8 : index
    %c64_135 = arith.constant 64 : index
    %376 = vector.load %arg8[%c8_134, %c64_135] : memref<64x128xf32, #tpu.memory_space<vmem>>, vector<8x32xf32>
    tpu.vector_store %arg8[%c8_134, %c64_135], %375 {strides = array<i32>} : memref<64x128xf32, #tpu.memory_space<vmem>>, vector<8x32xf32>,
    %377 = vector.extract_strided_slice %374 {offsets = [0, 32], sizes = [8, 32], strides = [1, 1]} : vector<8x64xf32> to vector<8x32xf32>
    %c48_136 = arith.constant 48 : index
    %c96_137 = arith.constant 96 : index
    %378 = vector.load %arg8[%c48_136, %c96_137] : memref<64x128xf32, #tpu.memory_space<vmem>>, vector<8x32xf32>
    tpu.vector_store %arg8[%c48_136, %c96_137], %377 {strides = array<i32>} : memref<64x128xf32, #tpu.memory_space<vmem>>, vector<8x32xf32>,
    %c16_138 = arith.constant 16 : index
    %c0_139 = arith.constant 0 : index
    %379 = vector.load %arg9[%c16_138, %c0_139] : memref<64x256xf32, #tpu.memory_space<vmem>>, vector<8x256xf32>
    %c40_140 = arith.constant 40 : index
    %c0_141 = arith.constant 0 : index
    %380 = vector.load %arg9[%c40_140, %c0_141] : memref<64x256xf32, #tpu.memory_space<vmem>>, vector<8x256xf32>
    %381 = arith.select %18, %379, %380 : vector<8x256xi1>, vector<8x256xf32>
    %cst_142 = arith.constant dense<0.000000e+00> : vector<8x256xf32>
    %382 = tpu.matmul %374, %308, %cst_142 {dimension_numbers = #tpu.dot_dimension_numbers<[1], [0], [0], [1], [0, 0, 1, 1], [], []>} : vector<8x64xf32>, vector<64x256xf32>, vector<8x256xf32> -> vector<8x256xf32>
    %383 = arith.addf %381, %382 : vector<8x256xf32>
    %384 = vector.extract_strided_slice %383 {offsets = [0, 0], sizes = [8, 64], strides = [1, 1]} : vector<8x256xf32> to vector<8x64xf32>
    %385 = arith.negf %384 : vector<8x64xf32>
    %386 = math.exp %385 : vector<8x64xf32>
    %cst_143 = arith.constant 1.000000e+00 : f32
    %387 = vector.broadcast %cst_143 : f32 to vector<8x64xf32>
    %388 = arith.addf %387, %386 : vector<8x64xf32>
    %389 = arith.divf %387, %388 : vector<8x64xf32>
    %390 = vector.extract_strided_slice %383 {offsets = [0, 64], sizes = [8, 64], strides = [1, 1]} : vector<8x256xf32> to vector<8x64xf32>
    %391 = arith.negf %390 : vector<8x64xf32>
    %392 = math.exp %391 : vector<8x64xf32>
    %cst_144 = arith.constant 1.000000e+00 : f32
    %393 = vector.broadcast %cst_144 : f32 to vector<8x64xf32>
    %394 = arith.addf %393, %392 : vector<8x64xf32>
    %395 = arith.divf %393, %394 : vector<8x64xf32>
    %396 = vector.extract_strided_slice %383 {offsets = [0, 128], sizes = [8, 64], strides = [1, 1]} : vector<8x256xf32> to vector<8x64xf32>
    %397 = math.tanh %396 : vector<8x64xf32>
    %398 = vector.extract_strided_slice %383 {offsets = [0, 192], sizes = [8, 64], strides = [1, 1]} : vector<8x256xf32> to vector<8x64xf32>
    %399 = arith.negf %398 : vector<8x64xf32>
    %400 = math.exp %399 : vector<8x64xf32>
    %cst_145 = arith.constant 1.000000e+00 : f32
    %401 = vector.broadcast %cst_145 : f32 to vector<8x64xf32>
    %402 = arith.addf %401, %400 : vector<8x64xf32>
    %403 = arith.divf %401, %402 : vector<8x64xf32>
    %404 = arith.mulf %395, %372 : vector<8x64xf32>
    %405 = arith.mulf %389, %397 : vector<8x64xf32>
    %406 = arith.addf %404, %405 : vector<8x64xf32>
    %407 = math.tanh %406 : vector<8x64xf32>
    %408 = arith.mulf %403, %407 : vector<8x64xf32>
    %409 = vector.extract_strided_slice %408 {offsets = [0, 0], sizes = [8, 32], strides = [1, 1]} : vector<8x64xf32> to vector<8x32xf32>
    %c16_146 = arith.constant 16 : index
    %c64_147 = arith.constant 64 : index
    %410 = vector.load %arg8[%c16_146, %c64_147] : memref<64x128xf32, #tpu.memory_space<vmem>>, vector<8x32xf32>
    tpu.vector_store %arg8[%c16_146, %c64_147], %409 {strides = array<i32>} : memref<64x128xf32, #tpu.memory_space<vmem>>, vector<8x32xf32>,
    %411 = vector.extract_strided_slice %408 {offsets = [0, 32], sizes = [8, 32], strides = [1, 1]} : vector<8x64xf32> to vector<8x32xf32>
    %c40_148 = arith.constant 40 : index
    %c96_149 = arith.constant 96 : index
    %412 = vector.load %arg8[%c40_148, %c96_149] : memref<64x128xf32, #tpu.memory_space<vmem>>, vector<8x32xf32>
    tpu.vector_store %arg8[%c40_148, %c96_149], %411 {strides = array<i32>} : memref<64x128xf32, #tpu.memory_space<vmem>>, vector<8x32xf32>,
    %c24_150 = arith.constant 24 : index
    %c0_151 = arith.constant 0 : index
    %413 = vector.load %arg9[%c24_150, %c0_151] : memref<64x256xf32, #tpu.memory_space<vmem>>, vector<8x256xf32>
    %c32_152 = arith.constant 32 : index
    %c0_153 = arith.constant 0 : index
    %414 = vector.load %arg9[%c32_152, %c0_153] : memref<64x256xf32, #tpu.memory_space<vmem>>, vector<8x256xf32>
    %415 = arith.select %18, %413, %414 : vector<8x256xi1>, vector<8x256xf32>
    %cst_154 = arith.constant dense<0.000000e+00> : vector<8x256xf32>
    %416 = tpu.matmul %408, %308, %cst_154 {dimension_numbers = #tpu.dot_dimension_numbers<[1], [0], [0], [1], [0, 0, 1, 1], [], []>} : vector<8x64xf32>, vector<64x256xf32>, vector<8x256xf32> -> vector<8x256xf32>
    %417 = arith.addf %415, %416 : vector<8x256xf32>
    %418 = vector.extract_strided_slice %417 {offsets = [0, 0], sizes = [8, 64], strides = [1, 1]} : vector<8x256xf32> to vector<8x64xf32>
    %419 = arith.negf %418 : vector<8x64xf32>
    %420 = math.exp %419 : vector<8x64xf32>
    %cst_155 = arith.constant 1.000000e+00 : f32
    %421 = vector.broadcast %cst_155 : f32 to vector<8x64xf32>
    %422 = arith.addf %421, %420 : vector<8x64xf32>
    %423 = arith.divf %421, %422 : vector<8x64xf32>
    %424 = vector.extract_strided_slice %417 {offsets = [0, 64], sizes = [8, 64], strides = [1, 1]} : vector<8x256xf32> to vector<8x64xf32>
    %425 = arith.negf %424 : vector<8x64xf32>
    %426 = math.exp %425 : vector<8x64xf32>
    %cst_156 = arith.constant 1.000000e+00 : f32
    %427 = vector.broadcast %cst_156 : f32 to vector<8x64xf32>
    %428 = arith.addf %427, %426 : vector<8x64xf32>
    %429 = arith.divf %427, %428 : vector<8x64xf32>
    %430 = vector.extract_strided_slice %417 {offsets = [0, 128], sizes = [8, 64], strides = [1, 1]} : vector<8x256xf32> to vector<8x64xf32>
    %431 = math.tanh %430 : vector<8x64xf32>
    %432 = vector.extract_strided_slice %417 {offsets = [0, 192], sizes = [8, 64], strides = [1, 1]} : vector<8x256xf32> to vector<8x64xf32>
    %433 = arith.negf %432 : vector<8x64xf32>
    %434 = math.exp %433 : vector<8x64xf32>
    %cst_157 = arith.constant 1.000000e+00 : f32
    %435 = vector.broadcast %cst_157 : f32 to vector<8x64xf32>
    %436 = arith.addf %435, %434 : vector<8x64xf32>
    %437 = arith.divf %435, %436 : vector<8x64xf32>
    %438 = arith.mulf %429, %406 : vector<8x64xf32>
    %439 = arith.mulf %423, %431 : vector<8x64xf32>
    %440 = arith.addf %438, %439 : vector<8x64xf32>
    %441 = math.tanh %440 : vector<8x64xf32>
    %442 = arith.mulf %437, %441 : vector<8x64xf32>
    %443 = vector.extract_strided_slice %442 {offsets = [0, 0], sizes = [8, 32], strides = [1, 1]} : vector<8x64xf32> to vector<8x32xf32>
    %c24_158 = arith.constant 24 : index
    %c64_159 = arith.constant 64 : index
    %444 = vector.load %arg8[%c24_158, %c64_159] : memref<64x128xf32, #tpu.memory_space<vmem>>, vector<8x32xf32>
    tpu.vector_store %arg8[%c24_158, %c64_159], %443 {strides = array<i32>} : memref<64x128xf32, #tpu.memory_space<vmem>>, vector<8x32xf32>,
    %445 = vector.extract_strided_slice %442 {offsets = [0, 32], sizes = [8, 32], strides = [1, 1]} : vector<8x64xf32> to vector<8x32xf32>
    %c32_160 = arith.constant 32 : index
    %c96_161 = arith.constant 96 : index
    %446 = vector.load %arg8[%c32_160, %c96_161] : memref<64x128xf32, #tpu.memory_space<vmem>>, vector<8x32xf32>
    tpu.vector_store %arg8[%c32_160, %c96_161], %445 {strides = array<i32>} : memref<64x128xf32, #tpu.memory_space<vmem>>, vector<8x32xf32>,
    %c32_162 = arith.constant 32 : index
    %c0_163 = arith.constant 0 : index
    %447 = vector.load %arg9[%c32_162, %c0_163] : memref<64x256xf32, #tpu.memory_space<vmem>>, vector<8x256xf32>
    %c24_164 = arith.constant 24 : index
    %c0_165 = arith.constant 0 : index
    %448 = vector.load %arg9[%c24_164, %c0_165] : memref<64x256xf32, #tpu.memory_space<vmem>>, vector<8x256xf32>
    %449 = arith.select %18, %447, %448 : vector<8x256xi1>, vector<8x256xf32>
    %cst_166 = arith.constant dense<0.000000e+00> : vector<8x256xf32>
    %450 = tpu.matmul %442, %308, %cst_166 {dimension_numbers = #tpu.dot_dimension_numbers<[1], [0], [0], [1], [0, 0, 1, 1], [], []>} : vector<8x64xf32>, vector<64x256xf32>, vector<8x256xf32> -> vector<8x256xf32>
    %451 = arith.addf %449, %450 : vector<8x256xf32>
    %452 = vector.extract_strided_slice %451 {offsets = [0, 0], sizes = [8, 64], strides = [1, 1]} : vector<8x256xf32> to vector<8x64xf32>
    %453 = arith.negf %452 : vector<8x64xf32>
    %454 = math.exp %453 : vector<8x64xf32>
    %cst_167 = arith.constant 1.000000e+00 : f32
    %455 = vector.broadcast %cst_167 : f32 to vector<8x64xf32>
    %456 = arith.addf %455, %454 : vector<8x64xf32>
    %457 = arith.divf %455, %456 : vector<8x64xf32>
    %458 = vector.extract_strided_slice %451 {offsets = [0, 64], sizes = [8, 64], strides = [1, 1]} : vector<8x256xf32> to vector<8x64xf32>
    %459 = arith.negf %458 : vector<8x64xf32>
    %460 = math.exp %459 : vector<8x64xf32>
    %cst_168 = arith.constant 1.000000e+00 : f32
    %461 = vector.broadcast %cst_168 : f32 to vector<8x64xf32>
    %462 = arith.addf %461, %460 : vector<8x64xf32>
    %463 = arith.divf %461, %462 : vector<8x64xf32>
    %464 = vector.extract_strided_slice %451 {offsets = [0, 128], sizes = [8, 64], strides = [1, 1]} : vector<8x256xf32> to vector<8x64xf32>
    %465 = math.tanh %464 : vector<8x64xf32>
    %466 = vector.extract_strided_slice %451 {offsets = [0, 192], sizes = [8, 64], strides = [1, 1]} : vector<8x256xf32> to vector<8x64xf32>
    %467 = arith.negf %466 : vector<8x64xf32>
    %468 = math.exp %467 : vector<8x64xf32>
    %cst_169 = arith.constant 1.000000e+00 : f32
    %469 = vector.broadcast %cst_169 : f32 to vector<8x64xf32>
    %470 = arith.addf %469, %468 : vector<8x64xf32>
    %471 = arith.divf %469, %470 : vector<8x64xf32>
    %472 = arith.mulf %463, %440 : vector<8x64xf32>
    %473 = arith.mulf %457, %465 : vector<8x64xf32>
    %474 = arith.addf %472, %473 : vector<8x64xf32>
    %475 = math.tanh %474 : vector<8x64xf32>
    %476 = arith.mulf %471, %475 : vector<8x64xf32>
    %477 = vector.extract_strided_slice %476 {offsets = [0, 0], sizes = [8, 32], strides = [1, 1]} : vector<8x64xf32> to vector<8x32xf32>
    %c32_170 = arith.constant 32 : index
    %c64_171 = arith.constant 64 : index
    %478 = vector.load %arg8[%c32_170, %c64_171] : memref<64x128xf32, #tpu.memory_space<vmem>>, vector<8x32xf32>
    tpu.vector_store %arg8[%c32_170, %c64_171], %477 {strides = array<i32>} : memref<64x128xf32, #tpu.memory_space<vmem>>, vector<8x32xf32>,
    %479 = vector.extract_strided_slice %476 {offsets = [0, 32], sizes = [8, 32], strides = [1, 1]} : vector<8x64xf32> to vector<8x32xf32>
    %c24_172 = arith.constant 24 : index
    %c96_173 = arith.constant 96 : index
    %480 = vector.load %arg8[%c24_172, %c96_173] : memref<64x128xf32, #tpu.memory_space<vmem>>, vector<8x32xf32>
    tpu.vector_store %arg8[%c24_172, %c96_173], %479 {strides = array<i32>} : memref<64x128xf32, #tpu.memory_space<vmem>>, vector<8x32xf32>,
    %c40_174 = arith.constant 40 : index
    %c0_175 = arith.constant 0 : index
    %481 = vector.load %arg9[%c40_174, %c0_175] : memref<64x256xf32, #tpu.memory_space<vmem>>, vector<8x256xf32>
    %c16_176 = arith.constant 16 : index
    %c0_177 = arith.constant 0 : index
    %482 = vector.load %arg9[%c16_176, %c0_177] : memref<64x256xf32, #tpu.memory_space<vmem>>, vector<8x256xf32>
    %483 = arith.select %18, %481, %482 : vector<8x256xi1>, vector<8x256xf32>
    %cst_178 = arith.constant dense<0.000000e+00> : vector<8x256xf32>
    %484 = tpu.matmul %476, %308, %cst_178 {dimension_numbers = #tpu.dot_dimension_numbers<[1], [0], [0], [1], [0, 0, 1, 1], [], []>} : vector<8x64xf32>, vector<64x256xf32>, vector<8x256xf32> -> vector<8x256xf32>
    %485 = arith.addf %483, %484 : vector<8x256xf32>
    %486 = vector.extract_strided_slice %485 {offsets = [0, 0], sizes = [8, 64], strides = [1, 1]} : vector<8x256xf32> to vector<8x64xf32>
    %487 = arith.negf %486 : vector<8x64xf32>
    %488 = math.exp %487 : vector<8x64xf32>
    %cst_179 = arith.constant 1.000000e+00 : f32
    %489 = vector.broadcast %cst_179 : f32 to vector<8x64xf32>
    %490 = arith.addf %489, %488 : vector<8x64xf32>
    %491 = arith.divf %489, %490 : vector<8x64xf32>
    %492 = vector.extract_strided_slice %485 {offsets = [0, 64], sizes = [8, 64], strides = [1, 1]} : vector<8x256xf32> to vector<8x64xf32>
    %493 = arith.negf %492 : vector<8x64xf32>
    %494 = math.exp %493 : vector<8x64xf32>
    %cst_180 = arith.constant 1.000000e+00 : f32
    %495 = vector.broadcast %cst_180 : f32 to vector<8x64xf32>
    %496 = arith.addf %495, %494 : vector<8x64xf32>
    %497 = arith.divf %495, %496 : vector<8x64xf32>
    %498 = vector.extract_strided_slice %485 {offsets = [0, 128], sizes = [8, 64], strides = [1, 1]} : vector<8x256xf32> to vector<8x64xf32>
    %499 = math.tanh %498 : vector<8x64xf32>
    %500 = vector.extract_strided_slice %485 {offsets = [0, 192], sizes = [8, 64], strides = [1, 1]} : vector<8x256xf32> to vector<8x64xf32>
    %501 = arith.negf %500 : vector<8x64xf32>
    %502 = math.exp %501 : vector<8x64xf32>
    %cst_181 = arith.constant 1.000000e+00 : f32
    %503 = vector.broadcast %cst_181 : f32 to vector<8x64xf32>
    %504 = arith.addf %503, %502 : vector<8x64xf32>
    %505 = arith.divf %503, %504 : vector<8x64xf32>
    %506 = arith.mulf %497, %474 : vector<8x64xf32>
    %507 = arith.mulf %491, %499 : vector<8x64xf32>
    %508 = arith.addf %506, %507 : vector<8x64xf32>
    %509 = math.tanh %508 : vector<8x64xf32>
    %510 = arith.mulf %505, %509 : vector<8x64xf32>
    %511 = vector.extract_strided_slice %510 {offsets = [0, 0], sizes = [8, 32], strides = [1, 1]} : vector<8x64xf32> to vector<8x32xf32>
    %c40_182 = arith.constant 40 : index
    %c64_183 = arith.constant 64 : index
    %512 = vector.load %arg8[%c40_182, %c64_183] : memref<64x128xf32, #tpu.memory_space<vmem>>, vector<8x32xf32>
    tpu.vector_store %arg8[%c40_182, %c64_183], %511 {strides = array<i32>} : memref<64x128xf32, #tpu.memory_space<vmem>>, vector<8x32xf32>,
    %513 = vector.extract_strided_slice %510 {offsets = [0, 32], sizes = [8, 32], strides = [1, 1]} : vector<8x64xf32> to vector<8x32xf32>
    %c16_184 = arith.constant 16 : index
    %c96_185 = arith.constant 96 : index
    %514 = vector.load %arg8[%c16_184, %c96_185] : memref<64x128xf32, #tpu.memory_space<vmem>>, vector<8x32xf32>
    tpu.vector_store %arg8[%c16_184, %c96_185], %513 {strides = array<i32>} : memref<64x128xf32, #tpu.memory_space<vmem>>, vector<8x32xf32>,
    %c48_186 = arith.constant 48 : index
    %c0_187 = arith.constant 0 : index
    %515 = vector.load %arg9[%c48_186, %c0_187] : memref<64x256xf32, #tpu.memory_space<vmem>>, vector<8x256xf32>
    %c8_188 = arith.constant 8 : index
    %c0_189 = arith.constant 0 : index
    %516 = vector.load %arg9[%c8_188, %c0_189] : memref<64x256xf32, #tpu.memory_space<vmem>>, vector<8x256xf32>
    %517 = arith.select %18, %515, %516 : vector<8x256xi1>, vector<8x256xf32>
    %cst_190 = arith.constant dense<0.000000e+00> : vector<8x256xf32>
    %518 = tpu.matmul %510, %308, %cst_190 {dimension_numbers = #tpu.dot_dimension_numbers<[1], [0], [0], [1], [0, 0, 1, 1], [], []>} : vector<8x64xf32>, vector<64x256xf32>, vector<8x256xf32> -> vector<8x256xf32>
    %519 = arith.addf %517, %518 : vector<8x256xf32>
    %520 = vector.extract_strided_slice %519 {offsets = [0, 0], sizes = [8, 64], strides = [1, 1]} : vector<8x256xf32> to vector<8x64xf32>
    %521 = arith.negf %520 : vector<8x64xf32>
    %522 = math.exp %521 : vector<8x64xf32>
    %cst_191 = arith.constant 1.000000e+00 : f32
    %523 = vector.broadcast %cst_191 : f32 to vector<8x64xf32>
    %524 = arith.addf %523, %522 : vector<8x64xf32>
    %525 = arith.divf %523, %524 : vector<8x64xf32>
    %526 = vector.extract_strided_slice %519 {offsets = [0, 64], sizes = [8, 64], strides = [1, 1]} : vector<8x256xf32> to vector<8x64xf32>
    %527 = arith.negf %526 : vector<8x64xf32>
    %528 = math.exp %527 : vector<8x64xf32>
    %cst_192 = arith.constant 1.000000e+00 : f32
    %529 = vector.broadcast %cst_192 : f32 to vector<8x64xf32>
    %530 = arith.addf %529, %528 : vector<8x64xf32>
    %531 = arith.divf %529, %530 : vector<8x64xf32>
    %532 = vector.extract_strided_slice %519 {offsets = [0, 128], sizes = [8, 64], strides = [1, 1]} : vector<8x256xf32> to vector<8x64xf32>
    %533 = math.tanh %532 : vector<8x64xf32>
    %534 = vector.extract_strided_slice %519 {offsets = [0, 192], sizes = [8, 64], strides = [1, 1]} : vector<8x256xf32> to vector<8x64xf32>
    %535 = arith.negf %534 : vector<8x64xf32>
    %536 = math.exp %535 : vector<8x64xf32>
    %cst_193 = arith.constant 1.000000e+00 : f32
    %537 = vector.broadcast %cst_193 : f32 to vector<8x64xf32>
    %538 = arith.addf %537, %536 : vector<8x64xf32>
    %539 = arith.divf %537, %538 : vector<8x64xf32>
    %540 = arith.mulf %531, %508 : vector<8x64xf32>
    %541 = arith.mulf %525, %533 : vector<8x64xf32>
    %542 = arith.addf %540, %541 : vector<8x64xf32>
    %543 = math.tanh %542 : vector<8x64xf32>
    %544 = arith.mulf %539, %543 : vector<8x64xf32>
    %545 = vector.extract_strided_slice %544 {offsets = [0, 0], sizes = [8, 32], strides = [1, 1]} : vector<8x64xf32> to vector<8x32xf32>
    %c48_194 = arith.constant 48 : index
    %c64_195 = arith.constant 64 : index
    %546 = vector.load %arg8[%c48_194, %c64_195] : memref<64x128xf32, #tpu.memory_space<vmem>>, vector<8x32xf32>
    tpu.vector_store %arg8[%c48_194, %c64_195], %545 {strides = array<i32>} : memref<64x128xf32, #tpu.memory_space<vmem>>, vector<8x32xf32>,
    %547 = vector.extract_strided_slice %544 {offsets = [0, 32], sizes = [8, 32], strides = [1, 1]} : vector<8x64xf32> to vector<8x32xf32>
    %c8_196 = arith.constant 8 : index
    %c96_197 = arith.constant 96 : index
    %548 = vector.load %arg8[%c8_196, %c96_197] : memref<64x128xf32, #tpu.memory_space<vmem>>, vector<8x32xf32>
    tpu.vector_store %arg8[%c8_196, %c96_197], %547 {strides = array<i32>} : memref<64x128xf32, #tpu.memory_space<vmem>>, vector<8x32xf32>,
    %c56_198 = arith.constant 56 : index
    %c0_199 = arith.constant 0 : index
    %549 = vector.load %arg9[%c56_198, %c0_199] : memref<64x256xf32, #tpu.memory_space<vmem>>, vector<8x256xf32>
    %c0_200 = arith.constant 0 : index
    %c0_201 = arith.constant 0 : index
    %550 = vector.load %arg9[%c0_200, %c0_201] : memref<64x256xf32, #tpu.memory_space<vmem>>, vector<8x256xf32>
    %551 = arith.select %18, %549, %550 : vector<8x256xi1>, vector<8x256xf32>
    %cst_202 = arith.constant dense<0.000000e+00> : vector<8x256xf32>
    %552 = tpu.matmul %544, %308, %cst_202 {dimension_numbers = #tpu.dot_dimension_numbers<[1], [0], [0], [1], [0, 0, 1, 1], [], []>} : vector<8x64xf32>, vector<64x256xf32>, vector<8x256xf32> -> vector<8x256xf32>
    %553 = arith.addf %551, %552 : vector<8x256xf32>
    %554 = vector.extract_strided_slice %553 {offsets = [0, 0], sizes = [8, 64], strides = [1, 1]} : vector<8x256xf32> to vector<8x64xf32>
    %555 = arith.negf %554 : vector<8x64xf32>
    %556 = math.exp %555 : vector<8x64xf32>
    %cst_203 = arith.constant 1.000000e+00 : f32
    %557 = vector.broadcast %cst_203 : f32 to vector<8x64xf32>
    %558 = arith.addf %557, %556 : vector<8x64xf32>
    %559 = arith.divf %557, %558 : vector<8x64xf32>
    %560 = vector.extract_strided_slice %553 {offsets = [0, 64], sizes = [8, 64], strides = [1, 1]} : vector<8x256xf32> to vector<8x64xf32>
    %561 = arith.negf %560 : vector<8x64xf32>
    %562 = math.exp %561 : vector<8x64xf32>
    %cst_204 = arith.constant 1.000000e+00 : f32
    %563 = vector.broadcast %cst_204 : f32 to vector<8x64xf32>
    %564 = arith.addf %563, %562 : vector<8x64xf32>
    %565 = arith.divf %563, %564 : vector<8x64xf32>
    %566 = vector.extract_strided_slice %553 {offsets = [0, 128], sizes = [8, 64], strides = [1, 1]} : vector<8x256xf32> to vector<8x64xf32>
    %567 = math.tanh %566 : vector<8x64xf32>
    %568 = vector.extract_strided_slice %553 {offsets = [0, 192], sizes = [8, 64], strides = [1, 1]} : vector<8x256xf32> to vector<8x64xf32>
    %569 = arith.negf %568 : vector<8x64xf32>
    %570 = math.exp %569 : vector<8x64xf32>
    %cst_205 = arith.constant 1.000000e+00 : f32
    %571 = vector.broadcast %cst_205 : f32 to vector<8x64xf32>
    %572 = arith.addf %571, %570 : vector<8x64xf32>
    %573 = arith.divf %571, %572 : vector<8x64xf32>
    %574 = arith.mulf %565, %542 : vector<8x64xf32>
    %575 = arith.mulf %559, %567 : vector<8x64xf32>
    %576 = arith.addf %574, %575 : vector<8x64xf32>
    %577 = math.tanh %576 : vector<8x64xf32>
    %578 = arith.mulf %573, %577 : vector<8x64xf32>
    %579 = vector.extract_strided_slice %578 {offsets = [0, 0], sizes = [8, 32], strides = [1, 1]} : vector<8x64xf32> to vector<8x32xf32>
    %c56_206 = arith.constant 56 : index
    %c64_207 = arith.constant 64 : index
    %580 = vector.load %arg8[%c56_206, %c64_207] : memref<64x128xf32, #tpu.memory_space<vmem>>, vector<8x32xf32>
    tpu.vector_store %arg8[%c56_206, %c64_207], %579 {strides = array<i32>} : memref<64x128xf32, #tpu.memory_space<vmem>>, vector<8x32xf32>,
    %581 = vector.extract_strided_slice %578 {offsets = [0, 32], sizes = [8, 32], strides = [1, 1]} : vector<8x64xf32> to vector<8x32xf32>
    %c0_208 = arith.constant 0 : index
    %c96_209 = arith.constant 96 : index
    %582 = vector.load %arg8[%c0_208, %c96_209] : memref<64x128xf32, #tpu.memory_space<vmem>>, vector<8x32xf32>
    tpu.vector_store %arg8[%c0_208, %c96_209], %581 {strides = array<i32>} : memref<64x128xf32, #tpu.memory_space<vmem>>, vector<8x32xf32>,
    %c0_210 = arith.constant 0 : index
    %c0_211 = arith.constant 0 : index
    %583 = vector.load %arg10[%c0_210, %c0_211] : memref<64x64xf32, #tpu.memory_space<vmem>>, vector<64x64xf32>
    %c0_212 = arith.constant 0 : index
    %c0_213 = arith.constant 0 : index
    %584 = vector.load %arg8[%c0_212, %c0_213] : memref<64x128xf32, #tpu.memory_space<vmem>>, vector<64x64xf32>
    tpu.vector_store %arg8[%c0_212, %c0_213], %583 {strides = array<i32>} : memref<64x128xf32, #tpu.memory_space<vmem>>, vector<64x64xf32>,
    return
  }
  func.func @transform_0(%arg0: i32) -> (i32, i32) {
    %c0_i32 = arith.constant 0 : i32
    %c0_i32_0 = arith.constant 0 : i32
    %c0_i32_1 = arith.constant 0 : i32
    return %c0_i32, %c0_i32_0 : i32, i32
  }
  func.func @transform_1(%arg0: i32) -> (i32, i32) {
    %c0_i32 = arith.constant 0 : i32
    %c0_i32_0 = arith.constant 0 : i32
    %c0_i32_1 = arith.constant 0 : i32
    return %c0_i32, %c0_i32_0 : i32, i32
  }
  func.func @transform_2(%arg0: i32) -> (i32, i32) {
    %c0_i32 = arith.constant 0 : i32
    %c0_i32_0 = arith.constant 0 : i32
    %c0_i32_1 = arith.constant 0 : i32
    return %c0_i32, %c0_i32_0 : i32, i32
  }
  func.func @transform_3(%arg0: i32) -> (i32, i32) {
    %c0_i32 = arith.constant 0 : i32
    %c0_i32_0 = arith.constant 0 : i32
    %c0_i32_1 = arith.constant 0 : i32
    return %c0_i32, %c0_i32_0 : i32, i32
  }
  func.func @transform_4(%arg0: i32) -> (i32, i32) {
    %c0_i32 = arith.constant 0 : i32
    %c0_i32_0 = arith.constant 0 : i32
    %c0_i32_1 = arith.constant 0 : i32
    return %c0_i32, %c0_i32_0 : i32, i32
  }
  func.func @transform_5(%arg0: i32) -> (i32, i32) {
    %c0_i32 = arith.constant 0 : i32
    %c0_i32_0 = arith.constant 0 : i32
    %c0_i32_1 = arith.constant 0 : i32
    return %c0_i32, %c0_i32_0 : i32, i32
  }
  func.func @transform_6(%arg0: i32) -> (i32, i32) {
    %c0_i32 = arith.constant 0 : i32
    %c0_i32_0 = arith.constant 0 : i32
    %c0_i32_1 = arith.constant 0 : i32
    return %c0_i32, %c0_i32_0 : i32, i32
  }
  func.func @transform_7(%arg0: i32) -> (i32, i32) {
    %c0_i32 = arith.constant 0 : i32
    %c0_i32_0 = arith.constant 0 : i32
    %c0_i32_1 = arith.constant 0 : i32
    return %c0_i32, %c0_i32_0 : i32, i32
  }
}

module attributes {stable_mosaic.version = 11 : i64} {
  func.func @kernel(%arg0: i32, %arg1: memref<128x64xf32, #tpu.memory_space<vmem>>, %arg2: memref<64x256xf32, #tpu.memory_space<vmem>>, %arg3: memref<64x256xf32, #tpu.memory_space<vmem>>, %arg4: memref<1x256xf32, #tpu.memory_space<vmem>>, %arg5: memref<64x256xf32, #tpu.memory_space<vmem>>, %arg6: memref<64x256xf32, #tpu.memory_space<vmem>>, %arg7: memref<1x256xf32, #tpu.memory_space<vmem>>, %arg8: memref<128x128xf32, #tpu.memory_space<vmem>>, %arg9: memref<128x256xf32, #tpu.memory_space<vmem>>, %arg10: memref<128x64xf32, #tpu.memory_space<vmem>>) attributes {dimension_semantics = [#tpu.dimension_semantics<arbitrary>], iteration_bounds = array<i64: 1>, scalar_prefetch = 0 : i64, scratch_operands = 2 : i64, tpu.core_type = #tpu.core_type<tc>, window_params = [{pipeline_mode = #tpu.pipeline_mode<synchronous>, transform_indices = @transform_0, window_bounds = array<i64: 128, 64>}, {pipeline_mode = #tpu.pipeline_mode<synchronous>, transform_indices = @transform_1, window_bounds = array<i64: 64, 256>}, {pipeline_mode = #tpu.pipeline_mode<synchronous>, transform_indices = @transform_2, window_bounds = array<i64: 64, 256>}, {pipeline_mode = #tpu.pipeline_mode<synchronous>, transform_indices = @transform_3, window_bounds = array<i64: 1, 256>}, {pipeline_mode = #tpu.pipeline_mode<synchronous>, transform_indices = @transform_4, window_bounds = array<i64: 64, 256>}, {pipeline_mode = #tpu.pipeline_mode<synchronous>, transform_indices = @transform_5, window_bounds = array<i64: 64, 256>}, {pipeline_mode = #tpu.pipeline_mode<synchronous>, transform_indices = @transform_6, window_bounds = array<i64: 1, 256>}, {pipeline_mode = #tpu.pipeline_mode<synchronous>, transform_indices = @transform_7, window_bounds = array<i64: 128, 128>}]} {
    %0 = tpu.iota {dimensions = array<i32: 1>} : vector<8x256xi32>
    %c64_i32 = arith.constant 64 : i32
    %c0_i32 = arith.constant 0 : i32
    %1 = arith.cmpi eq, %c64_i32, %c0_i32 : i32
    %c1_i32 = arith.constant 1 : i32
    %2 = arith.select %1, %c1_i32, %c64_i32 : i32
    %3 = vector.broadcast %2 : i32 to vector<8x256xi32>
    %4 = arith.remsi %0, %3 : vector<8x256xi32>
    %c0_i32_0 = arith.constant 0 : i32
    %5 = vector.broadcast %c0_i32_0 : i32 to vector<8x256xi32>
    %6 = arith.cmpi ne, %4, %5 : vector<8x256xi32>
    %c0_i32_1 = arith.constant 0 : i32
    %7 = vector.broadcast %c0_i32_1 : i32 to vector<8x256xi32>
    %8 = arith.cmpi slt, %4, %7 : vector<8x256xi32>
    %c0_i32_2 = arith.constant 0 : i32
    %9 = arith.cmpi slt, %2, %c0_i32_2 : i32
    %10 = vector.broadcast %9 : i1 to vector<8x256xi1>
    %11 = vector.broadcast %10 : vector<8x256xi1> to vector<8x256xi1>
    %12 = arith.xori %8, %11 : vector<8x256xi1>
    %13 = arith.andi %12, %6 : vector<8x256xi1>
    %14 = vector.broadcast %2 : i32 to vector<8x256xi32>
    %15 = arith.addi %4, %14 : vector<8x256xi32>
    %16 = arith.select %13, %15, %4 : vector<8x256xi1>, vector<8x256xi32>
    %c32_i32 = arith.constant 32 : i32
    %17 = vector.broadcast %c32_i32 : i32 to vector<8x256xi32>
    %18 = arith.cmpi slt, %16, %17 : vector<8x256xi32>
    %c0 = arith.constant 0 : index
    %c0_3 = arith.constant 0 : index
    %19 = vector.load %arg1[%c0, %c0_3] : memref<128x64xf32, #tpu.memory_space<vmem>>, vector<128x64xf32>
    %c0_4 = arith.constant 0 : index
    %c0_5 = arith.constant 0 : index
    %20 = vector.load %arg2[%c0_4, %c0_5] : memref<64x256xf32, #tpu.memory_space<vmem>>, vector<64x256xf32>
    %cst = arith.constant dense<0.000000e+00> : vector<128x256xf32>
    %21 = tpu.matmul %19, %20, %cst {dimension_numbers = #tpu.dot_dimension_numbers<[1], [0], [0], [1], [0, 0, 1, 1], [], []>} : vector<128x64xf32>, vector<64x256xf32>, vector<128x256xf32> -> vector<128x256xf32>
    %c0_6 = arith.constant 0 : index
    %c0_7 = arith.constant 0 : index
    %22 = vector.load %arg4[%c0_6, %c0_7] : memref<1x256xf32, #tpu.memory_space<vmem>>, vector<1x256xf32>
    %23 = vector.broadcast %22 : vector<1x256xf32> to vector<128x256xf32>
    %24 = arith.addf %21, %23 : vector<128x256xf32>
    %c0_8 = arith.constant 0 : index
    %c0_9 = arith.constant 0 : index
    %25 = vector.load %arg9[%c0_8, %c0_9] : memref<128x256xf32, #tpu.memory_space<vmem>>, vector<128x256xf32>
    tpu.vector_store %arg9[%c0_8, %c0_9], %24 {strides = array<i32>} : memref<128x256xf32, #tpu.memory_space<vmem>>, vector<128x256xf32>,
    %c0_10 = arith.constant 0 : index
    %c0_11 = arith.constant 0 : index
    %26 = vector.load %arg3[%c0_10, %c0_11] : memref<64x256xf32, #tpu.memory_space<vmem>>, vector<64x256xf32>
    %cst_12 = arith.constant 0.000000e+00 : f32
    %27 = vector.broadcast %cst_12 : f32 to vector<8x64xf32>
    %cst_13 = arith.constant 0.000000e+00 : f32
    %28 = vector.broadcast %cst_13 : f32 to vector<8x64xf32>
    %c0_14 = arith.constant 0 : index
    %c0_15 = arith.constant 0 : index
    %29 = vector.load %arg9[%c0_14, %c0_15] : memref<128x256xf32, #tpu.memory_space<vmem>>, vector<8x256xf32>
    %c120 = arith.constant 120 : index
    %c0_16 = arith.constant 0 : index
    %30 = vector.load %arg9[%c120, %c0_16] : memref<128x256xf32, #tpu.memory_space<vmem>>, vector<8x256xf32>
    %31 = arith.select %18, %29, %30 : vector<8x256xi1>, vector<8x256xf32>
    %cst_17 = arith.constant dense<0.000000e+00> : vector<8x256xf32>
    %32 = tpu.matmul %27, %26, %cst_17 {dimension_numbers = #tpu.dot_dimension_numbers<[1], [0], [0], [1], [0, 0, 1, 1], [], []>} : vector<8x64xf32>, vector<64x256xf32>, vector<8x256xf32> -> vector<8x256xf32>
    %33 = arith.addf %31, %32 : vector<8x256xf32>
    %34 = vector.extract_strided_slice %33 {offsets = [0, 0], sizes = [8, 64], strides = [1, 1]} : vector<8x256xf32> to vector<8x64xf32>
    %35 = arith.negf %34 : vector<8x64xf32>
    %36 = math.exp %35 : vector<8x64xf32>
    %cst_18 = arith.constant 1.000000e+00 : f32
    %37 = vector.broadcast %cst_18 : f32 to vector<8x64xf32>
    %38 = arith.addf %37, %36 : vector<8x64xf32>
    %39 = arith.divf %37, %38 : vector<8x64xf32>
    %40 = vector.extract_strided_slice %33 {offsets = [0, 64], sizes = [8, 64], strides = [1, 1]} : vector<8x256xf32> to vector<8x64xf32>
    %41 = arith.negf %40 : vector<8x64xf32>
    %42 = math.exp %41 : vector<8x64xf32>
    %cst_19 = arith.constant 1.000000e+00 : f32
    %43 = vector.broadcast %cst_19 : f32 to vector<8x64xf32>
    %44 = arith.addf %43, %42 : vector<8x64xf32>
    %45 = arith.divf %43, %44 : vector<8x64xf32>
    %46 = vector.extract_strided_slice %33 {offsets = [0, 128], sizes = [8, 64], strides = [1, 1]} : vector<8x256xf32> to vector<8x64xf32>
    %47 = math.tanh %46 : vector<8x64xf32>
    %48 = vector.extract_strided_slice %33 {offsets = [0, 192], sizes = [8, 64], strides = [1, 1]} : vector<8x256xf32> to vector<8x64xf32>
    %49 = arith.negf %48 : vector<8x64xf32>
    %50 = math.exp %49 : vector<8x64xf32>
    %cst_20 = arith.constant 1.000000e+00 : f32
    %51 = vector.broadcast %cst_20 : f32 to vector<8x64xf32>
    %52 = arith.addf %51, %50 : vector<8x64xf32>
    %53 = arith.divf %51, %52 : vector<8x64xf32>
    %54 = arith.mulf %45, %28 : vector<8x64xf32>
    %55 = arith.mulf %39, %47 : vector<8x64xf32>
    %56 = arith.addf %54, %55 : vector<8x64xf32>
    %57 = math.tanh %56 : vector<8x64xf32>
    %58 = arith.mulf %53, %57 : vector<8x64xf32>
    %59 = vector.extract_strided_slice %58 {offsets = [0, 0], sizes = [8, 32], strides = [1, 1]} : vector<8x64xf32> to vector<8x32xf32>
    %c0_21 = arith.constant 0 : index
    %c0_22 = arith.constant 0 : index
    %60 = vector.load %arg10[%c0_21, %c0_22] : memref<128x64xf32, #tpu.memory_space<vmem>>, vector<8x32xf32>
    tpu.vector_store %arg10[%c0_21, %c0_22], %59 {strides = array<i32>} : memref<128x64xf32, #tpu.memory_space<vmem>>, vector<8x32xf32>,
    %61 = vector.extract_strided_slice %58 {offsets = [0, 32], sizes = [8, 32], strides = [1, 1]} : vector<8x64xf32> to vector<8x32xf32>
    %c120_23 = arith.constant 120 : index
    %c32 = arith.constant 32 : index
    %62 = vector.load %arg10[%c120_23, %c32] : memref<128x64xf32, #tpu.memory_space<vmem>>, vector<8x32xf32>
    tpu.vector_store %arg10[%c120_23, %c32], %61 {strides = array<i32>} : memref<128x64xf32, #tpu.memory_space<vmem>>, vector<8x32xf32>,
    %c8 = arith.constant 8 : index
    %c0_24 = arith.constant 0 : index
    %63 = vector.load %arg9[%c8, %c0_24] : memref<128x256xf32, #tpu.memory_space<vmem>>, vector<8x256xf32>
    %c112 = arith.constant 112 : index
    %c0_25 = arith.constant 0 : index
    %64 = vector.load %arg9[%c112, %c0_25] : memref<128x256xf32, #tpu.memory_space<vmem>>, vector<8x256xf32>
    %65 = arith.select %18, %63, %64 : vector<8x256xi1>, vector<8x256xf32>
    %cst_26 = arith.constant dense<0.000000e+00> : vector<8x256xf32>
    %66 = tpu.matmul %58, %26, %cst_26 {dimension_numbers = #tpu.dot_dimension_numbers<[1], [0], [0], [1], [0, 0, 1, 1], [], []>} : vector<8x64xf32>, vector<64x256xf32>, vector<8x256xf32> -> vector<8x256xf32>
    %67 = arith.addf %65, %66 : vector<8x256xf32>
    %68 = vector.extract_strided_slice %67 {offsets = [0, 0], sizes = [8, 64], strides = [1, 1]} : vector<8x256xf32> to vector<8x64xf32>
    %69 = arith.negf %68 : vector<8x64xf32>
    %70 = math.exp %69 : vector<8x64xf32>
    %cst_27 = arith.constant 1.000000e+00 : f32
    %71 = vector.broadcast %cst_27 : f32 to vector<8x64xf32>
    %72 = arith.addf %71, %70 : vector<8x64xf32>
    %73 = arith.divf %71, %72 : vector<8x64xf32>
    %74 = vector.extract_strided_slice %67 {offsets = [0, 64], sizes = [8, 64], strides = [1, 1]} : vector<8x256xf32> to vector<8x64xf32>
    %75 = arith.negf %74 : vector<8x64xf32>
    %76 = math.exp %75 : vector<8x64xf32>
    %cst_28 = arith.constant 1.000000e+00 : f32
    %77 = vector.broadcast %cst_28 : f32 to vector<8x64xf32>
    %78 = arith.addf %77, %76 : vector<8x64xf32>
    %79 = arith.divf %77, %78 : vector<8x64xf32>
    %80 = vector.extract_strided_slice %67 {offsets = [0, 128], sizes = [8, 64], strides = [1, 1]} : vector<8x256xf32> to vector<8x64xf32>
    %81 = math.tanh %80 : vector<8x64xf32>
    %82 = vector.extract_strided_slice %67 {offsets = [0, 192], sizes = [8, 64], strides = [1, 1]} : vector<8x256xf32> to vector<8x64xf32>
    %83 = arith.negf %82 : vector<8x64xf32>
    %84 = math.exp %83 : vector<8x64xf32>
    %cst_29 = arith.constant 1.000000e+00 : f32
    %85 = vector.broadcast %cst_29 : f32 to vector<8x64xf32>
    %86 = arith.addf %85, %84 : vector<8x64xf32>
    %87 = arith.divf %85, %86 : vector<8x64xf32>
    %88 = arith.mulf %79, %56 : vector<8x64xf32>
    %89 = arith.mulf %73, %81 : vector<8x64xf32>
    %90 = arith.addf %88, %89 : vector<8x64xf32>
    %91 = math.tanh %90 : vector<8x64xf32>
    %92 = arith.mulf %87, %91 : vector<8x64xf32>
    %93 = vector.extract_strided_slice %92 {offsets = [0, 0], sizes = [8, 32], strides = [1, 1]} : vector<8x64xf32> to vector<8x32xf32>
    %c8_30 = arith.constant 8 : index
    %c0_31 = arith.constant 0 : index
    %94 = vector.load %arg10[%c8_30, %c0_31] : memref<128x64xf32, #tpu.memory_space<vmem>>, vector<8x32xf32>
    tpu.vector_store %arg10[%c8_30, %c0_31], %93 {strides = array<i32>} : memref<128x64xf32, #tpu.memory_space<vmem>>, vector<8x32xf32>,
    %95 = vector.extract_strided_slice %92 {offsets = [0, 32], sizes = [8, 32], strides = [1, 1]} : vector<8x64xf32> to vector<8x32xf32>
    %c112_32 = arith.constant 112 : index
    %c32_33 = arith.constant 32 : index
    %96 = vector.load %arg10[%c112_32, %c32_33] : memref<128x64xf32, #tpu.memory_space<vmem>>, vector<8x32xf32>
    tpu.vector_store %arg10[%c112_32, %c32_33], %95 {strides = array<i32>} : memref<128x64xf32, #tpu.memory_space<vmem>>, vector<8x32xf32>,
    %c16 = arith.constant 16 : index
    %c0_34 = arith.constant 0 : index
    %97 = vector.load %arg9[%c16, %c0_34] : memref<128x256xf32, #tpu.memory_space<vmem>>, vector<8x256xf32>
    %c104 = arith.constant 104 : index
    %c0_35 = arith.constant 0 : index
    %98 = vector.load %arg9[%c104, %c0_35] : memref<128x256xf32, #tpu.memory_space<vmem>>, vector<8x256xf32>
    %99 = arith.select %18, %97, %98 : vector<8x256xi1>, vector<8x256xf32>
    %cst_36 = arith.constant dense<0.000000e+00> : vector<8x256xf32>
    %100 = tpu.matmul %92, %26, %cst_36 {dimension_numbers = #tpu.dot_dimension_numbers<[1], [0], [0], [1], [0, 0, 1, 1], [], []>} : vector<8x64xf32>, vector<64x256xf32>, vector<8x256xf32> -> vector<8x256xf32>
    %101 = arith.addf %99, %100 : vector<8x256xf32>
    %102 = vector.extract_strided_slice %101 {offsets = [0, 0], sizes = [8, 64], strides = [1, 1]} : vector<8x256xf32> to vector<8x64xf32>
    %103 = arith.negf %102 : vector<8x64xf32>
    %104 = math.exp %103 : vector<8x64xf32>
    %cst_37 = arith.constant 1.000000e+00 : f32
    %105 = vector.broadcast %cst_37 : f32 to vector<8x64xf32>
    %106 = arith.addf %105, %104 : vector<8x64xf32>
    %107 = arith.divf %105, %106 : vector<8x64xf32>
    %108 = vector.extract_strided_slice %101 {offsets = [0, 64], sizes = [8, 64], strides = [1, 1]} : vector<8x256xf32> to vector<8x64xf32>
    %109 = arith.negf %108 : vector<8x64xf32>
    %110 = math.exp %109 : vector<8x64xf32>
    %cst_38 = arith.constant 1.000000e+00 : f32
    %111 = vector.broadcast %cst_38 : f32 to vector<8x64xf32>
    %112 = arith.addf %111, %110 : vector<8x64xf32>
    %113 = arith.divf %111, %112 : vector<8x64xf32>
    %114 = vector.extract_strided_slice %101 {offsets = [0, 128], sizes = [8, 64], strides = [1, 1]} : vector<8x256xf32> to vector<8x64xf32>
    %115 = math.tanh %114 : vector<8x64xf32>
    %116 = vector.extract_strided_slice %101 {offsets = [0, 192], sizes = [8, 64], strides = [1, 1]} : vector<8x256xf32> to vector<8x64xf32>
    %117 = arith.negf %116 : vector<8x64xf32>
    %118 = math.exp %117 : vector<8x64xf32>
    %cst_39 = arith.constant 1.000000e+00 : f32
    %119 = vector.broadcast %cst_39 : f32 to vector<8x64xf32>
    %120 = arith.addf %119, %118 : vector<8x64xf32>
    %121 = arith.divf %119, %120 : vector<8x64xf32>
    %122 = arith.mulf %113, %90 : vector<8x64xf32>
    %123 = arith.mulf %107, %115 : vector<8x64xf32>
    %124 = arith.addf %122, %123 : vector<8x64xf32>
    %125 = math.tanh %124 : vector<8x64xf32>
    %126 = arith.mulf %121, %125 : vector<8x64xf32>
    %127 = vector.extract_strided_slice %126 {offsets = [0, 0], sizes = [8, 32], strides = [1, 1]} : vector<8x64xf32> to vector<8x32xf32>
    %c16_40 = arith.constant 16 : index
    %c0_41 = arith.constant 0 : index
    %128 = vector.load %arg10[%c16_40, %c0_41] : memref<128x64xf32, #tpu.memory_space<vmem>>, vector<8x32xf32>
    tpu.vector_store %arg10[%c16_40, %c0_41], %127 {strides = array<i32>} : memref<128x64xf32, #tpu.memory_space<vmem>>, vector<8x32xf32>,
    %129 = vector.extract_strided_slice %126 {offsets = [0, 32], sizes = [8, 32], strides = [1, 1]} : vector<8x64xf32> to vector<8x32xf32>
    %c104_42 = arith.constant 104 : index
    %c32_43 = arith.constant 32 : index
    %130 = vector.load %arg10[%c104_42, %c32_43] : memref<128x64xf32, #tpu.memory_space<vmem>>, vector<8x32xf32>
    tpu.vector_store %arg10[%c104_42, %c32_43], %129 {strides = array<i32>} : memref<128x64xf32, #tpu.memory_space<vmem>>, vector<8x32xf32>,
    %c24 = arith.constant 24 : index
    %c0_44 = arith.constant 0 : index
    %131 = vector.load %arg9[%c24, %c0_44] : memref<128x256xf32, #tpu.memory_space<vmem>>, vector<8x256xf32>
    %c96 = arith.constant 96 : index
    %c0_45 = arith.constant 0 : index
    %132 = vector.load %arg9[%c96, %c0_45] : memref<128x256xf32, #tpu.memory_space<vmem>>, vector<8x256xf32>
    %133 = arith.select %18, %131, %132 : vector<8x256xi1>, vector<8x256xf32>
    %cst_46 = arith.constant dense<0.000000e+00> : vector<8x256xf32>
    %134 = tpu.matmul %126, %26, %cst_46 {dimension_numbers = #tpu.dot_dimension_numbers<[1], [0], [0], [1], [0, 0, 1, 1], [], []>} : vector<8x64xf32>, vector<64x256xf32>, vector<8x256xf32> -> vector<8x256xf32>
    %135 = arith.addf %133, %134 : vector<8x256xf32>
    %136 = vector.extract_strided_slice %135 {offsets = [0, 0], sizes = [8, 64], strides = [1, 1]} : vector<8x256xf32> to vector<8x64xf32>
    %137 = arith.negf %136 : vector<8x64xf32>
    %138 = math.exp %137 : vector<8x64xf32>
    %cst_47 = arith.constant 1.000000e+00 : f32
    %139 = vector.broadcast %cst_47 : f32 to vector<8x64xf32>
    %140 = arith.addf %139, %138 : vector<8x64xf32>
    %141 = arith.divf %139, %140 : vector<8x64xf32>
    %142 = vector.extract_strided_slice %135 {offsets = [0, 64], sizes = [8, 64], strides = [1, 1]} : vector<8x256xf32> to vector<8x64xf32>
    %143 = arith.negf %142 : vector<8x64xf32>
    %144 = math.exp %143 : vector<8x64xf32>
    %cst_48 = arith.constant 1.000000e+00 : f32
    %145 = vector.broadcast %cst_48 : f32 to vector<8x64xf32>
    %146 = arith.addf %145, %144 : vector<8x64xf32>
    %147 = arith.divf %145, %146 : vector<8x64xf32>
    %148 = vector.extract_strided_slice %135 {offsets = [0, 128], sizes = [8, 64], strides = [1, 1]} : vector<8x256xf32> to vector<8x64xf32>
    %149 = math.tanh %148 : vector<8x64xf32>
    %150 = vector.extract_strided_slice %135 {offsets = [0, 192], sizes = [8, 64], strides = [1, 1]} : vector<8x256xf32> to vector<8x64xf32>
    %151 = arith.negf %150 : vector<8x64xf32>
    %152 = math.exp %151 : vector<8x64xf32>
    %cst_49 = arith.constant 1.000000e+00 : f32
    %153 = vector.broadcast %cst_49 : f32 to vector<8x64xf32>
    %154 = arith.addf %153, %152 : vector<8x64xf32>
    %155 = arith.divf %153, %154 : vector<8x64xf32>
    %156 = arith.mulf %147, %124 : vector<8x64xf32>
    %157 = arith.mulf %141, %149 : vector<8x64xf32>
    %158 = arith.addf %156, %157 : vector<8x64xf32>
    %159 = math.tanh %158 : vector<8x64xf32>
    %160 = arith.mulf %155, %159 : vector<8x64xf32>
    %161 = vector.extract_strided_slice %160 {offsets = [0, 0], sizes = [8, 32], strides = [1, 1]} : vector<8x64xf32> to vector<8x32xf32>
    %c24_50 = arith.constant 24 : index
    %c0_51 = arith.constant 0 : index
    %162 = vector.load %arg10[%c24_50, %c0_51] : memref<128x64xf32, #tpu.memory_space<vmem>>, vector<8x32xf32>
    tpu.vector_store %arg10[%c24_50, %c0_51], %161 {strides = array<i32>} : memref<128x64xf32, #tpu.memory_space<vmem>>, vector<8x32xf32>,
    %163 = vector.extract_strided_slice %160 {offsets = [0, 32], sizes = [8, 32], strides = [1, 1]} : vector<8x64xf32> to vector<8x32xf32>
    %c96_52 = arith.constant 96 : index
    %c32_53 = arith.constant 32 : index
    %164 = vector.load %arg10[%c96_52, %c32_53] : memref<128x64xf32, #tpu.memory_space<vmem>>, vector<8x32xf32>
    tpu.vector_store %arg10[%c96_52, %c32_53], %163 {strides = array<i32>} : memref<128x64xf32, #tpu.memory_space<vmem>>, vector<8x32xf32>,
    %c32_54 = arith.constant 32 : index
    %c0_55 = arith.constant 0 : index
    %165 = vector.load %arg9[%c32_54, %c0_55] : memref<128x256xf32, #tpu.memory_space<vmem>>, vector<8x256xf32>
    %c88 = arith.constant 88 : index
    %c0_56 = arith.constant 0 : index
    %166 = vector.load %arg9[%c88, %c0_56] : memref<128x256xf32, #tpu.memory_space<vmem>>, vector<8x256xf32>
    %167 = arith.select %18, %165, %166 : vector<8x256xi1>, vector<8x256xf32>
    %cst_57 = arith.constant dense<0.000000e+00> : vector<8x256xf32>
    %168 = tpu.matmul %160, %26, %cst_57 {dimension_numbers = #tpu.dot_dimension_numbers<[1], [0], [0], [1], [0, 0, 1, 1], [], []>} : vector<8x64xf32>, vector<64x256xf32>, vector<8x256xf32> -> vector<8x256xf32>
    %169 = arith.addf %167, %168 : vector<8x256xf32>
    %170 = vector.extract_strided_slice %169 {offsets = [0, 0], sizes = [8, 64], strides = [1, 1]} : vector<8x256xf32> to vector<8x64xf32>
    %171 = arith.negf %170 : vector<8x64xf32>
    %172 = math.exp %171 : vector<8x64xf32>
    %cst_58 = arith.constant 1.000000e+00 : f32
    %173 = vector.broadcast %cst_58 : f32 to vector<8x64xf32>
    %174 = arith.addf %173, %172 : vector<8x64xf32>
    %175 = arith.divf %173, %174 : vector<8x64xf32>
    %176 = vector.extract_strided_slice %169 {offsets = [0, 64], sizes = [8, 64], strides = [1, 1]} : vector<8x256xf32> to vector<8x64xf32>
    %177 = arith.negf %176 : vector<8x64xf32>
    %178 = math.exp %177 : vector<8x64xf32>
    %cst_59 = arith.constant 1.000000e+00 : f32
    %179 = vector.broadcast %cst_59 : f32 to vector<8x64xf32>
    %180 = arith.addf %179, %178 : vector<8x64xf32>
    %181 = arith.divf %179, %180 : vector<8x64xf32>
    %182 = vector.extract_strided_slice %169 {offsets = [0, 128], sizes = [8, 64], strides = [1, 1]} : vector<8x256xf32> to vector<8x64xf32>
    %183 = math.tanh %182 : vector<8x64xf32>
    %184 = vector.extract_strided_slice %169 {offsets = [0, 192], sizes = [8, 64], strides = [1, 1]} : vector<8x256xf32> to vector<8x64xf32>
    %185 = arith.negf %184 : vector<8x64xf32>
    %186 = math.exp %185 : vector<8x64xf32>
    %cst_60 = arith.constant 1.000000e+00 : f32
    %187 = vector.broadcast %cst_60 : f32 to vector<8x64xf32>
    %188 = arith.addf %187, %186 : vector<8x64xf32>
    %189 = arith.divf %187, %188 : vector<8x64xf32>
    %190 = arith.mulf %181, %158 : vector<8x64xf32>
    %191 = arith.mulf %175, %183 : vector<8x64xf32>
    %192 = arith.addf %190, %191 : vector<8x64xf32>
    %193 = math.tanh %192 : vector<8x64xf32>
    %194 = arith.mulf %189, %193 : vector<8x64xf32>
    %195 = vector.extract_strided_slice %194 {offsets = [0, 0], sizes = [8, 32], strides = [1, 1]} : vector<8x64xf32> to vector<8x32xf32>
    %c32_61 = arith.constant 32 : index
    %c0_62 = arith.constant 0 : index
    %196 = vector.load %arg10[%c32_61, %c0_62] : memref<128x64xf32, #tpu.memory_space<vmem>>, vector<8x32xf32>
    tpu.vector_store %arg10[%c32_61, %c0_62], %195 {strides = array<i32>} : memref<128x64xf32, #tpu.memory_space<vmem>>, vector<8x32xf32>,
    %197 = vector.extract_strided_slice %194 {offsets = [0, 32], sizes = [8, 32], strides = [1, 1]} : vector<8x64xf32> to vector<8x32xf32>
    %c88_63 = arith.constant 88 : index
    %c32_64 = arith.constant 32 : index
    %198 = vector.load %arg10[%c88_63, %c32_64] : memref<128x64xf32, #tpu.memory_space<vmem>>, vector<8x32xf32>
    tpu.vector_store %arg10[%c88_63, %c32_64], %197 {strides = array<i32>} : memref<128x64xf32, #tpu.memory_space<vmem>>, vector<8x32xf32>,
    %c40 = arith.constant 40 : index
    %c0_65 = arith.constant 0 : index
    %199 = vector.load %arg9[%c40, %c0_65] : memref<128x256xf32, #tpu.memory_space<vmem>>, vector<8x256xf32>
    %c80 = arith.constant 80 : index
    %c0_66 = arith.constant 0 : index
    %200 = vector.load %arg9[%c80, %c0_66] : memref<128x256xf32, #tpu.memory_space<vmem>>, vector<8x256xf32>
    %201 = arith.select %18, %199, %200 : vector<8x256xi1>, vector<8x256xf32>
    %cst_67 = arith.constant dense<0.000000e+00> : vector<8x256xf32>
    %202 = tpu.matmul %194, %26, %cst_67 {dimension_numbers = #tpu.dot_dimension_numbers<[1], [0], [0], [1], [0, 0, 1, 1], [], []>} : vector<8x64xf32>, vector<64x256xf32>, vector<8x256xf32> -> vector<8x256xf32>
    %203 = arith.addf %201, %202 : vector<8x256xf32>
    %204 = vector.extract_strided_slice %203 {offsets = [0, 0], sizes = [8, 64], strides = [1, 1]} : vector<8x256xf32> to vector<8x64xf32>
    %205 = arith.negf %204 : vector<8x64xf32>
    %206 = math.exp %205 : vector<8x64xf32>
    %cst_68 = arith.constant 1.000000e+00 : f32
    %207 = vector.broadcast %cst_68 : f32 to vector<8x64xf32>
    %208 = arith.addf %207, %206 : vector<8x64xf32>
    %209 = arith.divf %207, %208 : vector<8x64xf32>
    %210 = vector.extract_strided_slice %203 {offsets = [0, 64], sizes = [8, 64], strides = [1, 1]} : vector<8x256xf32> to vector<8x64xf32>
    %211 = arith.negf %210 : vector<8x64xf32>
    %212 = math.exp %211 : vector<8x64xf32>
    %cst_69 = arith.constant 1.000000e+00 : f32
    %213 = vector.broadcast %cst_69 : f32 to vector<8x64xf32>
    %214 = arith.addf %213, %212 : vector<8x64xf32>
    %215 = arith.divf %213, %214 : vector<8x64xf32>
    %216 = vector.extract_strided_slice %203 {offsets = [0, 128], sizes = [8, 64], strides = [1, 1]} : vector<8x256xf32> to vector<8x64xf32>
    %217 = math.tanh %216 : vector<8x64xf32>
    %218 = vector.extract_strided_slice %203 {offsets = [0, 192], sizes = [8, 64], strides = [1, 1]} : vector<8x256xf32> to vector<8x64xf32>
    %219 = arith.negf %218 : vector<8x64xf32>
    %220 = math.exp %219 : vector<8x64xf32>
    %cst_70 = arith.constant 1.000000e+00 : f32
    %221 = vector.broadcast %cst_70 : f32 to vector<8x64xf32>
    %222 = arith.addf %221, %220 : vector<8x64xf32>
    %223 = arith.divf %221, %222 : vector<8x64xf32>
    %224 = arith.mulf %215, %192 : vector<8x64xf32>
    %225 = arith.mulf %209, %217 : vector<8x64xf32>
    %226 = arith.addf %224, %225 : vector<8x64xf32>
    %227 = math.tanh %226 : vector<8x64xf32>
    %228 = arith.mulf %223, %227 : vector<8x64xf32>
    %229 = vector.extract_strided_slice %228 {offsets = [0, 0], sizes = [8, 32], strides = [1, 1]} : vector<8x64xf32> to vector<8x32xf32>
    %c40_71 = arith.constant 40 : index
    %c0_72 = arith.constant 0 : index
    %230 = vector.load %arg10[%c40_71, %c0_72] : memref<128x64xf32, #tpu.memory_space<vmem>>, vector<8x32xf32>
    tpu.vector_store %arg10[%c40_71, %c0_72], %229 {strides = array<i32>} : memref<128x64xf32, #tpu.memory_space<vmem>>, vector<8x32xf32>,
    %231 = vector.extract_strided_slice %228 {offsets = [0, 32], sizes = [8, 32], strides = [1, 1]} : vector<8x64xf32> to vector<8x32xf32>
    %c80_73 = arith.constant 80 : index
    %c32_74 = arith.constant 32 : index
    %232 = vector.load %arg10[%c80_73, %c32_74] : memref<128x64xf32, #tpu.memory_space<vmem>>, vector<8x32xf32>
    tpu.vector_store %arg10[%c80_73, %c32_74], %231 {strides = array<i32>} : memref<128x64xf32, #tpu.memory_space<vmem>>, vector<8x32xf32>,
    %c48 = arith.constant 48 : index
    %c0_75 = arith.constant 0 : index
    %233 = vector.load %arg9[%c48, %c0_75] : memref<128x256xf32, #tpu.memory_space<vmem>>, vector<8x256xf32>
    %c72 = arith.constant 72 : index
    %c0_76 = arith.constant 0 : index
    %234 = vector.load %arg9[%c72, %c0_76] : memref<128x256xf32, #tpu.memory_space<vmem>>, vector<8x256xf32>
    %235 = arith.select %18, %233, %234 : vector<8x256xi1>, vector<8x256xf32>
    %cst_77 = arith.constant dense<0.000000e+00> : vector<8x256xf32>
    %236 = tpu.matmul %228, %26, %cst_77 {dimension_numbers = #tpu.dot_dimension_numbers<[1], [0], [0], [1], [0, 0, 1, 1], [], []>} : vector<8x64xf32>, vector<64x256xf32>, vector<8x256xf32> -> vector<8x256xf32>
    %237 = arith.addf %235, %236 : vector<8x256xf32>
    %238 = vector.extract_strided_slice %237 {offsets = [0, 0], sizes = [8, 64], strides = [1, 1]} : vector<8x256xf32> to vector<8x64xf32>
    %239 = arith.negf %238 : vector<8x64xf32>
    %240 = math.exp %239 : vector<8x64xf32>
    %cst_78 = arith.constant 1.000000e+00 : f32
    %241 = vector.broadcast %cst_78 : f32 to vector<8x64xf32>
    %242 = arith.addf %241, %240 : vector<8x64xf32>
    %243 = arith.divf %241, %242 : vector<8x64xf32>
    %244 = vector.extract_strided_slice %237 {offsets = [0, 64], sizes = [8, 64], strides = [1, 1]} : vector<8x256xf32> to vector<8x64xf32>
    %245 = arith.negf %244 : vector<8x64xf32>
    %246 = math.exp %245 : vector<8x64xf32>
    %cst_79 = arith.constant 1.000000e+00 : f32
    %247 = vector.broadcast %cst_79 : f32 to vector<8x64xf32>
    %248 = arith.addf %247, %246 : vector<8x64xf32>
    %249 = arith.divf %247, %248 : vector<8x64xf32>
    %250 = vector.extract_strided_slice %237 {offsets = [0, 128], sizes = [8, 64], strides = [1, 1]} : vector<8x256xf32> to vector<8x64xf32>
    %251 = math.tanh %250 : vector<8x64xf32>
    %252 = vector.extract_strided_slice %237 {offsets = [0, 192], sizes = [8, 64], strides = [1, 1]} : vector<8x256xf32> to vector<8x64xf32>
    %253 = arith.negf %252 : vector<8x64xf32>
    %254 = math.exp %253 : vector<8x64xf32>
    %cst_80 = arith.constant 1.000000e+00 : f32
    %255 = vector.broadcast %cst_80 : f32 to vector<8x64xf32>
    %256 = arith.addf %255, %254 : vector<8x64xf32>
    %257 = arith.divf %255, %256 : vector<8x64xf32>
    %258 = arith.mulf %249, %226 : vector<8x64xf32>
    %259 = arith.mulf %243, %251 : vector<8x64xf32>
    %260 = arith.addf %258, %259 : vector<8x64xf32>
    %261 = math.tanh %260 : vector<8x64xf32>
    %262 = arith.mulf %257, %261 : vector<8x64xf32>
    %263 = vector.extract_strided_slice %262 {offsets = [0, 0], sizes = [8, 32], strides = [1, 1]} : vector<8x64xf32> to vector<8x32xf32>
    %c48_81 = arith.constant 48 : index
    %c0_82 = arith.constant 0 : index
    %264 = vector.load %arg10[%c48_81, %c0_82] : memref<128x64xf32, #tpu.memory_space<vmem>>, vector<8x32xf32>
    tpu.vector_store %arg10[%c48_81, %c0_82], %263 {strides = array<i32>} : memref<128x64xf32, #tpu.memory_space<vmem>>, vector<8x32xf32>,
    %265 = vector.extract_strided_slice %262 {offsets = [0, 32], sizes = [8, 32], strides = [1, 1]} : vector<8x64xf32> to vector<8x32xf32>
    %c72_83 = arith.constant 72 : index
    %c32_84 = arith.constant 32 : index
    %266 = vector.load %arg10[%c72_83, %c32_84] : memref<128x64xf32, #tpu.memory_space<vmem>>, vector<8x32xf32>
    tpu.vector_store %arg10[%c72_83, %c32_84], %265 {strides = array<i32>} : memref<128x64xf32, #tpu.memory_space<vmem>>, vector<8x32xf32>,
    %c56 = arith.constant 56 : index
    %c0_85 = arith.constant 0 : index
    %267 = vector.load %arg9[%c56, %c0_85] : memref<128x256xf32, #tpu.memory_space<vmem>>, vector<8x256xf32>
    %c64 = arith.constant 64 : index
    %c0_86 = arith.constant 0 : index
    %268 = vector.load %arg9[%c64, %c0_86] : memref<128x256xf32, #tpu.memory_space<vmem>>, vector<8x256xf32>
    %269 = arith.select %18, %267, %268 : vector<8x256xi1>, vector<8x256xf32>
    %cst_87 = arith.constant dense<0.000000e+00> : vector<8x256xf32>
    %270 = tpu.matmul %262, %26, %cst_87 {dimension_numbers = #tpu.dot_dimension_numbers<[1], [0], [0], [1], [0, 0, 1, 1], [], []>} : vector<8x64xf32>, vector<64x256xf32>, vector<8x256xf32> -> vector<8x256xf32>
    %271 = arith.addf %269, %270 : vector<8x256xf32>
    %272 = vector.extract_strided_slice %271 {offsets = [0, 0], sizes = [8, 64], strides = [1, 1]} : vector<8x256xf32> to vector<8x64xf32>
    %273 = arith.negf %272 : vector<8x64xf32>
    %274 = math.exp %273 : vector<8x64xf32>
    %cst_88 = arith.constant 1.000000e+00 : f32
    %275 = vector.broadcast %cst_88 : f32 to vector<8x64xf32>
    %276 = arith.addf %275, %274 : vector<8x64xf32>
    %277 = arith.divf %275, %276 : vector<8x64xf32>
    %278 = vector.extract_strided_slice %271 {offsets = [0, 64], sizes = [8, 64], strides = [1, 1]} : vector<8x256xf32> to vector<8x64xf32>
    %279 = arith.negf %278 : vector<8x64xf32>
    %280 = math.exp %279 : vector<8x64xf32>
    %cst_89 = arith.constant 1.000000e+00 : f32
    %281 = vector.broadcast %cst_89 : f32 to vector<8x64xf32>
    %282 = arith.addf %281, %280 : vector<8x64xf32>
    %283 = arith.divf %281, %282 : vector<8x64xf32>
    %284 = vector.extract_strided_slice %271 {offsets = [0, 128], sizes = [8, 64], strides = [1, 1]} : vector<8x256xf32> to vector<8x64xf32>
    %285 = math.tanh %284 : vector<8x64xf32>
    %286 = vector.extract_strided_slice %271 {offsets = [0, 192], sizes = [8, 64], strides = [1, 1]} : vector<8x256xf32> to vector<8x64xf32>
    %287 = arith.negf %286 : vector<8x64xf32>
    %288 = math.exp %287 : vector<8x64xf32>
    %cst_90 = arith.constant 1.000000e+00 : f32
    %289 = vector.broadcast %cst_90 : f32 to vector<8x64xf32>
    %290 = arith.addf %289, %288 : vector<8x64xf32>
    %291 = arith.divf %289, %290 : vector<8x64xf32>
    %292 = arith.mulf %283, %260 : vector<8x64xf32>
    %293 = arith.mulf %277, %285 : vector<8x64xf32>
    %294 = arith.addf %292, %293 : vector<8x64xf32>
    %295 = math.tanh %294 : vector<8x64xf32>
    %296 = arith.mulf %291, %295 : vector<8x64xf32>
    %297 = vector.extract_strided_slice %296 {offsets = [0, 0], sizes = [8, 32], strides = [1, 1]} : vector<8x64xf32> to vector<8x32xf32>
    %c56_91 = arith.constant 56 : index
    %c0_92 = arith.constant 0 : index
    %298 = vector.load %arg10[%c56_91, %c0_92] : memref<128x64xf32, #tpu.memory_space<vmem>>, vector<8x32xf32>
    tpu.vector_store %arg10[%c56_91, %c0_92], %297 {strides = array<i32>} : memref<128x64xf32, #tpu.memory_space<vmem>>, vector<8x32xf32>,
    %299 = vector.extract_strided_slice %296 {offsets = [0, 32], sizes = [8, 32], strides = [1, 1]} : vector<8x64xf32> to vector<8x32xf32>
    %c64_93 = arith.constant 64 : index
    %c32_94 = arith.constant 32 : index
    %300 = vector.load %arg10[%c64_93, %c32_94] : memref<128x64xf32, #tpu.memory_space<vmem>>, vector<8x32xf32>
    tpu.vector_store %arg10[%c64_93, %c32_94], %299 {strides = array<i32>} : memref<128x64xf32, #tpu.memory_space<vmem>>, vector<8x32xf32>,
    %c64_95 = arith.constant 64 : index
    %c0_96 = arith.constant 0 : index
    %301 = vector.load %arg9[%c64_95, %c0_96] : memref<128x256xf32, #tpu.memory_space<vmem>>, vector<8x256xf32>
    %c56_97 = arith.constant 56 : index
    %c0_98 = arith.constant 0 : index
    %302 = vector.load %arg9[%c56_97, %c0_98] : memref<128x256xf32, #tpu.memory_space<vmem>>, vector<8x256xf32>
    %303 = arith.select %18, %301, %302 : vector<8x256xi1>, vector<8x256xf32>
    %cst_99 = arith.constant dense<0.000000e+00> : vector<8x256xf32>
    %304 = tpu.matmul %296, %26, %cst_99 {dimension_numbers = #tpu.dot_dimension_numbers<[1], [0], [0], [1], [0, 0, 1, 1], [], []>} : vector<8x64xf32>, vector<64x256xf32>, vector<8x256xf32> -> vector<8x256xf32>
    %305 = arith.addf %303, %304 : vector<8x256xf32>
    %306 = vector.extract_strided_slice %305 {offsets = [0, 0], sizes = [8, 64], strides = [1, 1]} : vector<8x256xf32> to vector<8x64xf32>
    %307 = arith.negf %306 : vector<8x64xf32>
    %308 = math.exp %307 : vector<8x64xf32>
    %cst_100 = arith.constant 1.000000e+00 : f32
    %309 = vector.broadcast %cst_100 : f32 to vector<8x64xf32>
    %310 = arith.addf %309, %308 : vector<8x64xf32>
    %311 = arith.divf %309, %310 : vector<8x64xf32>
    %312 = vector.extract_strided_slice %305 {offsets = [0, 64], sizes = [8, 64], strides = [1, 1]} : vector<8x256xf32> to vector<8x64xf32>
    %313 = arith.negf %312 : vector<8x64xf32>
    %314 = math.exp %313 : vector<8x64xf32>
    %cst_101 = arith.constant 1.000000e+00 : f32
    %315 = vector.broadcast %cst_101 : f32 to vector<8x64xf32>
    %316 = arith.addf %315, %314 : vector<8x64xf32>
    %317 = arith.divf %315, %316 : vector<8x64xf32>
    %318 = vector.extract_strided_slice %305 {offsets = [0, 128], sizes = [8, 64], strides = [1, 1]} : vector<8x256xf32> to vector<8x64xf32>
    %319 = math.tanh %318 : vector<8x64xf32>
    %320 = vector.extract_strided_slice %305 {offsets = [0, 192], sizes = [8, 64], strides = [1, 1]} : vector<8x256xf32> to vector<8x64xf32>
    %321 = arith.negf %320 : vector<8x64xf32>
    %322 = math.exp %321 : vector<8x64xf32>
    %cst_102 = arith.constant 1.000000e+00 : f32
    %323 = vector.broadcast %cst_102 : f32 to vector<8x64xf32>
    %324 = arith.addf %323, %322 : vector<8x64xf32>
    %325 = arith.divf %323, %324 : vector<8x64xf32>
    %326 = arith.mulf %317, %294 : vector<8x64xf32>
    %327 = arith.mulf %311, %319 : vector<8x64xf32>
    %328 = arith.addf %326, %327 : vector<8x64xf32>
    %329 = math.tanh %328 : vector<8x64xf32>
    %330 = arith.mulf %325, %329 : vector<8x64xf32>
    %331 = vector.extract_strided_slice %330 {offsets = [0, 0], sizes = [8, 32], strides = [1, 1]} : vector<8x64xf32> to vector<8x32xf32>
    %c64_103 = arith.constant 64 : index
    %c0_104 = arith.constant 0 : index
    %332 = vector.load %arg10[%c64_103, %c0_104] : memref<128x64xf32, #tpu.memory_space<vmem>>, vector<8x32xf32>
    tpu.vector_store %arg10[%c64_103, %c0_104], %331 {strides = array<i32>} : memref<128x64xf32, #tpu.memory_space<vmem>>, vector<8x32xf32>,
    %333 = vector.extract_strided_slice %330 {offsets = [0, 32], sizes = [8, 32], strides = [1, 1]} : vector<8x64xf32> to vector<8x32xf32>
    %c56_105 = arith.constant 56 : index
    %c32_106 = arith.constant 32 : index
    %334 = vector.load %arg10[%c56_105, %c32_106] : memref<128x64xf32, #tpu.memory_space<vmem>>, vector<8x32xf32>
    tpu.vector_store %arg10[%c56_105, %c32_106], %333 {strides = array<i32>} : memref<128x64xf32, #tpu.memory_space<vmem>>, vector<8x32xf32>,
    %c72_107 = arith.constant 72 : index
    %c0_108 = arith.constant 0 : index
    %335 = vector.load %arg9[%c72_107, %c0_108] : memref<128x256xf32, #tpu.memory_space<vmem>>, vector<8x256xf32>
    %c48_109 = arith.constant 48 : index
    %c0_110 = arith.constant 0 : index
    %336 = vector.load %arg9[%c48_109, %c0_110] : memref<128x256xf32, #tpu.memory_space<vmem>>, vector<8x256xf32>
    %337 = arith.select %18, %335, %336 : vector<8x256xi1>, vector<8x256xf32>
    %cst_111 = arith.constant dense<0.000000e+00> : vector<8x256xf32>
    %338 = tpu.matmul %330, %26, %cst_111 {dimension_numbers = #tpu.dot_dimension_numbers<[1], [0], [0], [1], [0, 0, 1, 1], [], []>} : vector<8x64xf32>, vector<64x256xf32>, vector<8x256xf32> -> vector<8x256xf32>
    %339 = arith.addf %337, %338 : vector<8x256xf32>
    %340 = vector.extract_strided_slice %339 {offsets = [0, 0], sizes = [8, 64], strides = [1, 1]} : vector<8x256xf32> to vector<8x64xf32>
    %341 = arith.negf %340 : vector<8x64xf32>
    %342 = math.exp %341 : vector<8x64xf32>
    %cst_112 = arith.constant 1.000000e+00 : f32
    %343 = vector.broadcast %cst_112 : f32 to vector<8x64xf32>
    %344 = arith.addf %343, %342 : vector<8x64xf32>
    %345 = arith.divf %343, %344 : vector<8x64xf32>
    %346 = vector.extract_strided_slice %339 {offsets = [0, 64], sizes = [8, 64], strides = [1, 1]} : vector<8x256xf32> to vector<8x64xf32>
    %347 = arith.negf %346 : vector<8x64xf32>
    %348 = math.exp %347 : vector<8x64xf32>
    %cst_113 = arith.constant 1.000000e+00 : f32
    %349 = vector.broadcast %cst_113 : f32 to vector<8x64xf32>
    %350 = arith.addf %349, %348 : vector<8x64xf32>
    %351 = arith.divf %349, %350 : vector<8x64xf32>
    %352 = vector.extract_strided_slice %339 {offsets = [0, 128], sizes = [8, 64], strides = [1, 1]} : vector<8x256xf32> to vector<8x64xf32>
    %353 = math.tanh %352 : vector<8x64xf32>
    %354 = vector.extract_strided_slice %339 {offsets = [0, 192], sizes = [8, 64], strides = [1, 1]} : vector<8x256xf32> to vector<8x64xf32>
    %355 = arith.negf %354 : vector<8x64xf32>
    %356 = math.exp %355 : vector<8x64xf32>
    %cst_114 = arith.constant 1.000000e+00 : f32
    %357 = vector.broadcast %cst_114 : f32 to vector<8x64xf32>
    %358 = arith.addf %357, %356 : vector<8x64xf32>
    %359 = arith.divf %357, %358 : vector<8x64xf32>
    %360 = arith.mulf %351, %328 : vector<8x64xf32>
    %361 = arith.mulf %345, %353 : vector<8x64xf32>
    %362 = arith.addf %360, %361 : vector<8x64xf32>
    %363 = math.tanh %362 : vector<8x64xf32>
    %364 = arith.mulf %359, %363 : vector<8x64xf32>
    %365 = vector.extract_strided_slice %364 {offsets = [0, 0], sizes = [8, 32], strides = [1, 1]} : vector<8x64xf32> to vector<8x32xf32>
    %c72_115 = arith.constant 72 : index
    %c0_116 = arith.constant 0 : index
    %366 = vector.load %arg10[%c72_115, %c0_116] : memref<128x64xf32, #tpu.memory_space<vmem>>, vector<8x32xf32>
    tpu.vector_store %arg10[%c72_115, %c0_116], %365 {strides = array<i32>} : memref<128x64xf32, #tpu.memory_space<vmem>>, vector<8x32xf32>,
    %367 = vector.extract_strided_slice %364 {offsets = [0, 32], sizes = [8, 32], strides = [1, 1]} : vector<8x64xf32> to vector<8x32xf32>
    %c48_117 = arith.constant 48 : index
    %c32_118 = arith.constant 32 : index
    %368 = vector.load %arg10[%c48_117, %c32_118] : memref<128x64xf32, #tpu.memory_space<vmem>>, vector<8x32xf32>
    tpu.vector_store %arg10[%c48_117, %c32_118], %367 {strides = array<i32>} : memref<128x64xf32, #tpu.memory_space<vmem>>, vector<8x32xf32>,
    %c80_119 = arith.constant 80 : index
    %c0_120 = arith.constant 0 : index
    %369 = vector.load %arg9[%c80_119, %c0_120] : memref<128x256xf32, #tpu.memory_space<vmem>>, vector<8x256xf32>
    %c40_121 = arith.constant 40 : index
    %c0_122 = arith.constant 0 : index
    %370 = vector.load %arg9[%c40_121, %c0_122] : memref<128x256xf32, #tpu.memory_space<vmem>>, vector<8x256xf32>
    %371 = arith.select %18, %369, %370 : vector<8x256xi1>, vector<8x256xf32>
    %cst_123 = arith.constant dense<0.000000e+00> : vector<8x256xf32>
    %372 = tpu.matmul %364, %26, %cst_123 {dimension_numbers = #tpu.dot_dimension_numbers<[1], [0], [0], [1], [0, 0, 1, 1], [], []>} : vector<8x64xf32>, vector<64x256xf32>, vector<8x256xf32> -> vector<8x256xf32>
    %373 = arith.addf %371, %372 : vector<8x256xf32>
    %374 = vector.extract_strided_slice %373 {offsets = [0, 0], sizes = [8, 64], strides = [1, 1]} : vector<8x256xf32> to vector<8x64xf32>
    %375 = arith.negf %374 : vector<8x64xf32>
    %376 = math.exp %375 : vector<8x64xf32>
    %cst_124 = arith.constant 1.000000e+00 : f32
    %377 = vector.broadcast %cst_124 : f32 to vector<8x64xf32>
    %378 = arith.addf %377, %376 : vector<8x64xf32>
    %379 = arith.divf %377, %378 : vector<8x64xf32>
    %380 = vector.extract_strided_slice %373 {offsets = [0, 64], sizes = [8, 64], strides = [1, 1]} : vector<8x256xf32> to vector<8x64xf32>
    %381 = arith.negf %380 : vector<8x64xf32>
    %382 = math.exp %381 : vector<8x64xf32>
    %cst_125 = arith.constant 1.000000e+00 : f32
    %383 = vector.broadcast %cst_125 : f32 to vector<8x64xf32>
    %384 = arith.addf %383, %382 : vector<8x64xf32>
    %385 = arith.divf %383, %384 : vector<8x64xf32>
    %386 = vector.extract_strided_slice %373 {offsets = [0, 128], sizes = [8, 64], strides = [1, 1]} : vector<8x256xf32> to vector<8x64xf32>
    %387 = math.tanh %386 : vector<8x64xf32>
    %388 = vector.extract_strided_slice %373 {offsets = [0, 192], sizes = [8, 64], strides = [1, 1]} : vector<8x256xf32> to vector<8x64xf32>
    %389 = arith.negf %388 : vector<8x64xf32>
    %390 = math.exp %389 : vector<8x64xf32>
    %cst_126 = arith.constant 1.000000e+00 : f32
    %391 = vector.broadcast %cst_126 : f32 to vector<8x64xf32>
    %392 = arith.addf %391, %390 : vector<8x64xf32>
    %393 = arith.divf %391, %392 : vector<8x64xf32>
    %394 = arith.mulf %385, %362 : vector<8x64xf32>
    %395 = arith.mulf %379, %387 : vector<8x64xf32>
    %396 = arith.addf %394, %395 : vector<8x64xf32>
    %397 = math.tanh %396 : vector<8x64xf32>
    %398 = arith.mulf %393, %397 : vector<8x64xf32>
    %399 = vector.extract_strided_slice %398 {offsets = [0, 0], sizes = [8, 32], strides = [1, 1]} : vector<8x64xf32> to vector<8x32xf32>
    %c80_127 = arith.constant 80 : index
    %c0_128 = arith.constant 0 : index
    %400 = vector.load %arg10[%c80_127, %c0_128] : memref<128x64xf32, #tpu.memory_space<vmem>>, vector<8x32xf32>
    tpu.vector_store %arg10[%c80_127, %c0_128], %399 {strides = array<i32>} : memref<128x64xf32, #tpu.memory_space<vmem>>, vector<8x32xf32>,
    %401 = vector.extract_strided_slice %398 {offsets = [0, 32], sizes = [8, 32], strides = [1, 1]} : vector<8x64xf32> to vector<8x32xf32>
    %c40_129 = arith.constant 40 : index
    %c32_130 = arith.constant 32 : index
    %402 = vector.load %arg10[%c40_129, %c32_130] : memref<128x64xf32, #tpu.memory_space<vmem>>, vector<8x32xf32>
    tpu.vector_store %arg10[%c40_129, %c32_130], %401 {strides = array<i32>} : memref<128x64xf32, #tpu.memory_space<vmem>>, vector<8x32xf32>,
    %c88_131 = arith.constant 88 : index
    %c0_132 = arith.constant 0 : index
    %403 = vector.load %arg9[%c88_131, %c0_132] : memref<128x256xf32, #tpu.memory_space<vmem>>, vector<8x256xf32>
    %c32_133 = arith.constant 32 : index
    %c0_134 = arith.constant 0 : index
    %404 = vector.load %arg9[%c32_133, %c0_134] : memref<128x256xf32, #tpu.memory_space<vmem>>, vector<8x256xf32>
    %405 = arith.select %18, %403, %404 : vector<8x256xi1>, vector<8x256xf32>
    %cst_135 = arith.constant dense<0.000000e+00> : vector<8x256xf32>
    %406 = tpu.matmul %398, %26, %cst_135 {dimension_numbers = #tpu.dot_dimension_numbers<[1], [0], [0], [1], [0, 0, 1, 1], [], []>} : vector<8x64xf32>, vector<64x256xf32>, vector<8x256xf32> -> vector<8x256xf32>
    %407 = arith.addf %405, %406 : vector<8x256xf32>
    %408 = vector.extract_strided_slice %407 {offsets = [0, 0], sizes = [8, 64], strides = [1, 1]} : vector<8x256xf32> to vector<8x64xf32>
    %409 = arith.negf %408 : vector<8x64xf32>
    %410 = math.exp %409 : vector<8x64xf32>
    %cst_136 = arith.constant 1.000000e+00 : f32
    %411 = vector.broadcast %cst_136 : f32 to vector<8x64xf32>
    %412 = arith.addf %411, %410 : vector<8x64xf32>
    %413 = arith.divf %411, %412 : vector<8x64xf32>
    %414 = vector.extract_strided_slice %407 {offsets = [0, 64], sizes = [8, 64], strides = [1, 1]} : vector<8x256xf32> to vector<8x64xf32>
    %415 = arith.negf %414 : vector<8x64xf32>
    %416 = math.exp %415 : vector<8x64xf32>
    %cst_137 = arith.constant 1.000000e+00 : f32
    %417 = vector.broadcast %cst_137 : f32 to vector<8x64xf32>
    %418 = arith.addf %417, %416 : vector<8x64xf32>
    %419 = arith.divf %417, %418 : vector<8x64xf32>
    %420 = vector.extract_strided_slice %407 {offsets = [0, 128], sizes = [8, 64], strides = [1, 1]} : vector<8x256xf32> to vector<8x64xf32>
    %421 = math.tanh %420 : vector<8x64xf32>
    %422 = vector.extract_strided_slice %407 {offsets = [0, 192], sizes = [8, 64], strides = [1, 1]} : vector<8x256xf32> to vector<8x64xf32>
    %423 = arith.negf %422 : vector<8x64xf32>
    %424 = math.exp %423 : vector<8x64xf32>
    %cst_138 = arith.constant 1.000000e+00 : f32
    %425 = vector.broadcast %cst_138 : f32 to vector<8x64xf32>
    %426 = arith.addf %425, %424 : vector<8x64xf32>
    %427 = arith.divf %425, %426 : vector<8x64xf32>
    %428 = arith.mulf %419, %396 : vector<8x64xf32>
    %429 = arith.mulf %413, %421 : vector<8x64xf32>
    %430 = arith.addf %428, %429 : vector<8x64xf32>
    %431 = math.tanh %430 : vector<8x64xf32>
    %432 = arith.mulf %427, %431 : vector<8x64xf32>
    %433 = vector.extract_strided_slice %432 {offsets = [0, 0], sizes = [8, 32], strides = [1, 1]} : vector<8x64xf32> to vector<8x32xf32>
    %c88_139 = arith.constant 88 : index
    %c0_140 = arith.constant 0 : index
    %434 = vector.load %arg10[%c88_139, %c0_140] : memref<128x64xf32, #tpu.memory_space<vmem>>, vector<8x32xf32>
    tpu.vector_store %arg10[%c88_139, %c0_140], %433 {strides = array<i32>} : memref<128x64xf32, #tpu.memory_space<vmem>>, vector<8x32xf32>,
    %435 = vector.extract_strided_slice %432 {offsets = [0, 32], sizes = [8, 32], strides = [1, 1]} : vector<8x64xf32> to vector<8x32xf32>
    %c32_141 = arith.constant 32 : index
    %c32_142 = arith.constant 32 : index
    %436 = vector.load %arg10[%c32_141, %c32_142] : memref<128x64xf32, #tpu.memory_space<vmem>>, vector<8x32xf32>
    tpu.vector_store %arg10[%c32_141, %c32_142], %435 {strides = array<i32>} : memref<128x64xf32, #tpu.memory_space<vmem>>, vector<8x32xf32>,
    %c96_143 = arith.constant 96 : index
    %c0_144 = arith.constant 0 : index
    %437 = vector.load %arg9[%c96_143, %c0_144] : memref<128x256xf32, #tpu.memory_space<vmem>>, vector<8x256xf32>
    %c24_145 = arith.constant 24 : index
    %c0_146 = arith.constant 0 : index
    %438 = vector.load %arg9[%c24_145, %c0_146] : memref<128x256xf32, #tpu.memory_space<vmem>>, vector<8x256xf32>
    %439 = arith.select %18, %437, %438 : vector<8x256xi1>, vector<8x256xf32>
    %cst_147 = arith.constant dense<0.000000e+00> : vector<8x256xf32>
    %440 = tpu.matmul %432, %26, %cst_147 {dimension_numbers = #tpu.dot_dimension_numbers<[1], [0], [0], [1], [0, 0, 1, 1], [], []>} : vector<8x64xf32>, vector<64x256xf32>, vector<8x256xf32> -> vector<8x256xf32>
    %441 = arith.addf %439, %440 : vector<8x256xf32>
    %442 = vector.extract_strided_slice %441 {offsets = [0, 0], sizes = [8, 64], strides = [1, 1]} : vector<8x256xf32> to vector<8x64xf32>
    %443 = arith.negf %442 : vector<8x64xf32>
    %444 = math.exp %443 : vector<8x64xf32>
    %cst_148 = arith.constant 1.000000e+00 : f32
    %445 = vector.broadcast %cst_148 : f32 to vector<8x64xf32>
    %446 = arith.addf %445, %444 : vector<8x64xf32>
    %447 = arith.divf %445, %446 : vector<8x64xf32>
    %448 = vector.extract_strided_slice %441 {offsets = [0, 64], sizes = [8, 64], strides = [1, 1]} : vector<8x256xf32> to vector<8x64xf32>
    %449 = arith.negf %448 : vector<8x64xf32>
    %450 = math.exp %449 : vector<8x64xf32>
    %cst_149 = arith.constant 1.000000e+00 : f32
    %451 = vector.broadcast %cst_149 : f32 to vector<8x64xf32>
    %452 = arith.addf %451, %450 : vector<8x64xf32>
    %453 = arith.divf %451, %452 : vector<8x64xf32>
    %454 = vector.extract_strided_slice %441 {offsets = [0, 128], sizes = [8, 64], strides = [1, 1]} : vector<8x256xf32> to vector<8x64xf32>
    %455 = math.tanh %454 : vector<8x64xf32>
    %456 = vector.extract_strided_slice %441 {offsets = [0, 192], sizes = [8, 64], strides = [1, 1]} : vector<8x256xf32> to vector<8x64xf32>
    %457 = arith.negf %456 : vector<8x64xf32>
    %458 = math.exp %457 : vector<8x64xf32>
    %cst_150 = arith.constant 1.000000e+00 : f32
    %459 = vector.broadcast %cst_150 : f32 to vector<8x64xf32>
    %460 = arith.addf %459, %458 : vector<8x64xf32>
    %461 = arith.divf %459, %460 : vector<8x64xf32>
    %462 = arith.mulf %453, %430 : vector<8x64xf32>
    %463 = arith.mulf %447, %455 : vector<8x64xf32>
    %464 = arith.addf %462, %463 : vector<8x64xf32>
    %465 = math.tanh %464 : vector<8x64xf32>
    %466 = arith.mulf %461, %465 : vector<8x64xf32>
    %467 = vector.extract_strided_slice %466 {offsets = [0, 0], sizes = [8, 32], strides = [1, 1]} : vector<8x64xf32> to vector<8x32xf32>
    %c96_151 = arith.constant 96 : index
    %c0_152 = arith.constant 0 : index
    %468 = vector.load %arg10[%c96_151, %c0_152] : memref<128x64xf32, #tpu.memory_space<vmem>>, vector<8x32xf32>
    tpu.vector_store %arg10[%c96_151, %c0_152], %467 {strides = array<i32>} : memref<128x64xf32, #tpu.memory_space<vmem>>, vector<8x32xf32>,
    %469 = vector.extract_strided_slice %466 {offsets = [0, 32], sizes = [8, 32], strides = [1, 1]} : vector<8x64xf32> to vector<8x32xf32>
    %c24_153 = arith.constant 24 : index
    %c32_154 = arith.constant 32 : index
    %470 = vector.load %arg10[%c24_153, %c32_154] : memref<128x64xf32, #tpu.memory_space<vmem>>, vector<8x32xf32>
    tpu.vector_store %arg10[%c24_153, %c32_154], %469 {strides = array<i32>} : memref<128x64xf32, #tpu.memory_space<vmem>>, vector<8x32xf32>,
    %c104_155 = arith.constant 104 : index
    %c0_156 = arith.constant 0 : index
    %471 = vector.load %arg9[%c104_155, %c0_156] : memref<128x256xf32, #tpu.memory_space<vmem>>, vector<8x256xf32>
    %c16_157 = arith.constant 16 : index
    %c0_158 = arith.constant 0 : index
    %472 = vector.load %arg9[%c16_157, %c0_158] : memref<128x256xf32, #tpu.memory_space<vmem>>, vector<8x256xf32>
    %473 = arith.select %18, %471, %472 : vector<8x256xi1>, vector<8x256xf32>
    %cst_159 = arith.constant dense<0.000000e+00> : vector<8x256xf32>
    %474 = tpu.matmul %466, %26, %cst_159 {dimension_numbers = #tpu.dot_dimension_numbers<[1], [0], [0], [1], [0, 0, 1, 1], [], []>} : vector<8x64xf32>, vector<64x256xf32>, vector<8x256xf32> -> vector<8x256xf32>
    %475 = arith.addf %473, %474 : vector<8x256xf32>
    %476 = vector.extract_strided_slice %475 {offsets = [0, 0], sizes = [8, 64], strides = [1, 1]} : vector<8x256xf32> to vector<8x64xf32>
    %477 = arith.negf %476 : vector<8x64xf32>
    %478 = math.exp %477 : vector<8x64xf32>
    %cst_160 = arith.constant 1.000000e+00 : f32
    %479 = vector.broadcast %cst_160 : f32 to vector<8x64xf32>
    %480 = arith.addf %479, %478 : vector<8x64xf32>
    %481 = arith.divf %479, %480 : vector<8x64xf32>
    %482 = vector.extract_strided_slice %475 {offsets = [0, 64], sizes = [8, 64], strides = [1, 1]} : vector<8x256xf32> to vector<8x64xf32>
    %483 = arith.negf %482 : vector<8x64xf32>
    %484 = math.exp %483 : vector<8x64xf32>
    %cst_161 = arith.constant 1.000000e+00 : f32
    %485 = vector.broadcast %cst_161 : f32 to vector<8x64xf32>
    %486 = arith.addf %485, %484 : vector<8x64xf32>
    %487 = arith.divf %485, %486 : vector<8x64xf32>
    %488 = vector.extract_strided_slice %475 {offsets = [0, 128], sizes = [8, 64], strides = [1, 1]} : vector<8x256xf32> to vector<8x64xf32>
    %489 = math.tanh %488 : vector<8x64xf32>
    %490 = vector.extract_strided_slice %475 {offsets = [0, 192], sizes = [8, 64], strides = [1, 1]} : vector<8x256xf32> to vector<8x64xf32>
    %491 = arith.negf %490 : vector<8x64xf32>
    %492 = math.exp %491 : vector<8x64xf32>
    %cst_162 = arith.constant 1.000000e+00 : f32
    %493 = vector.broadcast %cst_162 : f32 to vector<8x64xf32>
    %494 = arith.addf %493, %492 : vector<8x64xf32>
    %495 = arith.divf %493, %494 : vector<8x64xf32>
    %496 = arith.mulf %487, %464 : vector<8x64xf32>
    %497 = arith.mulf %481, %489 : vector<8x64xf32>
    %498 = arith.addf %496, %497 : vector<8x64xf32>
    %499 = math.tanh %498 : vector<8x64xf32>
    %500 = arith.mulf %495, %499 : vector<8x64xf32>
    %501 = vector.extract_strided_slice %500 {offsets = [0, 0], sizes = [8, 32], strides = [1, 1]} : vector<8x64xf32> to vector<8x32xf32>
    %c104_163 = arith.constant 104 : index
    %c0_164 = arith.constant 0 : index
    %502 = vector.load %arg10[%c104_163, %c0_164] : memref<128x64xf32, #tpu.memory_space<vmem>>, vector<8x32xf32>
    tpu.vector_store %arg10[%c104_163, %c0_164], %501 {strides = array<i32>} : memref<128x64xf32, #tpu.memory_space<vmem>>, vector<8x32xf32>,
    %503 = vector.extract_strided_slice %500 {offsets = [0, 32], sizes = [8, 32], strides = [1, 1]} : vector<8x64xf32> to vector<8x32xf32>
    %c16_165 = arith.constant 16 : index
    %c32_166 = arith.constant 32 : index
    %504 = vector.load %arg10[%c16_165, %c32_166] : memref<128x64xf32, #tpu.memory_space<vmem>>, vector<8x32xf32>
    tpu.vector_store %arg10[%c16_165, %c32_166], %503 {strides = array<i32>} : memref<128x64xf32, #tpu.memory_space<vmem>>, vector<8x32xf32>,
    %c112_167 = arith.constant 112 : index
    %c0_168 = arith.constant 0 : index
    %505 = vector.load %arg9[%c112_167, %c0_168] : memref<128x256xf32, #tpu.memory_space<vmem>>, vector<8x256xf32>
    %c8_169 = arith.constant 8 : index
    %c0_170 = arith.constant 0 : index
    %506 = vector.load %arg9[%c8_169, %c0_170] : memref<128x256xf32, #tpu.memory_space<vmem>>, vector<8x256xf32>
    %507 = arith.select %18, %505, %506 : vector<8x256xi1>, vector<8x256xf32>
    %cst_171 = arith.constant dense<0.000000e+00> : vector<8x256xf32>
    %508 = tpu.matmul %500, %26, %cst_171 {dimension_numbers = #tpu.dot_dimension_numbers<[1], [0], [0], [1], [0, 0, 1, 1], [], []>} : vector<8x64xf32>, vector<64x256xf32>, vector<8x256xf32> -> vector<8x256xf32>
    %509 = arith.addf %507, %508 : vector<8x256xf32>
    %510 = vector.extract_strided_slice %509 {offsets = [0, 0], sizes = [8, 64], strides = [1, 1]} : vector<8x256xf32> to vector<8x64xf32>
    %511 = arith.negf %510 : vector<8x64xf32>
    %512 = math.exp %511 : vector<8x64xf32>
    %cst_172 = arith.constant 1.000000e+00 : f32
    %513 = vector.broadcast %cst_172 : f32 to vector<8x64xf32>
    %514 = arith.addf %513, %512 : vector<8x64xf32>
    %515 = arith.divf %513, %514 : vector<8x64xf32>
    %516 = vector.extract_strided_slice %509 {offsets = [0, 64], sizes = [8, 64], strides = [1, 1]} : vector<8x256xf32> to vector<8x64xf32>
    %517 = arith.negf %516 : vector<8x64xf32>
    %518 = math.exp %517 : vector<8x64xf32>
    %cst_173 = arith.constant 1.000000e+00 : f32
    %519 = vector.broadcast %cst_173 : f32 to vector<8x64xf32>
    %520 = arith.addf %519, %518 : vector<8x64xf32>
    %521 = arith.divf %519, %520 : vector<8x64xf32>
    %522 = vector.extract_strided_slice %509 {offsets = [0, 128], sizes = [8, 64], strides = [1, 1]} : vector<8x256xf32> to vector<8x64xf32>
    %523 = math.tanh %522 : vector<8x64xf32>
    %524 = vector.extract_strided_slice %509 {offsets = [0, 192], sizes = [8, 64], strides = [1, 1]} : vector<8x256xf32> to vector<8x64xf32>
    %525 = arith.negf %524 : vector<8x64xf32>
    %526 = math.exp %525 : vector<8x64xf32>
    %cst_174 = arith.constant 1.000000e+00 : f32
    %527 = vector.broadcast %cst_174 : f32 to vector<8x64xf32>
    %528 = arith.addf %527, %526 : vector<8x64xf32>
    %529 = arith.divf %527, %528 : vector<8x64xf32>
    %530 = arith.mulf %521, %498 : vector<8x64xf32>
    %531 = arith.mulf %515, %523 : vector<8x64xf32>
    %532 = arith.addf %530, %531 : vector<8x64xf32>
    %533 = math.tanh %532 : vector<8x64xf32>
    %534 = arith.mulf %529, %533 : vector<8x64xf32>
    %535 = vector.extract_strided_slice %534 {offsets = [0, 0], sizes = [8, 32], strides = [1, 1]} : vector<8x64xf32> to vector<8x32xf32>
    %c112_175 = arith.constant 112 : index
    %c0_176 = arith.constant 0 : index
    %536 = vector.load %arg10[%c112_175, %c0_176] : memref<128x64xf32, #tpu.memory_space<vmem>>, vector<8x32xf32>
    tpu.vector_store %arg10[%c112_175, %c0_176], %535 {strides = array<i32>} : memref<128x64xf32, #tpu.memory_space<vmem>>, vector<8x32xf32>,
    %537 = vector.extract_strided_slice %534 {offsets = [0, 32], sizes = [8, 32], strides = [1, 1]} : vector<8x64xf32> to vector<8x32xf32>
    %c8_177 = arith.constant 8 : index
    %c32_178 = arith.constant 32 : index
    %538 = vector.load %arg10[%c8_177, %c32_178] : memref<128x64xf32, #tpu.memory_space<vmem>>, vector<8x32xf32>
    tpu.vector_store %arg10[%c8_177, %c32_178], %537 {strides = array<i32>} : memref<128x64xf32, #tpu.memory_space<vmem>>, vector<8x32xf32>,
    %c120_179 = arith.constant 120 : index
    %c0_180 = arith.constant 0 : index
    %539 = vector.load %arg9[%c120_179, %c0_180] : memref<128x256xf32, #tpu.memory_space<vmem>>, vector<8x256xf32>
    %c0_181 = arith.constant 0 : index
    %c0_182 = arith.constant 0 : index
    %540 = vector.load %arg9[%c0_181, %c0_182] : memref<128x256xf32, #tpu.memory_space<vmem>>, vector<8x256xf32>
    %541 = arith.select %18, %539, %540 : vector<8x256xi1>, vector<8x256xf32>
    %cst_183 = arith.constant dense<0.000000e+00> : vector<8x256xf32>
    %542 = tpu.matmul %534, %26, %cst_183 {dimension_numbers = #tpu.dot_dimension_numbers<[1], [0], [0], [1], [0, 0, 1, 1], [], []>} : vector<8x64xf32>, vector<64x256xf32>, vector<8x256xf32> -> vector<8x256xf32>
    %543 = arith.addf %541, %542 : vector<8x256xf32>
    %544 = vector.extract_strided_slice %543 {offsets = [0, 0], sizes = [8, 64], strides = [1, 1]} : vector<8x256xf32> to vector<8x64xf32>
    %545 = arith.negf %544 : vector<8x64xf32>
    %546 = math.exp %545 : vector<8x64xf32>
    %cst_184 = arith.constant 1.000000e+00 : f32
    %547 = vector.broadcast %cst_184 : f32 to vector<8x64xf32>
    %548 = arith.addf %547, %546 : vector<8x64xf32>
    %549 = arith.divf %547, %548 : vector<8x64xf32>
    %550 = vector.extract_strided_slice %543 {offsets = [0, 64], sizes = [8, 64], strides = [1, 1]} : vector<8x256xf32> to vector<8x64xf32>
    %551 = arith.negf %550 : vector<8x64xf32>
    %552 = math.exp %551 : vector<8x64xf32>
    %cst_185 = arith.constant 1.000000e+00 : f32
    %553 = vector.broadcast %cst_185 : f32 to vector<8x64xf32>
    %554 = arith.addf %553, %552 : vector<8x64xf32>
    %555 = arith.divf %553, %554 : vector<8x64xf32>
    %556 = vector.extract_strided_slice %543 {offsets = [0, 128], sizes = [8, 64], strides = [1, 1]} : vector<8x256xf32> to vector<8x64xf32>
    %557 = math.tanh %556 : vector<8x64xf32>
    %558 = vector.extract_strided_slice %543 {offsets = [0, 192], sizes = [8, 64], strides = [1, 1]} : vector<8x256xf32> to vector<8x64xf32>
    %559 = arith.negf %558 : vector<8x64xf32>
    %560 = math.exp %559 : vector<8x64xf32>
    %cst_186 = arith.constant 1.000000e+00 : f32
    %561 = vector.broadcast %cst_186 : f32 to vector<8x64xf32>
    %562 = arith.addf %561, %560 : vector<8x64xf32>
    %563 = arith.divf %561, %562 : vector<8x64xf32>
    %564 = arith.mulf %555, %532 : vector<8x64xf32>
    %565 = arith.mulf %549, %557 : vector<8x64xf32>
    %566 = arith.addf %564, %565 : vector<8x64xf32>
    %567 = math.tanh %566 : vector<8x64xf32>
    %568 = arith.mulf %563, %567 : vector<8x64xf32>
    %569 = vector.extract_strided_slice %568 {offsets = [0, 0], sizes = [8, 32], strides = [1, 1]} : vector<8x64xf32> to vector<8x32xf32>
    %c120_187 = arith.constant 120 : index
    %c0_188 = arith.constant 0 : index
    %570 = vector.load %arg10[%c120_187, %c0_188] : memref<128x64xf32, #tpu.memory_space<vmem>>, vector<8x32xf32>
    tpu.vector_store %arg10[%c120_187, %c0_188], %569 {strides = array<i32>} : memref<128x64xf32, #tpu.memory_space<vmem>>, vector<8x32xf32>,
    %571 = vector.extract_strided_slice %568 {offsets = [0, 32], sizes = [8, 32], strides = [1, 1]} : vector<8x64xf32> to vector<8x32xf32>
    %c0_189 = arith.constant 0 : index
    %c32_190 = arith.constant 32 : index
    %572 = vector.load %arg10[%c0_189, %c32_190] : memref<128x64xf32, #tpu.memory_space<vmem>>, vector<8x32xf32>
    tpu.vector_store %arg10[%c0_189, %c32_190], %571 {strides = array<i32>} : memref<128x64xf32, #tpu.memory_space<vmem>>, vector<8x32xf32>,
    %c0_191 = arith.constant 0 : index
    %c0_192 = arith.constant 0 : index
    %573 = vector.load %arg10[%c0_191, %c0_192] : memref<128x64xf32, #tpu.memory_space<vmem>>, vector<128x64xf32>
    %c0_193 = arith.constant 0 : index
    %c0_194 = arith.constant 0 : index
    %574 = vector.load %arg5[%c0_193, %c0_194] : memref<64x256xf32, #tpu.memory_space<vmem>>, vector<64x256xf32>
    %cst_195 = arith.constant dense<0.000000e+00> : vector<128x256xf32>
    %575 = tpu.matmul %573, %574, %cst_195 {dimension_numbers = #tpu.dot_dimension_numbers<[1], [0], [0], [1], [0, 0, 1, 1], [], []>} : vector<128x64xf32>, vector<64x256xf32>, vector<128x256xf32> -> vector<128x256xf32>
    %c0_196 = arith.constant 0 : index
    %c0_197 = arith.constant 0 : index
    %576 = vector.load %arg7[%c0_196, %c0_197] : memref<1x256xf32, #tpu.memory_space<vmem>>, vector<1x256xf32>
    %577 = vector.broadcast %576 : vector<1x256xf32> to vector<128x256xf32>
    %578 = arith.addf %575, %577 : vector<128x256xf32>
    %c0_198 = arith.constant 0 : index
    %c0_199 = arith.constant 0 : index
    %579 = vector.load %arg9[%c0_198, %c0_199] : memref<128x256xf32, #tpu.memory_space<vmem>>, vector<128x256xf32>
    tpu.vector_store %arg9[%c0_198, %c0_199], %578 {strides = array<i32>} : memref<128x256xf32, #tpu.memory_space<vmem>>, vector<128x256xf32>,
    %c0_200 = arith.constant 0 : index
    %c0_201 = arith.constant 0 : index
    %580 = vector.load %arg6[%c0_200, %c0_201] : memref<64x256xf32, #tpu.memory_space<vmem>>, vector<64x256xf32>
    %cst_202 = arith.constant 0.000000e+00 : f32
    %581 = vector.broadcast %cst_202 : f32 to vector<8x64xf32>
    %cst_203 = arith.constant 0.000000e+00 : f32
    %582 = vector.broadcast %cst_203 : f32 to vector<8x64xf32>
    %c0_204 = arith.constant 0 : index
    %c0_205 = arith.constant 0 : index
    %583 = vector.load %arg9[%c0_204, %c0_205] : memref<128x256xf32, #tpu.memory_space<vmem>>, vector<8x256xf32>
    %c120_206 = arith.constant 120 : index
    %c0_207 = arith.constant 0 : index
    %584 = vector.load %arg9[%c120_206, %c0_207] : memref<128x256xf32, #tpu.memory_space<vmem>>, vector<8x256xf32>
    %585 = arith.select %18, %583, %584 : vector<8x256xi1>, vector<8x256xf32>
    %cst_208 = arith.constant dense<0.000000e+00> : vector<8x256xf32>
    %586 = tpu.matmul %581, %580, %cst_208 {dimension_numbers = #tpu.dot_dimension_numbers<[1], [0], [0], [1], [0, 0, 1, 1], [], []>} : vector<8x64xf32>, vector<64x256xf32>, vector<8x256xf32> -> vector<8x256xf32>
    %587 = arith.addf %585, %586 : vector<8x256xf32>
    %588 = vector.extract_strided_slice %587 {offsets = [0, 0], sizes = [8, 64], strides = [1, 1]} : vector<8x256xf32> to vector<8x64xf32>
    %589 = arith.negf %588 : vector<8x64xf32>
    %590 = math.exp %589 : vector<8x64xf32>
    %cst_209 = arith.constant 1.000000e+00 : f32
    %591 = vector.broadcast %cst_209 : f32 to vector<8x64xf32>
    %592 = arith.addf %591, %590 : vector<8x64xf32>
    %593 = arith.divf %591, %592 : vector<8x64xf32>
    %594 = vector.extract_strided_slice %587 {offsets = [0, 64], sizes = [8, 64], strides = [1, 1]} : vector<8x256xf32> to vector<8x64xf32>
    %595 = arith.negf %594 : vector<8x64xf32>
    %596 = math.exp %595 : vector<8x64xf32>
    %cst_210 = arith.constant 1.000000e+00 : f32
    %597 = vector.broadcast %cst_210 : f32 to vector<8x64xf32>
    %598 = arith.addf %597, %596 : vector<8x64xf32>
    %599 = arith.divf %597, %598 : vector<8x64xf32>
    %600 = vector.extract_strided_slice %587 {offsets = [0, 128], sizes = [8, 64], strides = [1, 1]} : vector<8x256xf32> to vector<8x64xf32>
    %601 = math.tanh %600 : vector<8x64xf32>
    %602 = vector.extract_strided_slice %587 {offsets = [0, 192], sizes = [8, 64], strides = [1, 1]} : vector<8x256xf32> to vector<8x64xf32>
    %603 = arith.negf %602 : vector<8x64xf32>
    %604 = math.exp %603 : vector<8x64xf32>
    %cst_211 = arith.constant 1.000000e+00 : f32
    %605 = vector.broadcast %cst_211 : f32 to vector<8x64xf32>
    %606 = arith.addf %605, %604 : vector<8x64xf32>
    %607 = arith.divf %605, %606 : vector<8x64xf32>
    %608 = arith.mulf %599, %582 : vector<8x64xf32>
    %609 = arith.mulf %593, %601 : vector<8x64xf32>
    %610 = arith.addf %608, %609 : vector<8x64xf32>
    %611 = math.tanh %610 : vector<8x64xf32>
    %612 = arith.mulf %607, %611 : vector<8x64xf32>
    %613 = vector.extract_strided_slice %612 {offsets = [0, 0], sizes = [8, 32], strides = [1, 1]} : vector<8x64xf32> to vector<8x32xf32>
    %c0_212 = arith.constant 0 : index
    %c64_213 = arith.constant 64 : index
    %614 = vector.load %arg8[%c0_212, %c64_213] : memref<128x128xf32, #tpu.memory_space<vmem>>, vector<8x32xf32>
    tpu.vector_store %arg8[%c0_212, %c64_213], %613 {strides = array<i32>} : memref<128x128xf32, #tpu.memory_space<vmem>>, vector<8x32xf32>,
    %615 = vector.extract_strided_slice %612 {offsets = [0, 32], sizes = [8, 32], strides = [1, 1]} : vector<8x64xf32> to vector<8x32xf32>
    %c120_214 = arith.constant 120 : index
    %c96_215 = arith.constant 96 : index
    %616 = vector.load %arg8[%c120_214, %c96_215] : memref<128x128xf32, #tpu.memory_space<vmem>>, vector<8x32xf32>
    tpu.vector_store %arg8[%c120_214, %c96_215], %615 {strides = array<i32>} : memref<128x128xf32, #tpu.memory_space<vmem>>, vector<8x32xf32>,
    %c8_216 = arith.constant 8 : index
    %c0_217 = arith.constant 0 : index
    %617 = vector.load %arg9[%c8_216, %c0_217] : memref<128x256xf32, #tpu.memory_space<vmem>>, vector<8x256xf32>
    %c112_218 = arith.constant 112 : index
    %c0_219 = arith.constant 0 : index
    %618 = vector.load %arg9[%c112_218, %c0_219] : memref<128x256xf32, #tpu.memory_space<vmem>>, vector<8x256xf32>
    %619 = arith.select %18, %617, %618 : vector<8x256xi1>, vector<8x256xf32>
    %cst_220 = arith.constant dense<0.000000e+00> : vector<8x256xf32>
    %620 = tpu.matmul %612, %580, %cst_220 {dimension_numbers = #tpu.dot_dimension_numbers<[1], [0], [0], [1], [0, 0, 1, 1], [], []>} : vector<8x64xf32>, vector<64x256xf32>, vector<8x256xf32> -> vector<8x256xf32>
    %621 = arith.addf %619, %620 : vector<8x256xf32>
    %622 = vector.extract_strided_slice %621 {offsets = [0, 0], sizes = [8, 64], strides = [1, 1]} : vector<8x256xf32> to vector<8x64xf32>
    %623 = arith.negf %622 : vector<8x64xf32>
    %624 = math.exp %623 : vector<8x64xf32>
    %cst_221 = arith.constant 1.000000e+00 : f32
    %625 = vector.broadcast %cst_221 : f32 to vector<8x64xf32>
    %626 = arith.addf %625, %624 : vector<8x64xf32>
    %627 = arith.divf %625, %626 : vector<8x64xf32>
    %628 = vector.extract_strided_slice %621 {offsets = [0, 64], sizes = [8, 64], strides = [1, 1]} : vector<8x256xf32> to vector<8x64xf32>
    %629 = arith.negf %628 : vector<8x64xf32>
    %630 = math.exp %629 : vector<8x64xf32>
    %cst_222 = arith.constant 1.000000e+00 : f32
    %631 = vector.broadcast %cst_222 : f32 to vector<8x64xf32>
    %632 = arith.addf %631, %630 : vector<8x64xf32>
    %633 = arith.divf %631, %632 : vector<8x64xf32>
    %634 = vector.extract_strided_slice %621 {offsets = [0, 128], sizes = [8, 64], strides = [1, 1]} : vector<8x256xf32> to vector<8x64xf32>
    %635 = math.tanh %634 : vector<8x64xf32>
    %636 = vector.extract_strided_slice %621 {offsets = [0, 192], sizes = [8, 64], strides = [1, 1]} : vector<8x256xf32> to vector<8x64xf32>
    %637 = arith.negf %636 : vector<8x64xf32>
    %638 = math.exp %637 : vector<8x64xf32>
    %cst_223 = arith.constant 1.000000e+00 : f32
    %639 = vector.broadcast %cst_223 : f32 to vector<8x64xf32>
    %640 = arith.addf %639, %638 : vector<8x64xf32>
    %641 = arith.divf %639, %640 : vector<8x64xf32>
    %642 = arith.mulf %633, %610 : vector<8x64xf32>
    %643 = arith.mulf %627, %635 : vector<8x64xf32>
    %644 = arith.addf %642, %643 : vector<8x64xf32>
    %645 = math.tanh %644 : vector<8x64xf32>
    %646 = arith.mulf %641, %645 : vector<8x64xf32>
    %647 = vector.extract_strided_slice %646 {offsets = [0, 0], sizes = [8, 32], strides = [1, 1]} : vector<8x64xf32> to vector<8x32xf32>
    %c8_224 = arith.constant 8 : index
    %c64_225 = arith.constant 64 : index
    %648 = vector.load %arg8[%c8_224, %c64_225] : memref<128x128xf32, #tpu.memory_space<vmem>>, vector<8x32xf32>
    tpu.vector_store %arg8[%c8_224, %c64_225], %647 {strides = array<i32>} : memref<128x128xf32, #tpu.memory_space<vmem>>, vector<8x32xf32>,
    %649 = vector.extract_strided_slice %646 {offsets = [0, 32], sizes = [8, 32], strides = [1, 1]} : vector<8x64xf32> to vector<8x32xf32>
    %c112_226 = arith.constant 112 : index
    %c96_227 = arith.constant 96 : index
    %650 = vector.load %arg8[%c112_226, %c96_227] : memref<128x128xf32, #tpu.memory_space<vmem>>, vector<8x32xf32>
    tpu.vector_store %arg8[%c112_226, %c96_227], %649 {strides = array<i32>} : memref<128x128xf32, #tpu.memory_space<vmem>>, vector<8x32xf32>,
    %c16_228 = arith.constant 16 : index
    %c0_229 = arith.constant 0 : index
    %651 = vector.load %arg9[%c16_228, %c0_229] : memref<128x256xf32, #tpu.memory_space<vmem>>, vector<8x256xf32>
    %c104_230 = arith.constant 104 : index
    %c0_231 = arith.constant 0 : index
    %652 = vector.load %arg9[%c104_230, %c0_231] : memref<128x256xf32, #tpu.memory_space<vmem>>, vector<8x256xf32>
    %653 = arith.select %18, %651, %652 : vector<8x256xi1>, vector<8x256xf32>
    %cst_232 = arith.constant dense<0.000000e+00> : vector<8x256xf32>
    %654 = tpu.matmul %646, %580, %cst_232 {dimension_numbers = #tpu.dot_dimension_numbers<[1], [0], [0], [1], [0, 0, 1, 1], [], []>} : vector<8x64xf32>, vector<64x256xf32>, vector<8x256xf32> -> vector<8x256xf32>
    %655 = arith.addf %653, %654 : vector<8x256xf32>
    %656 = vector.extract_strided_slice %655 {offsets = [0, 0], sizes = [8, 64], strides = [1, 1]} : vector<8x256xf32> to vector<8x64xf32>
    %657 = arith.negf %656 : vector<8x64xf32>
    %658 = math.exp %657 : vector<8x64xf32>
    %cst_233 = arith.constant 1.000000e+00 : f32
    %659 = vector.broadcast %cst_233 : f32 to vector<8x64xf32>
    %660 = arith.addf %659, %658 : vector<8x64xf32>
    %661 = arith.divf %659, %660 : vector<8x64xf32>
    %662 = vector.extract_strided_slice %655 {offsets = [0, 64], sizes = [8, 64], strides = [1, 1]} : vector<8x256xf32> to vector<8x64xf32>
    %663 = arith.negf %662 : vector<8x64xf32>
    %664 = math.exp %663 : vector<8x64xf32>
    %cst_234 = arith.constant 1.000000e+00 : f32
    %665 = vector.broadcast %cst_234 : f32 to vector<8x64xf32>
    %666 = arith.addf %665, %664 : vector<8x64xf32>
    %667 = arith.divf %665, %666 : vector<8x64xf32>
    %668 = vector.extract_strided_slice %655 {offsets = [0, 128], sizes = [8, 64], strides = [1, 1]} : vector<8x256xf32> to vector<8x64xf32>
    %669 = math.tanh %668 : vector<8x64xf32>
    %670 = vector.extract_strided_slice %655 {offsets = [0, 192], sizes = [8, 64], strides = [1, 1]} : vector<8x256xf32> to vector<8x64xf32>
    %671 = arith.negf %670 : vector<8x64xf32>
    %672 = math.exp %671 : vector<8x64xf32>
    %cst_235 = arith.constant 1.000000e+00 : f32
    %673 = vector.broadcast %cst_235 : f32 to vector<8x64xf32>
    %674 = arith.addf %673, %672 : vector<8x64xf32>
    %675 = arith.divf %673, %674 : vector<8x64xf32>
    %676 = arith.mulf %667, %644 : vector<8x64xf32>
    %677 = arith.mulf %661, %669 : vector<8x64xf32>
    %678 = arith.addf %676, %677 : vector<8x64xf32>
    %679 = math.tanh %678 : vector<8x64xf32>
    %680 = arith.mulf %675, %679 : vector<8x64xf32>
    %681 = vector.extract_strided_slice %680 {offsets = [0, 0], sizes = [8, 32], strides = [1, 1]} : vector<8x64xf32> to vector<8x32xf32>
    %c16_236 = arith.constant 16 : index
    %c64_237 = arith.constant 64 : index
    %682 = vector.load %arg8[%c16_236, %c64_237] : memref<128x128xf32, #tpu.memory_space<vmem>>, vector<8x32xf32>
    tpu.vector_store %arg8[%c16_236, %c64_237], %681 {strides = array<i32>} : memref<128x128xf32, #tpu.memory_space<vmem>>, vector<8x32xf32>,
    %683 = vector.extract_strided_slice %680 {offsets = [0, 32], sizes = [8, 32], strides = [1, 1]} : vector<8x64xf32> to vector<8x32xf32>
    %c104_238 = arith.constant 104 : index
    %c96_239 = arith.constant 96 : index
    %684 = vector.load %arg8[%c104_238, %c96_239] : memref<128x128xf32, #tpu.memory_space<vmem>>, vector<8x32xf32>
    tpu.vector_store %arg8[%c104_238, %c96_239], %683 {strides = array<i32>} : memref<128x128xf32, #tpu.memory_space<vmem>>, vector<8x32xf32>,
    %c24_240 = arith.constant 24 : index
    %c0_241 = arith.constant 0 : index
    %685 = vector.load %arg9[%c24_240, %c0_241] : memref<128x256xf32, #tpu.memory_space<vmem>>, vector<8x256xf32>
    %c96_242 = arith.constant 96 : index
    %c0_243 = arith.constant 0 : index
    %686 = vector.load %arg9[%c96_242, %c0_243] : memref<128x256xf32, #tpu.memory_space<vmem>>, vector<8x256xf32>
    %687 = arith.select %18, %685, %686 : vector<8x256xi1>, vector<8x256xf32>
    %cst_244 = arith.constant dense<0.000000e+00> : vector<8x256xf32>
    %688 = tpu.matmul %680, %580, %cst_244 {dimension_numbers = #tpu.dot_dimension_numbers<[1], [0], [0], [1], [0, 0, 1, 1], [], []>} : vector<8x64xf32>, vector<64x256xf32>, vector<8x256xf32> -> vector<8x256xf32>
    %689 = arith.addf %687, %688 : vector<8x256xf32>
    %690 = vector.extract_strided_slice %689 {offsets = [0, 0], sizes = [8, 64], strides = [1, 1]} : vector<8x256xf32> to vector<8x64xf32>
    %691 = arith.negf %690 : vector<8x64xf32>
    %692 = math.exp %691 : vector<8x64xf32>
    %cst_245 = arith.constant 1.000000e+00 : f32
    %693 = vector.broadcast %cst_245 : f32 to vector<8x64xf32>
    %694 = arith.addf %693, %692 : vector<8x64xf32>
    %695 = arith.divf %693, %694 : vector<8x64xf32>
    %696 = vector.extract_strided_slice %689 {offsets = [0, 64], sizes = [8, 64], strides = [1, 1]} : vector<8x256xf32> to vector<8x64xf32>
    %697 = arith.negf %696 : vector<8x64xf32>
    %698 = math.exp %697 : vector<8x64xf32>
    %cst_246 = arith.constant 1.000000e+00 : f32
    %699 = vector.broadcast %cst_246 : f32 to vector<8x64xf32>
    %700 = arith.addf %699, %698 : vector<8x64xf32>
    %701 = arith.divf %699, %700 : vector<8x64xf32>
    %702 = vector.extract_strided_slice %689 {offsets = [0, 128], sizes = [8, 64], strides = [1, 1]} : vector<8x256xf32> to vector<8x64xf32>
    %703 = math.tanh %702 : vector<8x64xf32>
    %704 = vector.extract_strided_slice %689 {offsets = [0, 192], sizes = [8, 64], strides = [1, 1]} : vector<8x256xf32> to vector<8x64xf32>
    %705 = arith.negf %704 : vector<8x64xf32>
    %706 = math.exp %705 : vector<8x64xf32>
    %cst_247 = arith.constant 1.000000e+00 : f32
    %707 = vector.broadcast %cst_247 : f32 to vector<8x64xf32>
    %708 = arith.addf %707, %706 : vector<8x64xf32>
    %709 = arith.divf %707, %708 : vector<8x64xf32>
    %710 = arith.mulf %701, %678 : vector<8x64xf32>
    %711 = arith.mulf %695, %703 : vector<8x64xf32>
    %712 = arith.addf %710, %711 : vector<8x64xf32>
    %713 = math.tanh %712 : vector<8x64xf32>
    %714 = arith.mulf %709, %713 : vector<8x64xf32>
    %715 = vector.extract_strided_slice %714 {offsets = [0, 0], sizes = [8, 32], strides = [1, 1]} : vector<8x64xf32> to vector<8x32xf32>
    %c24_248 = arith.constant 24 : index
    %c64_249 = arith.constant 64 : index
    %716 = vector.load %arg8[%c24_248, %c64_249] : memref<128x128xf32, #tpu.memory_space<vmem>>, vector<8x32xf32>
    tpu.vector_store %arg8[%c24_248, %c64_249], %715 {strides = array<i32>} : memref<128x128xf32, #tpu.memory_space<vmem>>, vector<8x32xf32>,
    %717 = vector.extract_strided_slice %714 {offsets = [0, 32], sizes = [8, 32], strides = [1, 1]} : vector<8x64xf32> to vector<8x32xf32>
    %c96_250 = arith.constant 96 : index
    %c96_251 = arith.constant 96 : index
    %718 = vector.load %arg8[%c96_250, %c96_251] : memref<128x128xf32, #tpu.memory_space<vmem>>, vector<8x32xf32>
    tpu.vector_store %arg8[%c96_250, %c96_251], %717 {strides = array<i32>} : memref<128x128xf32, #tpu.memory_space<vmem>>, vector<8x32xf32>,
    %c32_252 = arith.constant 32 : index
    %c0_253 = arith.constant 0 : index
    %719 = vector.load %arg9[%c32_252, %c0_253] : memref<128x256xf32, #tpu.memory_space<vmem>>, vector<8x256xf32>
    %c88_254 = arith.constant 88 : index
    %c0_255 = arith.constant 0 : index
    %720 = vector.load %arg9[%c88_254, %c0_255] : memref<128x256xf32, #tpu.memory_space<vmem>>, vector<8x256xf32>
    %721 = arith.select %18, %719, %720 : vector<8x256xi1>, vector<8x256xf32>
    %cst_256 = arith.constant dense<0.000000e+00> : vector<8x256xf32>
    %722 = tpu.matmul %714, %580, %cst_256 {dimension_numbers = #tpu.dot_dimension_numbers<[1], [0], [0], [1], [0, 0, 1, 1], [], []>} : vector<8x64xf32>, vector<64x256xf32>, vector<8x256xf32> -> vector<8x256xf32>
    %723 = arith.addf %721, %722 : vector<8x256xf32>
    %724 = vector.extract_strided_slice %723 {offsets = [0, 0], sizes = [8, 64], strides = [1, 1]} : vector<8x256xf32> to vector<8x64xf32>
    %725 = arith.negf %724 : vector<8x64xf32>
    %726 = math.exp %725 : vector<8x64xf32>
    %cst_257 = arith.constant 1.000000e+00 : f32
    %727 = vector.broadcast %cst_257 : f32 to vector<8x64xf32>
    %728 = arith.addf %727, %726 : vector<8x64xf32>
    %729 = arith.divf %727, %728 : vector<8x64xf32>
    %730 = vector.extract_strided_slice %723 {offsets = [0, 64], sizes = [8, 64], strides = [1, 1]} : vector<8x256xf32> to vector<8x64xf32>
    %731 = arith.negf %730 : vector<8x64xf32>
    %732 = math.exp %731 : vector<8x64xf32>
    %cst_258 = arith.constant 1.000000e+00 : f32
    %733 = vector.broadcast %cst_258 : f32 to vector<8x64xf32>
    %734 = arith.addf %733, %732 : vector<8x64xf32>
    %735 = arith.divf %733, %734 : vector<8x64xf32>
    %736 = vector.extract_strided_slice %723 {offsets = [0, 128], sizes = [8, 64], strides = [1, 1]} : vector<8x256xf32> to vector<8x64xf32>
    %737 = math.tanh %736 : vector<8x64xf32>
    %738 = vector.extract_strided_slice %723 {offsets = [0, 192], sizes = [8, 64], strides = [1, 1]} : vector<8x256xf32> to vector<8x64xf32>
    %739 = arith.negf %738 : vector<8x64xf32>
    %740 = math.exp %739 : vector<8x64xf32>
    %cst_259 = arith.constant 1.000000e+00 : f32
    %741 = vector.broadcast %cst_259 : f32 to vector<8x64xf32>
    %742 = arith.addf %741, %740 : vector<8x64xf32>
    %743 = arith.divf %741, %742 : vector<8x64xf32>
    %744 = arith.mulf %735, %712 : vector<8x64xf32>
    %745 = arith.mulf %729, %737 : vector<8x64xf32>
    %746 = arith.addf %744, %745 : vector<8x64xf32>
    %747 = math.tanh %746 : vector<8x64xf32>
    %748 = arith.mulf %743, %747 : vector<8x64xf32>
    %749 = vector.extract_strided_slice %748 {offsets = [0, 0], sizes = [8, 32], strides = [1, 1]} : vector<8x64xf32> to vector<8x32xf32>
    %c32_260 = arith.constant 32 : index
    %c64_261 = arith.constant 64 : index
    %750 = vector.load %arg8[%c32_260, %c64_261] : memref<128x128xf32, #tpu.memory_space<vmem>>, vector<8x32xf32>
    tpu.vector_store %arg8[%c32_260, %c64_261], %749 {strides = array<i32>} : memref<128x128xf32, #tpu.memory_space<vmem>>, vector<8x32xf32>,
    %751 = vector.extract_strided_slice %748 {offsets = [0, 32], sizes = [8, 32], strides = [1, 1]} : vector<8x64xf32> to vector<8x32xf32>
    %c88_262 = arith.constant 88 : index
    %c96_263 = arith.constant 96 : index
    %752 = vector.load %arg8[%c88_262, %c96_263] : memref<128x128xf32, #tpu.memory_space<vmem>>, vector<8x32xf32>
    tpu.vector_store %arg8[%c88_262, %c96_263], %751 {strides = array<i32>} : memref<128x128xf32, #tpu.memory_space<vmem>>, vector<8x32xf32>,
    %c40_264 = arith.constant 40 : index
    %c0_265 = arith.constant 0 : index
    %753 = vector.load %arg9[%c40_264, %c0_265] : memref<128x256xf32, #tpu.memory_space<vmem>>, vector<8x256xf32>
    %c80_266 = arith.constant 80 : index
    %c0_267 = arith.constant 0 : index
    %754 = vector.load %arg9[%c80_266, %c0_267] : memref<128x256xf32, #tpu.memory_space<vmem>>, vector<8x256xf32>
    %755 = arith.select %18, %753, %754 : vector<8x256xi1>, vector<8x256xf32>
    %cst_268 = arith.constant dense<0.000000e+00> : vector<8x256xf32>
    %756 = tpu.matmul %748, %580, %cst_268 {dimension_numbers = #tpu.dot_dimension_numbers<[1], [0], [0], [1], [0, 0, 1, 1], [], []>} : vector<8x64xf32>, vector<64x256xf32>, vector<8x256xf32> -> vector<8x256xf32>
    %757 = arith.addf %755, %756 : vector<8x256xf32>
    %758 = vector.extract_strided_slice %757 {offsets = [0, 0], sizes = [8, 64], strides = [1, 1]} : vector<8x256xf32> to vector<8x64xf32>
    %759 = arith.negf %758 : vector<8x64xf32>
    %760 = math.exp %759 : vector<8x64xf32>
    %cst_269 = arith.constant 1.000000e+00 : f32
    %761 = vector.broadcast %cst_269 : f32 to vector<8x64xf32>
    %762 = arith.addf %761, %760 : vector<8x64xf32>
    %763 = arith.divf %761, %762 : vector<8x64xf32>
    %764 = vector.extract_strided_slice %757 {offsets = [0, 64], sizes = [8, 64], strides = [1, 1]} : vector<8x256xf32> to vector<8x64xf32>
    %765 = arith.negf %764 : vector<8x64xf32>
    %766 = math.exp %765 : vector<8x64xf32>
    %cst_270 = arith.constant 1.000000e+00 : f32
    %767 = vector.broadcast %cst_270 : f32 to vector<8x64xf32>
    %768 = arith.addf %767, %766 : vector<8x64xf32>
    %769 = arith.divf %767, %768 : vector<8x64xf32>
    %770 = vector.extract_strided_slice %757 {offsets = [0, 128], sizes = [8, 64], strides = [1, 1]} : vector<8x256xf32> to vector<8x64xf32>
    %771 = math.tanh %770 : vector<8x64xf32>
    %772 = vector.extract_strided_slice %757 {offsets = [0, 192], sizes = [8, 64], strides = [1, 1]} : vector<8x256xf32> to vector<8x64xf32>
    %773 = arith.negf %772 : vector<8x64xf32>
    %774 = math.exp %773 : vector<8x64xf32>
    %cst_271 = arith.constant 1.000000e+00 : f32
    %775 = vector.broadcast %cst_271 : f32 to vector<8x64xf32>
    %776 = arith.addf %775, %774 : vector<8x64xf32>
    %777 = arith.divf %775, %776 : vector<8x64xf32>
    %778 = arith.mulf %769, %746 : vector<8x64xf32>
    %779 = arith.mulf %763, %771 : vector<8x64xf32>
    %780 = arith.addf %778, %779 : vector<8x64xf32>
    %781 = math.tanh %780 : vector<8x64xf32>
    %782 = arith.mulf %777, %781 : vector<8x64xf32>
    %783 = vector.extract_strided_slice %782 {offsets = [0, 0], sizes = [8, 32], strides = [1, 1]} : vector<8x64xf32> to vector<8x32xf32>
    %c40_272 = arith.constant 40 : index
    %c64_273 = arith.constant 64 : index
    %784 = vector.load %arg8[%c40_272, %c64_273] : memref<128x128xf32, #tpu.memory_space<vmem>>, vector<8x32xf32>
    tpu.vector_store %arg8[%c40_272, %c64_273], %783 {strides = array<i32>} : memref<128x128xf32, #tpu.memory_space<vmem>>, vector<8x32xf32>,
    %785 = vector.extract_strided_slice %782 {offsets = [0, 32], sizes = [8, 32], strides = [1, 1]} : vector<8x64xf32> to vector<8x32xf32>
    %c80_274 = arith.constant 80 : index
    %c96_275 = arith.constant 96 : index
    %786 = vector.load %arg8[%c80_274, %c96_275] : memref<128x128xf32, #tpu.memory_space<vmem>>, vector<8x32xf32>
    tpu.vector_store %arg8[%c80_274, %c96_275], %785 {strides = array<i32>} : memref<128x128xf32, #tpu.memory_space<vmem>>, vector<8x32xf32>,
    %c48_276 = arith.constant 48 : index
    %c0_277 = arith.constant 0 : index
    %787 = vector.load %arg9[%c48_276, %c0_277] : memref<128x256xf32, #tpu.memory_space<vmem>>, vector<8x256xf32>
    %c72_278 = arith.constant 72 : index
    %c0_279 = arith.constant 0 : index
    %788 = vector.load %arg9[%c72_278, %c0_279] : memref<128x256xf32, #tpu.memory_space<vmem>>, vector<8x256xf32>
    %789 = arith.select %18, %787, %788 : vector<8x256xi1>, vector<8x256xf32>
    %cst_280 = arith.constant dense<0.000000e+00> : vector<8x256xf32>
    %790 = tpu.matmul %782, %580, %cst_280 {dimension_numbers = #tpu.dot_dimension_numbers<[1], [0], [0], [1], [0, 0, 1, 1], [], []>} : vector<8x64xf32>, vector<64x256xf32>, vector<8x256xf32> -> vector<8x256xf32>
    %791 = arith.addf %789, %790 : vector<8x256xf32>
    %792 = vector.extract_strided_slice %791 {offsets = [0, 0], sizes = [8, 64], strides = [1, 1]} : vector<8x256xf32> to vector<8x64xf32>
    %793 = arith.negf %792 : vector<8x64xf32>
    %794 = math.exp %793 : vector<8x64xf32>
    %cst_281 = arith.constant 1.000000e+00 : f32
    %795 = vector.broadcast %cst_281 : f32 to vector<8x64xf32>
    %796 = arith.addf %795, %794 : vector<8x64xf32>
    %797 = arith.divf %795, %796 : vector<8x64xf32>
    %798 = vector.extract_strided_slice %791 {offsets = [0, 64], sizes = [8, 64], strides = [1, 1]} : vector<8x256xf32> to vector<8x64xf32>
    %799 = arith.negf %798 : vector<8x64xf32>
    %800 = math.exp %799 : vector<8x64xf32>
    %cst_282 = arith.constant 1.000000e+00 : f32
    %801 = vector.broadcast %cst_282 : f32 to vector<8x64xf32>
    %802 = arith.addf %801, %800 : vector<8x64xf32>
    %803 = arith.divf %801, %802 : vector<8x64xf32>
    %804 = vector.extract_strided_slice %791 {offsets = [0, 128], sizes = [8, 64], strides = [1, 1]} : vector<8x256xf32> to vector<8x64xf32>
    %805 = math.tanh %804 : vector<8x64xf32>
    %806 = vector.extract_strided_slice %791 {offsets = [0, 192], sizes = [8, 64], strides = [1, 1]} : vector<8x256xf32> to vector<8x64xf32>
    %807 = arith.negf %806 : vector<8x64xf32>
    %808 = math.exp %807 : vector<8x64xf32>
    %cst_283 = arith.constant 1.000000e+00 : f32
    %809 = vector.broadcast %cst_283 : f32 to vector<8x64xf32>
    %810 = arith.addf %809, %808 : vector<8x64xf32>
    %811 = arith.divf %809, %810 : vector<8x64xf32>
    %812 = arith.mulf %803, %780 : vector<8x64xf32>
    %813 = arith.mulf %797, %805 : vector<8x64xf32>
    %814 = arith.addf %812, %813 : vector<8x64xf32>
    %815 = math.tanh %814 : vector<8x64xf32>
    %816 = arith.mulf %811, %815 : vector<8x64xf32>
    %817 = vector.extract_strided_slice %816 {offsets = [0, 0], sizes = [8, 32], strides = [1, 1]} : vector<8x64xf32> to vector<8x32xf32>
    %c48_284 = arith.constant 48 : index
    %c64_285 = arith.constant 64 : index
    %818 = vector.load %arg8[%c48_284, %c64_285] : memref<128x128xf32, #tpu.memory_space<vmem>>, vector<8x32xf32>
    tpu.vector_store %arg8[%c48_284, %c64_285], %817 {strides = array<i32>} : memref<128x128xf32, #tpu.memory_space<vmem>>, vector<8x32xf32>,
    %819 = vector.extract_strided_slice %816 {offsets = [0, 32], sizes = [8, 32], strides = [1, 1]} : vector<8x64xf32> to vector<8x32xf32>
    %c72_286 = arith.constant 72 : index
    %c96_287 = arith.constant 96 : index
    %820 = vector.load %arg8[%c72_286, %c96_287] : memref<128x128xf32, #tpu.memory_space<vmem>>, vector<8x32xf32>
    tpu.vector_store %arg8[%c72_286, %c96_287], %819 {strides = array<i32>} : memref<128x128xf32, #tpu.memory_space<vmem>>, vector<8x32xf32>,
    %c56_288 = arith.constant 56 : index
    %c0_289 = arith.constant 0 : index
    %821 = vector.load %arg9[%c56_288, %c0_289] : memref<128x256xf32, #tpu.memory_space<vmem>>, vector<8x256xf32>
    %c64_290 = arith.constant 64 : index
    %c0_291 = arith.constant 0 : index
    %822 = vector.load %arg9[%c64_290, %c0_291] : memref<128x256xf32, #tpu.memory_space<vmem>>, vector<8x256xf32>
    %823 = arith.select %18, %821, %822 : vector<8x256xi1>, vector<8x256xf32>
    %cst_292 = arith.constant dense<0.000000e+00> : vector<8x256xf32>
    %824 = tpu.matmul %816, %580, %cst_292 {dimension_numbers = #tpu.dot_dimension_numbers<[1], [0], [0], [1], [0, 0, 1, 1], [], []>} : vector<8x64xf32>, vector<64x256xf32>, vector<8x256xf32> -> vector<8x256xf32>
    %825 = arith.addf %823, %824 : vector<8x256xf32>
    %826 = vector.extract_strided_slice %825 {offsets = [0, 0], sizes = [8, 64], strides = [1, 1]} : vector<8x256xf32> to vector<8x64xf32>
    %827 = arith.negf %826 : vector<8x64xf32>
    %828 = math.exp %827 : vector<8x64xf32>
    %cst_293 = arith.constant 1.000000e+00 : f32
    %829 = vector.broadcast %cst_293 : f32 to vector<8x64xf32>
    %830 = arith.addf %829, %828 : vector<8x64xf32>
    %831 = arith.divf %829, %830 : vector<8x64xf32>
    %832 = vector.extract_strided_slice %825 {offsets = [0, 64], sizes = [8, 64], strides = [1, 1]} : vector<8x256xf32> to vector<8x64xf32>
    %833 = arith.negf %832 : vector<8x64xf32>
    %834 = math.exp %833 : vector<8x64xf32>
    %cst_294 = arith.constant 1.000000e+00 : f32
    %835 = vector.broadcast %cst_294 : f32 to vector<8x64xf32>
    %836 = arith.addf %835, %834 : vector<8x64xf32>
    %837 = arith.divf %835, %836 : vector<8x64xf32>
    %838 = vector.extract_strided_slice %825 {offsets = [0, 128], sizes = [8, 64], strides = [1, 1]} : vector<8x256xf32> to vector<8x64xf32>
    %839 = math.tanh %838 : vector<8x64xf32>
    %840 = vector.extract_strided_slice %825 {offsets = [0, 192], sizes = [8, 64], strides = [1, 1]} : vector<8x256xf32> to vector<8x64xf32>
    %841 = arith.negf %840 : vector<8x64xf32>
    %842 = math.exp %841 : vector<8x64xf32>
    %cst_295 = arith.constant 1.000000e+00 : f32
    %843 = vector.broadcast %cst_295 : f32 to vector<8x64xf32>
    %844 = arith.addf %843, %842 : vector<8x64xf32>
    %845 = arith.divf %843, %844 : vector<8x64xf32>
    %846 = arith.mulf %837, %814 : vector<8x64xf32>
    %847 = arith.mulf %831, %839 : vector<8x64xf32>
    %848 = arith.addf %846, %847 : vector<8x64xf32>
    %849 = math.tanh %848 : vector<8x64xf32>
    %850 = arith.mulf %845, %849 : vector<8x64xf32>
    %851 = vector.extract_strided_slice %850 {offsets = [0, 0], sizes = [8, 32], strides = [1, 1]} : vector<8x64xf32> to vector<8x32xf32>
    %c56_296 = arith.constant 56 : index
    %c64_297 = arith.constant 64 : index
    %852 = vector.load %arg8[%c56_296, %c64_297] : memref<128x128xf32, #tpu.memory_space<vmem>>, vector<8x32xf32>
    tpu.vector_store %arg8[%c56_296, %c64_297], %851 {strides = array<i32>} : memref<128x128xf32, #tpu.memory_space<vmem>>, vector<8x32xf32>,
    %853 = vector.extract_strided_slice %850 {offsets = [0, 32], sizes = [8, 32], strides = [1, 1]} : vector<8x64xf32> to vector<8x32xf32>
    %c64_298 = arith.constant 64 : index
    %c96_299 = arith.constant 96 : index
    %854 = vector.load %arg8[%c64_298, %c96_299] : memref<128x128xf32, #tpu.memory_space<vmem>>, vector<8x32xf32>
    tpu.vector_store %arg8[%c64_298, %c96_299], %853 {strides = array<i32>} : memref<128x128xf32, #tpu.memory_space<vmem>>, vector<8x32xf32>,
    %c64_300 = arith.constant 64 : index
    %c0_301 = arith.constant 0 : index
    %855 = vector.load %arg9[%c64_300, %c0_301] : memref<128x256xf32, #tpu.memory_space<vmem>>, vector<8x256xf32>
    %c56_302 = arith.constant 56 : index
    %c0_303 = arith.constant 0 : index
    %856 = vector.load %arg9[%c56_302, %c0_303] : memref<128x256xf32, #tpu.memory_space<vmem>>, vector<8x256xf32>
    %857 = arith.select %18, %855, %856 : vector<8x256xi1>, vector<8x256xf32>
    %cst_304 = arith.constant dense<0.000000e+00> : vector<8x256xf32>
    %858 = tpu.matmul %850, %580, %cst_304 {dimension_numbers = #tpu.dot_dimension_numbers<[1], [0], [0], [1], [0, 0, 1, 1], [], []>} : vector<8x64xf32>, vector<64x256xf32>, vector<8x256xf32> -> vector<8x256xf32>
    %859 = arith.addf %857, %858 : vector<8x256xf32>
    %860 = vector.extract_strided_slice %859 {offsets = [0, 0], sizes = [8, 64], strides = [1, 1]} : vector<8x256xf32> to vector<8x64xf32>
    %861 = arith.negf %860 : vector<8x64xf32>
    %862 = math.exp %861 : vector<8x64xf32>
    %cst_305 = arith.constant 1.000000e+00 : f32
    %863 = vector.broadcast %cst_305 : f32 to vector<8x64xf32>
    %864 = arith.addf %863, %862 : vector<8x64xf32>
    %865 = arith.divf %863, %864 : vector<8x64xf32>
    %866 = vector.extract_strided_slice %859 {offsets = [0, 64], sizes = [8, 64], strides = [1, 1]} : vector<8x256xf32> to vector<8x64xf32>
    %867 = arith.negf %866 : vector<8x64xf32>
    %868 = math.exp %867 : vector<8x64xf32>
    %cst_306 = arith.constant 1.000000e+00 : f32
    %869 = vector.broadcast %cst_306 : f32 to vector<8x64xf32>
    %870 = arith.addf %869, %868 : vector<8x64xf32>
    %871 = arith.divf %869, %870 : vector<8x64xf32>
    %872 = vector.extract_strided_slice %859 {offsets = [0, 128], sizes = [8, 64], strides = [1, 1]} : vector<8x256xf32> to vector<8x64xf32>
    %873 = math.tanh %872 : vector<8x64xf32>
    %874 = vector.extract_strided_slice %859 {offsets = [0, 192], sizes = [8, 64], strides = [1, 1]} : vector<8x256xf32> to vector<8x64xf32>
    %875 = arith.negf %874 : vector<8x64xf32>
    %876 = math.exp %875 : vector<8x64xf32>
    %cst_307 = arith.constant 1.000000e+00 : f32
    %877 = vector.broadcast %cst_307 : f32 to vector<8x64xf32>
    %878 = arith.addf %877, %876 : vector<8x64xf32>
    %879 = arith.divf %877, %878 : vector<8x64xf32>
    %880 = arith.mulf %871, %848 : vector<8x64xf32>
    %881 = arith.mulf %865, %873 : vector<8x64xf32>
    %882 = arith.addf %880, %881 : vector<8x64xf32>
    %883 = math.tanh %882 : vector<8x64xf32>
    %884 = arith.mulf %879, %883 : vector<8x64xf32>
    %885 = vector.extract_strided_slice %884 {offsets = [0, 0], sizes = [8, 32], strides = [1, 1]} : vector<8x64xf32> to vector<8x32xf32>
    %c64_308 = arith.constant 64 : index
    %c64_309 = arith.constant 64 : index
    %886 = vector.load %arg8[%c64_308, %c64_309] : memref<128x128xf32, #tpu.memory_space<vmem>>, vector<8x32xf32>
    tpu.vector_store %arg8[%c64_308, %c64_309], %885 {strides = array<i32>} : memref<128x128xf32, #tpu.memory_space<vmem>>, vector<8x32xf32>,
    %887 = vector.extract_strided_slice %884 {offsets = [0, 32], sizes = [8, 32], strides = [1, 1]} : vector<8x64xf32> to vector<8x32xf32>
    %c56_310 = arith.constant 56 : index
    %c96_311 = arith.constant 96 : index
    %888 = vector.load %arg8[%c56_310, %c96_311] : memref<128x128xf32, #tpu.memory_space<vmem>>, vector<8x32xf32>
    tpu.vector_store %arg8[%c56_310, %c96_311], %887 {strides = array<i32>} : memref<128x128xf32, #tpu.memory_space<vmem>>, vector<8x32xf32>,
    %c72_312 = arith.constant 72 : index
    %c0_313 = arith.constant 0 : index
    %889 = vector.load %arg9[%c72_312, %c0_313] : memref<128x256xf32, #tpu.memory_space<vmem>>, vector<8x256xf32>
    %c48_314 = arith.constant 48 : index
    %c0_315 = arith.constant 0 : index
    %890 = vector.load %arg9[%c48_314, %c0_315] : memref<128x256xf32, #tpu.memory_space<vmem>>, vector<8x256xf32>
    %891 = arith.select %18, %889, %890 : vector<8x256xi1>, vector<8x256xf32>
    %cst_316 = arith.constant dense<0.000000e+00> : vector<8x256xf32>
    %892 = tpu.matmul %884, %580, %cst_316 {dimension_numbers = #tpu.dot_dimension_numbers<[1], [0], [0], [1], [0, 0, 1, 1], [], []>} : vector<8x64xf32>, vector<64x256xf32>, vector<8x256xf32> -> vector<8x256xf32>
    %893 = arith.addf %891, %892 : vector<8x256xf32>
    %894 = vector.extract_strided_slice %893 {offsets = [0, 0], sizes = [8, 64], strides = [1, 1]} : vector<8x256xf32> to vector<8x64xf32>
    %895 = arith.negf %894 : vector<8x64xf32>
    %896 = math.exp %895 : vector<8x64xf32>
    %cst_317 = arith.constant 1.000000e+00 : f32
    %897 = vector.broadcast %cst_317 : f32 to vector<8x64xf32>
    %898 = arith.addf %897, %896 : vector<8x64xf32>
    %899 = arith.divf %897, %898 : vector<8x64xf32>
    %900 = vector.extract_strided_slice %893 {offsets = [0, 64], sizes = [8, 64], strides = [1, 1]} : vector<8x256xf32> to vector<8x64xf32>
    %901 = arith.negf %900 : vector<8x64xf32>
    %902 = math.exp %901 : vector<8x64xf32>
    %cst_318 = arith.constant 1.000000e+00 : f32
    %903 = vector.broadcast %cst_318 : f32 to vector<8x64xf32>
    %904 = arith.addf %903, %902 : vector<8x64xf32>
    %905 = arith.divf %903, %904 : vector<8x64xf32>
    %906 = vector.extract_strided_slice %893 {offsets = [0, 128], sizes = [8, 64], strides = [1, 1]} : vector<8x256xf32> to vector<8x64xf32>
    %907 = math.tanh %906 : vector<8x64xf32>
    %908 = vector.extract_strided_slice %893 {offsets = [0, 192], sizes = [8, 64], strides = [1, 1]} : vector<8x256xf32> to vector<8x64xf32>
    %909 = arith.negf %908 : vector<8x64xf32>
    %910 = math.exp %909 : vector<8x64xf32>
    %cst_319 = arith.constant 1.000000e+00 : f32
    %911 = vector.broadcast %cst_319 : f32 to vector<8x64xf32>
    %912 = arith.addf %911, %910 : vector<8x64xf32>
    %913 = arith.divf %911, %912 : vector<8x64xf32>
    %914 = arith.mulf %905, %882 : vector<8x64xf32>
    %915 = arith.mulf %899, %907 : vector<8x64xf32>
    %916 = arith.addf %914, %915 : vector<8x64xf32>
    %917 = math.tanh %916 : vector<8x64xf32>
    %918 = arith.mulf %913, %917 : vector<8x64xf32>
    %919 = vector.extract_strided_slice %918 {offsets = [0, 0], sizes = [8, 32], strides = [1, 1]} : vector<8x64xf32> to vector<8x32xf32>
    %c72_320 = arith.constant 72 : index
    %c64_321 = arith.constant 64 : index
    %920 = vector.load %arg8[%c72_320, %c64_321] : memref<128x128xf32, #tpu.memory_space<vmem>>, vector<8x32xf32>
    tpu.vector_store %arg8[%c72_320, %c64_321], %919 {strides = array<i32>} : memref<128x128xf32, #tpu.memory_space<vmem>>, vector<8x32xf32>,
    %921 = vector.extract_strided_slice %918 {offsets = [0, 32], sizes = [8, 32], strides = [1, 1]} : vector<8x64xf32> to vector<8x32xf32>
    %c48_322 = arith.constant 48 : index
    %c96_323 = arith.constant 96 : index
    %922 = vector.load %arg8[%c48_322, %c96_323] : memref<128x128xf32, #tpu.memory_space<vmem>>, vector<8x32xf32>
    tpu.vector_store %arg8[%c48_322, %c96_323], %921 {strides = array<i32>} : memref<128x128xf32, #tpu.memory_space<vmem>>, vector<8x32xf32>,
    %c80_324 = arith.constant 80 : index
    %c0_325 = arith.constant 0 : index
    %923 = vector.load %arg9[%c80_324, %c0_325] : memref<128x256xf32, #tpu.memory_space<vmem>>, vector<8x256xf32>
    %c40_326 = arith.constant 40 : index
    %c0_327 = arith.constant 0 : index
    %924 = vector.load %arg9[%c40_326, %c0_327] : memref<128x256xf32, #tpu.memory_space<vmem>>, vector<8x256xf32>
    %925 = arith.select %18, %923, %924 : vector<8x256xi1>, vector<8x256xf32>
    %cst_328 = arith.constant dense<0.000000e+00> : vector<8x256xf32>
    %926 = tpu.matmul %918, %580, %cst_328 {dimension_numbers = #tpu.dot_dimension_numbers<[1], [0], [0], [1], [0, 0, 1, 1], [], []>} : vector<8x64xf32>, vector<64x256xf32>, vector<8x256xf32> -> vector<8x256xf32>
    %927 = arith.addf %925, %926 : vector<8x256xf32>
    %928 = vector.extract_strided_slice %927 {offsets = [0, 0], sizes = [8, 64], strides = [1, 1]} : vector<8x256xf32> to vector<8x64xf32>
    %929 = arith.negf %928 : vector<8x64xf32>
    %930 = math.exp %929 : vector<8x64xf32>
    %cst_329 = arith.constant 1.000000e+00 : f32
    %931 = vector.broadcast %cst_329 : f32 to vector<8x64xf32>
    %932 = arith.addf %931, %930 : vector<8x64xf32>
    %933 = arith.divf %931, %932 : vector<8x64xf32>
    %934 = vector.extract_strided_slice %927 {offsets = [0, 64], sizes = [8, 64], strides = [1, 1]} : vector<8x256xf32> to vector<8x64xf32>
    %935 = arith.negf %934 : vector<8x64xf32>
    %936 = math.exp %935 : vector<8x64xf32>
    %cst_330 = arith.constant 1.000000e+00 : f32
    %937 = vector.broadcast %cst_330 : f32 to vector<8x64xf32>
    %938 = arith.addf %937, %936 : vector<8x64xf32>
    %939 = arith.divf %937, %938 : vector<8x64xf32>
    %940 = vector.extract_strided_slice %927 {offsets = [0, 128], sizes = [8, 64], strides = [1, 1]} : vector<8x256xf32> to vector<8x64xf32>
    %941 = math.tanh %940 : vector<8x64xf32>
    %942 = vector.extract_strided_slice %927 {offsets = [0, 192], sizes = [8, 64], strides = [1, 1]} : vector<8x256xf32> to vector<8x64xf32>
    %943 = arith.negf %942 : vector<8x64xf32>
    %944 = math.exp %943 : vector<8x64xf32>
    %cst_331 = arith.constant 1.000000e+00 : f32
    %945 = vector.broadcast %cst_331 : f32 to vector<8x64xf32>
    %946 = arith.addf %945, %944 : vector<8x64xf32>
    %947 = arith.divf %945, %946 : vector<8x64xf32>
    %948 = arith.mulf %939, %916 : vector<8x64xf32>
    %949 = arith.mulf %933, %941 : vector<8x64xf32>
    %950 = arith.addf %948, %949 : vector<8x64xf32>
    %951 = math.tanh %950 : vector<8x64xf32>
    %952 = arith.mulf %947, %951 : vector<8x64xf32>
    %953 = vector.extract_strided_slice %952 {offsets = [0, 0], sizes = [8, 32], strides = [1, 1]} : vector<8x64xf32> to vector<8x32xf32>
    %c80_332 = arith.constant 80 : index
    %c64_333 = arith.constant 64 : index
    %954 = vector.load %arg8[%c80_332, %c64_333] : memref<128x128xf32, #tpu.memory_space<vmem>>, vector<8x32xf32>
    tpu.vector_store %arg8[%c80_332, %c64_333], %953 {strides = array<i32>} : memref<128x128xf32, #tpu.memory_space<vmem>>, vector<8x32xf32>,
    %955 = vector.extract_strided_slice %952 {offsets = [0, 32], sizes = [8, 32], strides = [1, 1]} : vector<8x64xf32> to vector<8x32xf32>
    %c40_334 = arith.constant 40 : index
    %c96_335 = arith.constant 96 : index
    %956 = vector.load %arg8[%c40_334, %c96_335] : memref<128x128xf32, #tpu.memory_space<vmem>>, vector<8x32xf32>
    tpu.vector_store %arg8[%c40_334, %c96_335], %955 {strides = array<i32>} : memref<128x128xf32, #tpu.memory_space<vmem>>, vector<8x32xf32>,
    %c88_336 = arith.constant 88 : index
    %c0_337 = arith.constant 0 : index
    %957 = vector.load %arg9[%c88_336, %c0_337] : memref<128x256xf32, #tpu.memory_space<vmem>>, vector<8x256xf32>
    %c32_338 = arith.constant 32 : index
    %c0_339 = arith.constant 0 : index
    %958 = vector.load %arg9[%c32_338, %c0_339] : memref<128x256xf32, #tpu.memory_space<vmem>>, vector<8x256xf32>
    %959 = arith.select %18, %957, %958 : vector<8x256xi1>, vector<8x256xf32>
    %cst_340 = arith.constant dense<0.000000e+00> : vector<8x256xf32>
    %960 = tpu.matmul %952, %580, %cst_340 {dimension_numbers = #tpu.dot_dimension_numbers<[1], [0], [0], [1], [0, 0, 1, 1], [], []>} : vector<8x64xf32>, vector<64x256xf32>, vector<8x256xf32> -> vector<8x256xf32>
    %961 = arith.addf %959, %960 : vector<8x256xf32>
    %962 = vector.extract_strided_slice %961 {offsets = [0, 0], sizes = [8, 64], strides = [1, 1]} : vector<8x256xf32> to vector<8x64xf32>
    %963 = arith.negf %962 : vector<8x64xf32>
    %964 = math.exp %963 : vector<8x64xf32>
    %cst_341 = arith.constant 1.000000e+00 : f32
    %965 = vector.broadcast %cst_341 : f32 to vector<8x64xf32>
    %966 = arith.addf %965, %964 : vector<8x64xf32>
    %967 = arith.divf %965, %966 : vector<8x64xf32>
    %968 = vector.extract_strided_slice %961 {offsets = [0, 64], sizes = [8, 64], strides = [1, 1]} : vector<8x256xf32> to vector<8x64xf32>
    %969 = arith.negf %968 : vector<8x64xf32>
    %970 = math.exp %969 : vector<8x64xf32>
    %cst_342 = arith.constant 1.000000e+00 : f32
    %971 = vector.broadcast %cst_342 : f32 to vector<8x64xf32>
    %972 = arith.addf %971, %970 : vector<8x64xf32>
    %973 = arith.divf %971, %972 : vector<8x64xf32>
    %974 = vector.extract_strided_slice %961 {offsets = [0, 128], sizes = [8, 64], strides = [1, 1]} : vector<8x256xf32> to vector<8x64xf32>
    %975 = math.tanh %974 : vector<8x64xf32>
    %976 = vector.extract_strided_slice %961 {offsets = [0, 192], sizes = [8, 64], strides = [1, 1]} : vector<8x256xf32> to vector<8x64xf32>
    %977 = arith.negf %976 : vector<8x64xf32>
    %978 = math.exp %977 : vector<8x64xf32>
    %cst_343 = arith.constant 1.000000e+00 : f32
    %979 = vector.broadcast %cst_343 : f32 to vector<8x64xf32>
    %980 = arith.addf %979, %978 : vector<8x64xf32>
    %981 = arith.divf %979, %980 : vector<8x64xf32>
    %982 = arith.mulf %973, %950 : vector<8x64xf32>
    %983 = arith.mulf %967, %975 : vector<8x64xf32>
    %984 = arith.addf %982, %983 : vector<8x64xf32>
    %985 = math.tanh %984 : vector<8x64xf32>
    %986 = arith.mulf %981, %985 : vector<8x64xf32>
    %987 = vector.extract_strided_slice %986 {offsets = [0, 0], sizes = [8, 32], strides = [1, 1]} : vector<8x64xf32> to vector<8x32xf32>
    %c88_344 = arith.constant 88 : index
    %c64_345 = arith.constant 64 : index
    %988 = vector.load %arg8[%c88_344, %c64_345] : memref<128x128xf32, #tpu.memory_space<vmem>>, vector<8x32xf32>
    tpu.vector_store %arg8[%c88_344, %c64_345], %987 {strides = array<i32>} : memref<128x128xf32, #tpu.memory_space<vmem>>, vector<8x32xf32>,
    %989 = vector.extract_strided_slice %986 {offsets = [0, 32], sizes = [8, 32], strides = [1, 1]} : vector<8x64xf32> to vector<8x32xf32>
    %c32_346 = arith.constant 32 : index
    %c96_347 = arith.constant 96 : index
    %990 = vector.load %arg8[%c32_346, %c96_347] : memref<128x128xf32, #tpu.memory_space<vmem>>, vector<8x32xf32>
    tpu.vector_store %arg8[%c32_346, %c96_347], %989 {strides = array<i32>} : memref<128x128xf32, #tpu.memory_space<vmem>>, vector<8x32xf32>,
    %c96_348 = arith.constant 96 : index
    %c0_349 = arith.constant 0 : index
    %991 = vector.load %arg9[%c96_348, %c0_349] : memref<128x256xf32, #tpu.memory_space<vmem>>, vector<8x256xf32>
    %c24_350 = arith.constant 24 : index
    %c0_351 = arith.constant 0 : index
    %992 = vector.load %arg9[%c24_350, %c0_351] : memref<128x256xf32, #tpu.memory_space<vmem>>, vector<8x256xf32>
    %993 = arith.select %18, %991, %992 : vector<8x256xi1>, vector<8x256xf32>
    %cst_352 = arith.constant dense<0.000000e+00> : vector<8x256xf32>
    %994 = tpu.matmul %986, %580, %cst_352 {dimension_numbers = #tpu.dot_dimension_numbers<[1], [0], [0], [1], [0, 0, 1, 1], [], []>} : vector<8x64xf32>, vector<64x256xf32>, vector<8x256xf32> -> vector<8x256xf32>
    %995 = arith.addf %993, %994 : vector<8x256xf32>
    %996 = vector.extract_strided_slice %995 {offsets = [0, 0], sizes = [8, 64], strides = [1, 1]} : vector<8x256xf32> to vector<8x64xf32>
    %997 = arith.negf %996 : vector<8x64xf32>
    %998 = math.exp %997 : vector<8x64xf32>
    %cst_353 = arith.constant 1.000000e+00 : f32
    %999 = vector.broadcast %cst_353 : f32 to vector<8x64xf32>
    %1000 = arith.addf %999, %998 : vector<8x64xf32>
    %1001 = arith.divf %999, %1000 : vector<8x64xf32>
    %1002 = vector.extract_strided_slice %995 {offsets = [0, 64], sizes = [8, 64], strides = [1, 1]} : vector<8x256xf32> to vector<8x64xf32>
    %1003 = arith.negf %1002 : vector<8x64xf32>
    %1004 = math.exp %1003 : vector<8x64xf32>
    %cst_354 = arith.constant 1.000000e+00 : f32
    %1005 = vector.broadcast %cst_354 : f32 to vector<8x64xf32>
    %1006 = arith.addf %1005, %1004 : vector<8x64xf32>
    %1007 = arith.divf %1005, %1006 : vector<8x64xf32>
    %1008 = vector.extract_strided_slice %995 {offsets = [0, 128], sizes = [8, 64], strides = [1, 1]} : vector<8x256xf32> to vector<8x64xf32>
    %1009 = math.tanh %1008 : vector<8x64xf32>
    %1010 = vector.extract_strided_slice %995 {offsets = [0, 192], sizes = [8, 64], strides = [1, 1]} : vector<8x256xf32> to vector<8x64xf32>
    %1011 = arith.negf %1010 : vector<8x64xf32>
    %1012 = math.exp %1011 : vector<8x64xf32>
    %cst_355 = arith.constant 1.000000e+00 : f32
    %1013 = vector.broadcast %cst_355 : f32 to vector<8x64xf32>
    %1014 = arith.addf %1013, %1012 : vector<8x64xf32>
    %1015 = arith.divf %1013, %1014 : vector<8x64xf32>
    %1016 = arith.mulf %1007, %984 : vector<8x64xf32>
    %1017 = arith.mulf %1001, %1009 : vector<8x64xf32>
    %1018 = arith.addf %1016, %1017 : vector<8x64xf32>
    %1019 = math.tanh %1018 : vector<8x64xf32>
    %1020 = arith.mulf %1015, %1019 : vector<8x64xf32>
    %1021 = vector.extract_strided_slice %1020 {offsets = [0, 0], sizes = [8, 32], strides = [1, 1]} : vector<8x64xf32> to vector<8x32xf32>
    %c96_356 = arith.constant 96 : index
    %c64_357 = arith.constant 64 : index
    %1022 = vector.load %arg8[%c96_356, %c64_357] : memref<128x128xf32, #tpu.memory_space<vmem>>, vector<8x32xf32>
    tpu.vector_store %arg8[%c96_356, %c64_357], %1021 {strides = array<i32>} : memref<128x128xf32, #tpu.memory_space<vmem>>, vector<8x32xf32>,
    %1023 = vector.extract_strided_slice %1020 {offsets = [0, 32], sizes = [8, 32], strides = [1, 1]} : vector<8x64xf32> to vector<8x32xf32>
    %c24_358 = arith.constant 24 : index
    %c96_359 = arith.constant 96 : index
    %1024 = vector.load %arg8[%c24_358, %c96_359] : memref<128x128xf32, #tpu.memory_space<vmem>>, vector<8x32xf32>
    tpu.vector_store %arg8[%c24_358, %c96_359], %1023 {strides = array<i32>} : memref<128x128xf32, #tpu.memory_space<vmem>>, vector<8x32xf32>,
    %c104_360 = arith.constant 104 : index
    %c0_361 = arith.constant 0 : index
    %1025 = vector.load %arg9[%c104_360, %c0_361] : memref<128x256xf32, #tpu.memory_space<vmem>>, vector<8x256xf32>
    %c16_362 = arith.constant 16 : index
    %c0_363 = arith.constant 0 : index
    %1026 = vector.load %arg9[%c16_362, %c0_363] : memref<128x256xf32, #tpu.memory_space<vmem>>, vector<8x256xf32>
    %1027 = arith.select %18, %1025, %1026 : vector<8x256xi1>, vector<8x256xf32>
    %cst_364 = arith.constant dense<0.000000e+00> : vector<8x256xf32>
    %1028 = tpu.matmul %1020, %580, %cst_364 {dimension_numbers = #tpu.dot_dimension_numbers<[1], [0], [0], [1], [0, 0, 1, 1], [], []>} : vector<8x64xf32>, vector<64x256xf32>, vector<8x256xf32> -> vector<8x256xf32>
    %1029 = arith.addf %1027, %1028 : vector<8x256xf32>
    %1030 = vector.extract_strided_slice %1029 {offsets = [0, 0], sizes = [8, 64], strides = [1, 1]} : vector<8x256xf32> to vector<8x64xf32>
    %1031 = arith.negf %1030 : vector<8x64xf32>
    %1032 = math.exp %1031 : vector<8x64xf32>
    %cst_365 = arith.constant 1.000000e+00 : f32
    %1033 = vector.broadcast %cst_365 : f32 to vector<8x64xf32>
    %1034 = arith.addf %1033, %1032 : vector<8x64xf32>
    %1035 = arith.divf %1033, %1034 : vector<8x64xf32>
    %1036 = vector.extract_strided_slice %1029 {offsets = [0, 64], sizes = [8, 64], strides = [1, 1]} : vector<8x256xf32> to vector<8x64xf32>
    %1037 = arith.negf %1036 : vector<8x64xf32>
    %1038 = math.exp %1037 : vector<8x64xf32>
    %cst_366 = arith.constant 1.000000e+00 : f32
    %1039 = vector.broadcast %cst_366 : f32 to vector<8x64xf32>
    %1040 = arith.addf %1039, %1038 : vector<8x64xf32>
    %1041 = arith.divf %1039, %1040 : vector<8x64xf32>
    %1042 = vector.extract_strided_slice %1029 {offsets = [0, 128], sizes = [8, 64], strides = [1, 1]} : vector<8x256xf32> to vector<8x64xf32>
    %1043 = math.tanh %1042 : vector<8x64xf32>
    %1044 = vector.extract_strided_slice %1029 {offsets = [0, 192], sizes = [8, 64], strides = [1, 1]} : vector<8x256xf32> to vector<8x64xf32>
    %1045 = arith.negf %1044 : vector<8x64xf32>
    %1046 = math.exp %1045 : vector<8x64xf32>
    %cst_367 = arith.constant 1.000000e+00 : f32
    %1047 = vector.broadcast %cst_367 : f32 to vector<8x64xf32>
    %1048 = arith.addf %1047, %1046 : vector<8x64xf32>
    %1049 = arith.divf %1047, %1048 : vector<8x64xf32>
    %1050 = arith.mulf %1041, %1018 : vector<8x64xf32>
    %1051 = arith.mulf %1035, %1043 : vector<8x64xf32>
    %1052 = arith.addf %1050, %1051 : vector<8x64xf32>
    %1053 = math.tanh %1052 : vector<8x64xf32>
    %1054 = arith.mulf %1049, %1053 : vector<8x64xf32>
    %1055 = vector.extract_strided_slice %1054 {offsets = [0, 0], sizes = [8, 32], strides = [1, 1]} : vector<8x64xf32> to vector<8x32xf32>
    %c104_368 = arith.constant 104 : index
    %c64_369 = arith.constant 64 : index
    %1056 = vector.load %arg8[%c104_368, %c64_369] : memref<128x128xf32, #tpu.memory_space<vmem>>, vector<8x32xf32>
    tpu.vector_store %arg8[%c104_368, %c64_369], %1055 {strides = array<i32>} : memref<128x128xf32, #tpu.memory_space<vmem>>, vector<8x32xf32>,
    %1057 = vector.extract_strided_slice %1054 {offsets = [0, 32], sizes = [8, 32], strides = [1, 1]} : vector<8x64xf32> to vector<8x32xf32>
    %c16_370 = arith.constant 16 : index
    %c96_371 = arith.constant 96 : index
    %1058 = vector.load %arg8[%c16_370, %c96_371] : memref<128x128xf32, #tpu.memory_space<vmem>>, vector<8x32xf32>
    tpu.vector_store %arg8[%c16_370, %c96_371], %1057 {strides = array<i32>} : memref<128x128xf32, #tpu.memory_space<vmem>>, vector<8x32xf32>,
    %c112_372 = arith.constant 112 : index
    %c0_373 = arith.constant 0 : index
    %1059 = vector.load %arg9[%c112_372, %c0_373] : memref<128x256xf32, #tpu.memory_space<vmem>>, vector<8x256xf32>
    %c8_374 = arith.constant 8 : index
    %c0_375 = arith.constant 0 : index
    %1060 = vector.load %arg9[%c8_374, %c0_375] : memref<128x256xf32, #tpu.memory_space<vmem>>, vector<8x256xf32>
    %1061 = arith.select %18, %1059, %1060 : vector<8x256xi1>, vector<8x256xf32>
    %cst_376 = arith.constant dense<0.000000e+00> : vector<8x256xf32>
    %1062 = tpu.matmul %1054, %580, %cst_376 {dimension_numbers = #tpu.dot_dimension_numbers<[1], [0], [0], [1], [0, 0, 1, 1], [], []>} : vector<8x64xf32>, vector<64x256xf32>, vector<8x256xf32> -> vector<8x256xf32>
    %1063 = arith.addf %1061, %1062 : vector<8x256xf32>
    %1064 = vector.extract_strided_slice %1063 {offsets = [0, 0], sizes = [8, 64], strides = [1, 1]} : vector<8x256xf32> to vector<8x64xf32>
    %1065 = arith.negf %1064 : vector<8x64xf32>
    %1066 = math.exp %1065 : vector<8x64xf32>
    %cst_377 = arith.constant 1.000000e+00 : f32
    %1067 = vector.broadcast %cst_377 : f32 to vector<8x64xf32>
    %1068 = arith.addf %1067, %1066 : vector<8x64xf32>
    %1069 = arith.divf %1067, %1068 : vector<8x64xf32>
    %1070 = vector.extract_strided_slice %1063 {offsets = [0, 64], sizes = [8, 64], strides = [1, 1]} : vector<8x256xf32> to vector<8x64xf32>
    %1071 = arith.negf %1070 : vector<8x64xf32>
    %1072 = math.exp %1071 : vector<8x64xf32>
    %cst_378 = arith.constant 1.000000e+00 : f32
    %1073 = vector.broadcast %cst_378 : f32 to vector<8x64xf32>
    %1074 = arith.addf %1073, %1072 : vector<8x64xf32>
    %1075 = arith.divf %1073, %1074 : vector<8x64xf32>
    %1076 = vector.extract_strided_slice %1063 {offsets = [0, 128], sizes = [8, 64], strides = [1, 1]} : vector<8x256xf32> to vector<8x64xf32>
    %1077 = math.tanh %1076 : vector<8x64xf32>
    %1078 = vector.extract_strided_slice %1063 {offsets = [0, 192], sizes = [8, 64], strides = [1, 1]} : vector<8x256xf32> to vector<8x64xf32>
    %1079 = arith.negf %1078 : vector<8x64xf32>
    %1080 = math.exp %1079 : vector<8x64xf32>
    %cst_379 = arith.constant 1.000000e+00 : f32
    %1081 = vector.broadcast %cst_379 : f32 to vector<8x64xf32>
    %1082 = arith.addf %1081, %1080 : vector<8x64xf32>
    %1083 = arith.divf %1081, %1082 : vector<8x64xf32>
    %1084 = arith.mulf %1075, %1052 : vector<8x64xf32>
    %1085 = arith.mulf %1069, %1077 : vector<8x64xf32>
    %1086 = arith.addf %1084, %1085 : vector<8x64xf32>
    %1087 = math.tanh %1086 : vector<8x64xf32>
    %1088 = arith.mulf %1083, %1087 : vector<8x64xf32>
    %1089 = vector.extract_strided_slice %1088 {offsets = [0, 0], sizes = [8, 32], strides = [1, 1]} : vector<8x64xf32> to vector<8x32xf32>
    %c112_380 = arith.constant 112 : index
    %c64_381 = arith.constant 64 : index
    %1090 = vector.load %arg8[%c112_380, %c64_381] : memref<128x128xf32, #tpu.memory_space<vmem>>, vector<8x32xf32>
    tpu.vector_store %arg8[%c112_380, %c64_381], %1089 {strides = array<i32>} : memref<128x128xf32, #tpu.memory_space<vmem>>, vector<8x32xf32>,
    %1091 = vector.extract_strided_slice %1088 {offsets = [0, 32], sizes = [8, 32], strides = [1, 1]} : vector<8x64xf32> to vector<8x32xf32>
    %c8_382 = arith.constant 8 : index
    %c96_383 = arith.constant 96 : index
    %1092 = vector.load %arg8[%c8_382, %c96_383] : memref<128x128xf32, #tpu.memory_space<vmem>>, vector<8x32xf32>
    tpu.vector_store %arg8[%c8_382, %c96_383], %1091 {strides = array<i32>} : memref<128x128xf32, #tpu.memory_space<vmem>>, vector<8x32xf32>,
    %c120_384 = arith.constant 120 : index
    %c0_385 = arith.constant 0 : index
    %1093 = vector.load %arg9[%c120_384, %c0_385] : memref<128x256xf32, #tpu.memory_space<vmem>>, vector<8x256xf32>
    %c0_386 = arith.constant 0 : index
    %c0_387 = arith.constant 0 : index
    %1094 = vector.load %arg9[%c0_386, %c0_387] : memref<128x256xf32, #tpu.memory_space<vmem>>, vector<8x256xf32>
    %1095 = arith.select %18, %1093, %1094 : vector<8x256xi1>, vector<8x256xf32>
    %cst_388 = arith.constant dense<0.000000e+00> : vector<8x256xf32>
    %1096 = tpu.matmul %1088, %580, %cst_388 {dimension_numbers = #tpu.dot_dimension_numbers<[1], [0], [0], [1], [0, 0, 1, 1], [], []>} : vector<8x64xf32>, vector<64x256xf32>, vector<8x256xf32> -> vector<8x256xf32>
    %1097 = arith.addf %1095, %1096 : vector<8x256xf32>
    %1098 = vector.extract_strided_slice %1097 {offsets = [0, 0], sizes = [8, 64], strides = [1, 1]} : vector<8x256xf32> to vector<8x64xf32>
    %1099 = arith.negf %1098 : vector<8x64xf32>
    %1100 = math.exp %1099 : vector<8x64xf32>
    %cst_389 = arith.constant 1.000000e+00 : f32
    %1101 = vector.broadcast %cst_389 : f32 to vector<8x64xf32>
    %1102 = arith.addf %1101, %1100 : vector<8x64xf32>
    %1103 = arith.divf %1101, %1102 : vector<8x64xf32>
    %1104 = vector.extract_strided_slice %1097 {offsets = [0, 64], sizes = [8, 64], strides = [1, 1]} : vector<8x256xf32> to vector<8x64xf32>
    %1105 = arith.negf %1104 : vector<8x64xf32>
    %1106 = math.exp %1105 : vector<8x64xf32>
    %cst_390 = arith.constant 1.000000e+00 : f32
    %1107 = vector.broadcast %cst_390 : f32 to vector<8x64xf32>
    %1108 = arith.addf %1107, %1106 : vector<8x64xf32>
    %1109 = arith.divf %1107, %1108 : vector<8x64xf32>
    %1110 = vector.extract_strided_slice %1097 {offsets = [0, 128], sizes = [8, 64], strides = [1, 1]} : vector<8x256xf32> to vector<8x64xf32>
    %1111 = math.tanh %1110 : vector<8x64xf32>
    %1112 = vector.extract_strided_slice %1097 {offsets = [0, 192], sizes = [8, 64], strides = [1, 1]} : vector<8x256xf32> to vector<8x64xf32>
    %1113 = arith.negf %1112 : vector<8x64xf32>
    %1114 = math.exp %1113 : vector<8x64xf32>
    %cst_391 = arith.constant 1.000000e+00 : f32
    %1115 = vector.broadcast %cst_391 : f32 to vector<8x64xf32>
    %1116 = arith.addf %1115, %1114 : vector<8x64xf32>
    %1117 = arith.divf %1115, %1116 : vector<8x64xf32>
    %1118 = arith.mulf %1109, %1086 : vector<8x64xf32>
    %1119 = arith.mulf %1103, %1111 : vector<8x64xf32>
    %1120 = arith.addf %1118, %1119 : vector<8x64xf32>
    %1121 = math.tanh %1120 : vector<8x64xf32>
    %1122 = arith.mulf %1117, %1121 : vector<8x64xf32>
    %1123 = vector.extract_strided_slice %1122 {offsets = [0, 0], sizes = [8, 32], strides = [1, 1]} : vector<8x64xf32> to vector<8x32xf32>
    %c120_392 = arith.constant 120 : index
    %c64_393 = arith.constant 64 : index
    %1124 = vector.load %arg8[%c120_392, %c64_393] : memref<128x128xf32, #tpu.memory_space<vmem>>, vector<8x32xf32>
    tpu.vector_store %arg8[%c120_392, %c64_393], %1123 {strides = array<i32>} : memref<128x128xf32, #tpu.memory_space<vmem>>, vector<8x32xf32>,
    %1125 = vector.extract_strided_slice %1122 {offsets = [0, 32], sizes = [8, 32], strides = [1, 1]} : vector<8x64xf32> to vector<8x32xf32>
    %c0_394 = arith.constant 0 : index
    %c96_395 = arith.constant 96 : index
    %1126 = vector.load %arg8[%c0_394, %c96_395] : memref<128x128xf32, #tpu.memory_space<vmem>>, vector<8x32xf32>
    tpu.vector_store %arg8[%c0_394, %c96_395], %1125 {strides = array<i32>} : memref<128x128xf32, #tpu.memory_space<vmem>>, vector<8x32xf32>,
    %c0_396 = arith.constant 0 : index
    %c0_397 = arith.constant 0 : index
    %1127 = vector.load %arg10[%c0_396, %c0_397] : memref<128x64xf32, #tpu.memory_space<vmem>>, vector<128x64xf32>
    %c0_398 = arith.constant 0 : index
    %c0_399 = arith.constant 0 : index
    %1128 = vector.load %arg8[%c0_398, %c0_399] : memref<128x128xf32, #tpu.memory_space<vmem>>, vector<128x64xf32>
    tpu.vector_store %arg8[%c0_398, %c0_399], %1127 {strides = array<i32>} : memref<128x128xf32, #tpu.memory_space<vmem>>, vector<128x64xf32>,
    return
  }
  func.func @transform_0(%arg0: i32) -> (i32, i32) {
    %c0_i32 = arith.constant 0 : i32
    %c0_i32_0 = arith.constant 0 : i32
    %c0_i32_1 = arith.constant 0 : i32
    return %c0_i32, %c0_i32_0 : i32, i32
  }
  func.func @transform_1(%arg0: i32) -> (i32, i32) {
    %c0_i32 = arith.constant 0 : i32
    %c0_i32_0 = arith.constant 0 : i32
    %c0_i32_1 = arith.constant 0 : i32
    return %c0_i32, %c0_i32_0 : i32, i32
  }
  func.func @transform_2(%arg0: i32) -> (i32, i32) {
    %c0_i32 = arith.constant 0 : i32
    %c0_i32_0 = arith.constant 0 : i32
    %c0_i32_1 = arith.constant 0 : i32
    return %c0_i32, %c0_i32_0 : i32, i32
  }
  func.func @transform_3(%arg0: i32) -> (i32, i32) {
    %c0_i32 = arith.constant 0 : i32
    %c0_i32_0 = arith.constant 0 : i32
    %c0_i32_1 = arith.constant 0 : i32
    return %c0_i32, %c0_i32_0 : i32, i32
  }
  func.func @transform_4(%arg0: i32) -> (i32, i32) {
    %c0_i32 = arith.constant 0 : i32
    %c0_i32_0 = arith.constant 0 : i32
    %c0_i32_1 = arith.constant 0 : i32
    return %c0_i32, %c0_i32_0 : i32, i32
  }
  func.func @transform_5(%arg0: i32) -> (i32, i32) {
    %c0_i32 = arith.constant 0 : i32
    %c0_i32_0 = arith.constant 0 : i32
    %c0_i32_1 = arith.constant 0 : i32
    return %c0_i32, %c0_i32_0 : i32, i32
  }
  func.func @transform_6(%arg0: i32) -> (i32, i32) {
    %c0_i32 = arith.constant 0 : i32
    %c0_i32_0 = arith.constant 0 : i32
    %c0_i32_1 = arith.constant 0 : i32
    return %c0_i32, %c0_i32_0 : i32, i32
  }
  func.func @transform_7(%arg0: i32) -> (i32, i32) {
    %c0_i32 = arith.constant 0 : i32
    %c0_i32_0 = arith.constant 0 : i32
    %c0_i32_1 = arith.constant 0 : i32
    return %c0_i32, %c0_i32_0 : i32, i32
  }
}

</mosaic_0001>

<llo_original>
// kernel: qua_forward.4
$region0: #{qua_forward.4}
  #allocation0 [shape = 'u32[]', space=smem, size = 0x4, offset = 0x4, fixed_abs, tag = 'smem constant byte address 0x4 - core index']
  #allocation1 [shape = 'u32[72,128]{1,0:T(1,128)}', space=vmem, size = 0x9000, scoped, tag = 'internal scratch']
  %s0 = inlined_call_operand.vmem [shape: f32[2,24,32], index: 0, kind: input, shape index: {}]
  %s1 = inlined_call_operand.vmem [shape: f32[32,32], index: 1, kind: input, shape index: {}]
  %s2 = inlined_call_operand.vmem [shape: f32[1,32], index: 2, kind: input, shape index: {}]
  %s3 = inlined_call_operand.vmem [shape: f32[2,1,8], index: 3, kind: input, shape index: {}]
  %s4 = inlined_call_operand.vmem [shape: f32[2,16,64], index: 4, kind: output, shape index: {}]
  %s5 = sld [smem:[#allocation0]]
  $region49: #{qua_forward.4} parent=0
    _
  %s7 = ssub.s32 1, %s5
  %s8 = scalar_select 0, %s7, %s5
  loop: start=0, step=1, limit=4
  $region2: #{qua_forward.4} parent=0 // loop_pre_header
    _
  $region3: #{qua_forward.4} parent=0 // loop_header
    %s10 = sphi 0, %s14
    %p11 = scmp.ge.s32.totalorder %s10, 4
    %s20 = sphi 0, %s22
    %s23 = sphi 0, %s20
    %s24 = sphi 0, %s23
    %s40 = sphi 0, %s24
    %s44 = sphi 0, %s44
    %s46 = sphi 0, %s44
    %s47 = sphi 0, %s46
    %s61 = sphi 0, %s47
    %s65 = sphi 0, %s65
    %s67 = sphi 0, %s65
    %s68 = sphi 0, %s67
    %s82 = sphi 0, %s68
    %s88 = sphi 0, %s90
    %s91 = sphi 0, %s88
    %s92 = sphi 0, %s91
    %s108 = sphi 0, %s92
    %s114 = sphi 0, %s116
    %s117 = sphi 0, %s114
    %s118 = sphi 0, %s117
    %s134 = sphi 0, %s118
  $region4: #{qua_forward.4} parent=0 // loop_header_branch
    %13 = sbr.rel (%p11) target = $region8
  $region5: #{qua_forward.4} parent=0 // loop_body
    %s15 = ssub.s32 %s10, 1
    %s16 = ssub.s32 %s10, 2
    %s17 = sadd.s32 %s10, 1
    %s18 = ssub.s32 %s10, %s17
    %p19 = scmp.eq.s32.totalorder %s18, 0
    %s21 = sadd.s32 %s20, 1
    %s22 = scalar_select %p19, %s20, %s21
    %p25 = pneg %p19
    %p26 = scmp.eq.s32.totalorder %s10, 1
    %p27 = por %p25, %p26
    %p28 = scmp.ne.s32.totalorder %s20, %s23
    %p29 = scmp.eq.s32.totalorder %s10, 0
    %p30 = por %p28, %p29
    %p31 = scmp.ne.s32.totalorder %s20, %s23
    %p32 = scmp.eq.s32.totalorder %s15, 1
    %p33 = por %p31, %p32
    %p34 = scmp.ne.s32.totalorder %s23, %s24
    %p35 = scmp.eq.s32.totalorder %s15, 0
    %p36 = por %p34, %p35
    %p37 = scmp.ne.s32.totalorder %s23, %s24
    %p38 = scmp.eq.s32.totalorder %s16, 1
    %p39 = por %p37, %p38
    %p41 = scmp.ne.s32.totalorder %s24, %s40
    %p42 = scmp.eq.s32.totalorder %s16, 0
    %p43 = por %p41, %p42
    %s45 = sadd.s32 %s44, 1
    %p48 = scmp.eq.s32.totalorder %s10, 1
    %p49 = scmp.ne.s32.totalorder %s44, %s46
    %p50 = scmp.eq.s32.totalorder %s10, 0
    %p51 = por %p49, %p50
    %p52 = scmp.ne.s32.totalorder %s44, %s46
    %p53 = scmp.eq.s32.totalorder %s15, 1
    %p54 = por %p52, %p53
    %p55 = scmp.ne.s32.totalorder %s46, %s47
    %p56 = scmp.eq.s32.totalorder %s15, 0
    %p57 = por %p55, %p56
    %p58 = scmp.ne.s32.totalorder %s46, %s47
    %p59 = scmp.eq.s32.totalorder %s16, 1
    %p60 = por %p58, %p59
    %p62 = scmp.ne.s32.totalorder %s47, %s61
    %p63 = scmp.eq.s32.totalorder %s16, 0
    %p64 = por %p62, %p63
    %s66 = sadd.s32 %s65, 1
    %p69 = scmp.eq.s32.totalorder %s10, 1
    %p70 = scmp.ne.s32.totalorder %s65, %s67
    %p71 = scmp.eq.s32.totalorder %s10, 0
    %p72 = por %p70, %p71
    %p73 = scmp.ne.s32.totalorder %s65, %s67
    %p74 = scmp.eq.s32.totalorder %s15, 1
    %p75 = por %p73, %p74
    %p76 = scmp.ne.s32.totalorder %s67, %s68
    %p77 = scmp.eq.s32.totalorder %s15, 0
    %p78 = por %p76, %p77
    %p79 = scmp.ne.s32.totalorder %s67, %s68
    %p80 = scmp.eq.s32.totalorder %s16, 1
    %p81 = por %p79, %p80
    %p83 = scmp.ne.s32.totalorder %s68, %s82
    %p84 = scmp.eq.s32.totalorder %s16, 0
    %p85 = por %p83, %p84
    %s86 = ssub.s32 %s10, %s17
    %p87 = scmp.eq.s32.totalorder %s86, 0
    %s89 = sadd.s32 %s88, 1
    %s90 = scalar_select %p87, %s88, %s89
    %p93 = pneg %p87
    %p94 = scmp.eq.s32.totalorder %s10, 1
    %p95 = por %p93, %p94
    %p96 = scmp.ne.s32.totalorder %s88, %s91
    %p97 = scmp.eq.s32.totalorder %s10, 0
    %p98 = por %p96, %p97
    %p99 = scmp.ne.s32.totalorder %s88, %s91
    %p100 = scmp.eq.s32.totalorder %s15, 1
    %p101 = por %p99, %p100
    %p102 = scmp.ne.s32.totalorder %s91, %s92
    %p103 = scmp.eq.s32.totalorder %s15, 0
    %p104 = por %p102, %p103
    %p105 = scmp.ne.s32.totalorder %s91, %s92
    %p106 = scmp.eq.s32.totalorder %s16, 1
    %p107 = por %p105, %p106
    %p109 = scmp.ne.s32.totalorder %s92, %s108
    %p110 = scmp.eq.s32.totalorder %s16, 0
    %p111 = por %p109, %p110
    %s112 = ssub.s32 %s10, %s17
    %p113 = scmp.eq.s32.totalorder %s112, 0
    %s115 = sadd.s32 %s114, 1
    %s116 = scalar_select %p113, %s114, %s115
    %p119 = pneg %p113
    %p120 = scmp.eq.s32.totalorder %s10, 1
    %p121 = por %p119, %p120
    %p122 = scmp.ne.s32.totalorder %s114, %s117
    %p123 = scmp.eq.s32.totalorder %s10, 0
    %p124 = por %p122, %p123
    %p125 = scmp.ne.s32.totalorder %s114, %s117
    %p126 = scmp.eq.s32.totalorder %s15, 1
    %p127 = por %p125, %p126
    %p128 = scmp.ne.s32.totalorder %s117, %s118
    %p129 = scmp.eq.s32.totalorder %s15, 0
    %p130 = por %p128, %p129
    %p131 = scmp.ne.s32.totalorder %s117, %s118
    %p132 = scmp.eq.s32.totalorder %s16, 1
    %p133 = por %p131, %p132
    %p135 = scmp.ne.s32.totalorder %s118, %s134
    %p136 = scmp.eq.s32.totalorder %s16, 0
    %p137 = por %p135, %p136
    %p138 = scmp.le.s32.totalorder 1, %s10
    %p139 = scmp.lt.s32.totalorder %s10, 3
    %p140 = pnand %p138, %p139
    %p141 = pneg %p140
    // Predicated region
    $region9: #{qua_forward.4} parent=5 // pred_check
      _
    $region10: #{qua_forward.4} parent=5 // pred_check_branch
      %143 = sbr.rel (%p140) target = $region12
    $region11: #{qua_forward.4} parent=5 // pred_region
      %s144 = ssub.s32 %s10, 1
      // Predicated region
      $region13: #{qua_forward.4} parent=11 // pred_check
        %p145 = pneg %p57
      $region14: #{qua_forward.4} parent=11 // pred_check_branch
        %147 = sbr.rel (%p145) target = $region16
      $region15: #{qua_forward.4} parent=11 // pred_region
        _
      $region16: #{qua_forward.4} parent=11 // pred_fallthru
        _
      // Predicated region
      $region17: #{qua_forward.4} parent=11 // pred_check
        %p148 = pneg %p78
      $region18: #{qua_forward.4} parent=11 // pred_check_branch
        %150 = sbr.rel (%p148) target = $region20
      $region19: #{qua_forward.4} parent=11 // pred_region
        _
      $region20: #{qua_forward.4} parent=11 // pred_fallthru
        _
    $region12: #{qua_forward.4} parent=5 // pred_fallthru
      _
    %p151 = scmp.lt.s32.totalorder %s10, 2
    // Predicated region
    $region21: #{qua_forward.4} parent=5 // pred_check
      %p152 = pneg %p151
    $region22: #{qua_forward.4} parent=5 // pred_check_branch
      %154 = sbr.rel (%p152) target = $region24
    $region23: #{qua_forward.4} parent=5 // pred_region
      // Predicated region
      $region25: #{qua_forward.4} parent=23 // pred_check
        %p155 = pneg %p30
      $region26: #{qua_forward.4} parent=23 // pred_check_branch
        %157 = sbr.rel (%p155) target = $region28
      $region27: #{qua_forward.4} parent=23 // pred_region
        %p158 = scmp.lt.s32.totalorder %s10, 1
        %s159 = scalar_select %p158, %s10, 1
        %s160 = smul.addr %s159, 3
        %s161 = smul.addr %s160, 8
        %s162 = scalar_lea.vmem %s0, %s161
      $region28: #{qua_forward.4} parent=23 // pred_fallthru
        _
      // Predicated region
      $region29: #{qua_forward.4} parent=23 // pred_check
        %p163 = pneg %p98
      $region30: #{qua_forward.4} parent=23 // pred_check_branch
        %165 = sbr.rel (%p163) target = $region32
      $region31: #{qua_forward.4} parent=23 // pred_region
        %p166 = scmp.lt.s32.totalorder %s10, 1
        %s167 = scalar_select %p166, %s10, 1
        %s168 = scalar_lea.vmem %s3, %s167
      $region32: #{qua_forward.4} parent=23 // pred_fallthru
        _
    $region24: #{qua_forward.4} parent=5 // pred_fallthru
      _
    %p169 = scmp.le.s32.totalorder 1, %s10
    %p170 = scmp.lt.s32.totalorder %s10, 3
    %p171 = pnand %p169, %p170
    %p172 = pneg %p171
    // Predicated region
    $region33: #{qua_forward.4} parent=5 // pred_check
      _
    $region34: #{qua_forward.4} parent=5 // pred_check_branch
      %174 = sbr.rel (%p171) target = $region36
    $region35: #{qua_forward.4} parent=5 // pred_region
      %s175 = ssub.s32 %s10, 1
      %p176 = scmp.lt.s32.totalorder %s15, 1
      %s177 = scalar_select %p176, %s15, 1
      %s178 = smul.addr %s177, 3
      %s179 = smul.addr %s178, 8
      %s180 = scalar_lea.vmem %s0, %s179
      %p181 = pneg %p36
      %p182 = pneg %p33
      %p183 = pneg %p57
      %p184 = pneg %p54
      %p185 = pneg %p78
      %p186 = pneg %p75
      %p187 = scmp.lt.s32.totalorder %s15, 1
      %s188 = scalar_select %p187, %s15, 1
      %s189 = scalar_lea.vmem %s3, %s188
      %p190 = pneg %p104
      %p191 = pneg %p101
      %p192 = pneg %p130
      %p193 = pneg %p127
      %p194 = scmp.lt.s32.totalorder %s15, 1
      %s195 = scalar_select %p194, %s15, 1
      %s196 = smul.addr %s195, 2
      %s197 = smul.addr %s196, 8
      %s198 = scalar_lea.vmem %s4, %s197
      %p199 = scmp.lt.s32.totalorder %s15, 1
      %s200 = scalar_select %p199, %s15, 1
      %s201 = smul.addr %s200, 3
      %s202 = smul.addr %s201, 8
      %s203 = scalar_lea.vmem %s0, %s202
      %p204 = scmp.lt.s32.totalorder %s15, 1
      %s205 = scalar_select %p204, %s15, 1
      %s206 = scalar_lea.vmem %s3, %s205
      %p207 = scmp.lt.s32.totalorder %s15, 1
      %s208 = scalar_select %p207, %s15, 1
      %s209 = smul.addr %s208, 2
      %s210 = smul.addr %s209, 8
      %s211 = scalar_lea.vmem %s4, %s210
      %v212 = vld [vmem:[%s203] sm:$0xff]
      %v213 = vld [vmem:[%s203 + $0x8] sm:$0xff]
      %v214 = vld [vmem:[%s203 + $0x10] sm:$0xff]
      %v215 = vld [vmem:[%s1] sm:$0xff]
      %v216 = vld [vmem:[%s1 + $0x8] sm:$0xff]
      %v217 = vld [vmem:[%s1 + $0x10] sm:$0xff]
      %v218 = vld [vmem:[%s1 + $0x18] sm:$0xff]
      %v219 = vld [vmem:[%s2] sm:$0x1]
      %v221 = vperm.slane %v219, 0
      %vm223 = vcmask 261120
      %v225 = vsel %vm223, %v212, 0
      %v228 = vsel %vm223, %v213, 0
      %v231 = vsel %vm223, %v214, 0
      %233 = vmatpush.msra.mxu0 0.0
      %234 = vmatpush.msra.mxu0 0.0
      %235 = vmatpush.msra.mxu0 0.0
      %236 = vmatpush.msra.mxu0 0.0
      %237 = vmatpush.msra.mxu0 0.0
      %238 = vmatpush.msra.mxu0 0.0
      %239 = vmatpush.msra.mxu0 0.0
      %240 = vmatpush.msra.mxu0 0.0
      %241 = vmatpush.msra.mxu0 0.0
      %242 = vmatpush.msra.mxu0 0.0
      %243 = vmatpush.msra.mxu0 0.0
      %244 = vmatpush.msra.mxu0 0.0
      %245 = vmatpush.msra.mxu0 %v218
      %246 = vmatpush.msra.mxu0 %v217
      %247 = vmatpush.msra.mxu0 %v216
      %248 = vmatpush.msra.mxu0 %v215
      %249 = vmatmul.f32.gmra.mxu0 %v225
      %v250 = vpop.f32.mrf.mxu0
      %v251 = vadd.f32 %v221, %v250
      %252 = vmatmul.f32.gmra.mxu0 %v228
      %v253 = vpop.f32.mrf.mxu0
      %v254 = vadd.f32 %v221, %v253
      %255 = vmatmul.f32.gmra.mxu0 %v231
      %v256 = vpop.f32.mrf.mxu0
      %v257 = vadd.f32 %v221, %v256
      %258 = vdwg.mxu0
      %v259 = vmax.f32 %v251, 0.0
      %v260 = vmax.f32 %v254, 0.0
      %v261 = vmax.f32 %v257, 0.0
      %v263 = vsel %vm223, %v259, 0
      %v266 = vsel %vm223, %v260, 0
      %v269 = vsel %vm223, %v261, 0
      %271 = vmatpush.xpose.msra.mxu0 0.0
      %272 = vmatpush.xpose.msra.mxu0 0.0
      %273 = vmatpush.xpose.msra.mxu0 0.0
      %274 = vmatpush.xpose.msra.mxu0 0.0
      %275 = vmatpush.xpose.msra.mxu0 0.0
      %276 = vmatpush.xpose.msra.mxu0 0.0
      %277 = vmatpush.xpose.msra.mxu0 0.0
      %278 = vmatpush.xpose.msra.mxu0 0.0
      %279 = vmatpush.xpose.msra.mxu0 0.0
      %280 = vmatpush.xpose.msra.mxu0 0.0
      %281 = vmatpush.xpose.msra.mxu0 0.0
      %282 = vmatpush.xpose.msra.mxu0 0.0
      %283 = vmatpush.xpose.msra.mxu0 0.0
      %284 = vmatpush.xpose.msra.mxu0 0.0
      %285 = vmatpush.xpose.msra.mxu0 0.0
      %286 = vmatpush.xpose.msra.mxu0 %v269
      %287 = vmatmul.f32.gmra.mxu0 %v263
      %v288 = vpop.f32.mrf.mxu0
      %v289 = vadd.f32 0.0, %v288
      %290 = vmatmul.f32.gmra.mxu0 %v266
      %v291 = vpop.f32.mrf.mxu0
      %v292 = vadd.f32 0.0, %v291
      %293 = vdwg.mxu0
      %v294 = vld [vmem:[%s206] sm:$0x1]
      %vm295 = vcmp.eq.f32.partialorder %v294, 1.0
      %v296 = vsel %vm295, 1, 0
      %v297 = vperm.slane %v296, 0
      %vm298 = vcmp.eq.s32.totalorder %v297, 1
      %v299 = vsel %vm298, -1e+30, %v289
      %v300 = vsel %vm298, -1e+30, %v292
      %vm301 = vcmask 64512
      %v302 = vsel %vm301, %v299, -inf
      %303 = vmax.xlane.f32.xlu0 %v302
      %v304 = vpop.xlane.xlu0 %303
      %v305 = vsel %vm301, %v300, -inf
      %306 = vmax.xlane.f32.xlu0 %v305
      %v307 = vpop.xlane.xlu0 %306
      %v308 = vsub.f32 %v299, %v304
      %v309 = vsub.f32 %v300, %v307
      %v310 = vmul.f32 %v308, 1.442695
      %v311 = vpow.pop %v310
      %v312 = vmul.f32 %v309, 1.442695
      %v313 = vpow.pop %v312
      %v314 = vsel %vm301, %v311, 0.0
      %315 = vadd.xlane.f32.xlu0 %v314
      %v316 = vpop.xlane.xlu0 %315
      %v317 = vsel %vm301, %v313, 0.0
      %318 = vadd.xlane.f32.xlu0 %v317
      %v319 = vpop.xlane.xlu0 %318
      %v320 = vrcp.pop %v316
      %v321 = vrcp.pop %v319
      %v322 = vmul.f32 %v311, %v320
      %v323 = vmul.f32 %v313, %v321
      %v325 = vsel %vm301, %v322, 0
      %v328 = vsel %vm301, %v323, 0
      %330 = vmatpush.msra.mxu0 0.0
      %331 = vmatpush.msra.mxu0 0.0
      %332 = vmatpush.msra.mxu0 0.0
      %333 = vmatpush.msra.mxu0 0.0
      %334 = vmatpush.msra.mxu0 0.0
      %335 = vmatpush.msra.mxu0 0.0
      %336 = vmatpush.msra.mxu0 0.0
      %337 = vmatpush.msra.mxu0 0.0
      %338 = vmatpush.msra.mxu0 0.0
      %339 = vmatpush.msra.mxu0 0.0
      %340 = vmatpush.msra.mxu0 0.0
      %341 = vmatpush.msra.mxu0 0.0
      %342 = vmatpush.msra.mxu0 0.0
      %343 = vmatpush.msra.mxu0 0.0
      %344 = vmatpush.msra.mxu0 0.0
      %345 = vmatpush.msra.mxu0 %v214
      %346 = vmatmul.f32.gmra.mxu0 %v325
      %v347 = vpop.f32.mrf.mxu0
      %v348 = vadd.f32 0.0, %v347
      %349 = vmatmul.f32.gmra.mxu0 %v328
      %v350 = vpop.f32.mrf.mxu0
      %v351 = vadd.f32 0.0, %v350
      %352 = vdwg.mxu0
      %353 = vst.msk [vmem:[%s211] sm:$0xff] %vm223, %v212
      %354 = vst.msk [vmem:[%s211 + $0x8] sm:$0xff] %vm223, %v213
      %357 = vrot.lane.b32.xlu0 %v348, 32
      %v358 = vpop.permute.xlu0 %357
      %359 = vrot.lane.b32.xlu0 %v351, 32
      %v360 = vpop.permute.xlu0 %359
      %vm363 = vcmask 523520
      %364 = vst.msk [vmem:[%s211] sm:$0xff] %vm363, %v358
      %365 = vst.msk [vmem:[%s211 + $0x8] sm:$0xff] %vm363, %v360
      %p366 = scmp.lt.s32.totalorder %s15, 1
      %s367 = scalar_select %p366, %s15, 1
      %s368 = smul.addr %s367, 2
      %s369 = smul.addr %s368, 8
      %s370 = scalar_lea.vmem %s4, %s369
      // Predicated region
      $region37: #{qua_forward.4} parent=35 // pred_check
        %p371 = pneg %p127
      $region38: #{qua_forward.4} parent=35 // pred_check_branch
        %373 = sbr.rel (%p371) target = $region40
      $region39: #{qua_forward.4} parent=35 // pred_region
        _
      $region40: #{qua_forward.4} parent=35 // pred_fallthru
        _
    $region36: #{qua_forward.4} parent=5 // pred_fallthru
      _
    %p374 = scmp.le.s32.totalorder 2, %s10
    // Predicated region
    $region41: #{qua_forward.4} parent=5 // pred_check
      %p375 = pneg %p374
    $region42: #{qua_forward.4} parent=5 // pred_check_branch
      %377 = sbr.rel (%p375) target = $region44
    $region43: #{qua_forward.4} parent=5 // pred_region
      %s378 = ssub.s32 %s10, 2
      // Predicated region
      $region45: #{qua_forward.4} parent=43 // pred_check
        %p379 = pneg %p133
      $region46: #{qua_forward.4} parent=43 // pred_check_branch
        %381 = sbr.rel (%p379) target = $region48
      $region47: #{qua_forward.4} parent=43 // pred_region
        %p382 = scmp.lt.s32.totalorder %s16, 1
        %s383 = scalar_select %p382, %s16, 1
        %s384 = smul.addr %s383, 2
        %s385 = smul.addr %s384, 8
        %s386 = scalar_lea.vmem %s4, %s385
      $region48: #{qua_forward.4} parent=43 // pred_fallthru
        _
    $region44: #{qua_forward.4} parent=5 // pred_fallthru
      _
  $region6: #{qua_forward.4} parent=0 // loop_footer
    %s14 = sadd.s32 1, %s10
  $region7: #{qua_forward.4} parent=0 // loop_footer_branch
    %9 = sbr.rel target = $region3
  $region8: #{qua_forward.4} parent=0 // loop_exit
    _

// kernel: qua_forward.7
$region0: #{qua_forward.7}
  #allocation0 [shape = 'u32[]', space=smem, size = 0x4, offset = 0x4, fixed_abs, tag = 'smem constant byte address 0x4 - core index']
  #allocation1 [shape = 'u32[72,128]{1,0:T(1,128)}', space=vmem, size = 0x9000, scoped, tag = 'internal scratch']
  #allocation2 [shape = 'f32[1,1]{1,0:T(1,128)S(1)}', space=vmem, size = 0x200, scoped, tag = 'scoped memory for qua_forward.7']
  %s0 = inlined_call_operand.vmem [shape: f32[2,8,128], index: 0, kind: input, shape index: {}]
  %s1 = inlined_call_operand.vmem [shape: f32[2,16,128], index: 1, kind: input, shape index: {}]
  %s2 = inlined_call_operand.vmem [shape: f32[1,128], index: 2, kind: input, shape index: {}]
  %s3 = inlined_call_operand.<no memory space> [shape: f32[1,1], index: 3, kind: input, shape index: {}]
  %s4 = inlined_call_operand.vmem [shape: f32[128,256], index: 4, kind: input, shape index: {}]
  %s5 = inlined_call_operand.vmem [shape: f32[1,256], index: 5, kind: input, shape index: {}]
  %s6 = inlined_call_operand.vmem [shape: f32[2,1,8], index: 6, kind: input, shape index: {}]
  %s7 = inlined_call_operand.vmem [shape: f32[2,1,16], index: 7, kind: input, shape index: {}]
  %s8 = inlined_call_operand.vmem [shape: f32[2,2,16], index: 8, kind: output, shape index: {}]
  %s9 = sld [smem:[#allocation0]]
  $region65: #{qua_forward.7} parent=0
    _
  %s11 = ssub.s32 1, %s9
  %s12 = scalar_select 0, %s11, %s9
  %v13 = vstv %s3
  %14 = vst [vmem:[#allocation2] sm:$0x1] %v13
  loop: start=0, step=1, limit=4
  $region2: #{qua_forward.7} parent=0 // loop_pre_header
    _
  $region3: #{qua_forward.7} parent=0 // loop_header
    %s16 = sphi 0, %s20
    %p17 = scmp.ge.s32.totalorder %s16, 4
    %s26 = sphi 0, %s28
    %s29 = sphi 0, %s26
    %s30 = sphi 0, %s29
    %s46 = sphi 0, %s30
    %s52 = sphi 0, %s54
    %s55 = sphi 0, %s52
    %s56 = sphi 0, %s55
    %s72 = sphi 0, %s56
    %s76 = sphi 0, %s76
    %s78 = sphi 0, %s76
    %s79 = sphi 0, %s78
    %s93 = sphi 0, %s79
    %s97 = sphi 0, %s97
    %s99 = sphi 0, %s97
    %s100 = sphi 0, %s99
    %s114 = sphi 0, %s100
    %s118 = sphi 0, %s118
    %s120 = sphi 0, %s118
    %s121 = sphi 0, %s120
    %s135 = sphi 0, %s121
    %s139 = sphi 0, %s139
    %s141 = sphi 0, %s139
    %s142 = sphi 0, %s141
    %s156 = sphi 0, %s142
    %s162 = sphi 0, %s164
    %s165 = sphi 0, %s162
    %s166 = sphi 0, %s165
    %s182 = sphi 0, %s166
    %s188 = sphi 0, %s190
    %s191 = sphi 0, %s188
    %s192 = sphi 0, %s191
    %s208 = sphi 0, %s192
    %s214 = sphi 0, %s216
    %s217 = sphi 0, %s214
    %s218 = sphi 0, %s217
    %s234 = sphi 0, %s218
  $region4: #{qua_forward.7} parent=0 // loop_header_branch
    %19 = sbr.rel (%p17) target = $region8
  $region5: #{qua_forward.7} parent=0 // loop_body
    %s21 = ssub.s32 %s16, 1
    %s22 = ssub.s32 %s16, 2
    %s23 = sadd.s32 %s16, 1
    %s24 = ssub.s32 %s16, %s23
    %p25 = scmp.eq.s32.totalorder %s24, 0
    %s27 = sadd.s32 %s26, 1
    %s28 = scalar_select %p25, %s26, %s27
    %p31 = pneg %p25
    %p32 = scmp.eq.s32.totalorder %s16, 1
    %p33 = por %p31, %p32
    %p34 = scmp.ne.s32.totalorder %s26, %s29
    %p35 = scmp.eq.s32.totalorder %s16, 0
    %p36 = por %p34, %p35
    %p37 = scmp.ne.s32.totalorder %s26, %s29
    %p38 = scmp.eq.s32.totalorder %s21, 1
    %p39 = por %p37, %p38
    %p40 = scmp.ne.s32.totalorder %s29, %s30
    %p41 = scmp.eq.s32.totalorder %s21, 0
    %p42 = por %p40, %p41
    %p43 = scmp.ne.s32.totalorder %s29, %s30
    %p44 = scmp.eq.s32.totalorder %s22, 1
    %p45 = por %p43, %p44
    %p47 = scmp.ne.s32.totalorder %s30, %s46
    %p48 = scmp.eq.s32.totalorder %s22, 0
    %p49 = por %p47, %p48
    %s50 = ssub.s32 %s16, %s23
    %p51 = scmp.eq.s32.totalorder %s50, 0
    %s53 = sadd.s32 %s52, 1
    %s54 = scalar_select %p51, %s52, %s53
    %p57 = pneg %p51
    %p58 = scmp.eq.s32.totalorder %s16, 1
    %p59 = por %p57, %p58
    %p60 = scmp.ne.s32.totalorder %s52, %s55
    %p61 = scmp.eq.s32.totalorder %s16, 0
    %p62 = por %p60, %p61
    %p63 = scmp.ne.s32.totalorder %s52, %s55
    %p64 = scmp.eq.s32.totalorder %s21, 1
    %p65 = por %p63, %p64
    %p66 = scmp.ne.s32.totalorder %s55, %s56
    %p67 = scmp.eq.s32.totalorder %s21, 0
    %p68 = por %p66, %p67
    %p69 = scmp.ne.s32.totalorder %s55, %s56
    %p70 = scmp.eq.s32.totalorder %s22, 1
    %p71 = por %p69, %p70
    %p73 = scmp.ne.s32.totalorder %s56, %s72
    %p74 = scmp.eq.s32.totalorder %s22, 0
    %p75 = por %p73, %p74
    %s77 = sadd.s32 %s76, 1
    %p80 = scmp.eq.s32.totalorder %s16, 1
    %p81 = scmp.ne.s32.totalorder %s76, %s78
    %p82 = scmp.eq.s32.totalorder %s16, 0
    %p83 = por %p81, %p82
    %p84 = scmp.ne.s32.totalorder %s76, %s78
    %p85 = scmp.eq.s32.totalorder %s21, 1
    %p86 = por %p84, %p85
    %p87 = scmp.ne.s32.totalorder %s78, %s79
    %p88 = scmp.eq.s32.totalorder %s21, 0
    %p89 = por %p87, %p88
    %p90 = scmp.ne.s32.totalorder %s78, %s79
    %p91 = scmp.eq.s32.totalorder %s22, 1
    %p92 = por %p90, %p91
    %p94 = scmp.ne.s32.totalorder %s79, %s93
    %p95 = scmp.eq.s32.totalorder %s22, 0
    %p96 = por %p94, %p95
    %s98 = sadd.s32 %s97, 1
    %p101 = scmp.eq.s32.totalorder %s16, 1
    %p102 = scmp.ne.s32.totalorder %s97, %s99
    %p103 = scmp.eq.s32.totalorder %s16, 0
    %p104 = por %p102, %p103
    %p105 = scmp.ne.s32.totalorder %s97, %s99
    %p106 = scmp.eq.s32.totalorder %s21, 1
    %p107 = por %p105, %p106
    %p108 = scmp.ne.s32.totalorder %s99, %s100
    %p109 = scmp.eq.s32.totalorder %s21, 0
    %p110 = por %p108, %p109
    %p111 = scmp.ne.s32.totalorder %s99, %s100
    %p112 = scmp.eq.s32.totalorder %s22, 1
    %p113 = por %p111, %p112
    %p115 = scmp.ne.s32.totalorder %s100, %s114
    %p116 = scmp.eq.s32.totalorder %s22, 0
    %p117 = por %p115, %p116
    %s119 = sadd.s32 %s118, 1
    %p122 = scmp.eq.s32.totalorder %s16, 1
    %p123 = scmp.ne.s32.totalorder %s118, %s120
    %p124 = scmp.eq.s32.totalorder %s16, 0
    %p125 = por %p123, %p124
    %p126 = scmp.ne.s32.totalorder %s118, %s120
    %p127 = scmp.eq.s32.totalorder %s21, 1
    %p128 = por %p126, %p127
    %p129 = scmp.ne.s32.totalorder %s120, %s121
    %p130 = scmp.eq.s32.totalorder %s21, 0
    %p131 = por %p129, %p130
    %p132 = scmp.ne.s32.totalorder %s120, %s121
    %p133 = scmp.eq.s32.totalorder %s22, 1
    %p134 = por %p132, %p133
    %p136 = scmp.ne.s32.totalorder %s121, %s135
    %p137 = scmp.eq.s32.totalorder %s22, 0
    %p138 = por %p136, %p137
    %s140 = sadd.s32 %s139, 1
    %p143 = scmp.eq.s32.totalorder %s16, 1
    %p144 = scmp.ne.s32.totalorder %s139, %s141
    %p145 = scmp.eq.s32.totalorder %s16, 0
    %p146 = por %p144, %p145
    %p147 = scmp.ne.s32.totalorder %s139, %s141
    %p148 = scmp.eq.s32.totalorder %s21, 1
    %p149 = por %p147, %p148
    %p150 = scmp.ne.s32.totalorder %s141, %s142
    %p151 = scmp.eq.s32.totalorder %s21, 0
    %p152 = por %p150, %p151
    %p153 = scmp.ne.s32.totalorder %s141, %s142
    %p154 = scmp.eq.s32.totalorder %s22, 1
    %p155 = por %p153, %p154
    %p157 = scmp.ne.s32.totalorder %s142, %s156
    %p158 = scmp.eq.s32.totalorder %s22, 0
    %p159 = por %p157, %p158
    %s160 = ssub.s32 %s16, %s23
    %p161 = scmp.eq.s32.totalorder %s160, 0
    %s163 = sadd.s32 %s162, 1
    %s164 = scalar_select %p161, %s162, %s163
    %p167 = pneg %p161
    %p168 = scmp.eq.s32.totalorder %s16, 1
    %p169 = por %p167, %p168
    %p170 = scmp.ne.s32.totalorder %s162, %s165
    %p171 = scmp.eq.s32.totalorder %s16, 0
    %p172 = por %p170, %p171
    %p173 = scmp.ne.s32.totalorder %s162, %s165
    %p174 = scmp.eq.s32.totalorder %s21, 1
    %p175 = por %p173, %p174
    %p176 = scmp.ne.s32.totalorder %s165, %s166
    %p177 = scmp.eq.s32.totalorder %s21, 0
    %p178 = por %p176, %p177
    %p179 = scmp.ne.s32.totalorder %s165, %s166
    %p180 = scmp.eq.s32.totalorder %s22, 1
    %p181 = por %p179, %p180
    %p183 = scmp.ne.s32.totalorder %s166, %s182
    %p184 = scmp.eq.s32.totalorder %s22, 0
    %p185 = por %p183, %p184
    %s186 = ssub.s32 %s16, %s23
    %p187 = scmp.eq.s32.totalorder %s186, 0
    %s189 = sadd.s32 %s188, 1
    %s190 = scalar_select %p187, %s188, %s189
    %p193 = pneg %p187
    %p194 = scmp.eq.s32.totalorder %s16, 1
    %p195 = por %p193, %p194
    %p196 = scmp.ne.s32.totalorder %s188, %s191
    %p197 = scmp.eq.s32.totalorder %s16, 0
    %p198 = por %p196, %p197
    %p199 = scmp.ne.s32.totalorder %s188, %s191
    %p200 = scmp.eq.s32.totalorder %s21, 1
    %p201 = por %p199, %p200
    %p202 = scmp.ne.s32.totalorder %s191, %s192
    %p203 = scmp.eq.s32.totalorder %s21, 0
    %p204 = por %p202, %p203
    %p205 = scmp.ne.s32.totalorder %s191, %s192
    %p206 = scmp.eq.s32.totalorder %s22, 1
    %p207 = por %p205, %p206
    %p209 = scmp.ne.s32.totalorder %s192, %s208
    %p210 = scmp.eq.s32.totalorder %s22, 0
    %p211 = por %p209, %p210
    %s212 = ssub.s32 %s16, %s23
    %p213 = scmp.eq.s32.totalorder %s212, 0
    %s215 = sadd.s32 %s214, 1
    %s216 = scalar_select %p213, %s214, %s215
    %p219 = pneg %p213
    %p220 = scmp.eq.s32.totalorder %s16, 1
    %p221 = por %p219, %p220
    %p222 = scmp.ne.s32.totalorder %s214, %s217
    %p223 = scmp.eq.s32.totalorder %s16, 0
    %p224 = por %p222, %p223
    %p225 = scmp.ne.s32.totalorder %s214, %s217
    %p226 = scmp.eq.s32.totalorder %s21, 1
    %p227 = por %p225, %p226
    %p228 = scmp.ne.s32.totalorder %s217, %s218
    %p229 = scmp.eq.s32.totalorder %s21, 0
    %p230 = por %p228, %p229
    %p231 = scmp.ne.s32.totalorder %s217, %s218
    %p232 = scmp.eq.s32.totalorder %s22, 1
    %p233 = por %p231, %p232
    %p235 = scmp.ne.s32.totalorder %s218, %s234
    %p236 = scmp.eq.s32.totalorder %s22, 0
    %p237 = por %p235, %p236
    %p238 = scmp.le.s32.totalorder 1, %s16
    %p239 = scmp.lt.s32.totalorder %s16, 3
    %p240 = pnand %p238, %p239
    %p241 = pneg %p240
    // Predicated region
    $region9: #{qua_forward.7} parent=5 // pred_check
      _
    $region10: #{qua_forward.7} parent=5 // pred_check_branch
      %243 = sbr.rel (%p240) target = $region12
    $region11: #{qua_forward.7} parent=5 // pred_region
      %s244 = ssub.s32 %s16, 1
      // Predicated region
      $region13: #{qua_forward.7} parent=11 // pred_check
        %p245 = pneg %p89
      $region14: #{qua_forward.7} parent=11 // pred_check_branch
        %247 = sbr.rel (%p245) target = $region16
      $region15: #{qua_forward.7} parent=11 // pred_region
        _
      $region16: #{qua_forward.7} parent=11 // pred_fallthru
        _
      // Predicated region
      $region17: #{qua_forward.7} parent=11 // pred_check
        %p248 = pneg %p110
      $region18: #{qua_forward.7} parent=11 // pred_check_branch
        %250 = sbr.rel (%p248) target = $region20
      $region19: #{qua_forward.7} parent=11 // pred_region
        _
      $region20: #{qua_forward.7} parent=11 // pred_fallthru
        _
      // Predicated region
      $region21: #{qua_forward.7} parent=11 // pred_check
        %p251 = pneg %p131
      $region22: #{qua_forward.7} parent=11 // pred_check_branch
        %253 = sbr.rel (%p251) target = $region24
      $region23: #{qua_forward.7} parent=11 // pred_region
        _
      $region24: #{qua_forward.7} parent=11 // pred_fallthru
        _
      // Predicated region
      $region25: #{qua_forward.7} parent=11 // pred_check
        %p254 = pneg %p152
      $region26: #{qua_forward.7} parent=11 // pred_check_branch
        %256 = sbr.rel (%p254) target = $region28
      $region27: #{qua_forward.7} parent=11 // pred_region
        _
      $region28: #{qua_forward.7} parent=11 // pred_fallthru
        _
    $region12: #{qua_forward.7} parent=5 // pred_fallthru
      _
    %p257 = scmp.lt.s32.totalorder %s16, 2
    // Predicated region
    $region29: #{qua_forward.7} parent=5 // pred_check
      %p258 = pneg %p257
    $region30: #{qua_forward.7} parent=5 // pred_check_branch
      %260 = sbr.rel (%p258) target = $region32
    $region31: #{qua_forward.7} parent=5 // pred_region
      // Predicated region
      $region33: #{qua_forward.7} parent=31 // pred_check
        %p261 = pneg %p36
      $region34: #{qua_forward.7} parent=31 // pred_check_branch
        %263 = sbr.rel (%p261) target = $region36
      $region35: #{qua_forward.7} parent=31 // pred_region
        %p264 = scmp.lt.s32.totalorder %s16, 1
        %s265 = scalar_select %p264, %s16, 1
        %s266 = smul.addr %s265, 8
        %s267 = scalar_lea.vmem %s0, %s266
      $region36: #{qua_forward.7} parent=31 // pred_fallthru
        _
      // Predicated region
      $region37: #{qua_forward.7} parent=31 // pred_check
        %p268 = pneg %p62
      $region38: #{qua_forward.7} parent=31 // pred_check_branch
        %270 = sbr.rel (%p268) target = $region40
      $region39: #{qua_forward.7} parent=31 // pred_region
        %p271 = scmp.lt.s32.totalorder %s16, 1
        %s272 = scalar_select %p271, %s16, 1
        %s273 = smul.addr %s272, 2
        %s274 = smul.addr %s273, 8
        %s275 = scalar_lea.vmem %s1, %s274
      $region40: #{qua_forward.7} parent=31 // pred_fallthru
        _
      // Predicated region
      $region41: #{qua_forward.7} parent=31 // pred_check
        %p276 = pneg %p172
      $region42: #{qua_forward.7} parent=31 // pred_check_branch
        %278 = sbr.rel (%p276) target = $region44
      $region43: #{qua_forward.7} parent=31 // pred_region
        %p279 = scmp.lt.s32.totalorder %s16, 1
        %s280 = scalar_select %p279, %s16, 1
        %s281 = scalar_lea.vmem %s6, %s280
      $region44: #{qua_forward.7} parent=31 // pred_fallthru
        _
      // Predicated region
      $region45: #{qua_forward.7} parent=31 // pred_check
        %p282 = pneg %p198
      $region46: #{qua_forward.7} parent=31 // pred_check_branch
        %284 = sbr.rel (%p282) target = $region48
      $region47: #{qua_forward.7} parent=31 // pred_region
        %p285 = scmp.lt.s32.totalorder %s16, 1
        %s286 = scalar_select %p285, %s16, 1
        %s287 = scalar_lea.vmem %s7, %s286
      $region48: #{qua_forward.7} parent=31 // pred_fallthru
        _
    $region32: #{qua_forward.7} parent=5 // pred_fallthru
      _
    %p288 = scmp.le.s32.totalorder 1, %s16
    %p289 = scmp.lt.s32.totalorder %s16, 3
    %p290 = pnand %p288, %p289
    %p291 = pneg %p290
    // Predicated region
    $region49: #{qua_forward.7} parent=5 // pred_check
      _
    $region50: #{qua_forward.7} parent=5 // pred_check_branch
      %293 = sbr.rel (%p290) target = $region52
    $region51: #{qua_forward.7} parent=5 // pred_region
      %s294 = ssub.s32 %s16, 1
      %p295 = scmp.lt.s32.totalorder %s21, 1
      %s296 = scalar_select %p295, %s21, 1
      %s297 = smul.addr %s296, 8
      %s298 = scalar_lea.vmem %s0, %s297
      %p299 = pneg %p42
      %p300 = pneg %p39
      %p301 = scmp.lt.s32.totalorder %s21, 1
      %s302 = scalar_select %p301, %s21, 1
      %s303 = smul.addr %s302, 2
      %s304 = smul.addr %s303, 8
      %s305 = scalar_lea.vmem %s1, %s304
      %p306 = pneg %p68
      %p307 = pneg %p65
      %p308 = pneg %p89
      %p309 = pneg %p86
      %p310 = pneg %p110
      %p311 = pneg %p107
      %p312 = pneg %p131
      %p313 = pneg %p128
      %p314 = pneg %p152
      %p315 = pneg %p149
      %p316 = scmp.lt.s32.totalorder %s21, 1
      %s317 = scalar_select %p316, %s21, 1
      %s318 = scalar_lea.vmem %s6, %s317
      %p319 = pneg %p178
      %p320 = pneg %p175
      %p321 = scmp.lt.s32.totalorder %s21, 1
      %s322 = scalar_select %p321, %s21, 1
      %s323 = scalar_lea.vmem %s7, %s322
      %p324 = pneg %p204
      %p325 = pneg %p201
      %p326 = pneg %p230
      %p327 = pneg %p227
      %p328 = scmp.lt.s32.totalorder %s21, 1
      %s329 = scalar_select %p328, %s21, 1
      %s330 = smul.addr %s329, 2
      %s331 = scalar_lea.vmem %s8, %s330
      %p332 = scmp.lt.s32.totalorder %s21, 1
      %s333 = scalar_select %p332, %s21, 1
      %s334 = smul.addr %s333, 8
      %s335 = scalar_lea.vmem %s0, %s334
      %p336 = scmp.lt.s32.totalorder %s21, 1
      %s337 = scalar_select %p336, %s21, 1
      %s338 = smul.addr %s337, 2
      %s339 = smul.addr %s338, 8
      %s340 = scalar_lea.vmem %s1, %s339
      %p341 = scmp.lt.s32.totalorder %s21, 1
      %s342 = scalar_select %p341, %s21, 1
      %s343 = scalar_lea.vmem %s6, %s342
      %p344 = scmp.lt.s32.totalorder %s21, 1
      %s345 = scalar_select %p344, %s21, 1
      %s346 = scalar_lea.vmem %s7, %s345
      %p347 = scmp.lt.s32.totalorder %s21, 1
      %s348 = scalar_select %p347, %s21, 1
      %s349 = smul.addr %s348, 2
      %s350 = scalar_lea.vmem %s8, %s349
      %v351 = vld [vmem:[%s335] sm:$0xff]
      %v352 = vld [vmem:[%s340] sm:$0xff]
      %v353 = vld [vmem:[%s340 + $0x8] sm:$0xff]
      %v354 = vld [vmem:[%s2] sm:$0x1]
      %v355 = vld [vmem:[#allocation2] sm:$0x1]
      %357 = vset.pattern.permute.xlu0 0
      %358 = vperm.xlu0 %357, %v355
      %v359 = vpop.permute.xlu0 %358
      %v361 = vperm.slane %v359, 0
      %362 = vmatpush.xpose.msra.mxu0 0.0
      %363 = vmatpush.xpose.msra.mxu0 0.0
      %364 = vmatpush.xpose.msra.mxu0 0.0
      %365 = vmatpush.xpose.msra.mxu0 0.0
      %366 = vmatpush.xpose.msra.mxu0 0.0
      %367 = vmatpush.xpose.msra.mxu0 0.0
      %368 = vmatpush.xpose.msra.mxu0 0.0
      %369 = vmatpush.xpose.msra.mxu0 0.0
      %370 = vmatpush.xpose.msra.mxu0 0.0
      %371 = vmatpush.xpose.msra.mxu0 0.0
      %372 = vmatpush.xpose.msra.mxu0 0.0
      %373 = vmatpush.xpose.msra.mxu0 0.0
      %374 = vmatpush.xpose.msra.mxu0 0.0
      %375 = vmatpush.xpose.msra.mxu0 0.0
      %376 = vmatpush.xpose.msra.mxu0 0.0
      %377 = vmatpush.xpose.msra.mxu0 %v351
      %378 = vmatmul.f32.gmra.mxu0 %v354
      %v379 = vpop.f32.mrf.mxu0
      %v380 = vadd.f32 %v361, %v379
      %381 = vdwg.mxu0
      %v382 = vld [vmem:[%s343] sm:$0x1]
      %vm383 = vcmp.eq.f32.partialorder %v382, 1.0
      %v384 = vsel %vm383, -1e+30, %v380
      %vm385 = vcmask 57344
      %v386 = vsel %vm385, %v384, -inf
      %387 = vmax.xlane.f32.xlu0 %v386
      %v388 = vpop.xlane.xlu0 %387
      %v389 = vsub.f32 %v384, %v388
      %v390 = vmul.f32 %v389, 1.442695
      %v391 = vpow.pop %v390
      %v392 = vsel %vm385, %v391, 0.0
      %393 = vadd.xlane.f32.xlu0 %v392
      %v394 = vpop.xlane.xlu0 %393
      %v395 = vrcp.pop %v394
      %v396 = vmul.f32 %v391, %v395
      %vm397 = vcmask 64512
      %v399 = vsel %vm397, %v396, 0
      %401 = vmatpush.msra.mxu0 0.0
      %402 = vmatpush.msra.mxu0 0.0
      %403 = vmatpush.msra.mxu0 0.0
      %404 = vmatpush.msra.mxu0 0.0
      %405 = vmatpush.msra.mxu0 0.0
      %406 = vmatpush.msra.mxu0 0.0
      %407 = vmatpush.msra.mxu0 0.0
      %408 = vmatpush.msra.mxu0 0.0
      %409 = vmatpush.msra.mxu0 0.0
      %410 = vmatpush.msra.mxu0 0.0
      %411 = vmatpush.msra.mxu0 0.0
      %412 = vmatpush.msra.mxu0 0.0
      %413 = vmatpush.msra.mxu0 0.0
      %414 = vmatpush.msra.mxu0 0.0
      %415 = vmatpush.msra.mxu0 0.0
      %416 = vmatpush.msra.mxu0 %v351
      %417 = vmatmul.f32.gmra.mxu0 %v399
      %v418 = vpop.f32.mrf.mxu0
      %v419 = vadd.f32 0.0, %v418
      %420 = vdwg.mxu0
      %v421 = vld [vmem:[%s4] sm:$0xff]
      %v422 = vld [vmem:[%s4 + $0x8] sm:$0xff]
      %v423 = vld [vmem:[%s4 + $0x10] sm:$0xff]
      %v424 = vld [vmem:[%s4 + $0x18] sm:$0xff]
      %v425 = vld [vmem:[%s4 + $0x20] sm:$0xff]
      %v426 = vld [vmem:[%s4 + $0x28] sm:$0xff]
      %v427 = vld [vmem:[%s4 + $0x30] sm:$0xff]
      %v428 = vld [vmem:[%s4 + $0x38] sm:$0xff]
      %v429 = vld [vmem:[%s4 + $0x40] sm:$0xff]
      %v430 = vld [vmem:[%s4 + $0x48] sm:$0xff]
      %v431 = vld [vmem:[%s4 + $0x50] sm:$0xff]
      %v432 = vld [vmem:[%s4 + $0x58] sm:$0xff]
      %v433 = vld [vmem:[%s4 + $0x60] sm:$0xff]
      %v434 = vld [vmem:[%s4 + $0x68] sm:$0xff]
      %v435 = vld [vmem:[%s4 + $0x70] sm:$0xff]
      %v436 = vld [vmem:[%s4 + $0x78] sm:$0xff]
      %v437 = vld [vmem:[%s4 + $0x80] sm:$0xff]
      %v438 = vld [vmem:[%s4 + $0x88] sm:$0xff]
      %v439 = vld [vmem:[%s4 + $0x90] sm:$0xff]
      %v440 = vld [vmem:[%s4 + $0x98] sm:$0xff]
      %v441 = vld [vmem:[%s4 + $0xa0] sm:$0xff]
      %v442 = vld [vmem:[%s4 + $0xa8] sm:$0xff]
      %v443 = vld [vmem:[%s4 + $0xb0] sm:$0xff]
      %v444 = vld [vmem:[%s4 + $0xb8] sm:$0xff]
      %v445 = vld [vmem:[%s4 + $0xc0] sm:$0xff]
      %v446 = vld [vmem:[%s4 + $0xc8] sm:$0xff]
      %v447 = vld [vmem:[%s4 + $0xd0] sm:$0xff]
      %v448 = vld [vmem:[%s4 + $0xd8] sm:$0xff]
      %v449 = vld [vmem:[%s4 + $0xe0] sm:$0xff]
      %v450 = vld [vmem:[%s4 + $0xe8] sm:$0xff]
      %v451 = vld [vmem:[%s4 + $0xf0] sm:$0xff]
      %v452 = vld [vmem:[%s4 + $0xf8] sm:$0xff]
      %v453 = vld [vmem:[%s5] sm:$0x3]
      %v455 = vperm.slane %v453, 0
      %v456 = vperm.slane %v453, 1
      %459 = vmatpush.msra.mxu0 %v451
      %460 = vmatpush.msra.mxu0 %v449
      %461 = vmatpush.msra.mxu0 %v447
      %462 = vmatpush.msra.mxu0 %v445
      %463 = vmatpush.msra.mxu0 %v443
      %464 = vmatpush.msra.mxu0 %v441
      %465 = vmatpush.msra.mxu0 %v439
      %466 = vmatpush.msra.mxu0 %v437
      %467 = vmatpush.msra.mxu0 %v435
      %468 = vmatpush.msra.mxu0 %v433
      %469 = vmatpush.msra.mxu0 %v431
      %470 = vmatpush.msra.mxu0 %v429
      %471 = vmatpush.msra.mxu0 %v427
      %472 = vmatpush.msra.mxu0 %v425
      %473 = vmatpush.msra.mxu0 %v423
      %474 = vmatpush.msra.mxu0 %v421
      %475 = vmatmul.f32.gmra.mxu0 %v419
      %v476 = vpop.f32.mrf.mxu0
      %v477 = vadd.f32 %v455, %v476
      %478 = vdwg.mxu0
      %479 = vmatpush.msra.mxu0 %v452
      %480 = vmatpush.msra.mxu0 %v450
      %481 = vmatpush.msra.mxu0 %v448
      %482 = vmatpush.msra.mxu0 %v446
      %483 = vmatpush.msra.mxu0 %v444
      %484 = vmatpush.msra.mxu0 %v442
      %485 = vmatpush.msra.mxu0 %v440
      %486 = vmatpush.msra.mxu0 %v438
      %487 = vmatpush.msra.mxu0 %v436
      %488 = vmatpush.msra.mxu0 %v434
      %489 = vmatpush.msra.mxu0 %v432
      %490 = vmatpush.msra.mxu0 %v430
      %491 = vmatpush.msra.mxu0 %v428
      %492 = vmatpush.msra.mxu0 %v426
      %493 = vmatpush.msra.mxu0 %v424
      %494 = vmatpush.msra.mxu0 %v422
      %495 = vmatmul.f32.gmra.mxu0 %v419
      %v496 = vpop.f32.mrf.mxu0
      %v497 = vadd.f32 %v456, %v496
      %498 = vdwg.mxu0
      %499 = vmatpush.xpose.msra.mxu0 0.0
      %500 = vmatpush.xpose.msra.mxu0 0.0
      %501 = vmatpush.xpose.msra.mxu0 0.0
      %502 = vmatpush.xpose.msra.mxu0 0.0
      %503 = vmatpush.xpose.msra.mxu0 0.0
      %504 = vmatpush.xpose.msra.mxu0 0.0
      %505 = vmatpush.xpose.msra.mxu0 0.0
      %506 = vmatpush.xpose.msra.mxu0 0.0
      %507 = vmatpush.xpose.msra.mxu0 0.0
      %508 = vmatpush.xpose.msra.mxu0 0.0
      %509 = vmatpush.xpose.msra.mxu0 0.0
      %510 = vmatpush.xpose.msra.mxu0 0.0
      %511 = vmatpush.xpose.msra.mxu0 0.0
      %512 = vmatpush.xpose.msra.mxu0 0.0
      %513 = vmatpush.xpose.msra.mxu0 %v353
      %514 = vmatpush.xpose.msra.mxu0 %v352
      %515 = vmatmul.f32.gmra.mxu0 %v477
      %v516 = vpop.f32.mrf.mxu0
      %v517 = vadd.f32 0.0, %v516
      %518 = vdwg.mxu0
      %519 = vmatpush.xpose.msra.mxu0 0.0
      %520 = vmatpush.xpose.msra.mxu0 0.0
      %521 = vmatpush.xpose.msra.mxu0 0.0
      %522 = vmatpush.xpose.msra.mxu0 0.0
      %523 = vmatpush.xpose.msra.mxu0 0.0
      %524 = vmatpush.xpose.msra.mxu0 0.0
      %525 = vmatpush.xpose.msra.mxu0 0.0
      %526 = vmatpush.xpose.msra.mxu0 0.0
      %527 = vmatpush.xpose.msra.mxu0 0.0
      %528 = vmatpush.xpose.msra.mxu0 0.0
      %529 = vmatpush.xpose.msra.mxu0 0.0
      %530 = vmatpush.xpose.msra.mxu0 0.0
      %531 = vmatpush.xpose.msra.mxu0 0.0
      %532 = vmatpush.xpose.msra.mxu0 0.0
      %533 = vmatpush.xpose.msra.mxu0 %v353
      %534 = vmatpush.xpose.msra.mxu0 %v352
      %535 = vmatmul.f32.gmra.mxu0 %v497
      %v536 = vpop.f32.mrf.mxu0
      %v537 = vadd.f32 0.0, %v536
      %538 = vdwg.mxu0
      %v539 = vld [vmem:[%s346] sm:$0x1]
      %vm540 = vcmp.eq.f32.partialorder %v539, 1.0
      %v541 = vsel %vm540, -inf, %v517
      %vm542 = vcmask 122880
      %543 = vst.msk [vmem:[%s350] sm:$0x1] %vm542, %v541
      %v544 = vsel %vm540, -inf, %v537
      %545 = vst.msk [vmem:[%s350 + $0x1] sm:$0x1] %vm542, %v544
      %p546 = scmp.lt.s32.totalorder %s21, 1
      %s547 = scalar_select %p546, %s21, 1
      %s548 = smul.addr %s547, 2
      %s549 = scalar_lea.vmem %s8, %s548
      // Predicated region
      $region53: #{qua_forward.7} parent=51 // pred_check
        %p550 = pneg %p227
      $region54: #{qua_forward.7} parent=51 // pred_check_branch
        %552 = sbr.rel (%p550) target = $region56
      $region55: #{qua_forward.7} parent=51 // pred_region
        _
      $region56: #{qua_forward.7} parent=51 // pred_fallthru
        _
    $region52: #{qua_forward.7} parent=5 // pred_fallthru
      _
    %p553 = scmp.le.s32.totalorder 2, %s16
    // Predicated region
    $region57: #{qua_forward.7} parent=5 // pred_check
      %p554 = pneg %p553
    $region58: #{qua_forward.7} parent=5 // pred_check_branch
      %556 = sbr.rel (%p554) target = $region60
    $region59: #{qua_forward.7} parent=5 // pred_region
      %s557 = ssub.s32 %s16, 2
      // Predicated region
      $region61: #{qua_forward.7} parent=59 // pred_check
        %p558 = pneg %p233
      $region62: #{qua_forward.7} parent=59 // pred_check_branch
        %560 = sbr.rel (%p558) target = $region64
      $region63: #{qua_forward.7} parent=59 // pred_region
        %p561 = scmp.lt.s32.totalorder %s22, 1
        %s562 = scalar_select %p561, %s22, 1
        %s563 = smul.addr %s562, 2
        %s564 = scalar_lea.vmem %s8, %s563
      $region64: #{qua_forward.7} parent=59 // pred_fallthru
        _
    $region60: #{qua_forward.7} parent=5 // pred_fallthru
      _
  $region6: #{qua_forward.7} parent=0 // loop_footer
    %s20 = sadd.s32 1, %s16
  $region7: #{qua_forward.7} parent=0 // loop_footer_branch
    %15 = sbr.rel target = $region3
  $region8: #{qua_forward.7} parent=0 // loop_exit
    _

// kernel: qua_forward.6
$region0: #{qua_forward.6}
  #allocation0 [shape = 'u32[]', space=smem, size = 0x4, offset = 0x4, fixed_abs, tag = 'smem constant byte address 0x4 - core index']
  #allocation1 [shape = 'u32[72,128]{1,0:T(1,128)}', space=vmem, size = 0x9000, scoped, tag = 'internal scratch']
  #allocation2 [shape = 'f32[64,256]{1,0:T(8,128)}', space=vmem, size = 0x10000, scoped, tag = 'scratch operand']
  #allocation3 [shape = 'f32[64,64]{1,0:T(8,128)}', space=vmem, size = 0x8000, scoped, tag = 'scratch operand']
  %s0 = inlined_call_operand.vmem [shape: f32[64,32], index: 0, kind: input, shape index: {}]
  %s1 = inlined_call_operand.vmem [shape: f32[32,256], index: 1, kind: input, shape index: {}]
  %s2 = inlined_call_operand.vmem [shape: f32[64,256], index: 2, kind: input, shape index: {}]
  %s3 = inlined_call_operand.vmem [shape: f32[1,256], index: 3, kind: input, shape index: {}]
  %s4 = inlined_call_operand.vmem [shape: f32[64,256], index: 4, kind: input, shape index: {}]
  %s5 = inlined_call_operand.vmem [shape: f32[64,256], index: 5, kind: input, shape index: {}]
  %s6 = inlined_call_operand.vmem [shape: f32[1,256], index: 6, kind: input, shape index: {}]
  %s7 = inlined_call_operand.vmem [shape: f32[64,128], index: 7, kind: output, shape index: {}]
  %s8 = sld [smem:[#allocation0]]
  $region38: #{qua_forward.6} parent=0
    _
  %s10 = ssub.s32 1, %s8
  %s11 = scalar_select 0, %s10, %s8
  // Predicated region
  $region2: #{qua_forward.6} parent=0 // pred_check
    _
  $region3: #{qua_forward.6} parent=0 // pred_check_branch
    %13 = sbr.rel (0) target = $region5
  $region4: #{qua_forward.6} parent=0 // pred_region
    _
  $region5: #{qua_forward.6} parent=0 // pred_fallthru
    _
  // Predicated region
  $region6: #{qua_forward.6} parent=0 // pred_check
    _
  $region7: #{qua_forward.6} parent=0 // pred_check_branch
    %15 = sbr.rel (0) target = $region9
  $region8: #{qua_forward.6} parent=0 // pred_region
    _
  $region9: #{qua_forward.6} parent=0 // pred_fallthru
    _
  // Predicated region
  $region10: #{qua_forward.6} parent=0 // pred_check
    _
  $region11: #{qua_forward.6} parent=0 // pred_check_branch
    %17 = sbr.rel (0) target = $region13
  $region12: #{qua_forward.6} parent=0 // pred_region
    _
  $region13: #{qua_forward.6} parent=0 // pred_fallthru
    _
  // Predicated region
  $region14: #{qua_forward.6} parent=0 // pred_check
    _
  $region15: #{qua_forward.6} parent=0 // pred_check_branch
    %19 = sbr.rel (0) target = $region17
  $region16: #{qua_forward.6} parent=0 // pred_region
    _
  $region17: #{qua_forward.6} parent=0 // pred_fallthru
    _
  // Predicated region
  $region18: #{qua_forward.6} parent=0 // pred_check
    _
  $region19: #{qua_forward.6} parent=0 // pred_check_branch
    %21 = sbr.rel (0) target = $region21
  $region20: #{qua_forward.6} parent=0 // pred_region
    _
  $region21: #{qua_forward.6} parent=0 // pred_fallthru
    _
  // Predicated region
  $region22: #{qua_forward.6} parent=0 // pred_check
    _
  $region23: #{qua_forward.6} parent=0 // pred_check_branch
    %23 = sbr.rel (0) target = $region25
  $region24: #{qua_forward.6} parent=0 // pred_region
    _
  $region25: #{qua_forward.6} parent=0 // pred_fallthru
    _
  // Predicated region
  $region26: #{qua_forward.6} parent=0 // pred_check
    _
  $region27: #{qua_forward.6} parent=0 // pred_check_branch
    %25 = sbr.rel (0) target = $region29
  $region28: #{qua_forward.6} parent=0 // pred_region
    _
  $region29: #{qua_forward.6} parent=0 // pred_fallthru
    _
  %v26 = vlaneseq
  %v27 = vand.u32 %v26, 127
  %v28 = vadd.s32 %v27, 128
  %vm29 = vcmp.lt.s32.totalorder %v27, 0
  %v30 = vsub.s32 0, %v27
  %v31 = vsel %vm29, %v30, %v27
  %v32 = vshrl.u32 %v31, 6
  %v33 = vand.u32 %v31, 63
  %v34 = vsub.s32 0, %v33
  %v35 = vsel %vm29, %v34, %v33
  %vm36 = vcmp.lt.s32.totalorder %v28, 0
  %v37 = vsub.s32 0, %v28
  %v38 = vsel %vm36, %v37, %v28
  %v39 = vshrl.u32 %v38, 6
  %v40 = vand.u32 %v38, 63
  %v41 = vsub.s32 0, %v40
  %v42 = vsel %vm36, %v41, %v40
  %vm43 = vcmp.ne.s32.totalorder %v35, 0
  %vm44 = vcmp.ne.s32.totalorder %v42, 0
  %vm45 = vcmp.lt.s32.totalorder %v35, 0
  %vm46 = vcmp.lt.s32.totalorder %v42, 0
  %vm47 = vmand %vm45, %vm43
  %vm48 = vmand %vm46, %vm44
  %v49 = vadd.s32 %v35, 64
  %v50 = vadd.s32 %v42, 64
  %v51 = vsel %vm47, %v49, %v35
  %v52 = vsel %vm48, %v50, %v42
  %vm53 = vcmp.lt.s32.totalorder %v51, 32
  %vm54 = vcmp.lt.s32.totalorder %v52, 32
  %v55 = vld [vmem:[%s0] sm:$0xff]
  %v56 = vld [vmem:[%s0 + $0x8] sm:$0xff]
  %v57 = vld [vmem:[%s0 + $0x10] sm:$0xff]
  %v58 = vld [vmem:[%s0 + $0x18] sm:$0xff]
  %v59 = vld [vmem:[%s0 + $0x20] sm:$0xff]
  %v60 = vld [vmem:[%s0 + $0x28] sm:$0xff]
  %v61 = vld [vmem:[%s0 + $0x30] sm:$0xff]
  %v62 = vld [vmem:[%s0 + $0x38] sm:$0xff]
  %v63 = vld [vmem:[%s1] sm:$0xff]
  %v64 = vld [vmem:[%s1 + $0x8] sm:$0xff]
  %v65 = vld [vmem:[%s1 + $0x10] sm:$0xff]
  %v66 = vld [vmem:[%s1 + $0x18] sm:$0xff]
  %v67 = vld [vmem:[%s1 + $0x20] sm:$0xff]
  %v68 = vld [vmem:[%s1 + $0x28] sm:$0xff]
  %v69 = vld [vmem:[%s1 + $0x30] sm:$0xff]
  %v70 = vld [vmem:[%s1 + $0x38] sm:$0xff]
  %v71 = vld [vmem:[%s3] sm:$0x3]
  %v73 = vperm.slane %v71, 0
  %v74 = vperm.slane %v71, 1
  %vm77 = vcmask 261120
  %v79 = vsel %vm77, %v55, 0
  %v82 = vsel %vm77, %v56, 0
  %v85 = vsel %vm77, %v57, 0
  %v88 = vsel %vm77, %v58, 0
  %v91 = vsel %vm77, %v59, 0
  %v94 = vsel %vm77, %v60, 0
  %v97 = vsel %vm77, %v61, 0
  %v100 = vsel %vm77, %v62, 0
  %102 = vmatpush.msra.mxu0 0.0
  %103 = vmatpush.msra.mxu0 0.0
  %104 = vmatpush.msra.mxu0 0.0
  %105 = vmatpush.msra.mxu0 0.0
  %106 = vmatpush.msra.mxu0 0.0
  %107 = vmatpush.msra.mxu0 0.0
  %108 = vmatpush.msra.mxu0 0.0
  %109 = vmatpush.msra.mxu0 0.0
  %110 = vmatpush.msra.mxu0 0.0
  %111 = vmatpush.msra.mxu0 0.0
  %112 = vmatpush.msra.mxu0 0.0
  %113 = vmatpush.msra.mxu0 0.0
  %114 = vmatpush.msra.mxu0 %v69
  %115 = vmatpush.msra.mxu0 %v67
  %116 = vmatpush.msra.mxu0 %v65
  %117 = vmatpush.msra.mxu0 %v63
  %118 = vmatmul.f32.gmra.mxu0 %v79
  %v119 = vpop.f32.mrf.mxu0
  %v120 = vadd.f32 %v73, %v119
  %121 = vmatmul.f32.gmra.mxu0 %v82
  %v122 = vpop.f32.mrf.mxu0
  %v123 = vadd.f32 %v73, %v122
  %124 = vmatmul.f32.gmra.mxu0 %v85
  %v125 = vpop.f32.mrf.mxu0
  %v126 = vadd.f32 %v73, %v125
  %127 = vmatmul.f32.gmra.mxu0 %v88
  %v128 = vpop.f32.mrf.mxu0
  %v129 = vadd.f32 %v73, %v128
  %130 = vmatmul.f32.gmra.mxu0 %v91
  %v131 = vpop.f32.mrf.mxu0
  %v132 = vadd.f32 %v73, %v131
  %133 = vmatmul.f32.gmra.mxu0 %v94
  %v134 = vpop.f32.mrf.mxu0
  %v135 = vadd.f32 %v73, %v134
  %136 = vmatmul.f32.gmra.mxu0 %v97
  %v137 = vpop.f32.mrf.mxu0
  %v138 = vadd.f32 %v73, %v137
  %139 = vmatmul.f32.gmra.mxu0 %v100
  %v140 = vpop.f32.mrf.mxu0
  %v141 = vadd.f32 %v73, %v140
  %142 = vdwg.mxu0
  %143 = vmatpush.msra.mxu0 0.0
  %144 = vmatpush.msra.mxu0 0.0
  %145 = vmatpush.msra.mxu0 0.0
  %146 = vmatpush.msra.mxu0 0.0
  %147 = vmatpush.msra.mxu0 0.0
  %148 = vmatpush.msra.mxu0 0.0
  %149 = vmatpush.msra.mxu0 0.0
  %150 = vmatpush.msra.mxu0 0.0
  %151 = vmatpush.msra.mxu0 0.0
  %152 = vmatpush.msra.mxu0 0.0
  %153 = vmatpush.msra.mxu0 0.0
  %154 = vmatpush.msra.mxu0 0.0
  %155 = vmatpush.msra.mxu0 %v70
  %156 = vmatpush.msra.mxu0 %v68
  %157 = vmatpush.msra.mxu0 %v66
  %158 = vmatpush.msra.mxu0 %v64
  %159 = vmatmul.f32.gmra.mxu0 %v79
  %v160 = vpop.f32.mrf.mxu0
  %v161 = vadd.f32 %v74, %v160
  %162 = vmatmul.f32.gmra.mxu0 %v82
  %v163 = vpop.f32.mrf.mxu0
  %v164 = vadd.f32 %v74, %v163
  %165 = vmatmul.f32.gmra.mxu0 %v85
  %v166 = vpop.f32.mrf.mxu0
  %v167 = vadd.f32 %v74, %v166
  %168 = vmatmul.f32.gmra.mxu0 %v88
  %v169 = vpop.f32.mrf.mxu0
  %v170 = vadd.f32 %v74, %v169
  %171 = vmatmul.f32.gmra.mxu0 %v91
  %v172 = vpop.f32.mrf.mxu0
  %v173 = vadd.f32 %v74, %v172
  %174 = vmatmul.f32.gmra.mxu0 %v94
  %v175 = vpop.f32.mrf.mxu0
  %v176 = vadd.f32 %v74, %v175
  %177 = vmatmul.f32.gmra.mxu0 %v97
  %v178 = vpop.f32.mrf.mxu0
  %v179 = vadd.f32 %v74, %v178
  %180 = vmatmul.f32.gmra.mxu0 %v100
  %v181 = vpop.f32.mrf.mxu0
  %v182 = vadd.f32 %v74, %v181
  %183 = vdwg.mxu0
  %184 = vst [vmem:[#allocation2] sm:$0xff] %v120
  %185 = vst [vmem:[#allocation2 + $0x8] sm:$0xff] %v161
  %186 = vst [vmem:[#allocation2 + $0x10] sm:$0xff] %v123
  %187 = vst [vmem:[#allocation2 + $0x18] sm:$0xff] %v164
  %188 = vst [vmem:[#allocation2 + $0x20] sm:$0xff] %v126
  %189 = vst [vmem:[#allocation2 + $0x28] sm:$0xff] %v167
  %190 = vst [vmem:[#allocation2 + $0x30] sm:$0xff] %v129
  %191 = vst [vmem:[#allocation2 + $0x38] sm:$0xff] %v170
  %192 = vst [vmem:[#allocation2 + $0x40] sm:$0xff] %v132
  %193 = vst [vmem:[#allocation2 + $0x48] sm:$0xff] %v173
  %194 = vst [vmem:[#allocation2 + $0x50] sm:$0xff] %v135
  %195 = vst [vmem:[#allocation2 + $0x58] sm:$0xff] %v176
  %196 = vst [vmem:[#allocation2 + $0x60] sm:$0xff] %v138
  %197 = vst [vmem:[#allocation2 + $0x68] sm:$0xff] %v179
  %198 = vst [vmem:[#allocation2 + $0x70] sm:$0xff] %v141
  %199 = vst [vmem:[#allocation2 + $0x78] sm:$0xff] %v182
  %v200 = vld [vmem:[%s2] sm:$0xff]
  %v201 = vld [vmem:[%s2 + $0x8] sm:$0xff]
  %v202 = vld [vmem:[%s2 + $0x10] sm:$0xff]
  %v203 = vld [vmem:[%s2 + $0x18] sm:$0xff]
  %v204 = vld [vmem:[%s2 + $0x20] sm:$0xff]
  %v205 = vld [vmem:[%s2 + $0x28] sm:$0xff]
  %v206 = vld [vmem:[%s2 + $0x30] sm:$0xff]
  %v207 = vld [vmem:[%s2 + $0x38] sm:$0xff]
  %v208 = vld [vmem:[%s2 + $0x40] sm:$0xff]
  %v209 = vld [vmem:[%s2 + $0x48] sm:$0xff]
  %v210 = vld [vmem:[%s2 + $0x50] sm:$0xff]
  %v211 = vld [vmem:[%s2 + $0x58] sm:$0xff]
  %v212 = vld [vmem:[%s2 + $0x60] sm:$0xff]
  %v213 = vld [vmem:[%s2 + $0x68] sm:$0xff]
  %v214 = vld [vmem:[%s2 + $0x70] sm:$0xff]
  %v215 = vld [vmem:[%s2 + $0x78] sm:$0xff]
  %v216 = vld [vmem:[#allocation2] sm:$0xff]
  %v217 = vld [vmem:[#allocation2 + $0x8] sm:$0xff]
  %v218 = vld [vmem:[#allocation2 + $0x70] sm:$0xff]
  %v219 = vld [vmem:[#allocation2 + $0x78] sm:$0xff]
  %v220 = vsel %vm53, %v216, %v218
  %v221 = vsel %vm54, %v217, %v219
  %vm222 = vcmask 523264
  %v224 = vsel %vm222, 0.0, 0
  %226 = vmatpush.msra.mxu0 0.0
  %227 = vmatpush.msra.mxu0 0.0
  %228 = vmatpush.msra.mxu0 0.0
  %229 = vmatpush.msra.mxu0 0.0
  %230 = vmatpush.msra.mxu0 0.0
  %231 = vmatpush.msra.mxu0 0.0
  %232 = vmatpush.msra.mxu0 0.0
  %233 = vmatpush.msra.mxu0 0.0
  %234 = vmatpush.msra.mxu0 %v214
  %235 = vmatpush.msra.mxu0 %v212
  %236 = vmatpush.msra.mxu0 %v210
  %237 = vmatpush.msra.mxu0 %v208
  %238 = vmatpush.msra.mxu0 %v206
  %239 = vmatpush.msra.mxu0 %v204
  %240 = vmatpush.msra.mxu0 %v202
  %241 = vmatpush.msra.mxu0 %v200
  %242 = vmatmul.f32.gmra.mxu0 %v224
  %v243 = vpop.f32.mrf.mxu0
  %v244 = vadd.f32 0.0, %v243
  %245 = vdwg.mxu0
  %246 = vmatpush.msra.mxu0 0.0
  %247 = vmatpush.msra.mxu0 0.0
  %248 = vmatpush.msra.mxu0 0.0
  %249 = vmatpush.msra.mxu0 0.0
  %250 = vmatpush.msra.mxu0 0.0
  %251 = vmatpush.msra.mxu0 0.0
  %252 = vmatpush.msra.mxu0 0.0
  %253 = vmatpush.msra.mxu0 0.0
  %254 = vmatpush.msra.mxu0 %v215
  %255 = vmatpush.msra.mxu0 %v213
  %256 = vmatpush.msra.mxu0 %v211
  %257 = vmatpush.msra.mxu0 %v209
  %258 = vmatpush.msra.mxu0 %v207
  %259 = vmatpush.msra.mxu0 %v205
  %260 = vmatpush.msra.mxu0 %v203
  %261 = vmatpush.msra.mxu0 %v201
  %262 = vmatmul.f32.gmra.mxu0 %v224
  %v263 = vpop.f32.mrf.mxu0
  %v264 = vadd.f32 0.0, %v263
  %265 = vdwg.mxu0
  %v266 = vadd.f32 %v220, %v244
  %v267 = vadd.f32 %v221, %v264
  %v268 = vxor.u32 %v266, 2147483648
  %v269 = vmul.f32 %v268, 1.442695
  %v270 = vpow.pop %v269
  %v271 = vadd.f32 %v270, 1.0
  %v272 = vrcp.pop %v271
  %v273 = vmul.f32 %v271, %v272
  %v274 = vsub.f32 1.0, %v273
  %v275 = vmul.f32 %v272, %v274
  %v276 = vadd.f32 %v272, %v275
  %vm277 = vweird.f32 %v271
  %vm278 = vweird.f32 %v272
  %vm279 = vmor %vm277, %vm278
  %v280 = vsel %vm279, %v272, %v276
  %v281 = vand.u32 2147483647, %v271
  %vm282 = vcmp.eq.f32.partialorder %v281, 8.507059e+37
  %v283 = vand.u32 %v271, 2147483648
  %v284 = vor.u32 1.1754944e-38, %v283
  %v285 = vsel %vm282, %v284, %v280
  %v286 = vmul.f32 1.0, %v285
  %v287 = vtanh.pop %v267
  %v288 = vxor.u32 %v267, 2147483648
  %v289 = vmul.f32 %v288, 1.442695
  %v290 = vpow.pop %v289
  %v291 = vadd.f32 %v290, 1.0
  %v292 = vrcp.pop %v291
  %v293 = vmul.f32 %v291, %v292
  %v294 = vsub.f32 1.0, %v293
  %v295 = vmul.f32 %v292, %v294
  %v296 = vadd.f32 %v292, %v295
  %vm297 = vweird.f32 %v291
  %vm298 = vweird.f32 %v292
  %vm299 = vmor %vm297, %vm298
  %v300 = vsel %vm299, %v292, %v296
  %v301 = vand.u32 2147483647, %v291
  %vm302 = vcmp.eq.f32.partialorder %v301, 8.507059e+37
  %v303 = vand.u32 %v291, 2147483648
  %v304 = vor.u32 1.1754944e-38, %v303
  %v305 = vsel %vm302, %v304, %v300
  %v306 = vmul.f32 1.0, %v305
  %v307 = vmul.f32 %v286, 0.0
  %v308 = vmul.f32 %v286, %v287
  %310 = vrot.lane.b32.xlu0 %v308, 64
  %v311 = vpop.permute.xlu0 %310
  %v313 = vadd.f32 %v307, %v311
  %v314 = vtanh.pop %v313
  %v315 = vmul.f32 %v306, %v314
  %317 = vrot.lane.b32.xlu0 %v315, 64
  %v318 = vpop.permute.xlu0 %317
  %320 = vst.msk [vmem:[#allocation3] sm:$0xff] %vm77, %v318
  %vm321 = vcmask 523520
  %322 = vst.msk [vmem:[#allocation3 + $0x38] sm:$0xff] %vm321, %v318
  %v323 = vld [vmem:[#allocation2 + $0x10] sm:$0xff]
  %v324 = vld [vmem:[#allocation2 + $0x18] sm:$0xff]
  %v325 = vld [vmem:[#allocation2 + $0x60] sm:$0xff]
  %v326 = vld [vmem:[#allocation2 + $0x68] sm:$0xff]
  %v327 = vsel %vm53, %v323, %v325
  %v328 = vsel %vm54, %v324, %v326
  %v329 = vsel %vm222, %v318, 0
  %331 = vmatpush.msra.mxu0 0.0
  %332 = vmatpush.msra.mxu0 0.0
  %333 = vmatpush.msra.mxu0 0.0
  %334 = vmatpush.msra.mxu0 0.0
  %335 = vmatpush.msra.mxu0 0.0
  %336 = vmatpush.msra.mxu0 0.0
  %337 = vmatpush.msra.mxu0 0.0
  %338 = vmatpush.msra.mxu0 0.0
  %339 = vmatpush.msra.mxu0 %v214
  %340 = vmatpush.msra.mxu0 %v212
  %341 = vmatpush.msra.mxu0 %v210
  %342 = vmatpush.msra.mxu0 %v208
  %343 = vmatpush.msra.mxu0 %v206
  %344 = vmatpush.msra.mxu0 %v204
  %345 = vmatpush.msra.mxu0 %v202
  %346 = vmatpush.msra.mxu0 %v200
  %347 = vmatmul.f32.gmra.mxu0 %v329
  %v348 = vpop.f32.mrf.mxu0
  %v349 = vadd.f32 0.0, %v348
  %350 = vdwg.mxu0
  %351 = vmatpush.msra.mxu0 0.0
  %352 = vmatpush.msra.mxu0 0.0
  %353 = vmatpush.msra.mxu0 0.0
  %354 = vmatpush.msra.mxu0 0.0
  %355 = vmatpush.msra.mxu0 0.0
  %356 = vmatpush.msra.mxu0 0.0
  %357 = vmatpush.msra.mxu0 0.0
  %358 = vmatpush.msra.mxu0 0.0
  %359 = vmatpush.msra.mxu0 %v215
  %360 = vmatpush.msra.mxu0 %v213
  %361 = vmatpush.msra.mxu0 %v211
  %362 = vmatpush.msra.mxu0 %v209
  %363 = vmatpush.msra.mxu0 %v207
  %364 = vmatpush.msra.mxu0 %v205
  %365 = vmatpush.msra.mxu0 %v203
  %366 = vmatpush.msra.mxu0 %v201
  %367 = vmatmul.f32.gmra.mxu0 %v329
  %v368 = vpop.f32.mrf.mxu0
  %v369 = vadd.f32 0.0, %v368
  %370 = vdwg.mxu0
  %v371 = vadd.f32 %v327, %v349
  %v372 = vadd.f32 %v328, %v369
  %v373 = vxor.u32 %v371, 2147483648
  %v374 = vmul.f32 %v373, 1.442695
  %v375 = vpow.pop %v374
  %v376 = vadd.f32 %v375, 1.0
  %v377 = vrcp.pop %v376
  %v378 = vmul.f32 %v376, %v377
  %v379 = vsub.f32 1.0, %v378
  %v380 = vmul.f32 %v377, %v379
  %v381 = vadd.f32 %v377, %v380
  %vm382 = vweird.f32 %v376
  %vm383 = vweird.f32 %v377
  %vm384 = vmor %vm382, %vm383
  %v385 = vsel %vm384, %v377, %v381
  %v386 = vand.u32 2147483647, %v376
  %vm387 = vcmp.eq.f32.partialorder %v386, 8.507059e+37
  %v388 = vand.u32 %v376, 2147483648
  %v389 = vor.u32 1.1754944e-38, %v388
  %v390 = vsel %vm387, %v389, %v385
  %v391 = vmul.f32 1.0, %v390
  %v392 = vtanh.pop %v372
  %v393 = vxor.u32 %v372, 2147483648
  %v394 = vmul.f32 %v393, 1.442695
  %v395 = vpow.pop %v394
  %v396 = vadd.f32 %v395, 1.0
  %v397 = vrcp.pop %v396
  %v398 = vmul.f32 %v396, %v397
  %v399 = vsub.f32 1.0, %v398
  %v400 = vmul.f32 %v397, %v399
  %v401 = vadd.f32 %v397, %v400
  %vm402 = vweird.f32 %v396
  %vm403 = vweird.f32 %v397
  %vm404 = vmor %vm402, %vm403
  %v405 = vsel %vm404, %v397, %v401
  %v406 = vand.u32 2147483647, %v396
  %vm407 = vcmp.eq.f32.partialorder %v406, 8.507059e+37
  %v408 = vand.u32 %v396, 2147483648
  %v409 = vor.u32 1.1754944e-38, %v408
  %v410 = vsel %vm407, %v409, %v405
  %v411 = vmul.f32 1.0, %v410
  %v412 = vmul.f32 %v391, %v313
  %v413 = vmul.f32 %v391, %v392
  %415 = vrot.lane.b32.xlu0 %v413, 64
  %v416 = vpop.permute.xlu0 %415
  %v418 = vadd.f32 %v412, %v416
  %v419 = vtanh.pop %v418
  %v420 = vmul.f32 %v411, %v419
  %422 = vrot.lane.b32.xlu0 %v420, 64
  %v423 = vpop.permute.xlu0 %422
  %425 = vst.msk [vmem:[#allocation3 + $0x8] sm:$0xff] %vm77, %v423
  %426 = vst.msk [vmem:[#allocation3 + $0x30] sm:$0xff] %vm321, %v423
  %v427 = vld [vmem:[#allocation2 + $0x20] sm:$0xff]
  %v428 = vld [vmem:[#allocation2 + $0x28] sm:$0xff]
  %v429 = vld [vmem:[#allocation2 + $0x50] sm:$0xff]
  %v430 = vld [vmem:[#allocation2 + $0x58] sm:$0xff]
  %v431 = vsel %vm53, %v427, %v429
  %v432 = vsel %vm54, %v428, %v430
  %v433 = vsel %vm222, %v423, 0
  %435 = vmatpush.msra.mxu0 0.0
  %436 = vmatpush.msra.mxu0 0.0
  %437 = vmatpush.msra.mxu0 0.0
  %438 = vmatpush.msra.mxu0 0.0
  %439 = vmatpush.msra.mxu0 0.0
  %440 = vmatpush.msra.mxu0 0.0
  %441 = vmatpush.msra.mxu0 0.0
  %442 = vmatpush.msra.mxu0 0.0
  %443 = vmatpush.msra.mxu0 %v214
  %444 = vmatpush.msra.mxu0 %v212
  %445 = vmatpush.msra.mxu0 %v210
  %446 = vmatpush.msra.mxu0 %v208
  %447 = vmatpush.msra.mxu0 %v206
  %448 = vmatpush.msra.mxu0 %v204
  %449 = vmatpush.msra.mxu0 %v202
  %450 = vmatpush.msra.mxu0 %v200
  %451 = vmatmul.f32.gmra.mxu0 %v433
  %v452 = vpop.f32.mrf.mxu0
  %v453 = vadd.f32 0.0, %v452
  %454 = vdwg.mxu0
  %455 = vmatpush.msra.mxu0 0.0
  %456 = vmatpush.msra.mxu0 0.0
  %457 = vmatpush.msra.mxu0 0.0
  %458 = vmatpush.msra.mxu0 0.0
  %459 = vmatpush.msra.mxu0 0.0
  %460 = vmatpush.msra.mxu0 0.0
  %461 = vmatpush.msra.mxu0 0.0
  %462 = vmatpush.msra.mxu0 0.0
  %463 = vmatpush.msra.mxu0 %v215
  %464 = vmatpush.msra.mxu0 %v213
  %465 = vmatpush.msra.mxu0 %v211
  %466 = vmatpush.msra.mxu0 %v209
  %467 = vmatpush.msra.mxu0 %v207
  %468 = vmatpush.msra.mxu0 %v205
  %469 = vmatpush.msra.mxu0 %v203
  %470 = vmatpush.msra.mxu0 %v201
  %471 = vmatmul.f32.gmra.mxu0 %v433
  %v472 = vpop.f32.mrf.mxu0
  %v473 = vadd.f32 0.0, %v472
  %474 = vdwg.mxu0
  %v475 = vadd.f32 %v431, %v453
  %v476 = vadd.f32 %v432, %v473
  %v477 = vxor.u32 %v475, 2147483648
  %v478 = vmul.f32 %v477, 1.442695
  %v479 = vpow.pop %v478
  %v480 = vadd.f32 %v479, 1.0
  %v481 = vrcp.pop %v480
  %v482 = vmul.f32 %v480, %v481
  %v483 = vsub.f32 1.0, %v482
  %v484 = vmul.f32 %v481, %v483
  %v485 = vadd.f32 %v481, %v484
  %vm486 = vweird.f32 %v480
  %vm487 = vweird.f32 %v481
  %vm488 = vmor %vm486, %vm487
  %v489 = vsel %vm488, %v481, %v485
  %v490 = vand.u32 2147483647, %v480
  %vm491 = vcmp.eq.f32.partialorder %v490, 8.507059e+37
  %v492 = vand.u32 %v480, 2147483648
  %v493 = vor.u32 1.1754944e-38, %v492
  %v494 = vsel %vm491, %v493, %v489
  %v495 = vmul.f32 1.0, %v494
  %v496 = vtanh.pop %v476
  %v497 = vxor.u32 %v476, 2147483648
  %v498 = vmul.f32 %v497, 1.442695
  %v499 = vpow.pop %v498
  %v500 = vadd.f32 %v499, 1.0
  %v501 = vrcp.pop %v500
  %v502 = vmul.f32 %v500, %v501
  %v503 = vsub.f32 1.0, %v502
  %v504 = vmul.f32 %v501, %v503
  %v505 = vadd.f32 %v501, %v504
  %vm506 = vweird.f32 %v500
  %vm507 = vweird.f32 %v501
  %vm508 = vmor %vm506, %vm507
  %v509 = vsel %vm508, %v501, %v505
  %v510 = vand.u32 2147483647, %v500
  %vm511 = vcmp.eq.f32.partialorder %v510, 8.507059e+37
  %v512 = vand.u32 %v500, 2147483648
  %v513 = vor.u32 1.1754944e-38, %v512
  %v514 = vsel %vm511, %v513, %v509
  %v515 = vmul.f32 1.0, %v514
  %v516 = vmul.f32 %v495, %v418
  %v517 = vmul.f32 %v495, %v496
  %519 = vrot.lane.b32.xlu0 %v517, 64
  %v520 = vpop.permute.xlu0 %519
  %v522 = vadd.f32 %v516, %v520
  %v523 = vtanh.pop %v522
  %v524 = vmul.f32 %v515, %v523
  %526 = vrot.lane.b32.xlu0 %v524, 64
  %v527 = vpop.permute.xlu0 %526
  %529 = vst.msk [vmem:[#allocation3 + $0x10] sm:$0xff] %vm77, %v527
  %530 = vst.msk [vmem:[#allocation3 + $0x28] sm:$0xff] %vm321, %v527
  %v531 = vld [vmem:[#allocation2 + $0x30] sm:$0xff]
  %v532 = vld [vmem:[#allocation2 + $0x38] sm:$0xff]
  %v533 = vld [vmem:[#allocation2 + $0x40] sm:$0xff]
  %v534 = vld [vmem:[#allocation2 + $0x48] sm:$0xff]
  %v535 = vsel %vm53, %v531, %v533
  %v536 = vsel %vm54, %v532, %v534
  %v537 = vsel %vm222, %v527, 0
  %539 = vmatpush.msra.mxu0 0.0
  %540 = vmatpush.msra.mxu0 0.0
  %541 = vmatpush.msra.mxu0 0.0
  %542 = vmatpush.msra.mxu0 0.0
  %543 = vmatpush.msra.mxu0 0.0
  %544 = vmatpush.msra.mxu0 0.0
  %545 = vmatpush.msra.mxu0 0.0
  %546 = vmatpush.msra.mxu0 0.0
  %547 = vmatpush.msra.mxu0 %v214
  %548 = vmatpush.msra.mxu0 %v212
  %549 = vmatpush.msra.mxu0 %v210
  %550 = vmatpush.msra.mxu0 %v208
  %551 = vmatpush.msra.mxu0 %v206
  %552 = vmatpush.msra.mxu0 %v204
  %553 = vmatpush.msra.mxu0 %v202
  %554 = vmatpush.msra.mxu0 %v200
  %555 = vmatmul.f32.gmra.mxu0 %v537
  %v556 = vpop.f32.mrf.mxu0
  %v557 = vadd.f32 0.0, %v556
  %558 = vdwg.mxu0
  %559 = vmatpush.msra.mxu0 0.0
  %560 = vmatpush.msra.mxu0 0.0
  %561 = vmatpush.msra.mxu0 0.0
  %562 = vmatpush.msra.mxu0 0.0
  %563 = vmatpush.msra.mxu0 0.0
  %564 = vmatpush.msra.mxu0 0.0
  %565 = vmatpush.msra.mxu0 0.0
  %566 = vmatpush.msra.mxu0 0.0
  %567 = vmatpush.msra.mxu0 %v215
  %568 = vmatpush.msra.mxu0 %v213
  %569 = vmatpush.msra.mxu0 %v211
  %570 = vmatpush.msra.mxu0 %v209
  %571 = vmatpush.msra.mxu0 %v207
  %572 = vmatpush.msra.mxu0 %v205
  %573 = vmatpush.msra.mxu0 %v203
  %574 = vmatpush.msra.mxu0 %v201
  %575 = vmatmul.f32.gmra.mxu0 %v537
  %v576 = vpop.f32.mrf.mxu0
  %v577 = vadd.f32 0.0, %v576
  %578 = vdwg.mxu0
  %v579 = vadd.f32 %v535, %v557
  %v580 = vadd.f32 %v536, %v577
  %v581 = vxor.u32 %v579, 2147483648
  %v582 = vmul.f32 %v581, 1.442695
  %v583 = vpow.pop %v582
  %v584 = vadd.f32 %v583, 1.0
  %v585 = vrcp.pop %v584
  %v586 = vmul.f32 %v584, %v585
  %v587 = vsub.f32 1.0, %v586
  %v588 = vmul.f32 %v585, %v587
  %v589 = vadd.f32 %v585, %v588
  %vm590 = vweird.f32 %v584
  %vm591 = vweird.f32 %v585
  %vm592 = vmor %vm590, %vm591
  %v593 = vsel %vm592, %v585, %v589
  %v594 = vand.u32 2147483647, %v584
  %vm595 = vcmp.eq.f32.partialorder %v594, 8.507059e+37
  %v596 = vand.u32 %v584, 2147483648
  %v597 = vor.u32 1.1754944e-38, %v596
  %v598 = vsel %vm595, %v597, %v593
  %v599 = vmul.f32 1.0, %v598
  %v600 = vtanh.pop %v580
  %v601 = vxor.u32 %v580, 2147483648
  %v602 = vmul.f32 %v601, 1.442695
  %v603 = vpow.pop %v602
  %v604 = vadd.f32 %v603, 1.0
  %v605 = vrcp.pop %v604
  %v606 = vmul.f32 %v604, %v605
  %v607 = vsub.f32 1.0, %v606
  %v608 = vmul.f32 %v605, %v607
  %v609 = vadd.f32 %v605, %v608
  %vm610 = vweird.f32 %v604
  %vm611 = vweird.f32 %v605
  %vm612 = vmor %vm610, %vm611
  %v613 = vsel %vm612, %v605, %v609
  %v614 = vand.u32 2147483647, %v604
  %vm615 = vcmp.eq.f32.partialorder %v614, 8.507059e+37
  %v616 = vand.u32 %v604, 2147483648
  %v617 = vor.u32 1.1754944e-38, %v616
  %v618 = vsel %vm615, %v617, %v613
  %v619 = vmul.f32 1.0, %v618
  %v620 = vmul.f32 %v599, %v522
  %v621 = vmul.f32 %v599, %v600
  %623 = vrot.lane.b32.xlu0 %v621, 64
  %v624 = vpop.permute.xlu0 %623
  %v626 = vadd.f32 %v620, %v624
  %v627 = vtanh.pop %v626
  %v628 = vmul.f32 %v619, %v627
  %630 = vrot.lane.b32.xlu0 %v628, 64
  %v631 = vpop.permute.xlu0 %630
  %633 = vst.msk [vmem:[#allocation3 + $0x18] sm:$0xff] %vm77, %v631
  %634 = vst.msk [vmem:[#allocation3 + $0x20] sm:$0xff] %vm321, %v631
  %v635 = vld [vmem:[#allocation2 + $0x40] sm:$0xff]
  %v636 = vld [vmem:[#allocation2 + $0x48] sm:$0xff]
  %v637 = vld [vmem:[#allocation2 + $0x30] sm:$0xff]
  %v638 = vld [vmem:[#allocation2 + $0x38] sm:$0xff]
  %v639 = vsel %vm53, %v635, %v637
  %v640 = vsel %vm54, %v636, %v638
  %v641 = vsel %vm222, %v631, 0
  %643 = vmatpush.msra.mxu0 0.0
  %644 = vmatpush.msra.mxu0 0.0
  %645 = vmatpush.msra.mxu0 0.0
  %646 = vmatpush.msra.mxu0 0.0
  %647 = vmatpush.msra.mxu0 0.0
  %648 = vmatpush.msra.mxu0 0.0
  %649 = vmatpush.msra.mxu0 0.0
  %650 = vmatpush.msra.mxu0 0.0
  %651 = vmatpush.msra.mxu0 %v214
  %652 = vmatpush.msra.mxu0 %v212
  %653 = vmatpush.msra.mxu0 %v210
  %654 = vmatpush.msra.mxu0 %v208
  %655 = vmatpush.msra.mxu0 %v206
  %656 = vmatpush.msra.mxu0 %v204
  %657 = vmatpush.msra.mxu0 %v202
  %658 = vmatpush.msra.mxu0 %v200
  %659 = vmatmul.f32.gmra.mxu0 %v641
  %v660 = vpop.f32.mrf.mxu0
  %v661 = vadd.f32 0.0, %v660
  %662 = vdwg.mxu0
  %663 = vmatpush.msra.mxu0 0.0
  %664 = vmatpush.msra.mxu0 0.0
  %665 = vmatpush.msra.mxu0 0.0
  %666 = vmatpush.msra.mxu0 0.0
  %667 = vmatpush.msra.mxu0 0.0
  %668 = vmatpush.msra.mxu0 0.0
  %669 = vmatpush.msra.mxu0 0.0
  %670 = vmatpush.msra.mxu0 0.0
  %671 = vmatpush.msra.mxu0 %v215
  %672 = vmatpush.msra.mxu0 %v213
  %673 = vmatpush.msra.mxu0 %v211
  %674 = vmatpush.msra.mxu0 %v209
  %675 = vmatpush.msra.mxu0 %v207
  %676 = vmatpush.msra.mxu0 %v205
  %677 = vmatpush.msra.mxu0 %v203
  %678 = vmatpush.msra.mxu0 %v201
  %679 = vmatmul.f32.gmra.mxu0 %v641
  %v680 = vpop.f32.mrf.mxu0
  %v681 = vadd.f32 0.0, %v680
  %682 = vdwg.mxu0
  %v683 = vadd.f32 %v639, %v661
  %v684 = vadd.f32 %v640, %v681
  %v685 = vxor.u32 %v683, 2147483648
  %v686 = vmul.f32 %v685, 1.442695
  %v687 = vpow.pop %v686
  %v688 = vadd.f32 %v687, 1.0
  %v689 = vrcp.pop %v688
  %v690 = vmul.f32 %v688, %v689
  %v691 = vsub.f32 1.0, %v690
  %v692 = vmul.f32 %v689, %v691
  %v693 = vadd.f32 %v689, %v692
  %vm694 = vweird.f32 %v688
  %vm695 = vweird.f32 %v689
  %vm696 = vmor %vm694, %vm695
  %v697 = vsel %vm696, %v689, %v693
  %v698 = vand.u32 2147483647, %v688
  %vm699 = vcmp.eq.f32.partialorder %v698, 8.507059e+37
  %v700 = vand.u32 %v688, 2147483648
  %v701 = vor.u32 1.1754944e-38, %v700
  %v702 = vsel %vm699, %v701, %v697
  %v703 = vmul.f32 1.0, %v702
  %v704 = vtanh.pop %v684
  %v705 = vxor.u32 %v684, 2147483648
  %v706 = vmul.f32 %v705, 1.442695
  %v707 = vpow.pop %v706
  %v708 = vadd.f32 %v707, 1.0
  %v709 = vrcp.pop %v708
  %v710 = vmul.f32 %v708, %v709
  %v711 = vsub.f32 1.0, %v710
  %v712 = vmul.f32 %v709, %v711
  %v713 = vadd.f32 %v709, %v712
  %vm714 = vweird.f32 %v708
  %vm715 = vweird.f32 %v709
  %vm716 = vmor %vm714, %vm715
  %v717 = vsel %vm716, %v709, %v713
  %v718 = vand.u32 2147483647, %v708
  %vm719 = vcmp.eq.f32.partialorder %v718, 8.507059e+37
  %v720 = vand.u32 %v708, 2147483648
  %v721 = vor.u32 1.1754944e-38, %v720
  %v722 = vsel %vm719, %v721, %v717
  %v723 = vmul.f32 1.0, %v722
  %v724 = vmul.f32 %v703, %v626
  %v725 = vmul.f32 %v703, %v704
  %727 = vrot.lane.b32.xlu0 %v725, 64
  %v728 = vpop.permute.xlu0 %727
  %v730 = vadd.f32 %v724, %v728
  %v731 = vtanh.pop %v730
  %v732 = vmul.f32 %v723, %v731
  %734 = vrot.lane.b32.xlu0 %v732, 64
  %v735 = vpop.permute.xlu0 %734
  %737 = vst.msk [vmem:[#allocation3 + $0x20] sm:$0xff] %vm77, %v735
  %738 = vst.msk [vmem:[#allocation3 + $0x18] sm:$0xff] %vm321, %v735
  %v739 = vld [vmem:[#allocation2 + $0x50] sm:$0xff]
  %v740 = vld [vmem:[#allocation2 + $0x58] sm:$0xff]
  %v741 = vld [vmem:[#allocation2 + $0x20] sm:$0xff]
  %v742 = vld [vmem:[#allocation2 + $0x28] sm:$0xff]
  %v743 = vsel %vm53, %v739, %v741
  %v744 = vsel %vm54, %v740, %v742
  %v745 = vsel %vm222, %v735, 0
  %747 = vmatpush.msra.mxu0 0.0
  %748 = vmatpush.msra.mxu0 0.0
  %749 = vmatpush.msra.mxu0 0.0
  %750 = vmatpush.msra.mxu0 0.0
  %751 = vmatpush.msra.mxu0 0.0
  %752 = vmatpush.msra.mxu0 0.0
  %753 = vmatpush.msra.mxu0 0.0
  %754 = vmatpush.msra.mxu0 0.0
  %755 = vmatpush.msra.mxu0 %v214
  %756 = vmatpush.msra.mxu0 %v212
  %757 = vmatpush.msra.mxu0 %v210
  %758 = vmatpush.msra.mxu0 %v208
  %759 = vmatpush.msra.mxu0 %v206
  %760 = vmatpush.msra.mxu0 %v204
  %761 = vmatpush.msra.mxu0 %v202
  %762 = vmatpush.msra.mxu0 %v200
  %763 = vmatmul.f32.gmra.mxu0 %v745
  %v764 = vpop.f32.mrf.mxu0
  %v765 = vadd.f32 0.0, %v764
  %766 = vdwg.mxu0
  %767 = vmatpush.msra.mxu0 0.0
  %768 = vmatpush.msra.mxu0 0.0
  %769 = vmatpush.msra.mxu0 0.0
  %770 = vmatpush.msra.mxu0 0.0
  %771 = vmatpush.msra.mxu0 0.0
  %772 = vmatpush.msra.mxu0 0.0
  %773 = vmatpush.msra.mxu0 0.0
  %774 = vmatpush.msra.mxu0 0.0
  %775 = vmatpush.msra.mxu0 %v215
  %776 = vmatpush.msra.mxu0 %v213
  %777 = vmatpush.msra.mxu0 %v211
  %778 = vmatpush.msra.mxu0 %v209
  %779 = vmatpush.msra.mxu0 %v207
  %780 = vmatpush.msra.mxu0 %v205
  %781 = vmatpush.msra.mxu0 %v203
  %782 = vmatpush.msra.mxu0 %v201
  %783 = vmatmul.f32.gmra.mxu0 %v745
  %v784 = vpop.f32.mrf.mxu0
  %v785 = vadd.f32 0.0, %v784
  %786 = vdwg.mxu0
  %v787 = vadd.f32 %v743, %v765
  %v788 = vadd.f32 %v744, %v785
  %v789 = vxor.u32 %v787, 2147483648
  %v790 = vmul.f32 %v789, 1.442695
  %v791 = vpow.pop %v790
  %v792 = vadd.f32 %v791, 1.0
  %v793 = vrcp.pop %v792
  %v794 = vmul.f32 %v792, %v793
  %v795 = vsub.f32 1.0, %v794
  %v796 = vmul.f32 %v793, %v795
  %v797 = vadd.f32 %v793, %v796
  %vm798 = vweird.f32 %v792
  %vm799 = vweird.f32 %v793
  %vm800 = vmor %vm798, %vm799
  %v801 = vsel %vm800, %v793, %v797
  %v802 = vand.u32 2147483647, %v792
  %vm803 = vcmp.eq.f32.partialorder %v802, 8.507059e+37
  %v804 = vand.u32 %v792, 2147483648
  %v805 = vor.u32 1.1754944e-38, %v804
  %v806 = vsel %vm803, %v805, %v801
  %v807 = vmul.f32 1.0, %v806
  %v808 = vtanh.pop %v788
  %v809 = vxor.u32 %v788, 2147483648
  %v810 = vmul.f32 %v809, 1.442695
  %v811 = vpow.pop %v810
  %v812 = vadd.f32 %v811, 1.0
  %v813 = vrcp.pop %v812
  %v814 = vmul.f32 %v812, %v813
  %v815 = vsub.f32 1.0, %v814
  %v816 = vmul.f32 %v813, %v815
  %v817 = vadd.f32 %v813, %v816
  %vm818 = vweird.f32 %v812
  %vm819 = vweird.f32 %v813
  %vm820 = vmor %vm818, %vm819
  %v821 = vsel %vm820, %v813, %v817
  %v822 = vand.u32 2147483647, %v812
  %vm823 = vcmp.eq.f32.partialorder %v822, 8.507059e+37
  %v824 = vand.u32 %v812, 2147483648
  %v825 = vor.u32 1.1754944e-38, %v824
  %v826 = vsel %vm823, %v825, %v821
  %v827 = vmul.f32 1.0, %v826
  %v828 = vmul.f32 %v807, %v730
  %v829 = vmul.f32 %v807, %v808
  %831 = vrot.lane.b32.xlu0 %v829, 64
  %v832 = vpop.permute.xlu0 %831
  %v834 = vadd.f32 %v828, %v832
  %v835 = vtanh.pop %v834
  %v836 = vmul.f32 %v827, %v835
  %838 = vrot.lane.b32.xlu0 %v836, 64
  %v839 = vpop.permute.xlu0 %838
  %841 = vst.msk [vmem:[#allocation3 + $0x28] sm:$0xff] %vm77, %v839
  %842 = vst.msk [vmem:[#allocation3 + $0x10] sm:$0xff] %vm321, %v839
  %v843 = vld [vmem:[#allocation2 + $0x60] sm:$0xff]
  %v844 = vld [vmem:[#allocation2 + $0x68] sm:$0xff]
  %v845 = vld [vmem:[#allocation2 + $0x10] sm:$0xff]
  %v846 = vld [vmem:[#allocation2 + $0x18] sm:$0xff]
  %v847 = vsel %vm53, %v843, %v845
  %v848 = vsel %vm54, %v844, %v846
  %v849 = vsel %vm222, %v839, 0
  %851 = vmatpush.msra.mxu0 0.0
  %852 = vmatpush.msra.mxu0 0.0
  %853 = vmatpush.msra.mxu0 0.0
  %854 = vmatpush.msra.mxu0 0.0
  %855 = vmatpush.msra.mxu0 0.0
  %856 = vmatpush.msra.mxu0 0.0
  %857 = vmatpush.msra.mxu0 0.0
  %858 = vmatpush.msra.mxu0 0.0
  %859 = vmatpush.msra.mxu0 %v214
  %860 = vmatpush.msra.mxu0 %v212
  %861 = vmatpush.msra.mxu0 %v210
  %862 = vmatpush.msra.mxu0 %v208
  %863 = vmatpush.msra.mxu0 %v206
  %864 = vmatpush.msra.mxu0 %v204
  %865 = vmatpush.msra.mxu0 %v202
  %866 = vmatpush.msra.mxu0 %v200
  %867 = vmatmul.f32.gmra.mxu0 %v849
  %v868 = vpop.f32.mrf.mxu0
  %v869 = vadd.f32 0.0, %v868
  %870 = vdwg.mxu0
  %871 = vmatpush.msra.mxu0 0.0
  %872 = vmatpush.msra.mxu0 0.0
  %873 = vmatpush.msra.mxu0 0.0
  %874 = vmatpush.msra.mxu0 0.0
  %875 = vmatpush.msra.mxu0 0.0
  %876 = vmatpush.msra.mxu0 0.0
  %877 = vmatpush.msra.mxu0 0.0
  %878 = vmatpush.msra.mxu0 0.0
  %879 = vmatpush.msra.mxu0 %v215
  %880 = vmatpush.msra.mxu0 %v213
  %881 = vmatpush.msra.mxu0 %v211
  %882 = vmatpush.msra.mxu0 %v209
  %883 = vmatpush.msra.mxu0 %v207
  %884 = vmatpush.msra.mxu0 %v205
  %885 = vmatpush.msra.mxu0 %v203
  %886 = vmatpush.msra.mxu0 %v201
  %887 = vmatmul.f32.gmra.mxu0 %v849
  %v888 = vpop.f32.mrf.mxu0
  %v889 = vadd.f32 0.0, %v888
  %890 = vdwg.mxu0
  %v891 = vadd.f32 %v847, %v869
  %v892 = vadd.f32 %v848, %v889
  %v893 = vxor.u32 %v891, 2147483648
  %v894 = vmul.f32 %v893, 1.442695
  %v895 = vpow.pop %v894
  %v896 = vadd.f32 %v895, 1.0
  %v897 = vrcp.pop %v896
  %v898 = vmul.f32 %v896, %v897
  %v899 = vsub.f32 1.0, %v898
  %v900 = vmul.f32 %v897, %v899
  %v901 = vadd.f32 %v897, %v900
  %vm902 = vweird.f32 %v896
  %vm903 = vweird.f32 %v897
  %vm904 = vmor %vm902, %vm903
  %v905 = vsel %vm904, %v897, %v901
  %v906 = vand.u32 2147483647, %v896
  %vm907 = vcmp.eq.f32.partialorder %v906, 8.507059e+37
  %v908 = vand.u32 %v896, 2147483648
  %v909 = vor.u32 1.1754944e-38, %v908
  %v910 = vsel %vm907, %v909, %v905
  %v911 = vmul.f32 1.0, %v910
  %v912 = vtanh.pop %v892
  %v913 = vxor.u32 %v892, 2147483648
  %v914 = vmul.f32 %v913, 1.442695
  %v915 = vpow.pop %v914
  %v916 = vadd.f32 %v915, 1.0
  %v917 = vrcp.pop %v916
  %v918 = vmul.f32 %v916, %v917
  %v919 = vsub.f32 1.0, %v918
  %v920 = vmul.f32 %v917, %v919
  %v921 = vadd.f32 %v917, %v920
  %vm922 = vweird.f32 %v916
  %vm923 = vweird.f32 %v917
  %vm924 = vmor %vm922, %vm923
  %v925 = vsel %vm924, %v917, %v921
  %v926 = vand.u32 2147483647, %v916
  %vm927 = vcmp.eq.f32.partialorder %v926, 8.507059e+37
  %v928 = vand.u32 %v916, 2147483648
  %v929 = vor.u32 1.1754944e-38, %v928
  %v930 = vsel %vm927, %v929, %v925
  %v931 = vmul.f32 1.0, %v930
  %v932 = vmul.f32 %v911, %v834
  %v933 = vmul.f32 %v911, %v912
  %935 = vrot.lane.b32.xlu0 %v933, 64
  %v936 = vpop.permute.xlu0 %935
  %v938 = vadd.f32 %v932, %v936
  %v939 = vtanh.pop %v938
  %v940 = vmul.f32 %v931, %v939
  %942 = vrot.lane.b32.xlu0 %v940, 64
  %v943 = vpop.permute.xlu0 %942
  %945 = vst.msk [vmem:[#allocation3 + $0x30] sm:$0xff] %vm77, %v943
  %946 = vst.msk [vmem:[#allocation3 + $0x8] sm:$0xff] %vm321, %v943
  %v947 = vld [vmem:[#allocation2 + $0x70] sm:$0xff]
  %v948 = vld [vmem:[#allocation2 + $0x78] sm:$0xff]
  %v949 = vld [vmem:[#allocation2] sm:$0xff]
  %v950 = vld [vmem:[#allocation2 + $0x8] sm:$0xff]
  %v951 = vsel %vm53, %v947, %v949
  %v952 = vsel %vm54, %v948, %v950
  %v953 = vsel %vm222, %v943, 0
  %955 = vmatpush.msra.mxu0 0.0
  %956 = vmatpush.msra.mxu0 0.0
  %957 = vmatpush.msra.mxu0 0.0
  %958 = vmatpush.msra.mxu0 0.0
  %959 = vmatpush.msra.mxu0 0.0
  %960 = vmatpush.msra.mxu0 0.0
  %961 = vmatpush.msra.mxu0 0.0
  %962 = vmatpush.msra.mxu0 0.0
  %963 = vmatpush.msra.mxu0 %v214
  %964 = vmatpush.msra.mxu0 %v212
  %965 = vmatpush.msra.mxu0 %v210
  %966 = vmatpush.msra.mxu0 %v208
  %967 = vmatpush.msra.mxu0 %v206
  %968 = vmatpush.msra.mxu0 %v204
  %969 = vmatpush.msra.mxu0 %v202
  %970 = vmatpush.msra.mxu0 %v200
  %971 = vmatmul.f32.gmra.mxu0 %v953
  %v972 = vpop.f32.mrf.mxu0
  %v973 = vadd.f32 0.0, %v972
  %974 = vdwg.mxu0
  %975 = vmatpush.msra.mxu0 0.0
  %976 = vmatpush.msra.mxu0 0.0
  %977 = vmatpush.msra.mxu0 0.0
  %978 = vmatpush.msra.mxu0 0.0
  %979 = vmatpush.msra.mxu0 0.0
  %980 = vmatpush.msra.mxu0 0.0
  %981 = vmatpush.msra.mxu0 0.0
  %982 = vmatpush.msra.mxu0 0.0
  %983 = vmatpush.msra.mxu0 %v215
  %984 = vmatpush.msra.mxu0 %v213
  %985 = vmatpush.msra.mxu0 %v211
  %986 = vmatpush.msra.mxu0 %v209
  %987 = vmatpush.msra.mxu0 %v207
  %988 = vmatpush.msra.mxu0 %v205
  %989 = vmatpush.msra.mxu0 %v203
  %990 = vmatpush.msra.mxu0 %v201
  %991 = vmatmul.f32.gmra.mxu0 %v953
  %v992 = vpop.f32.mrf.mxu0
  %v993 = vadd.f32 0.0, %v992
  %994 = vdwg.mxu0
  %v995 = vadd.f32 %v951, %v973
  %v996 = vadd.f32 %v952, %v993
  %v997 = vxor.u32 %v995, 2147483648
  %v998 = vmul.f32 %v997, 1.442695
  %v999 = vpow.pop %v998
  %v1000 = vadd.f32 %v999, 1.0
  %v1001 = vrcp.pop %v1000
  %v1002 = vmul.f32 %v1000, %v1001
  %v1003 = vsub.f32 1.0, %v1002
  %v1004 = vmul.f32 %v1001, %v1003
  %v1005 = vadd.f32 %v1001, %v1004
  %vm1006 = vweird.f32 %v1000
  %vm1007 = vweird.f32 %v1001
  %vm1008 = vmor %vm1006, %vm1007
  %v1009 = vsel %vm1008, %v1001, %v1005
  %v1010 = vand.u32 2147483647, %v1000
  %vm1011 = vcmp.eq.f32.partialorder %v1010, 8.507059e+37
  %v1012 = vand.u32 %v1000, 2147483648
  %v1013 = vor.u32 1.1754944e-38, %v1012
  %v1014 = vsel %vm1011, %v1013, %v1009
  %v1015 = vmul.f32 1.0, %v1014
  %v1016 = vtanh.pop %v996
  %v1017 = vxor.u32 %v996, 2147483648
  %v1018 = vmul.f32 %v1017, 1.442695
  %v1019 = vpow.pop %v1018
  %v1020 = vadd.f32 %v1019, 1.0
  %v1021 = vrcp.pop %v1020
  %v1022 = vmul.f32 %v1020, %v1021
  %v1023 = vsub.f32 1.0, %v1022
  %v1024 = vmul.f32 %v1021, %v1023
  %v1025 = vadd.f32 %v1021, %v1024
  %vm1026 = vweird.f32 %v1020
  %vm1027 = vweird.f32 %v1021
  %vm1028 = vmor %vm1026, %vm1027
  %v1029 = vsel %vm1028, %v1021, %v1025
  %v1030 = vand.u32 2147483647, %v1020
  %vm1031 = vcmp.eq.f32.partialorder %v1030, 8.507059e+37
  %v1032 = vand.u32 %v1020, 2147483648
  %v1033 = vor.u32 1.1754944e-38, %v1032
  %v1034 = vsel %vm1031, %v1033, %v1029
  %v1035 = vmul.f32 1.0, %v1034
  %v1036 = vmul.f32 %v1015, %v938
  %v1037 = vmul.f32 %v1015, %v1016
  %1039 = vrot.lane.b32.xlu0 %v1037, 64
  %v1040 = vpop.permute.xlu0 %1039
  %v1042 = vadd.f32 %v1036, %v1040
  %v1043 = vtanh.pop %v1042
  %v1044 = vmul.f32 %v1035, %v1043
  %1046 = vrot.lane.b32.xlu0 %v1044, 64
  %v1047 = vpop.permute.xlu0 %1046
  %1049 = vst.msk [vmem:[#allocation3 + $0x38] sm:$0xff] %vm77, %v1047
  %1050 = vst.msk [vmem:[#allocation3] sm:$0xff] %vm321, %v1047
  %v1051 = vld [vmem:[#allocation3] sm:$0xff]
  %v1052 = vld [vmem:[#allocation3 + $0x8] sm:$0xff]
  %v1053 = vld [vmem:[#allocation3 + $0x10] sm:$0xff]
  %v1054 = vld [vmem:[#allocation3 + $0x18] sm:$0xff]
  %v1055 = vld [vmem:[#allocation3 + $0x20] sm:$0xff]
  %v1056 = vld [vmem:[#allocation3 + $0x28] sm:$0xff]
  %v1057 = vld [vmem:[#allocation3 + $0x30] sm:$0xff]
  %v1058 = vld [vmem:[#allocation3 + $0x38] sm:$0xff]
  %v1059 = vld [vmem:[%s4] sm:$0xff]
  %v1060 = vld [vmem:[%s4 + $0x8] sm:$0xff]
  %v1061 = vld [vmem:[%s4 + $0x10] sm:$0xff]
  %v1062 = vld [vmem:[%s4 + $0x18] sm:$0xff]
  %v1063 = vld [vmem:[%s4 + $0x20] sm:$0xff]
  %v1064 = vld [vmem:[%s4 + $0x28] sm:$0xff]
  %v1065 = vld [vmem:[%s4 + $0x30] sm:$0xff]
  %v1066 = vld [vmem:[%s4 + $0x38] sm:$0xff]
  %v1067 = vld [vmem:[%s4 + $0x40] sm:$0xff]
  %v1068 = vld [vmem:[%s4 + $0x48] sm:$0xff]
  %v1069 = vld [vmem:[%s4 + $0x50] sm:$0xff]
  %v1070 = vld [vmem:[%s4 + $0x58] sm:$0xff]
  %v1071 = vld [vmem:[%s4 + $0x60] sm:$0xff]
  %v1072 = vld [vmem:[%s4 + $0x68] sm:$0xff]
  %v1073 = vld [vmem:[%s4 + $0x70] sm:$0xff]
  %v1074 = vld [vmem:[%s4 + $0x78] sm:$0xff]
  %v1075 = vld [vmem:[%s6] sm:$0x3]
  %v1077 = vperm.slane %v1075, 0
  %v1078 = vperm.slane %v1075, 1
  %v1082 = vsel %vm222, %v1051, 0
  %v1085 = vsel %vm222, %v1052, 0
  %v1088 = vsel %vm222, %v1053, 0
  %v1091 = vsel %vm222, %v1054, 0
  %v1094 = vsel %vm222, %v1055, 0
  %v1097 = vsel %vm222, %v1056, 0
  %v1100 = vsel %vm222, %v1057, 0
  %v1103 = vsel %vm222, %v1058, 0
  %1105 = vmatpush.msra.mxu0 0.0
  %1106 = vmatpush.msra.mxu0 0.0
  %1107 = vmatpush.msra.mxu0 0.0
  %1108 = vmatpush.msra.mxu0 0.0
  %1109 = vmatpush.msra.mxu0 0.0
  %1110 = vmatpush.msra.mxu0 0.0
  %1111 = vmatpush.msra.mxu0 0.0
  %1112 = vmatpush.msra.mxu0 0.0
  %1113 = vmatpush.msra.mxu0 %v1073
  %1114 = vmatpush.msra.mxu0 %v1071
  %1115 = vmatpush.msra.mxu0 %v1069
  %1116 = vmatpush.msra.mxu0 %v1067
  %1117 = vmatpush.msra.mxu0 %v1065
  %1118 = vmatpush.msra.mxu0 %v1063
  %1119 = vmatpush.msra.mxu0 %v1061
  %1120 = vmatpush.msra.mxu0 %v1059
  %1121 = vmatmul.f32.gmra.mxu0 %v1082
  %v1122 = vpop.f32.mrf.mxu0
  %v1123 = vadd.f32 %v1077, %v1122
  %1124 = vmatmul.f32.gmra.mxu0 %v1085
  %v1125 = vpop.f32.mrf.mxu0
  %v1126 = vadd.f32 %v1077, %v1125
  %1127 = vmatmul.f32.gmra.mxu0 %v1088
  %v1128 = vpop.f32.mrf.mxu0
  %v1129 = vadd.f32 %v1077, %v1128
  %1130 = vmatmul.f32.gmra.mxu0 %v1091
  %v1131 = vpop.f32.mrf.mxu0
  %v1132 = vadd.f32 %v1077, %v1131
  %1133 = vmatmul.f32.gmra.mxu0 %v1094
  %v1134 = vpop.f32.mrf.mxu0
  %v1135 = vadd.f32 %v1077, %v1134
  %1136 = vmatmul.f32.gmra.mxu0 %v1097
  %v1137 = vpop.f32.mrf.mxu0
  %v1138 = vadd.f32 %v1077, %v1137
  %1139 = vmatmul.f32.gmra.mxu0 %v1100
  %v1140 = vpop.f32.mrf.mxu0
  %v1141 = vadd.f32 %v1077, %v1140
  %1142 = vmatmul.f32.gmra.mxu0 %v1103
  %v1143 = vpop.f32.mrf.mxu0
  %v1144 = vadd.f32 %v1077, %v1143
  %1145 = vdwg.mxu0
  %1146 = vmatpush.msra.mxu0 0.0
  %1147 = vmatpush.msra.mxu0 0.0
  %1148 = vmatpush.msra.mxu0 0.0
  %1149 = vmatpush.msra.mxu0 0.0
  %1150 = vmatpush.msra.mxu0 0.0
  %1151 = vmatpush.msra.mxu0 0.0
  %1152 = vmatpush.msra.mxu0 0.0
  %1153 = vmatpush.msra.mxu0 0.0
  %1154 = vmatpush.msra.mxu0 %v1074
  %1155 = vmatpush.msra.mxu0 %v1072
  %1156 = vmatpush.msra.mxu0 %v1070
  %1157 = vmatpush.msra.mxu0 %v1068
  %1158 = vmatpush.msra.mxu0 %v1066
  %1159 = vmatpush.msra.mxu0 %v1064
  %1160 = vmatpush.msra.mxu0 %v1062
  %1161 = vmatpush.msra.mxu0 %v1060
  %1162 = vmatmul.f32.gmra.mxu0 %v1082
  %v1163 = vpop.f32.mrf.mxu0
  %v1164 = vadd.f32 %v1078, %v1163
  %1165 = vmatmul.f32.gmra.mxu0 %v1085
  %v1166 = vpop.f32.mrf.mxu0
  %v1167 = vadd.f32 %v1078, %v1166
  %1168 = vmatmul.f32.gmra.mxu0 %v1088
  %v1169 = vpop.f32.mrf.mxu0
  %v1170 = vadd.f32 %v1078, %v1169
  %1171 = vmatmul.f32.gmra.mxu0 %v1091
  %v1172 = vpop.f32.mrf.mxu0
  %v1173 = vadd.f32 %v1078, %v1172
  %1174 = vmatmul.f32.gmra.mxu0 %v1094
  %v1175 = vpop.f32.mrf.mxu0
  %v1176 = vadd.f32 %v1078, %v1175
  %1177 = vmatmul.f32.gmra.mxu0 %v1097
  %v1178 = vpop.f32.mrf.mxu0
  %v1179 = vadd.f32 %v1078, %v1178
  %1180 = vmatmul.f32.gmra.mxu0 %v1100
  %v1181 = vpop.f32.mrf.mxu0
  %v1182 = vadd.f32 %v1078, %v1181
  %1183 = vmatmul.f32.gmra.mxu0 %v1103
  %v1184 = vpop.f32.mrf.mxu0
  %v1185 = vadd.f32 %v1078, %v1184
  %1186 = vdwg.mxu0
  %1187 = vst [vmem:[#allocation2] sm:$0xff] %v1123
  %1188 = vst [vmem:[#allocation2 + $0x8] sm:$0xff] %v1164
  %1189 = vst [vmem:[#allocation2 + $0x10] sm:$0xff] %v1126
  %1190 = vst [vmem:[#allocation2 + $0x18] sm:$0xff] %v1167
  %1191 = vst [vmem:[#allocation2 + $0x20] sm:$0xff] %v1129
  %1192 = vst [vmem:[#allocation2 + $0x28] sm:$0xff] %v1170
  %1193 = vst [vmem:[#allocation2 + $0x30] sm:$0xff] %v1132
  %1194 = vst [vmem:[#allocation2 + $0x38] sm:$0xff] %v1173
  %1195 = vst [vmem:[#allocation2 + $0x40] sm:$0xff] %v1135
  %1196 = vst [vmem:[#allocation2 + $0x48] sm:$0xff] %v1176
  %1197 = vst [vmem:[#allocation2 + $0x50] sm:$0xff] %v1138
  %1198 = vst [vmem:[#allocation2 + $0x58] sm:$0xff] %v1179
  %1199 = vst [vmem:[#allocation2 + $0x60] sm:$0xff] %v1141
  %1200 = vst [vmem:[#allocation2 + $0x68] sm:$0xff] %v1182
  %1201 = vst [vmem:[#allocation2 + $0x70] sm:$0xff] %v1144
  %1202 = vst [vmem:[#allocation2 + $0x78] sm:$0xff] %v1185
  %v1203 = vld [vmem:[%s5] sm:$0xff]
  %v1204 = vld [vmem:[%s5 + $0x8] sm:$0xff]
  %v1205 = vld [vmem:[%s5 + $0x10] sm:$0xff]
  %v1206 = vld [vmem:[%s5 + $0x18] sm:$0xff]
  %v1207 = vld [vmem:[%s5 + $0x20] sm:$0xff]
  %v1208 = vld [vmem:[%s5 + $0x28] sm:$0xff]
  %v1209 = vld [vmem:[%s5 + $0x30] sm:$0xff]
  %v1210 = vld [vmem:[%s5 + $0x38] sm:$0xff]
  %v1211 = vld [vmem:[%s5 + $0x40] sm:$0xff]
  %v1212 = vld [vmem:[%s5 + $0x48] sm:$0xff]
  %v1213 = vld [vmem:[%s5 + $0x50] sm:$0xff]
  %v1214 = vld [vmem:[%s5 + $0x58] sm:$0xff]
  %v1215 = vld [vmem:[%s5 + $0x60] sm:$0xff]
  %v1216 = vld [vmem:[%s5 + $0x68] sm:$0xff]
  %v1217 = vld [vmem:[%s5 + $0x70] sm:$0xff]
  %v1218 = vld [vmem:[%s5 + $0x78] sm:$0xff]
  %v1219 = vld [vmem:[#allocation2] sm:$0xff]
  %v1220 = vld [vmem:[#allocation2 + $0x8] sm:$0xff]
  %v1221 = vld [vmem:[#allocation2 + $0x70] sm:$0xff]
  %v1222 = vld [vmem:[#allocation2 + $0x78] sm:$0xff]
  %v1223 = vsel %vm53, %v1219, %v1221
  %v1224 = vsel %vm54, %v1220, %v1222
  %1225 = vmatpush.msra.mxu0 0.0
  %1226 = vmatpush.msra.mxu0 0.0
  %1227 = vmatpush.msra.mxu0 0.0
  %1228 = vmatpush.msra.mxu0 0.0
  %1229 = vmatpush.msra.mxu0 0.0
  %1230 = vmatpush.msra.mxu0 0.0
  %1231 = vmatpush.msra.mxu0 0.0
  %1232 = vmatpush.msra.mxu0 0.0
  %1233 = vmatpush.msra.mxu0 %v1217
  %1234 = vmatpush.msra.mxu0 %v1215
  %1235 = vmatpush.msra.mxu0 %v1213
  %1236 = vmatpush.msra.mxu0 %v1211
  %1237 = vmatpush.msra.mxu0 %v1209
  %1238 = vmatpush.msra.mxu0 %v1207
  %1239 = vmatpush.msra.mxu0 %v1205
  %1240 = vmatpush.msra.mxu0 %v1203
  %1241 = vmatmul.f32.gmra.mxu0 %v224
  %v1242 = vpop.f32.mrf.mxu0
  %v1243 = vadd.f32 0.0, %v1242
  %1244 = vdwg.mxu0
  %1245 = vmatpush.msra.mxu0 0.0
  %1246 = vmatpush.msra.mxu0 0.0
  %1247 = vmatpush.msra.mxu0 0.0
  %1248 = vmatpush.msra.mxu0 0.0
  %1249 = vmatpush.msra.mxu0 0.0
  %1250 = vmatpush.msra.mxu0 0.0
  %1251 = vmatpush.msra.mxu0 0.0
  %1252 = vmatpush.msra.mxu0 0.0
  %1253 = vmatpush.msra.mxu0 %v1218
  %1254 = vmatpush.msra.mxu0 %v1216
  %1255 = vmatpush.msra.mxu0 %v1214
  %1256 = vmatpush.msra.mxu0 %v1212
  %1257 = vmatpush.msra.mxu0 %v1210
  %1258 = vmatpush.msra.mxu0 %v1208
  %1259 = vmatpush.msra.mxu0 %v1206
  %1260 = vmatpush.msra.mxu0 %v1204
  %1261 = vmatmul.f32.gmra.mxu0 %v224
  %v1262 = vpop.f32.mrf.mxu0
  %v1263 = vadd.f32 0.0, %v1262
  %1264 = vdwg.mxu0
  %v1265 = vadd.f32 %v1223, %v1243
  %v1266 = vadd.f32 %v1224, %v1263
  %v1267 = vxor.u32 %v1265, 2147483648
  %v1268 = vmul.f32 %v1267, 1.442695
  %v1269 = vpow.pop %v1268
  %v1270 = vadd.f32 %v1269, 1.0
  %v1271 = vrcp.pop %v1270
  %v1272 = vmul.f32 %v1270, %v1271
  %v1273 = vsub.f32 1.0, %v1272
  %v1274 = vmul.f32 %v1271, %v1273
  %v1275 = vadd.f32 %v1271, %v1274
  %vm1276 = vweird.f32 %v1270
  %vm1277 = vweird.f32 %v1271
  %vm1278 = vmor %vm1276, %vm1277
  %v1279 = vsel %vm1278, %v1271, %v1275
  %v1280 = vand.u32 2147483647, %v1270
  %vm1281 = vcmp.eq.f32.partialorder %v1280, 8.507059e+37
  %v1282 = vand.u32 %v1270, 2147483648
  %v1283 = vor.u32 1.1754944e-38, %v1282
  %v1284 = vsel %vm1281, %v1283, %v1279
  %v1285 = vmul.f32 1.0, %v1284
  %v1286 = vtanh.pop %v1266
  %v1287 = vxor.u32 %v1266, 2147483648
  %v1288 = vmul.f32 %v1287, 1.442695
  %v1289 = vpow.pop %v1288
  %v1290 = vadd.f32 %v1289, 1.0
  %v1291 = vrcp.pop %v1290
  %v1292 = vmul.f32 %v1290, %v1291
  %v1293 = vsub.f32 1.0, %v1292
  %v1294 = vmul.f32 %v1291, %v1293
  %v1295 = vadd.f32 %v1291, %v1294
  %vm1296 = vweird.f32 %v1290
  %vm1297 = vweird.f32 %v1291
  %vm1298 = vmor %vm1296, %vm1297
  %v1299 = vsel %vm1298, %v1291, %v1295
  %v1300 = vand.u32 2147483647, %v1290
  %vm1301 = vcmp.eq.f32.partialorder %v1300, 8.507059e+37
  %v1302 = vand.u32 %v1290, 2147483648
  %v1303 = vor.u32 1.1754944e-38, %v1302
  %v1304 = vsel %vm1301, %v1303, %v1299
  %v1305 = vmul.f32 1.0, %v1304
  %v1306 = vmul.f32 %v1285, 0.0
  %v1307 = vmul.f32 %v1285, %v1286
  %1309 = vrot.lane.b32.xlu0 %v1307, 64
  %v1310 = vpop.permute.xlu0 %1309
  %v1312 = vadd.f32 %v1306, %v1310
  %v1313 = vtanh.pop %v1312
  %v1314 = vmul.f32 %v1305, %v1313
  %vm1315 = vcmask 785920
  %1316 = vst.msk [vmem:[%s7] sm:$0xff] %vm1315, %v1314
  %vm1317 = vcmask 1048320
  %1318 = vst.msk [vmem:[%s7 + $0x38] sm:$0xff] %vm1317, %v1314
  %v1319 = vld [vmem:[#allocation2 + $0x10] sm:$0xff]
  %v1320 = vld [vmem:[#allocation2 + $0x18] sm:$0xff]
  %v1321 = vld [vmem:[#allocation2 + $0x60] sm:$0xff]
  %v1322 = vld [vmem:[#allocation2 + $0x68] sm:$0xff]
  %v1323 = vsel %vm53, %v1319, %v1321
  %v1324 = vsel %vm54, %v1320, %v1322
  %1326 = vrot.lane.b32.xlu0 %v1314, 64
  %v1327 = vpop.permute.xlu0 %1326
  %v1328 = vsel %vm222, %v1327, 0
  %1330 = vmatpush.msra.mxu0 0.0
  %1331 = vmatpush.msra.mxu0 0.0
  %1332 = vmatpush.msra.mxu0 0.0
  %1333 = vmatpush.msra.mxu0 0.0
  %1334 = vmatpush.msra.mxu0 0.0
  %1335 = vmatpush.msra.mxu0 0.0
  %1336 = vmatpush.msra.mxu0 0.0
  %1337 = vmatpush.msra.mxu0 0.0
  %1338 = vmatpush.msra.mxu0 %v1217
  %1339 = vmatpush.msra.mxu0 %v1215
  %1340 = vmatpush.msra.mxu0 %v1213
  %1341 = vmatpush.msra.mxu0 %v1211
  %1342 = vmatpush.msra.mxu0 %v1209
  %1343 = vmatpush.msra.mxu0 %v1207
  %1344 = vmatpush.msra.mxu0 %v1205
  %1345 = vmatpush.msra.mxu0 %v1203
  %1346 = vmatmul.f32.gmra.mxu0 %v1328
  %v1347 = vpop.f32.mrf.mxu0
  %v1348 = vadd.f32 0.0, %v1347
  %1349 = vdwg.mxu0
  %1350 = vmatpush.msra.mxu0 0.0
  %1351 = vmatpush.msra.mxu0 0.0
  %1352 = vmatpush.msra.mxu0 0.0
  %1353 = vmatpush.msra.mxu0 0.0
  %1354 = vmatpush.msra.mxu0 0.0
  %1355 = vmatpush.msra.mxu0 0.0
  %1356 = vmatpush.msra.mxu0 0.0
  %1357 = vmatpush.msra.mxu0 0.0
  %1358 = vmatpush.msra.mxu0 %v1218
  %1359 = vmatpush.msra.mxu0 %v1216
  %1360 = vmatpush.msra.mxu0 %v1214
  %1361 = vmatpush.msra.mxu0 %v1212
  %1362 = vmatpush.msra.mxu0 %v1210
  %1363 = vmatpush.msra.mxu0 %v1208
  %1364 = vmatpush.msra.mxu0 %v1206
  %1365 = vmatpush.msra.mxu0 %v1204
  %1366 = vmatmul.f32.gmra.mxu0 %v1328
  %v1367 = vpop.f32.mrf.mxu0
  %v1368 = vadd.f32 0.0, %v1367
  %1369 = vdwg.mxu0
  %v1370 = vadd.f32 %v1323, %v1348
  %v1371 = vadd.f32 %v1324, %v1368
  %v1372 = vxor.u32 %v1370, 2147483648
  %v1373 = vmul.f32 %v1372, 1.442695
  %v1374 = vpow.pop %v1373
  %v1375 = vadd.f32 %v1374, 1.0
  %v1376 = vrcp.pop %v1375
  %v1377 = vmul.f32 %v1375, %v1376
  %v1378 = vsub.f32 1.0, %v1377
  %v1379 = vmul.f32 %v1376, %v1378
  %v1380 = vadd.f32 %v1376, %v1379
  %vm1381 = vweird.f32 %v1375
  %vm1382 = vweird.f32 %v1376
  %vm1383 = vmor %vm1381, %vm1382
  %v1384 = vsel %vm1383, %v1376, %v1380
  %v1385 = vand.u32 2147483647, %v1375
  %vm1386 = vcmp.eq.f32.partialorder %v1385, 8.507059e+37
  %v1387 = vand.u32 %v1375, 2147483648
  %v1388 = vor.u32 1.1754944e-38, %v1387
  %v1389 = vsel %vm1386, %v1388, %v1384
  %v1390 = vmul.f32 1.0, %v1389
  %v1391 = vtanh.pop %v1371
  %v1392 = vxor.u32 %v1371, 2147483648
  %v1393 = vmul.f32 %v1392, 1.442695
  %v1394 = vpow.pop %v1393
  %v1395 = vadd.f32 %v1394, 1.0
  %v1396 = vrcp.pop %v1395
  %v1397 = vmul.f32 %v1395, %v1396
  %v1398 = vsub.f32 1.0, %v1397
  %v1399 = vmul.f32 %v1396, %v1398
  %v1400 = vadd.f32 %v1396, %v1399
  %vm1401 = vweird.f32 %v1395
  %vm1402 = vweird.f32 %v1396
  %vm1403 = vmor %vm1401, %vm1402
  %v1404 = vsel %vm1403, %v1396, %v1400
  %v1405 = vand.u32 2147483647, %v1395
  %vm1406 = vcmp.eq.f32.partialorder %v1405, 8.507059e+37
  %v1407 = vand.u32 %v1395, 2147483648
  %v1408 = vor.u32 1.1754944e-38, %v1407
  %v1409 = vsel %vm1406, %v1408, %v1404
  %v1410 = vmul.f32 1.0, %v1409
  %v1411 = vmul.f32 %v1390, %v1312
  %v1412 = vmul.f32 %v1390, %v1391
  %1414 = vrot.lane.b32.xlu0 %v1412, 64
  %v1415 = vpop.permute.xlu0 %1414
  %v1417 = vadd.f32 %v1411, %v1415
  %v1418 = vtanh.pop %v1417
  %v1419 = vmul.f32 %v1410, %v1418
  %1420 = vst.msk [vmem:[%s7 + $0x8] sm:$0xff] %vm1315, %v1419
  %1421 = vst.msk [vmem:[%s7 + $0x30] sm:$0xff] %vm1317, %v1419
  %v1422 = vld [vmem:[#allocation2 + $0x20] sm:$0xff]
  %v1423 = vld [vmem:[#allocation2 + $0x28] sm:$0xff]
  %v1424 = vld [vmem:[#allocation2 + $0x50] sm:$0xff]
  %v1425 = vld [vmem:[#allocation2 + $0x58] sm:$0xff]
  %v1426 = vsel %vm53, %v1422, %v1424
  %v1427 = vsel %vm54, %v1423, %v1425
  %1429 = vrot.lane.b32.xlu0 %v1419, 64
  %v1430 = vpop.permute.xlu0 %1429
  %v1431 = vsel %vm222, %v1430, 0
  %1433 = vmatpush.msra.mxu0 0.0
  %1434 = vmatpush.msra.mxu0 0.0
  %1435 = vmatpush.msra.mxu0 0.0
  %1436 = vmatpush.msra.mxu0 0.0
  %1437 = vmatpush.msra.mxu0 0.0
  %1438 = vmatpush.msra.mxu0 0.0
  %1439 = vmatpush.msra.mxu0 0.0
  %1440 = vmatpush.msra.mxu0 0.0
  %1441 = vmatpush.msra.mxu0 %v1217
  %1442 = vmatpush.msra.mxu0 %v1215
  %1443 = vmatpush.msra.mxu0 %v1213
  %1444 = vmatpush.msra.mxu0 %v1211
  %1445 = vmatpush.msra.mxu0 %v1209
  %1446 = vmatpush.msra.mxu0 %v1207
  %1447 = vmatpush.msra.mxu0 %v1205
  %1448 = vmatpush.msra.mxu0 %v1203
  %1449 = vmatmul.f32.gmra.mxu0 %v1431
  %v1450 = vpop.f32.mrf.mxu0
  %v1451 = vadd.f32 0.0, %v1450
  %1452 = vdwg.mxu0
  %1453 = vmatpush.msra.mxu0 0.0
  %1454 = vmatpush.msra.mxu0 0.0
  %1455 = vmatpush.msra.mxu0 0.0
  %1456 = vmatpush.msra.mxu0 0.0
  %1457 = vmatpush.msra.mxu0 0.0
  %1458 = vmatpush.msra.mxu0 0.0
  %1459 = vmatpush.msra.mxu0 0.0
  %1460 = vmatpush.msra.mxu0 0.0
  %1461 = vmatpush.msra.mxu0 %v1218
  %1462 = vmatpush.msra.mxu0 %v1216
  %1463 = vmatpush.msra.mxu0 %v1214
  %1464 = vmatpush.msra.mxu0 %v1212
  %1465 = vmatpush.msra.mxu0 %v1210
  %1466 = vmatpush.msra.mxu0 %v1208
  %1467 = vmatpush.msra.mxu0 %v1206
  %1468 = vmatpush.msra.mxu0 %v1204
  %1469 = vmatmul.f32.gmra.mxu0 %v1431
  %v1470 = vpop.f32.mrf.mxu0
  %v1471 = vadd.f32 0.0, %v1470
  %1472 = vdwg.mxu0
  %v1473 = vadd.f32 %v1426, %v1451
  %v1474 = vadd.f32 %v1427, %v1471
  %v1475 = vxor.u32 %v1473, 2147483648
  %v1476 = vmul.f32 %v1475, 1.442695
  %v1477 = vpow.pop %v1476
  %v1478 = vadd.f32 %v1477, 1.0
  %v1479 = vrcp.pop %v1478
  %v1480 = vmul.f32 %v1478, %v1479
  %v1481 = vsub.f32 1.0, %v1480
  %v1482 = vmul.f32 %v1479, %v1481
  %v1483 = vadd.f32 %v1479, %v1482
  %vm1484 = vweird.f32 %v1478
  %vm1485 = vweird.f32 %v1479
  %vm1486 = vmor %vm1484, %vm1485
  %v1487 = vsel %vm1486, %v1479, %v1483
  %v1488 = vand.u32 2147483647, %v1478
  %vm1489 = vcmp.eq.f32.partialorder %v1488, 8.507059e+37
  %v1490 = vand.u32 %v1478, 2147483648
  %v1491 = vor.u32 1.1754944e-38, %v1490
  %v1492 = vsel %vm1489, %v1491, %v1487
  %v1493 = vmul.f32 1.0, %v1492
  %v1494 = vtanh.pop %v1474
  %v1495 = vxor.u32 %v1474, 2147483648
  %v1496 = vmul.f32 %v1495, 1.442695
  %v1497 = vpow.pop %v1496
  %v1498 = vadd.f32 %v1497, 1.0
  %v1499 = vrcp.pop %v1498
  %v1500 = vmul.f32 %v1498, %v1499
  %v1501 = vsub.f32 1.0, %v1500
  %v1502 = vmul.f32 %v1499, %v1501
  %v1503 = vadd.f32 %v1499, %v1502
  %vm1504 = vweird.f32 %v1498
  %vm1505 = vweird.f32 %v1499
  %vm1506 = vmor %vm1504, %vm1505
  %v1507 = vsel %vm1506, %v1499, %v1503
  %v1508 = vand.u32 2147483647, %v1498
  %vm1509 = vcmp.eq.f32.partialorder %v1508, 8.507059e+37
  %v1510 = vand.u32 %v1498, 2147483648
  %v1511 = vor.u32 1.1754944e-38, %v1510
  %v1512 = vsel %vm1509, %v1511, %v1507
  %v1513 = vmul.f32 1.0, %v1512
  %v1514 = vmul.f32 %v1493, %v1417
  %v1515 = vmul.f32 %v1493, %v1494
  %1517 = vrot.lane.b32.xlu0 %v1515, 64
  %v1518 = vpop.permute.xlu0 %1517
  %v1520 = vadd.f32 %v1514, %v1518
  %v1521 = vtanh.pop %v1520
  %v1522 = vmul.f32 %v1513, %v1521
  %1523 = vst.msk [vmem:[%s7 + $0x10] sm:$0xff] %vm1315, %v1522
  %1524 = vst.msk [vmem:[%s7 + $0x28] sm:$0xff] %vm1317, %v1522
  %v1525 = vld [vmem:[#allocation2 + $0x30] sm:$0xff]
  %v1526 = vld [vmem:[#allocation2 + $0x38] sm:$0xff]
  %v1527 = vld [vmem:[#allocation2 + $0x40] sm:$0xff]
  %v1528 = vld [vmem:[#allocation2 + $0x48] sm:$0xff]
  %v1529 = vsel %vm53, %v1525, %v1527
  %v1530 = vsel %vm54, %v1526, %v1528
  %1532 = vrot.lane.b32.xlu0 %v1522, 64
  %v1533 = vpop.permute.xlu0 %1532
  %v1534 = vsel %vm222, %v1533, 0
  %1536 = vmatpush.msra.mxu0 0.0
  %1537 = vmatpush.msra.mxu0 0.0
  %1538 = vmatpush.msra.mxu0 0.0
  %1539 = vmatpush.msra.mxu0 0.0
  %1540 = vmatpush.msra.mxu0 0.0
  %1541 = vmatpush.msra.mxu0 0.0
  %1542 = vmatpush.msra.mxu0 0.0
  %1543 = vmatpush.msra.mxu0 0.0
  %1544 = vmatpush.msra.mxu0 %v1217
  %1545 = vmatpush.msra.mxu0 %v1215
  %1546 = vmatpush.msra.mxu0 %v1213
  %1547 = vmatpush.msra.mxu0 %v1211
  %1548 = vmatpush.msra.mxu0 %v1209
  %1549 = vmatpush.msra.mxu0 %v1207
  %1550 = vmatpush.msra.mxu0 %v1205
  %1551 = vmatpush.msra.mxu0 %v1203
  %1552 = vmatmul.f32.gmra.mxu0 %v1534
  %v1553 = vpop.f32.mrf.mxu0
  %v1554 = vadd.f32 0.0, %v1553
  %1555 = vdwg.mxu0
  %1556 = vmatpush.msra.mxu0 0.0
  %1557 = vmatpush.msra.mxu0 0.0
  %1558 = vmatpush.msra.mxu0 0.0
  %1559 = vmatpush.msra.mxu0 0.0
  %1560 = vmatpush.msra.mxu0 0.0
  %1561 = vmatpush.msra.mxu0 0.0
  %1562 = vmatpush.msra.mxu0 0.0
  %1563 = vmatpush.msra.mxu0 0.0
  %1564 = vmatpush.msra.mxu0 %v1218
  %1565 = vmatpush.msra.mxu0 %v1216
  %1566 = vmatpush.msra.mxu0 %v1214
  %1567 = vmatpush.msra.mxu0 %v1212
  %1568 = vmatpush.msra.mxu0 %v1210
  %1569 = vmatpush.msra.mxu0 %v1208
  %1570 = vmatpush.msra.mxu0 %v1206
  %1571 = vmatpush.msra.mxu0 %v1204
  %1572 = vmatmul.f32.gmra.mxu0 %v1534
  %v1573 = vpop.f32.mrf.mxu0
  %v1574 = vadd.f32 0.0, %v1573
  %1575 = vdwg.mxu0
  %v1576 = vadd.f32 %v1529, %v1554
  %v1577 = vadd.f32 %v1530, %v1574
  %v1578 = vxor.u32 %v1576, 2147483648
  %v1579 = vmul.f32 %v1578, 1.442695
  %v1580 = vpow.pop %v1579
  %v1581 = vadd.f32 %v1580, 1.0
  %v1582 = vrcp.pop %v1581
  %v1583 = vmul.f32 %v1581, %v1582
  %v1584 = vsub.f32 1.0, %v1583
  %v1585 = vmul.f32 %v1582, %v1584
  %v1586 = vadd.f32 %v1582, %v1585
  %vm1587 = vweird.f32 %v1581
  %vm1588 = vweird.f32 %v1582
  %vm1589 = vmor %vm1587, %vm1588
  %v1590 = vsel %vm1589, %v1582, %v1586
  %v1591 = vand.u32 2147483647, %v1581
  %vm1592 = vcmp.eq.f32.partialorder %v1591, 8.507059e+37
  %v1593 = vand.u32 %v1581, 2147483648
  %v1594 = vor.u32 1.1754944e-38, %v1593
  %v1595 = vsel %vm1592, %v1594, %v1590
  %v1596 = vmul.f32 1.0, %v1595
  %v1597 = vtanh.pop %v1577
  %v1598 = vxor.u32 %v1577, 2147483648
  %v1599 = vmul.f32 %v1598, 1.442695
  %v1600 = vpow.pop %v1599
  %v1601 = vadd.f32 %v1600, 1.0
  %v1602 = vrcp.pop %v1601
  %v1603 = vmul.f32 %v1601, %v1602
  %v1604 = vsub.f32 1.0, %v1603
  %v1605 = vmul.f32 %v1602, %v1604
  %v1606 = vadd.f32 %v1602, %v1605
  %vm1607 = vweird.f32 %v1601
  %vm1608 = vweird.f32 %v1602
  %vm1609 = vmor %vm1607, %vm1608
  %v1610 = vsel %vm1609, %v1602, %v1606
  %v1611 = vand.u32 2147483647, %v1601
  %vm1612 = vcmp.eq.f32.partialorder %v1611, 8.507059e+37
  %v1613 = vand.u32 %v1601, 2147483648
  %v1614 = vor.u32 1.1754944e-38, %v1613
  %v1615 = vsel %vm1612, %v1614, %v1610
  %v1616 = vmul.f32 1.0, %v1615
  %v1617 = vmul.f32 %v1596, %v1520
  %v1618 = vmul.f32 %v1596, %v1597
  %1620 = vrot.lane.b32.xlu0 %v1618, 64
  %v1621 = vpop.permute.xlu0 %1620
  %v1623 = vadd.f32 %v1617, %v1621
  %v1624 = vtanh.pop %v1623
  %v1625 = vmul.f32 %v1616, %v1624
  %1626 = vst.msk [vmem:[%s7 + $0x18] sm:$0xff] %vm1315, %v1625
  %1627 = vst.msk [vmem:[%s7 + $0x20] sm:$0xff] %vm1317, %v1625
  %v1628 = vld [vmem:[#allocation2 + $0x40] sm:$0xff]
  %v1629 = vld [vmem:[#allocation2 + $0x48] sm:$0xff]
  %v1630 = vld [vmem:[#allocation2 + $0x30] sm:$0xff]
  %v1631 = vld [vmem:[#allocation2 + $0x38] sm:$0xff]
  %v1632 = vsel %vm53, %v1628, %v1630
  %v1633 = vsel %vm54, %v1629, %v1631
  %1635 = vrot.lane.b32.xlu0 %v1625, 64
  %v1636 = vpop.permute.xlu0 %1635
  %v1637 = vsel %vm222, %v1636, 0
  %1639 = vmatpush.msra.mxu0 0.0
  %1640 = vmatpush.msra.mxu0 0.0
  %1641 = vmatpush.msra.mxu0 0.0
  %1642 = vmatpush.msra.mxu0 0.0
  %1643 = vmatpush.msra.mxu0 0.0
  %1644 = vmatpush.msra.mxu0 0.0
  %1645 = vmatpush.msra.mxu0 0.0
  %1646 = vmatpush.msra.mxu0 0.0
  %1647 = vmatpush.msra.mxu0 %v1217
  %1648 = vmatpush.msra.mxu0 %v1215
  %1649 = vmatpush.msra.mxu0 %v1213
  %1650 = vmatpush.msra.mxu0 %v1211
  %1651 = vmatpush.msra.mxu0 %v1209
  %1652 = vmatpush.msra.mxu0 %v1207
  %1653 = vmatpush.msra.mxu0 %v1205
  %1654 = vmatpush.msra.mxu0 %v1203
  %1655 = vmatmul.f32.gmra.mxu0 %v1637
  %v1656 = vpop.f32.mrf.mxu0
  %v1657 = vadd.f32 0.0, %v1656
  %1658 = vdwg.mxu0
  %1659 = vmatpush.msra.mxu0 0.0
  %1660 = vmatpush.msra.mxu0 0.0
  %1661 = vmatpush.msra.mxu0 0.0
  %1662 = vmatpush.msra.mxu0 0.0
  %1663 = vmatpush.msra.mxu0 0.0
  %1664 = vmatpush.msra.mxu0 0.0
  %1665 = vmatpush.msra.mxu0 0.0
  %1666 = vmatpush.msra.mxu0 0.0
  %1667 = vmatpush.msra.mxu0 %v1218
  %1668 = vmatpush.msra.mxu0 %v1216
  %1669 = vmatpush.msra.mxu0 %v1214
  %1670 = vmatpush.msra.mxu0 %v1212
  %1671 = vmatpush.msra.mxu0 %v1210
  %1672 = vmatpush.msra.mxu0 %v1208
  %1673 = vmatpush.msra.mxu0 %v1206
  %1674 = vmatpush.msra.mxu0 %v1204
  %1675 = vmatmul.f32.gmra.mxu0 %v1637
  %v1676 = vpop.f32.mrf.mxu0
  %v1677 = vadd.f32 0.0, %v1676
  %1678 = vdwg.mxu0
  %v1679 = vadd.f32 %v1632, %v1657
  %v1680 = vadd.f32 %v1633, %v1677
  %v1681 = vxor.u32 %v1679, 2147483648
  %v1682 = vmul.f32 %v1681, 1.442695
  %v1683 = vpow.pop %v1682
  %v1684 = vadd.f32 %v1683, 1.0
  %v1685 = vrcp.pop %v1684
  %v1686 = vmul.f32 %v1684, %v1685
  %v1687 = vsub.f32 1.0, %v1686
  %v1688 = vmul.f32 %v1685, %v1687
  %v1689 = vadd.f32 %v1685, %v1688
  %vm1690 = vweird.f32 %v1684
  %vm1691 = vweird.f32 %v1685
  %vm1692 = vmor %vm1690, %vm1691
  %v1693 = vsel %vm1692, %v1685, %v1689
  %v1694 = vand.u32 2147483647, %v1684
  %vm1695 = vcmp.eq.f32.partialorder %v1694, 8.507059e+37
  %v1696 = vand.u32 %v1684, 2147483648
  %v1697 = vor.u32 1.1754944e-38, %v1696
  %v1698 = vsel %vm1695, %v1697, %v1693
  %v1699 = vmul.f32 1.0, %v1698
  %v1700 = vtanh.pop %v1680
  %v1701 = vxor.u32 %v1680, 2147483648
  %v1702 = vmul.f32 %v1701, 1.442695
  %v1703 = vpow.pop %v1702
  %v1704 = vadd.f32 %v1703, 1.0
  %v1705 = vrcp.pop %v1704
  %v1706 = vmul.f32 %v1704, %v1705
  %v1707 = vsub.f32 1.0, %v1706
  %v1708 = vmul.f32 %v1705, %v1707
  %v1709 = vadd.f32 %v1705, %v1708
  %vm1710 = vweird.f32 %v1704
  %vm1711 = vweird.f32 %v1705
  %vm1712 = vmor %vm1710, %vm1711
  %v1713 = vsel %vm1712, %v1705, %v1709
  %v1714 = vand.u32 2147483647, %v1704
  %vm1715 = vcmp.eq.f32.partialorder %v1714, 8.507059e+37
  %v1716 = vand.u32 %v1704, 2147483648
  %v1717 = vor.u32 1.1754944e-38, %v1716
  %v1718 = vsel %vm1715, %v1717, %v1713
  %v1719 = vmul.f32 1.0, %v1718
  %v1720 = vmul.f32 %v1699, %v1623
  %v1721 = vmul.f32 %v1699, %v1700
  %1723 = vrot.lane.b32.xlu0 %v1721, 64
  %v1724 = vpop.permute.xlu0 %1723
  %v1726 = vadd.f32 %v1720, %v1724
  %v1727 = vtanh.pop %v1726
  %v1728 = vmul.f32 %v1719, %v1727
  %1729 = vst.msk [vmem:[%s7 + $0x20] sm:$0xff] %vm1315, %v1728
  %1730 = vst.msk [vmem:[%s7 + $0x18] sm:$0xff] %vm1317, %v1728
  %v1731 = vld [vmem:[#allocation2 + $0x50] sm:$0xff]
  %v1732 = vld [vmem:[#allocation2 + $0x58] sm:$0xff]
  %v1733 = vld [vmem:[#allocation2 + $0x20] sm:$0xff]
  %v1734 = vld [vmem:[#allocation2 + $0x28] sm:$0xff]
  %v1735 = vsel %vm53, %v1731, %v1733
  %v1736 = vsel %vm54, %v1732, %v1734
  %1738 = vrot.lane.b32.xlu0 %v1728, 64
  %v1739 = vpop.permute.xlu0 %1738
  %v1740 = vsel %vm222, %v1739, 0
  %1742 = vmatpush.msra.mxu0 0.0
  %1743 = vmatpush.msra.mxu0 0.0
  %1744 = vmatpush.msra.mxu0 0.0
  %1745 = vmatpush.msra.mxu0 0.0
  %1746 = vmatpush.msra.mxu0 0.0
  %1747 = vmatpush.msra.mxu0 0.0
  %1748 = vmatpush.msra.mxu0 0.0
  %1749 = vmatpush.msra.mxu0 0.0
  %1750 = vmatpush.msra.mxu0 %v1217
  %1751 = vmatpush.msra.mxu0 %v1215
  %1752 = vmatpush.msra.mxu0 %v1213
  %1753 = vmatpush.msra.mxu0 %v1211
  %1754 = vmatpush.msra.mxu0 %v1209
  %1755 = vmatpush.msra.mxu0 %v1207
  %1756 = vmatpush.msra.mxu0 %v1205
  %1757 = vmatpush.msra.mxu0 %v1203
  %1758 = vmatmul.f32.gmra.mxu0 %v1740
  %v1759 = vpop.f32.mrf.mxu0
  %v1760 = vadd.f32 0.0, %v1759
  %1761 = vdwg.mxu0
  %1762 = vmatpush.msra.mxu0 0.0
  %1763 = vmatpush.msra.mxu0 0.0
  %1764 = vmatpush.msra.mxu0 0.0
  %1765 = vmatpush.msra.mxu0 0.0
  %1766 = vmatpush.msra.mxu0 0.0
  %1767 = vmatpush.msra.mxu0 0.0
  %1768 = vmatpush.msra.mxu0 0.0
  %1769 = vmatpush.msra.mxu0 0.0
  %1770 = vmatpush.msra.mxu0 %v1218
  %1771 = vmatpush.msra.mxu0 %v1216
  %1772 = vmatpush.msra.mxu0 %v1214
  %1773 = vmatpush.msra.mxu0 %v1212
  %1774 = vmatpush.msra.mxu0 %v1210
  %1775 = vmatpush.msra.mxu0 %v1208
  %1776 = vmatpush.msra.mxu0 %v1206
  %1777 = vmatpush.msra.mxu0 %v1204
  %1778 = vmatmul.f32.gmra.mxu0 %v1740
  %v1779 = vpop.f32.mrf.mxu0
  %v1780 = vadd.f32 0.0, %v1779
  %1781 = vdwg.mxu0
  %v1782 = vadd.f32 %v1735, %v1760
  %v1783 = vadd.f32 %v1736, %v1780
  %v1784 = vxor.u32 %v1782, 2147483648
  %v1785 = vmul.f32 %v1784, 1.442695
  %v1786 = vpow.pop %v1785
  %v1787 = vadd.f32 %v1786, 1.0
  %v1788 = vrcp.pop %v1787
  %v1789 = vmul.f32 %v1787, %v1788
  %v1790 = vsub.f32 1.0, %v1789
  %v1791 = vmul.f32 %v1788, %v1790
  %v1792 = vadd.f32 %v1788, %v1791
  %vm1793 = vweird.f32 %v1787
  %vm1794 = vweird.f32 %v1788
  %vm1795 = vmor %vm1793, %vm1794
  %v1796 = vsel %vm1795, %v1788, %v1792
  %v1797 = vand.u32 2147483647, %v1787
  %vm1798 = vcmp.eq.f32.partialorder %v1797, 8.507059e+37
  %v1799 = vand.u32 %v1787, 2147483648
  %v1800 = vor.u32 1.1754944e-38, %v1799
  %v1801 = vsel %vm1798, %v1800, %v1796
  %v1802 = vmul.f32 1.0, %v1801
  %v1803 = vtanh.pop %v1783
  %v1804 = vxor.u32 %v1783, 2147483648
  %v1805 = vmul.f32 %v1804, 1.442695
  %v1806 = vpow.pop %v1805
  %v1807 = vadd.f32 %v1806, 1.0
  %v1808 = vrcp.pop %v1807
  %v1809 = vmul.f32 %v1807, %v1808
  %v1810 = vsub.f32 1.0, %v1809
  %v1811 = vmul.f32 %v1808, %v1810
  %v1812 = vadd.f32 %v1808, %v1811
  %vm1813 = vweird.f32 %v1807
  %vm1814 = vweird.f32 %v1808
  %vm1815 = vmor %vm1813, %vm1814
  %v1816 = vsel %vm1815, %v1808, %v1812
  %v1817 = vand.u32 2147483647, %v1807
  %vm1818 = vcmp.eq.f32.partialorder %v1817, 8.507059e+37
  %v1819 = vand.u32 %v1807, 2147483648
  %v1820 = vor.u32 1.1754944e-38, %v1819
  %v1821 = vsel %vm1818, %v1820, %v1816
  %v1822 = vmul.f32 1.0, %v1821
  %v1823 = vmul.f32 %v1802, %v1726
  %v1824 = vmul.f32 %v1802, %v1803
  %1826 = vrot.lane.b32.xlu0 %v1824, 64
  %v1827 = vpop.permute.xlu0 %1826
  %v1829 = vadd.f32 %v1823, %v1827
  %v1830 = vtanh.pop %v1829
  %v1831 = vmul.f32 %v1822, %v1830
  %1832 = vst.msk [vmem:[%s7 + $0x28] sm:$0xff] %vm1315, %v1831
  %1833 = vst.msk [vmem:[%s7 + $0x10] sm:$0xff] %vm1317, %v1831
  %v1834 = vld [vmem:[#allocation2 + $0x60] sm:$0xff]
  %v1835 = vld [vmem:[#allocation2 + $0x68] sm:$0xff]
  %v1836 = vld [vmem:[#allocation2 + $0x10] sm:$0xff]
  %v1837 = vld [vmem:[#allocation2 + $0x18] sm:$0xff]
  %v1838 = vsel %vm53, %v1834, %v1836
  %v1839 = vsel %vm54, %v1835, %v1837
  %1841 = vrot.lane.b32.xlu0 %v1831, 64
  %v1842 = vpop.permute.xlu0 %1841
  %v1843 = vsel %vm222, %v1842, 0
  %1845 = vmatpush.msra.mxu0 0.0
  %1846 = vmatpush.msra.mxu0 0.0
  %1847 = vmatpush.msra.mxu0 0.0
  %1848 = vmatpush.msra.mxu0 0.0
  %1849 = vmatpush.msra.mxu0 0.0
  %1850 = vmatpush.msra.mxu0 0.0
  %1851 = vmatpush.msra.mxu0 0.0
  %1852 = vmatpush.msra.mxu0 0.0
  %1853 = vmatpush.msra.mxu0 %v1217
  %1854 = vmatpush.msra.mxu0 %v1215
  %1855 = vmatpush.msra.mxu0 %v1213
  %1856 = vmatpush.msra.mxu0 %v1211
  %1857 = vmatpush.msra.mxu0 %v1209
  %1858 = vmatpush.msra.mxu0 %v1207
  %1859 = vmatpush.msra.mxu0 %v1205
  %1860 = vmatpush.msra.mxu0 %v1203
  %1861 = vmatmul.f32.gmra.mxu0 %v1843
  %v1862 = vpop.f32.mrf.mxu0
  %v1863 = vadd.f32 0.0, %v1862
  %1864 = vdwg.mxu0
  %1865 = vmatpush.msra.mxu0 0.0
  %1866 = vmatpush.msra.mxu0 0.0
  %1867 = vmatpush.msra.mxu0 0.0
  %1868 = vmatpush.msra.mxu0 0.0
  %1869 = vmatpush.msra.mxu0 0.0
  %1870 = vmatpush.msra.mxu0 0.0
  %1871 = vmatpush.msra.mxu0 0.0
  %1872 = vmatpush.msra.mxu0 0.0
  %1873 = vmatpush.msra.mxu0 %v1218
  %1874 = vmatpush.msra.mxu0 %v1216
  %1875 = vmatpush.msra.mxu0 %v1214
  %1876 = vmatpush.msra.mxu0 %v1212
  %1877 = vmatpush.msra.mxu0 %v1210
  %1878 = vmatpush.msra.mxu0 %v1208
  %1879 = vmatpush.msra.mxu0 %v1206
  %1880 = vmatpush.msra.mxu0 %v1204
  %1881 = vmatmul.f32.gmra.mxu0 %v1843
  %v1882 = vpop.f32.mrf.mxu0
  %v1883 = vadd.f32 0.0, %v1882
  %1884 = vdwg.mxu0
  %v1885 = vadd.f32 %v1838, %v1863
  %v1886 = vadd.f32 %v1839, %v1883
  %v1887 = vxor.u32 %v1885, 2147483648
  %v1888 = vmul.f32 %v1887, 1.442695
  %v1889 = vpow.pop %v1888
  %v1890 = vadd.f32 %v1889, 1.0
  %v1891 = vrcp.pop %v1890
  %v1892 = vmul.f32 %v1890, %v1891
  %v1893 = vsub.f32 1.0, %v1892
  %v1894 = vmul.f32 %v1891, %v1893
  %v1895 = vadd.f32 %v1891, %v1894
  %vm1896 = vweird.f32 %v1890
  %vm1897 = vweird.f32 %v1891
  %vm1898 = vmor %vm1896, %vm1897
  %v1899 = vsel %vm1898, %v1891, %v1895
  %v1900 = vand.u32 2147483647, %v1890
  %vm1901 = vcmp.eq.f32.partialorder %v1900, 8.507059e+37
  %v1902 = vand.u32 %v1890, 2147483648
  %v1903 = vor.u32 1.1754944e-38, %v1902
  %v1904 = vsel %vm1901, %v1903, %v1899
  %v1905 = vmul.f32 1.0, %v1904
  %v1906 = vtanh.pop %v1886
  %v1907 = vxor.u32 %v1886, 2147483648
  %v1908 = vmul.f32 %v1907, 1.442695
  %v1909 = vpow.pop %v1908
  %v1910 = vadd.f32 %v1909, 1.0
  %v1911 = vrcp.pop %v1910
  %v1912 = vmul.f32 %v1910, %v1911
  %v1913 = vsub.f32 1.0, %v1912
  %v1914 = vmul.f32 %v1911, %v1913
  %v1915 = vadd.f32 %v1911, %v1914
  %vm1916 = vweird.f32 %v1910
  %vm1917 = vweird.f32 %v1911
  %vm1918 = vmor %vm1916, %vm1917
  %v1919 = vsel %vm1918, %v1911, %v1915
  %v1920 = vand.u32 2147483647, %v1910
  %vm1921 = vcmp.eq.f32.partialorder %v1920, 8.507059e+37
  %v1922 = vand.u32 %v1910, 2147483648
  %v1923 = vor.u32 1.1754944e-38, %v1922
  %v1924 = vsel %vm1921, %v1923, %v1919
  %v1925 = vmul.f32 1.0, %v1924
  %v1926 = vmul.f32 %v1905, %v1829
  %v1927 = vmul.f32 %v1905, %v1906
  %1929 = vrot.lane.b32.xlu0 %v1927, 64
  %v1930 = vpop.permute.xlu0 %1929
  %v1932 = vadd.f32 %v1926, %v1930
  %v1933 = vtanh.pop %v1932
  %v1934 = vmul.f32 %v1925, %v1933
  %1935 = vst.msk [vmem:[%s7 + $0x30] sm:$0xff] %vm1315, %v1934
  %1936 = vst.msk [vmem:[%s7 + $0x8] sm:$0xff] %vm1317, %v1934
  %v1937 = vld [vmem:[#allocation2 + $0x70] sm:$0xff]
  %v1938 = vld [vmem:[#allocation2 + $0x78] sm:$0xff]
  %v1939 = vld [vmem:[#allocation2] sm:$0xff]
  %v1940 = vld [vmem:[#allocation2 + $0x8] sm:$0xff]
  %v1941 = vsel %vm53, %v1937, %v1939
  %v1942 = vsel %vm54, %v1938, %v1940
  %1944 = vrot.lane.b32.xlu0 %v1934, 64
  %v1945 = vpop.permute.xlu0 %1944
  %v1946 = vsel %vm222, %v1945, 0
  %1948 = vmatpush.msra.mxu0 0.0
  %1949 = vmatpush.msra.mxu0 0.0
  %1950 = vmatpush.msra.mxu0 0.0
  %1951 = vmatpush.msra.mxu0 0.0
  %1952 = vmatpush.msra.mxu0 0.0
  %1953 = vmatpush.msra.mxu0 0.0
  %1954 = vmatpush.msra.mxu0 0.0
  %1955 = vmatpush.msra.mxu0 0.0
  %1956 = vmatpush.msra.mxu0 %v1217
  %1957 = vmatpush.msra.mxu0 %v1215
  %1958 = vmatpush.msra.mxu0 %v1213
  %1959 = vmatpush.msra.mxu0 %v1211
  %1960 = vmatpush.msra.mxu0 %v1209
  %1961 = vmatpush.msra.mxu0 %v1207
  %1962 = vmatpush.msra.mxu0 %v1205
  %1963 = vmatpush.msra.mxu0 %v1203
  %1964 = vmatmul.f32.gmra.mxu0 %v1946
  %v1965 = vpop.f32.mrf.mxu0
  %v1966 = vadd.f32 0.0, %v1965
  %1967 = vdwg.mxu0
  %1968 = vmatpush.msra.mxu0 0.0
  %1969 = vmatpush.msra.mxu0 0.0
  %1970 = vmatpush.msra.mxu0 0.0
  %1971 = vmatpush.msra.mxu0 0.0
  %1972 = vmatpush.msra.mxu0 0.0
  %1973 = vmatpush.msra.mxu0 0.0
  %1974 = vmatpush.msra.mxu0 0.0
  %1975 = vmatpush.msra.mxu0 0.0
  %1976 = vmatpush.msra.mxu0 %v1218
  %1977 = vmatpush.msra.mxu0 %v1216
  %1978 = vmatpush.msra.mxu0 %v1214
  %1979 = vmatpush.msra.mxu0 %v1212
  %1980 = vmatpush.msra.mxu0 %v1210
  %1981 = vmatpush.msra.mxu0 %v1208
  %1982 = vmatpush.msra.mxu0 %v1206
  %1983 = vmatpush.msra.mxu0 %v1204
  %1984 = vmatmul.f32.gmra.mxu0 %v1946
  %v1985 = vpop.f32.mrf.mxu0
  %v1986 = vadd.f32 0.0, %v1985
  %1987 = vdwg.mxu0
  %v1988 = vadd.f32 %v1941, %v1966
  %v1989 = vadd.f32 %v1942, %v1986
  %v1990 = vxor.u32 %v1988, 2147483648
  %v1991 = vmul.f32 %v1990, 1.442695
  %v1992 = vpow.pop %v1991
  %v1993 = vadd.f32 %v1992, 1.0
  %v1994 = vrcp.pop %v1993
  %v1995 = vmul.f32 %v1993, %v1994
  %v1996 = vsub.f32 1.0, %v1995
  %v1997 = vmul.f32 %v1994, %v1996
  %v1998 = vadd.f32 %v1994, %v1997
  %vm1999 = vweird.f32 %v1993
  %vm2000 = vweird.f32 %v1994
  %vm2001 = vmor %vm1999, %vm2000
  %v2002 = vsel %vm2001, %v1994, %v1998
  %v2003 = vand.u32 2147483647, %v1993
  %vm2004 = vcmp.eq.f32.partialorder %v2003, 8.507059e+37
  %v2005 = vand.u32 %v1993, 2147483648
  %v2006 = vor.u32 1.1754944e-38, %v2005
  %v2007 = vsel %vm2004, %v2006, %v2002
  %v2008 = vmul.f32 1.0, %v2007
  %v2009 = vtanh.pop %v1989
  %v2010 = vxor.u32 %v1989, 2147483648
  %v2011 = vmul.f32 %v2010, 1.442695
  %v2012 = vpow.pop %v2011
  %v2013 = vadd.f32 %v2012, 1.0
  %v2014 = vrcp.pop %v2013
  %v2015 = vmul.f32 %v2013, %v2014
  %v2016 = vsub.f32 1.0, %v2015
  %v2017 = vmul.f32 %v2014, %v2016
  %v2018 = vadd.f32 %v2014, %v2017
  %vm2019 = vweird.f32 %v2013
  %vm2020 = vweird.f32 %v2014
  %vm2021 = vmor %vm2019, %vm2020
  %v2022 = vsel %vm2021, %v2014, %v2018
  %v2023 = vand.u32 2147483647, %v2013
  %vm2024 = vcmp.eq.f32.partialorder %v2023, 8.507059e+37
  %v2025 = vand.u32 %v2013, 2147483648
  %v2026 = vor.u32 1.1754944e-38, %v2025
  %v2027 = vsel %vm2024, %v2026, %v2022
  %v2028 = vmul.f32 1.0, %v2027
  %v2029 = vmul.f32 %v2008, %v1932
  %v2030 = vmul.f32 %v2008, %v2009
  %2032 = vrot.lane.b32.xlu0 %v2030, 64
  %v2033 = vpop.permute.xlu0 %2032
  %v2035 = vadd.f32 %v2029, %v2033
  %v2036 = vtanh.pop %v2035
  %v2037 = vmul.f32 %v2028, %v2036
  %2038 = vst.msk [vmem:[%s7 + $0x38] sm:$0xff] %vm1315, %v2037
  %2039 = vst.msk [vmem:[%s7] sm:$0xff] %vm1317, %v2037
  %v2040 = vld [vmem:[#allocation3] sm:$0xff]
  %v2041 = vld [vmem:[#allocation3 + $0x8] sm:$0xff]
  %v2042 = vld [vmem:[#allocation3 + $0x10] sm:$0xff]
  %v2043 = vld [vmem:[#allocation3 + $0x18] sm:$0xff]
  %v2044 = vld [vmem:[#allocation3 + $0x20] sm:$0xff]
  %v2045 = vld [vmem:[#allocation3 + $0x28] sm:$0xff]
  %v2046 = vld [vmem:[#allocation3 + $0x30] sm:$0xff]
  %v2047 = vld [vmem:[#allocation3 + $0x38] sm:$0xff]
  %2048 = vst.msk [vmem:[%s7] sm:$0xff] %vm222, %v2040
  %2049 = vst.msk [vmem:[%s7 + $0x8] sm:$0xff] %vm222, %v2041
  %2050 = vst.msk [vmem:[%s7 + $0x10] sm:$0xff] %vm222, %v2042
  %2051 = vst.msk [vmem:[%s7 + $0x18] sm:$0xff] %vm222, %v2043
  %2052 = vst.msk [vmem:[%s7 + $0x20] sm:$0xff] %vm222, %v2044
  %2053 = vst.msk [vmem:[%s7 + $0x28] sm:$0xff] %vm222, %v2045
  %2054 = vst.msk [vmem:[%s7 + $0x30] sm:$0xff] %vm222, %v2046
  %2055 = vst.msk [vmem:[%s7 + $0x38] sm:$0xff] %vm222, %v2047
  // Predicated region
  $region30: #{qua_forward.6} parent=0 // pred_check
    _
  $region31: #{qua_forward.6} parent=0 // pred_check_branch
    %2057 = sbr.rel (0) target = $region33
  $region32: #{qua_forward.6} parent=0 // pred_region
    _
  $region33: #{qua_forward.6} parent=0 // pred_fallthru
    _
  // Predicated region
  $region34: #{qua_forward.6} parent=0 // pred_check
    _
  $region35: #{qua_forward.6} parent=0 // pred_check_branch
    %2059 = sbr.rel (0) target = $region37
  $region36: #{qua_forward.6} parent=0 // pred_region
    _
  $region37: #{qua_forward.6} parent=0 // pred_fallthru
    _

// kernel: qua_forward.5
$region0: #{qua_forward.5}
  #allocation0 [shape = 'u32[]', space=smem, size = 0x4, offset = 0x4, fixed_abs, tag = 'smem constant byte address 0x4 - core index']
  #allocation1 [shape = 'u32[72,128]{1,0:T(1,128)}', space=vmem, size = 0x9000, scoped, tag = 'internal scratch']
  #allocation2 [shape = 'f32[128,256]{1,0:T(8,128)}', space=vmem, size = 0x20000, scoped, tag = 'scratch operand']
  #allocation3 [shape = 'f32[128,64]{1,0:T(8,128)}', space=vmem, size = 0x10000, scoped, tag = 'scratch operand']
  %s0 = inlined_call_operand.vmem [shape: f32[128,64], index: 0, kind: input, shape index: {}]
  %s1 = inlined_call_operand.vmem [shape: f32[64,256], index: 1, kind: input, shape index: {}]
  %s2 = inlined_call_operand.vmem [shape: f32[64,256], index: 2, kind: input, shape index: {}]
  %s3 = inlined_call_operand.vmem [shape: f32[1,256], index: 3, kind: input, shape index: {}]
  %s4 = inlined_call_operand.vmem [shape: f32[64,256], index: 4, kind: input, shape index: {}]
  %s5 = inlined_call_operand.vmem [shape: f32[64,256], index: 5, kind: input, shape index: {}]
  %s6 = inlined_call_operand.vmem [shape: f32[1,256], index: 6, kind: input, shape index: {}]
  %s7 = inlined_call_operand.vmem [shape: f32[128,128], index: 7, kind: output, shape index: {}]
  %s8 = sld [smem:[#allocation0]]
  $region38: #{qua_forward.5} parent=0
    _
  %s10 = ssub.s32 1, %s8
  %s11 = scalar_select 0, %s10, %s8
  // Predicated region
  $region2: #{qua_forward.5} parent=0 // pred_check
    _
  $region3: #{qua_forward.5} parent=0 // pred_check_branch
    %13 = sbr.rel (0) target = $region5
  $region4: #{qua_forward.5} parent=0 // pred_region
    _
  $region5: #{qua_forward.5} parent=0 // pred_fallthru
    _
  // Predicated region
  $region6: #{qua_forward.5} parent=0 // pred_check
    _
  $region7: #{qua_forward.5} parent=0 // pred_check_branch
    %15 = sbr.rel (0) target = $region9
  $region8: #{qua_forward.5} parent=0 // pred_region
    _
  $region9: #{qua_forward.5} parent=0 // pred_fallthru
    _
  // Predicated region
  $region10: #{qua_forward.5} parent=0 // pred_check
    _
  $region11: #{qua_forward.5} parent=0 // pred_check_branch
    %17 = sbr.rel (0) target = $region13
  $region12: #{qua_forward.5} parent=0 // pred_region
    _
  $region13: #{qua_forward.5} parent=0 // pred_fallthru
    _
  // Predicated region
  $region14: #{qua_forward.5} parent=0 // pred_check
    _
  $region15: #{qua_forward.5} parent=0 // pred_check_branch
    %19 = sbr.rel (0) target = $region17
  $region16: #{qua_forward.5} parent=0 // pred_region
    _
  $region17: #{qua_forward.5} parent=0 // pred_fallthru
    _
  // Predicated region
  $region18: #{qua_forward.5} parent=0 // pred_check
    _
  $region19: #{qua_forward.5} parent=0 // pred_check_branch
    %21 = sbr.rel (0) target = $region21
  $region20: #{qua_forward.5} parent=0 // pred_region
    _
  $region21: #{qua_forward.5} parent=0 // pred_fallthru
    _
  // Predicated region
  $region22: #{qua_forward.5} parent=0 // pred_check
    _
  $region23: #{qua_forward.5} parent=0 // pred_check_branch
    %23 = sbr.rel (0) target = $region25
  $region24: #{qua_forward.5} parent=0 // pred_region
    _
  $region25: #{qua_forward.5} parent=0 // pred_fallthru
    _
  // Predicated region
  $region26: #{qua_forward.5} parent=0 // pred_check
    _
  $region27: #{qua_forward.5} parent=0 // pred_check_branch
    %25 = sbr.rel (0) target = $region29
  $region28: #{qua_forward.5} parent=0 // pred_region
    _
  $region29: #{qua_forward.5} parent=0 // pred_fallthru
    _
  %v26 = vlaneseq
  %v27 = vand.u32 %v26, 127
  %v28 = vadd.s32 %v27, 128
  %vm29 = vcmp.lt.s32.totalorder %v27, 0
  %v30 = vsub.s32 0, %v27
  %v31 = vsel %vm29, %v30, %v27
  %v32 = vshrl.u32 %v31, 6
  %v33 = vand.u32 %v31, 63
  %v34 = vsub.s32 0, %v33
  %v35 = vsel %vm29, %v34, %v33
  %vm36 = vcmp.lt.s32.totalorder %v28, 0
  %v37 = vsub.s32 0, %v28
  %v38 = vsel %vm36, %v37, %v28
  %v39 = vshrl.u32 %v38, 6
  %v40 = vand.u32 %v38, 63
  %v41 = vsub.s32 0, %v40
  %v42 = vsel %vm36, %v41, %v40
  %vm43 = vcmp.ne.s32.totalorder %v35, 0
  %vm44 = vcmp.ne.s32.totalorder %v42, 0
  %vm45 = vcmp.lt.s32.totalorder %v35, 0
  %vm46 = vcmp.lt.s32.totalorder %v42, 0
  %vm47 = vmand %vm45, %vm43
  %vm48 = vmand %vm46, %vm44
  %v49 = vadd.s32 %v35, 64
  %v50 = vadd.s32 %v42, 64
  %v51 = vsel %vm47, %v49, %v35
  %v52 = vsel %vm48, %v50, %v42
  %vm53 = vcmp.lt.s32.totalorder %v51, 32
  %vm54 = vcmp.lt.s32.totalorder %v52, 32
  %v55 = vld [vmem:[%s0] sm:$0xff]
  %v56 = vld [vmem:[%s0 + $0x8] sm:$0xff]
  %v57 = vld [vmem:[%s0 + $0x10] sm:$0xff]
  %v58 = vld [vmem:[%s0 + $0x18] sm:$0xff]
  %v59 = vld [vmem:[%s0 + $0x20] sm:$0xff]
  %v60 = vld [vmem:[%s0 + $0x28] sm:$0xff]
  %v61 = vld [vmem:[%s0 + $0x30] sm:$0xff]
  %v62 = vld [vmem:[%s0 + $0x38] sm:$0xff]
  %v63 = vld [vmem:[%s0 + $0x40] sm:$0xff]
  %v64 = vld [vmem:[%s0 + $0x48] sm:$0xff]
  %v65 = vld [vmem:[%s0 + $0x50] sm:$0xff]
  %v66 = vld [vmem:[%s0 + $0x58] sm:$0xff]
  %v67 = vld [vmem:[%s0 + $0x60] sm:$0xff]
  %v68 = vld [vmem:[%s0 + $0x68] sm:$0xff]
  %v69 = vld [vmem:[%s0 + $0x70] sm:$0xff]
  %v70 = vld [vmem:[%s0 + $0x78] sm:$0xff]
  %v71 = vld [vmem:[%s1] sm:$0xff]
  %v72 = vld [vmem:[%s1 + $0x8] sm:$0xff]
  %v73 = vld [vmem:[%s1 + $0x10] sm:$0xff]
  %v74 = vld [vmem:[%s1 + $0x18] sm:$0xff]
  %v75 = vld [vmem:[%s1 + $0x20] sm:$0xff]
  %v76 = vld [vmem:[%s1 + $0x28] sm:$0xff]
  %v77 = vld [vmem:[%s1 + $0x30] sm:$0xff]
  %v78 = vld [vmem:[%s1 + $0x38] sm:$0xff]
  %v79 = vld [vmem:[%s1 + $0x40] sm:$0xff]
  %v80 = vld [vmem:[%s1 + $0x48] sm:$0xff]
  %v81 = vld [vmem:[%s1 + $0x50] sm:$0xff]
  %v82 = vld [vmem:[%s1 + $0x58] sm:$0xff]
  %v83 = vld [vmem:[%s1 + $0x60] sm:$0xff]
  %v84 = vld [vmem:[%s1 + $0x68] sm:$0xff]
  %v85 = vld [vmem:[%s1 + $0x70] sm:$0xff]
  %v86 = vld [vmem:[%s1 + $0x78] sm:$0xff]
  %v87 = vld [vmem:[%s3] sm:$0x3]
  %v89 = vperm.slane %v87, 0
  %v90 = vperm.slane %v87, 1
  %vm93 = vcmask 523264
  %v95 = vsel %vm93, %v55, 0
  %v98 = vsel %vm93, %v56, 0
  %v101 = vsel %vm93, %v57, 0
  %v104 = vsel %vm93, %v58, 0
  %v107 = vsel %vm93, %v59, 0
  %v110 = vsel %vm93, %v60, 0
  %v113 = vsel %vm93, %v61, 0
  %v116 = vsel %vm93, %v62, 0
  %v119 = vsel %vm93, %v63, 0
  %v122 = vsel %vm93, %v64, 0
  %v125 = vsel %vm93, %v65, 0
  %v128 = vsel %vm93, %v66, 0
  %v131 = vsel %vm93, %v67, 0
  %v134 = vsel %vm93, %v68, 0
  %v137 = vsel %vm93, %v69, 0
  %v140 = vsel %vm93, %v70, 0
  %142 = vmatpush.msra.mxu0 0.0
  %143 = vmatpush.msra.mxu0 0.0
  %144 = vmatpush.msra.mxu0 0.0
  %145 = vmatpush.msra.mxu0 0.0
  %146 = vmatpush.msra.mxu0 0.0
  %147 = vmatpush.msra.mxu0 0.0
  %148 = vmatpush.msra.mxu0 0.0
  %149 = vmatpush.msra.mxu0 0.0
  %150 = vmatpush.msra.mxu0 %v85
  %151 = vmatpush.msra.mxu0 %v83
  %152 = vmatpush.msra.mxu0 %v81
  %153 = vmatpush.msra.mxu0 %v79
  %154 = vmatpush.msra.mxu0 %v77
  %155 = vmatpush.msra.mxu0 %v75
  %156 = vmatpush.msra.mxu0 %v73
  %157 = vmatpush.msra.mxu0 %v71
  %158 = vmatmul.f32.gmra.mxu0 %v95
  %v159 = vpop.f32.mrf.mxu0
  %v160 = vadd.f32 %v89, %v159
  %161 = vmatmul.f32.gmra.mxu0 %v98
  %v162 = vpop.f32.mrf.mxu0
  %v163 = vadd.f32 %v89, %v162
  %164 = vmatmul.f32.gmra.mxu0 %v101
  %v165 = vpop.f32.mrf.mxu0
  %v166 = vadd.f32 %v89, %v165
  %167 = vmatmul.f32.gmra.mxu0 %v104
  %v168 = vpop.f32.mrf.mxu0
  %v169 = vadd.f32 %v89, %v168
  %170 = vmatmul.f32.gmra.mxu0 %v107
  %v171 = vpop.f32.mrf.mxu0
  %v172 = vadd.f32 %v89, %v171
  %173 = vmatmul.f32.gmra.mxu0 %v110
  %v174 = vpop.f32.mrf.mxu0
  %v175 = vadd.f32 %v89, %v174
  %176 = vmatmul.f32.gmra.mxu0 %v113
  %v177 = vpop.f32.mrf.mxu0
  %v178 = vadd.f32 %v89, %v177
  %179 = vmatmul.f32.gmra.mxu0 %v116
  %v180 = vpop.f32.mrf.mxu0
  %v181 = vadd.f32 %v89, %v180
  %182 = vmatmul.f32.gmra.mxu0 %v119
  %v183 = vpop.f32.mrf.mxu0
  %v184 = vadd.f32 %v89, %v183
  %185 = vmatmul.f32.gmra.mxu0 %v122
  %v186 = vpop.f32.mrf.mxu0
  %v187 = vadd.f32 %v89, %v186
  %188 = vmatmul.f32.gmra.mxu0 %v125
  %v189 = vpop.f32.mrf.mxu0
  %v190 = vadd.f32 %v89, %v189
  %191 = vmatmul.f32.gmra.mxu0 %v128
  %v192 = vpop.f32.mrf.mxu0
  %v193 = vadd.f32 %v89, %v192
  %194 = vmatmul.f32.gmra.mxu0 %v131
  %v195 = vpop.f32.mrf.mxu0
  %v196 = vadd.f32 %v89, %v195
  %197 = vmatmul.f32.gmra.mxu0 %v134
  %v198 = vpop.f32.mrf.mxu0
  %v199 = vadd.f32 %v89, %v198
  %200 = vmatmul.f32.gmra.mxu0 %v137
  %v201 = vpop.f32.mrf.mxu0
  %v202 = vadd.f32 %v89, %v201
  %203 = vmatmul.f32.gmra.mxu0 %v140
  %v204 = vpop.f32.mrf.mxu0
  %v205 = vadd.f32 %v89, %v204
  %206 = vdwg.mxu0
  %207 = vmatpush.msra.mxu0 0.0
  %208 = vmatpush.msra.mxu0 0.0
  %209 = vmatpush.msra.mxu0 0.0
  %210 = vmatpush.msra.mxu0 0.0
  %211 = vmatpush.msra.mxu0 0.0
  %212 = vmatpush.msra.mxu0 0.0
  %213 = vmatpush.msra.mxu0 0.0
  %214 = vmatpush.msra.mxu0 0.0
  %215 = vmatpush.msra.mxu0 %v86
  %216 = vmatpush.msra.mxu0 %v84
  %217 = vmatpush.msra.mxu0 %v82
  %218 = vmatpush.msra.mxu0 %v80
  %219 = vmatpush.msra.mxu0 %v78
  %220 = vmatpush.msra.mxu0 %v76
  %221 = vmatpush.msra.mxu0 %v74
  %222 = vmatpush.msra.mxu0 %v72
  %223 = vmatmul.f32.gmra.mxu0 %v95
  %v224 = vpop.f32.mrf.mxu0
  %v225 = vadd.f32 %v90, %v224
  %226 = vmatmul.f32.gmra.mxu0 %v98
  %v227 = vpop.f32.mrf.mxu0
  %v228 = vadd.f32 %v90, %v227
  %229 = vmatmul.f32.gmra.mxu0 %v101
  %v230 = vpop.f32.mrf.mxu0
  %v231 = vadd.f32 %v90, %v230
  %232 = vmatmul.f32.gmra.mxu0 %v104
  %v233 = vpop.f32.mrf.mxu0
  %v234 = vadd.f32 %v90, %v233
  %235 = vmatmul.f32.gmra.mxu0 %v107
  %v236 = vpop.f32.mrf.mxu0
  %v237 = vadd.f32 %v90, %v236
  %238 = vmatmul.f32.gmra.mxu0 %v110
  %v239 = vpop.f32.mrf.mxu0
  %v240 = vadd.f32 %v90, %v239
  %241 = vmatmul.f32.gmra.mxu0 %v113
  %v242 = vpop.f32.mrf.mxu0
  %v243 = vadd.f32 %v90, %v242
  %244 = vmatmul.f32.gmra.mxu0 %v116
  %v245 = vpop.f32.mrf.mxu0
  %v246 = vadd.f32 %v90, %v245
  %247 = vmatmul.f32.gmra.mxu0 %v119
  %v248 = vpop.f32.mrf.mxu0
  %v249 = vadd.f32 %v90, %v248
  %250 = vmatmul.f32.gmra.mxu0 %v122
  %v251 = vpop.f32.mrf.mxu0
  %v252 = vadd.f32 %v90, %v251
  %253 = vmatmul.f32.gmra.mxu0 %v125
  %v254 = vpop.f32.mrf.mxu0
  %v255 = vadd.f32 %v90, %v254
  %256 = vmatmul.f32.gmra.mxu0 %v128
  %v257 = vpop.f32.mrf.mxu0
  %v258 = vadd.f32 %v90, %v257
  %259 = vmatmul.f32.gmra.mxu0 %v131
  %v260 = vpop.f32.mrf.mxu0
  %v261 = vadd.f32 %v90, %v260
  %262 = vmatmul.f32.gmra.mxu0 %v134
  %v263 = vpop.f32.mrf.mxu0
  %v264 = vadd.f32 %v90, %v263
  %265 = vmatmul.f32.gmra.mxu0 %v137
  %v266 = vpop.f32.mrf.mxu0
  %v267 = vadd.f32 %v90, %v266
  %268 = vmatmul.f32.gmra.mxu0 %v140
  %v269 = vpop.f32.mrf.mxu0
  %v270 = vadd.f32 %v90, %v269
  %271 = vdwg.mxu0
  %272 = vst [vmem:[#allocation2] sm:$0xff] %v160
  %273 = vst [vmem:[#allocation2 + $0x8] sm:$0xff] %v225
  %274 = vst [vmem:[#allocation2 + $0x10] sm:$0xff] %v163
  %275 = vst [vmem:[#allocation2 + $0x18] sm:$0xff] %v228
  %276 = vst [vmem:[#allocation2 + $0x20] sm:$0xff] %v166
  %277 = vst [vmem:[#allocation2 + $0x28] sm:$0xff] %v231
  %278 = vst [vmem:[#allocation2 + $0x30] sm:$0xff] %v169
  %279 = vst [vmem:[#allocation2 + $0x38] sm:$0xff] %v234
  %280 = vst [vmem:[#allocation2 + $0x40] sm:$0xff] %v172
  %281 = vst [vmem:[#allocation2 + $0x48] sm:$0xff] %v237
  %282 = vst [vmem:[#allocation2 + $0x50] sm:$0xff] %v175
  %283 = vst [vmem:[#allocation2 + $0x58] sm:$0xff] %v240
  %284 = vst [vmem:[#allocation2 + $0x60] sm:$0xff] %v178
  %285 = vst [vmem:[#allocation2 + $0x68] sm:$0xff] %v243
  %286 = vst [vmem:[#allocation2 + $0x70] sm:$0xff] %v181
  %287 = vst [vmem:[#allocation2 + $0x78] sm:$0xff] %v246
  %288 = vst [vmem:[#allocation2 + $0x80] sm:$0xff] %v184
  %289 = vst [vmem:[#allocation2 + $0x88] sm:$0xff] %v249
  %290 = vst [vmem:[#allocation2 + $0x90] sm:$0xff] %v187
  %291 = vst [vmem:[#allocation2 + $0x98] sm:$0xff] %v252
  %292 = vst [vmem:[#allocation2 + $0xa0] sm:$0xff] %v190
  %293 = vst [vmem:[#allocation2 + $0xa8] sm:$0xff] %v255
  %294 = vst [vmem:[#allocation2 + $0xb0] sm:$0xff] %v193
  %295 = vst [vmem:[#allocation2 + $0xb8] sm:$0xff] %v258
  %296 = vst [vmem:[#allocation2 + $0xc0] sm:$0xff] %v196
  %297 = vst [vmem:[#allocation2 + $0xc8] sm:$0xff] %v261
  %298 = vst [vmem:[#allocation2 + $0xd0] sm:$0xff] %v199
  %299 = vst [vmem:[#allocation2 + $0xd8] sm:$0xff] %v264
  %300 = vst [vmem:[#allocation2 + $0xe0] sm:$0xff] %v202
  %301 = vst [vmem:[#allocation2 + $0xe8] sm:$0xff] %v267
  %302 = vst [vmem:[#allocation2 + $0xf0] sm:$0xff] %v205
  %303 = vst [vmem:[#allocation2 + $0xf8] sm:$0xff] %v270
  %v304 = vld [vmem:[%s2] sm:$0xff]
  %v305 = vld [vmem:[%s2 + $0x8] sm:$0xff]
  %v306 = vld [vmem:[%s2 + $0x10] sm:$0xff]
  %v307 = vld [vmem:[%s2 + $0x18] sm:$0xff]
  %v308 = vld [vmem:[%s2 + $0x20] sm:$0xff]
  %v309 = vld [vmem:[%s2 + $0x28] sm:$0xff]
  %v310 = vld [vmem:[%s2 + $0x30] sm:$0xff]
  %v311 = vld [vmem:[%s2 + $0x38] sm:$0xff]
  %v312 = vld [vmem:[%s2 + $0x40] sm:$0xff]
  %v313 = vld [vmem:[%s2 + $0x48] sm:$0xff]
  %v314 = vld [vmem:[%s2 + $0x50] sm:$0xff]
  %v315 = vld [vmem:[%s2 + $0x58] sm:$0xff]
  %v316 = vld [vmem:[%s2 + $0x60] sm:$0xff]
  %v317 = vld [vmem:[%s2 + $0x68] sm:$0xff]
  %v318 = vld [vmem:[%s2 + $0x70] sm:$0xff]
  %v319 = vld [vmem:[%s2 + $0x78] sm:$0xff]
  %v320 = vld [vmem:[#allocation2] sm:$0xff]
  %v321 = vld [vmem:[#allocation2 + $0x8] sm:$0xff]
  %v322 = vld [vmem:[#allocation2 + $0xf0] sm:$0xff]
  %v323 = vld [vmem:[#allocation2 + $0xf8] sm:$0xff]
  %v324 = vsel %vm53, %v320, %v322
  %v325 = vsel %vm54, %v321, %v323
  %v327 = vsel %vm93, 0.0, 0
  %329 = vmatpush.msra.mxu0 0.0
  %330 = vmatpush.msra.mxu0 0.0
  %331 = vmatpush.msra.mxu0 0.0
  %332 = vmatpush.msra.mxu0 0.0
  %333 = vmatpush.msra.mxu0 0.0
  %334 = vmatpush.msra.mxu0 0.0
  %335 = vmatpush.msra.mxu0 0.0
  %336 = vmatpush.msra.mxu0 0.0
  %337 = vmatpush.msra.mxu0 %v318
  %338 = vmatpush.msra.mxu0 %v316
  %339 = vmatpush.msra.mxu0 %v314
  %340 = vmatpush.msra.mxu0 %v312
  %341 = vmatpush.msra.mxu0 %v310
  %342 = vmatpush.msra.mxu0 %v308
  %343 = vmatpush.msra.mxu0 %v306
  %344 = vmatpush.msra.mxu0 %v304
  %345 = vmatmul.f32.gmra.mxu0 %v327
  %v346 = vpop.f32.mrf.mxu0
  %v347 = vadd.f32 0.0, %v346
  %348 = vdwg.mxu0
  %349 = vmatpush.msra.mxu0 0.0
  %350 = vmatpush.msra.mxu0 0.0
  %351 = vmatpush.msra.mxu0 0.0
  %352 = vmatpush.msra.mxu0 0.0
  %353 = vmatpush.msra.mxu0 0.0
  %354 = vmatpush.msra.mxu0 0.0
  %355 = vmatpush.msra.mxu0 0.0
  %356 = vmatpush.msra.mxu0 0.0
  %357 = vmatpush.msra.mxu0 %v319
  %358 = vmatpush.msra.mxu0 %v317
  %359 = vmatpush.msra.mxu0 %v315
  %360 = vmatpush.msra.mxu0 %v313
  %361 = vmatpush.msra.mxu0 %v311
  %362 = vmatpush.msra.mxu0 %v309
  %363 = vmatpush.msra.mxu0 %v307
  %364 = vmatpush.msra.mxu0 %v305
  %365 = vmatmul.f32.gmra.mxu0 %v327
  %v366 = vpop.f32.mrf.mxu0
  %v367 = vadd.f32 0.0, %v366
  %368 = vdwg.mxu0
  %v369 = vadd.f32 %v324, %v347
  %v370 = vadd.f32 %v325, %v367
  %v371 = vxor.u32 %v369, 2147483648
  %v372 = vmul.f32 %v371, 1.442695
  %v373 = vpow.pop %v372
  %v374 = vadd.f32 %v373, 1.0
  %v375 = vrcp.pop %v374
  %v376 = vmul.f32 %v374, %v375
  %v377 = vsub.f32 1.0, %v376
  %v378 = vmul.f32 %v375, %v377
  %v379 = vadd.f32 %v375, %v378
  %vm380 = vweird.f32 %v374
  %vm381 = vweird.f32 %v375
  %vm382 = vmor %vm380, %vm381
  %v383 = vsel %vm382, %v375, %v379
  %v384 = vand.u32 2147483647, %v374
  %vm385 = vcmp.eq.f32.partialorder %v384, 8.507059e+37
  %v386 = vand.u32 %v374, 2147483648
  %v387 = vor.u32 1.1754944e-38, %v386
  %v388 = vsel %vm385, %v387, %v383
  %v389 = vmul.f32 1.0, %v388
  %v390 = vtanh.pop %v370
  %v391 = vxor.u32 %v370, 2147483648
  %v392 = vmul.f32 %v391, 1.442695
  %v393 = vpow.pop %v392
  %v394 = vadd.f32 %v393, 1.0
  %v395 = vrcp.pop %v394
  %v396 = vmul.f32 %v394, %v395
  %v397 = vsub.f32 1.0, %v396
  %v398 = vmul.f32 %v395, %v397
  %v399 = vadd.f32 %v395, %v398
  %vm400 = vweird.f32 %v394
  %vm401 = vweird.f32 %v395
  %vm402 = vmor %vm400, %vm401
  %v403 = vsel %vm402, %v395, %v399
  %v404 = vand.u32 2147483647, %v394
  %vm405 = vcmp.eq.f32.partialorder %v404, 8.507059e+37
  %v406 = vand.u32 %v394, 2147483648
  %v407 = vor.u32 1.1754944e-38, %v406
  %v408 = vsel %vm405, %v407, %v403
  %v409 = vmul.f32 1.0, %v408
  %v410 = vmul.f32 %v389, 0.0
  %v411 = vmul.f32 %v389, %v390
  %413 = vrot.lane.b32.xlu0 %v411, 64
  %v414 = vpop.permute.xlu0 %413
  %v416 = vadd.f32 %v410, %v414
  %v417 = vtanh.pop %v416
  %v418 = vmul.f32 %v409, %v417
  %420 = vrot.lane.b32.xlu0 %v418, 64
  %v421 = vpop.permute.xlu0 %420
  %vm423 = vcmask 261120
  %424 = vst.msk [vmem:[#allocation3] sm:$0xff] %vm423, %v421
  %vm425 = vcmask 523520
  %426 = vst.msk [vmem:[#allocation3 + $0x78] sm:$0xff] %vm425, %v421
  %v427 = vld [vmem:[#allocation2 + $0x10] sm:$0xff]
  %v428 = vld [vmem:[#allocation2 + $0x18] sm:$0xff]
  %v429 = vld [vmem:[#allocation2 + $0xe0] sm:$0xff]
  %v430 = vld [vmem:[#allocation2 + $0xe8] sm:$0xff]
  %v431 = vsel %vm53, %v427, %v429
  %v432 = vsel %vm54, %v428, %v430
  %v433 = vsel %vm93, %v421, 0
  %435 = vmatpush.msra.mxu0 0.0
  %436 = vmatpush.msra.mxu0 0.0
  %437 = vmatpush.msra.mxu0 0.0
  %438 = vmatpush.msra.mxu0 0.0
  %439 = vmatpush.msra.mxu0 0.0
  %440 = vmatpush.msra.mxu0 0.0
  %441 = vmatpush.msra.mxu0 0.0
  %442 = vmatpush.msra.mxu0 0.0
  %443 = vmatpush.msra.mxu0 %v318
  %444 = vmatpush.msra.mxu0 %v316
  %445 = vmatpush.msra.mxu0 %v314
  %446 = vmatpush.msra.mxu0 %v312
  %447 = vmatpush.msra.mxu0 %v310
  %448 = vmatpush.msra.mxu0 %v308
  %449 = vmatpush.msra.mxu0 %v306
  %450 = vmatpush.msra.mxu0 %v304
  %451 = vmatmul.f32.gmra.mxu0 %v433
  %v452 = vpop.f32.mrf.mxu0
  %v453 = vadd.f32 0.0, %v452
  %454 = vdwg.mxu0
  %455 = vmatpush.msra.mxu0 0.0
  %456 = vmatpush.msra.mxu0 0.0
  %457 = vmatpush.msra.mxu0 0.0
  %458 = vmatpush.msra.mxu0 0.0
  %459 = vmatpush.msra.mxu0 0.0
  %460 = vmatpush.msra.mxu0 0.0
  %461 = vmatpush.msra.mxu0 0.0
  %462 = vmatpush.msra.mxu0 0.0
  %463 = vmatpush.msra.mxu0 %v319
  %464 = vmatpush.msra.mxu0 %v317
  %465 = vmatpush.msra.mxu0 %v315
  %466 = vmatpush.msra.mxu0 %v313
  %467 = vmatpush.msra.mxu0 %v311
  %468 = vmatpush.msra.mxu0 %v309
  %469 = vmatpush.msra.mxu0 %v307
  %470 = vmatpush.msra.mxu0 %v305
  %471 = vmatmul.f32.gmra.mxu0 %v433
  %v472 = vpop.f32.mrf.mxu0
  %v473 = vadd.f32 0.0, %v472
  %474 = vdwg.mxu0
  %v475 = vadd.f32 %v431, %v453
  %v476 = vadd.f32 %v432, %v473
  %v477 = vxor.u32 %v475, 2147483648
  %v478 = vmul.f32 %v477, 1.442695
  %v479 = vpow.pop %v478
  %v480 = vadd.f32 %v479, 1.0
  %v481 = vrcp.pop %v480
  %v482 = vmul.f32 %v480, %v481
  %v483 = vsub.f32 1.0, %v482
  %v484 = vmul.f32 %v481, %v483
  %v485 = vadd.f32 %v481, %v484
  %vm486 = vweird.f32 %v480
  %vm487 = vweird.f32 %v481
  %vm488 = vmor %vm486, %vm487
  %v489 = vsel %vm488, %v481, %v485
  %v490 = vand.u32 2147483647, %v480
  %vm491 = vcmp.eq.f32.partialorder %v490, 8.507059e+37
  %v492 = vand.u32 %v480, 2147483648
  %v493 = vor.u32 1.1754944e-38, %v492
  %v494 = vsel %vm491, %v493, %v489
  %v495 = vmul.f32 1.0, %v494
  %v496 = vtanh.pop %v476
  %v497 = vxor.u32 %v476, 2147483648
  %v498 = vmul.f32 %v497, 1.442695
  %v499 = vpow.pop %v498
  %v500 = vadd.f32 %v499, 1.0
  %v501 = vrcp.pop %v500
  %v502 = vmul.f32 %v500, %v501
  %v503 = vsub.f32 1.0, %v502
  %v504 = vmul.f32 %v501, %v503
  %v505 = vadd.f32 %v501, %v504
  %vm506 = vweird.f32 %v500
  %vm507 = vweird.f32 %v501
  %vm508 = vmor %vm506, %vm507
  %v509 = vsel %vm508, %v501, %v505
  %v510 = vand.u32 2147483647, %v500
  %vm511 = vcmp.eq.f32.partialorder %v510, 8.507059e+37
  %v512 = vand.u32 %v500, 2147483648
  %v513 = vor.u32 1.1754944e-38, %v512
  %v514 = vsel %vm511, %v513, %v509
  %v515 = vmul.f32 1.0, %v514
  %v516 = vmul.f32 %v495, %v416
  %v517 = vmul.f32 %v495, %v496
  %519 = vrot.lane.b32.xlu0 %v517, 64
  %v520 = vpop.permute.xlu0 %519
  %v522 = vadd.f32 %v516, %v520
  %v523 = vtanh.pop %v522
  %v524 = vmul.f32 %v515, %v523
  %526 = vrot.lane.b32.xlu0 %v524, 64
  %v527 = vpop.permute.xlu0 %526
  %529 = vst.msk [vmem:[#allocation3 + $0x8] sm:$0xff] %vm423, %v527
  %530 = vst.msk [vmem:[#allocation3 + $0x70] sm:$0xff] %vm425, %v527
  %v531 = vld [vmem:[#allocation2 + $0x20] sm:$0xff]
  %v532 = vld [vmem:[#allocation2 + $0x28] sm:$0xff]
  %v533 = vld [vmem:[#allocation2 + $0xd0] sm:$0xff]
  %v534 = vld [vmem:[#allocation2 + $0xd8] sm:$0xff]
  %v535 = vsel %vm53, %v531, %v533
  %v536 = vsel %vm54, %v532, %v534
  %v537 = vsel %vm93, %v527, 0
  %539 = vmatpush.msra.mxu0 0.0
  %540 = vmatpush.msra.mxu0 0.0
  %541 = vmatpush.msra.mxu0 0.0
  %542 = vmatpush.msra.mxu0 0.0
  %543 = vmatpush.msra.mxu0 0.0
  %544 = vmatpush.msra.mxu0 0.0
  %545 = vmatpush.msra.mxu0 0.0
  %546 = vmatpush.msra.mxu0 0.0
  %547 = vmatpush.msra.mxu0 %v318
  %548 = vmatpush.msra.mxu0 %v316
  %549 = vmatpush.msra.mxu0 %v314
  %550 = vmatpush.msra.mxu0 %v312
  %551 = vmatpush.msra.mxu0 %v310
  %552 = vmatpush.msra.mxu0 %v308
  %553 = vmatpush.msra.mxu0 %v306
  %554 = vmatpush.msra.mxu0 %v304
  %555 = vmatmul.f32.gmra.mxu0 %v537
  %v556 = vpop.f32.mrf.mxu0
  %v557 = vadd.f32 0.0, %v556
  %558 = vdwg.mxu0
  %559 = vmatpush.msra.mxu0 0.0
  %560 = vmatpush.msra.mxu0 0.0
  %561 = vmatpush.msra.mxu0 0.0
  %562 = vmatpush.msra.mxu0 0.0
  %563 = vmatpush.msra.mxu0 0.0
  %564 = vmatpush.msra.mxu0 0.0
  %565 = vmatpush.msra.mxu0 0.0
  %566 = vmatpush.msra.mxu0 0.0
  %567 = vmatpush.msra.mxu0 %v319
  %568 = vmatpush.msra.mxu0 %v317
  %569 = vmatpush.msra.mxu0 %v315
  %570 = vmatpush.msra.mxu0 %v313
  %571 = vmatpush.msra.mxu0 %v311
  %572 = vmatpush.msra.mxu0 %v309
  %573 = vmatpush.msra.mxu0 %v307
  %574 = vmatpush.msra.mxu0 %v305
  %575 = vmatmul.f32.gmra.mxu0 %v537
  %v576 = vpop.f32.mrf.mxu0
  %v577 = vadd.f32 0.0, %v576
  %578 = vdwg.mxu0
  %v579 = vadd.f32 %v535, %v557
  %v580 = vadd.f32 %v536, %v577
  %v581 = vxor.u32 %v579, 2147483648
  %v582 = vmul.f32 %v581, 1.442695
  %v583 = vpow.pop %v582
  %v584 = vadd.f32 %v583, 1.0
  %v585 = vrcp.pop %v584
  %v586 = vmul.f32 %v584, %v585
  %v587 = vsub.f32 1.0, %v586
  %v588 = vmul.f32 %v585, %v587
  %v589 = vadd.f32 %v585, %v588
  %vm590 = vweird.f32 %v584
  %vm591 = vweird.f32 %v585
  %vm592 = vmor %vm590, %vm591
  %v593 = vsel %vm592, %v585, %v589
  %v594 = vand.u32 2147483647, %v584
  %vm595 = vcmp.eq.f32.partialorder %v594, 8.507059e+37
  %v596 = vand.u32 %v584, 2147483648
  %v597 = vor.u32 1.1754944e-38, %v596
  %v598 = vsel %vm595, %v597, %v593
  %v599 = vmul.f32 1.0, %v598
  %v600 = vtanh.pop %v580
  %v601 = vxor.u32 %v580, 2147483648
  %v602 = vmul.f32 %v601, 1.442695
  %v603 = vpow.pop %v602
  %v604 = vadd.f32 %v603, 1.0
  %v605 = vrcp.pop %v604
  %v606 = vmul.f32 %v604, %v605
  %v607 = vsub.f32 1.0, %v606
  %v608 = vmul.f32 %v605, %v607
  %v609 = vadd.f32 %v605, %v608
  %vm610 = vweird.f32 %v604
  %vm611 = vweird.f32 %v605
  %vm612 = vmor %vm610, %vm611
  %v613 = vsel %vm612, %v605, %v609
  %v614 = vand.u32 2147483647, %v604
  %vm615 = vcmp.eq.f32.partialorder %v614, 8.507059e+37
  %v616 = vand.u32 %v604, 2147483648
  %v617 = vor.u32 1.1754944e-38, %v616
  %v618 = vsel %vm615, %v617, %v613
  %v619 = vmul.f32 1.0, %v618
  %v620 = vmul.f32 %v599, %v522
  %v621 = vmul.f32 %v599, %v600
  %623 = vrot.lane.b32.xlu0 %v621, 64
  %v624 = vpop.permute.xlu0 %623
  %v626 = vadd.f32 %v620, %v624
  %v627 = vtanh.pop %v626
  %v628 = vmul.f32 %v619, %v627
  %630 = vrot.lane.b32.xlu0 %v628, 64
  %v631 = vpop.permute.xlu0 %630
  %633 = vst.msk [vmem:[#allocation3 + $0x10] sm:$0xff] %vm423, %v631
  %634 = vst.msk [vmem:[#allocation3 + $0x68] sm:$0xff] %vm425, %v631
  %v635 = vld [vmem:[#allocation2 + $0x30] sm:$0xff]
  %v636 = vld [vmem:[#allocation2 + $0x38] sm:$0xff]
  %v637 = vld [vmem:[#allocation2 + $0xc0] sm:$0xff]
  %v638 = vld [vmem:[#allocation2 + $0xc8] sm:$0xff]
  %v639 = vsel %vm53, %v635, %v637
  %v640 = vsel %vm54, %v636, %v638
  %v641 = vsel %vm93, %v631, 0
  %643 = vmatpush.msra.mxu0 0.0
  %644 = vmatpush.msra.mxu0 0.0
  %645 = vmatpush.msra.mxu0 0.0
  %646 = vmatpush.msra.mxu0 0.0
  %647 = vmatpush.msra.mxu0 0.0
  %648 = vmatpush.msra.mxu0 0.0
  %649 = vmatpush.msra.mxu0 0.0
  %650 = vmatpush.msra.mxu0 0.0
  %651 = vmatpush.msra.mxu0 %v318
  %652 = vmatpush.msra.mxu0 %v316
  %653 = vmatpush.msra.mxu0 %v314
  %654 = vmatpush.msra.mxu0 %v312
  %655 = vmatpush.msra.mxu0 %v310
  %656 = vmatpush.msra.mxu0 %v308
  %657 = vmatpush.msra.mxu0 %v306
  %658 = vmatpush.msra.mxu0 %v304
  %659 = vmatmul.f32.gmra.mxu0 %v641
  %v660 = vpop.f32.mrf.mxu0
  %v661 = vadd.f32 0.0, %v660
  %662 = vdwg.mxu0
  %663 = vmatpush.msra.mxu0 0.0
  %664 = vmatpush.msra.mxu0 0.0
  %665 = vmatpush.msra.mxu0 0.0
  %666 = vmatpush.msra.mxu0 0.0
  %667 = vmatpush.msra.mxu0 0.0
  %668 = vmatpush.msra.mxu0 0.0
  %669 = vmatpush.msra.mxu0 0.0
  %670 = vmatpush.msra.mxu0 0.0
  %671 = vmatpush.msra.mxu0 %v319
  %672 = vmatpush.msra.mxu0 %v317
  %673 = vmatpush.msra.mxu0 %v315
  %674 = vmatpush.msra.mxu0 %v313
  %675 = vmatpush.msra.mxu0 %v311
  %676 = vmatpush.msra.mxu0 %v309
  %677 = vmatpush.msra.mxu0 %v307
  %678 = vmatpush.msra.mxu0 %v305
  %679 = vmatmul.f32.gmra.mxu0 %v641
  %v680 = vpop.f32.mrf.mxu0
  %v681 = vadd.f32 0.0, %v680
  %682 = vdwg.mxu0
  %v683 = vadd.f32 %v639, %v661
  %v684 = vadd.f32 %v640, %v681
  %v685 = vxor.u32 %v683, 2147483648
  %v686 = vmul.f32 %v685, 1.442695
  %v687 = vpow.pop %v686
  %v688 = vadd.f32 %v687, 1.0
  %v689 = vrcp.pop %v688
  %v690 = vmul.f32 %v688, %v689
  %v691 = vsub.f32 1.0, %v690
  %v692 = vmul.f32 %v689, %v691
  %v693 = vadd.f32 %v689, %v692
  %vm694 = vweird.f32 %v688
  %vm695 = vweird.f32 %v689
  %vm696 = vmor %vm694, %vm695
  %v697 = vsel %vm696, %v689, %v693
  %v698 = vand.u32 2147483647, %v688
  %vm699 = vcmp.eq.f32.partialorder %v698, 8.507059e+37
  %v700 = vand.u32 %v688, 2147483648
  %v701 = vor.u32 1.1754944e-38, %v700
  %v702 = vsel %vm699, %v701, %v697
  %v703 = vmul.f32 1.0, %v702
  %v704 = vtanh.pop %v684
  %v705 = vxor.u32 %v684, 2147483648
  %v706 = vmul.f32 %v705, 1.442695
  %v707 = vpow.pop %v706
  %v708 = vadd.f32 %v707, 1.0
  %v709 = vrcp.pop %v708
  %v710 = vmul.f32 %v708, %v709
  %v711 = vsub.f32 1.0, %v710
  %v712 = vmul.f32 %v709, %v711
  %v713 = vadd.f32 %v709, %v712
  %vm714 = vweird.f32 %v708
  %vm715 = vweird.f32 %v709
  %vm716 = vmor %vm714, %vm715
  %v717 = vsel %vm716, %v709, %v713
  %v718 = vand.u32 2147483647, %v708
  %vm719 = vcmp.eq.f32.partialorder %v718, 8.507059e+37
  %v720 = vand.u32 %v708, 2147483648
  %v721 = vor.u32 1.1754944e-38, %v720
  %v722 = vsel %vm719, %v721, %v717
  %v723 = vmul.f32 1.0, %v722
  %v724 = vmul.f32 %v703, %v626
  %v725 = vmul.f32 %v703, %v704
  %727 = vrot.lane.b32.xlu0 %v725, 64
  %v728 = vpop.permute.xlu0 %727
  %v730 = vadd.f32 %v724, %v728
  %v731 = vtanh.pop %v730
  %v732 = vmul.f32 %v723, %v731
  %734 = vrot.lane.b32.xlu0 %v732, 64
  %v735 = vpop.permute.xlu0 %734
  %737 = vst.msk [vmem:[#allocation3 + $0x18] sm:$0xff] %vm423, %v735
  %738 = vst.msk [vmem:[#allocation3 + $0x60] sm:$0xff] %vm425, %v735
  %v739 = vld [vmem:[#allocation2 + $0x40] sm:$0xff]
  %v740 = vld [vmem:[#allocation2 + $0x48] sm:$0xff]
  %v741 = vld [vmem:[#allocation2 + $0xb0] sm:$0xff]
  %v742 = vld [vmem:[#allocation2 + $0xb8] sm:$0xff]
  %v743 = vsel %vm53, %v739, %v741
  %v744 = vsel %vm54, %v740, %v742
  %v745 = vsel %vm93, %v735, 0
  %747 = vmatpush.msra.mxu0 0.0
  %748 = vmatpush.msra.mxu0 0.0
  %749 = vmatpush.msra.mxu0 0.0
  %750 = vmatpush.msra.mxu0 0.0
  %751 = vmatpush.msra.mxu0 0.0
  %752 = vmatpush.msra.mxu0 0.0
  %753 = vmatpush.msra.mxu0 0.0
  %754 = vmatpush.msra.mxu0 0.0
  %755 = vmatpush.msra.mxu0 %v318
  %756 = vmatpush.msra.mxu0 %v316
  %757 = vmatpush.msra.mxu0 %v314
  %758 = vmatpush.msra.mxu0 %v312
  %759 = vmatpush.msra.mxu0 %v310
  %760 = vmatpush.msra.mxu0 %v308
  %761 = vmatpush.msra.mxu0 %v306
  %762 = vmatpush.msra.mxu0 %v304
  %763 = vmatmul.f32.gmra.mxu0 %v745
  %v764 = vpop.f32.mrf.mxu0
  %v765 = vadd.f32 0.0, %v764
  %766 = vdwg.mxu0
  %767 = vmatpush.msra.mxu0 0.0
  %768 = vmatpush.msra.mxu0 0.0
  %769 = vmatpush.msra.mxu0 0.0
  %770 = vmatpush.msra.mxu0 0.0
  %771 = vmatpush.msra.mxu0 0.0
  %772 = vmatpush.msra.mxu0 0.0
  %773 = vmatpush.msra.mxu0 0.0
  %774 = vmatpush.msra.mxu0 0.0
  %775 = vmatpush.msra.mxu0 %v319
  %776 = vmatpush.msra.mxu0 %v317
  %777 = vmatpush.msra.mxu0 %v315
  %778 = vmatpush.msra.mxu0 %v313
  %779 = vmatpush.msra.mxu0 %v311
  %780 = vmatpush.msra.mxu0 %v309
  %781 = vmatpush.msra.mxu0 %v307
  %782 = vmatpush.msra.mxu0 %v305
  %783 = vmatmul.f32.gmra.mxu0 %v745
  %v784 = vpop.f32.mrf.mxu0
  %v785 = vadd.f32 0.0, %v784
  %786 = vdwg.mxu0
  %v787 = vadd.f32 %v743, %v765
  %v788 = vadd.f32 %v744, %v785
  %v789 = vxor.u32 %v787, 2147483648
  %v790 = vmul.f32 %v789, 1.442695
  %v791 = vpow.pop %v790
  %v792 = vadd.f32 %v791, 1.0
  %v793 = vrcp.pop %v792
  %v794 = vmul.f32 %v792, %v793
  %v795 = vsub.f32 1.0, %v794
  %v796 = vmul.f32 %v793, %v795
  %v797 = vadd.f32 %v793, %v796
  %vm798 = vweird.f32 %v792
  %vm799 = vweird.f32 %v793
  %vm800 = vmor %vm798, %vm799
  %v801 = vsel %vm800, %v793, %v797
  %v802 = vand.u32 2147483647, %v792
  %vm803 = vcmp.eq.f32.partialorder %v802, 8.507059e+37
  %v804 = vand.u32 %v792, 2147483648
  %v805 = vor.u32 1.1754944e-38, %v804
  %v806 = vsel %vm803, %v805, %v801
  %v807 = vmul.f32 1.0, %v806
  %v808 = vtanh.pop %v788
  %v809 = vxor.u32 %v788, 2147483648
  %v810 = vmul.f32 %v809, 1.442695
  %v811 = vpow.pop %v810
  %v812 = vadd.f32 %v811, 1.0
  %v813 = vrcp.pop %v812
  %v814 = vmul.f32 %v812, %v813
  %v815 = vsub.f32 1.0, %v814
  %v816 = vmul.f32 %v813, %v815
  %v817 = vadd.f32 %v813, %v816
  %vm818 = vweird.f32 %v812
  %vm819 = vweird.f32 %v813
  %vm820 = vmor %vm818, %vm819
  %v821 = vsel %vm820, %v813, %v817
  %v822 = vand.u32 2147483647, %v812
  %vm823 = vcmp.eq.f32.partialorder %v822, 8.507059e+37
  %v824 = vand.u32 %v812, 2147483648
  %v825 = vor.u32 1.1754944e-38, %v824
  %v826 = vsel %vm823, %v825, %v821
  %v827 = vmul.f32 1.0, %v826
  %v828 = vmul.f32 %v807, %v730
  %v829 = vmul.f32 %v807, %v808
  %831 = vrot.lane.b32.xlu0 %v829, 64
  %v832 = vpop.permute.xlu0 %831
  %v834 = vadd.f32 %v828, %v832
  %v835 = vtanh.pop %v834
  %v836 = vmul.f32 %v827, %v835
  %838 = vrot.lane.b32.xlu0 %v836, 64
  %v839 = vpop.permute.xlu0 %838
  %841 = vst.msk [vmem:[#allocation3 + $0x20] sm:$0xff] %vm423, %v839
  %842 = vst.msk [vmem:[#allocation3 + $0x58] sm:$0xff] %vm425, %v839
  %v843 = vld [vmem:[#allocation2 + $0x50] sm:$0xff]
  %v844 = vld [vmem:[#allocation2 + $0x58] sm:$0xff]
  %v845 = vld [vmem:[#allocation2 + $0xa0] sm:$0xff]
  %v846 = vld [vmem:[#allocation2 + $0xa8] sm:$0xff]
  %v847 = vsel %vm53, %v843, %v845
  %v848 = vsel %vm54, %v844, %v846
  %v849 = vsel %vm93, %v839, 0
  %851 = vmatpush.msra.mxu0 0.0
  %852 = vmatpush.msra.mxu0 0.0
  %853 = vmatpush.msra.mxu0 0.0
  %854 = vmatpush.msra.mxu0 0.0
  %855 = vmatpush.msra.mxu0 0.0
  %856 = vmatpush.msra.mxu0 0.0
  %857 = vmatpush.msra.mxu0 0.0
  %858 = vmatpush.msra.mxu0 0.0
  %859 = vmatpush.msra.mxu0 %v318
  %860 = vmatpush.msra.mxu0 %v316
  %861 = vmatpush.msra.mxu0 %v314
  %862 = vmatpush.msra.mxu0 %v312
  %863 = vmatpush.msra.mxu0 %v310
  %864 = vmatpush.msra.mxu0 %v308
  %865 = vmatpush.msra.mxu0 %v306
  %866 = vmatpush.msra.mxu0 %v304
  %867 = vmatmul.f32.gmra.mxu0 %v849
  %v868 = vpop.f32.mrf.mxu0
  %v869 = vadd.f32 0.0, %v868
  %870 = vdwg.mxu0
  %871 = vmatpush.msra.mxu0 0.0
  %872 = vmatpush.msra.mxu0 0.0
  %873 = vmatpush.msra.mxu0 0.0
  %874 = vmatpush.msra.mxu0 0.0
  %875 = vmatpush.msra.mxu0 0.0
  %876 = vmatpush.msra.mxu0 0.0
  %877 = vmatpush.msra.mxu0 0.0
  %878 = vmatpush.msra.mxu0 0.0
  %879 = vmatpush.msra.mxu0 %v319
  %880 = vmatpush.msra.mxu0 %v317
  %881 = vmatpush.msra.mxu0 %v315
  %882 = vmatpush.msra.mxu0 %v313
  %883 = vmatpush.msra.mxu0 %v311
  %884 = vmatpush.msra.mxu0 %v309
  %885 = vmatpush.msra.mxu0 %v307
  %886 = vmatpush.msra.mxu0 %v305
  %887 = vmatmul.f32.gmra.mxu0 %v849
  %v888 = vpop.f32.mrf.mxu0
  %v889 = vadd.f32 0.0, %v888
  %890 = vdwg.mxu0
  %v891 = vadd.f32 %v847, %v869
  %v892 = vadd.f32 %v848, %v889
  %v893 = vxor.u32 %v891, 2147483648
  %v894 = vmul.f32 %v893, 1.442695
  %v895 = vpow.pop %v894
  %v896 = vadd.f32 %v895, 1.0
  %v897 = vrcp.pop %v896
  %v898 = vmul.f32 %v896, %v897
  %v899 = vsub.f32 1.0, %v898
  %v900 = vmul.f32 %v897, %v899
  %v901 = vadd.f32 %v897, %v900
  %vm902 = vweird.f32 %v896
  %vm903 = vweird.f32 %v897
  %vm904 = vmor %vm902, %vm903
  %v905 = vsel %vm904, %v897, %v901
  %v906 = vand.u32 2147483647, %v896
  %vm907 = vcmp.eq.f32.partialorder %v906, 8.507059e+37
  %v908 = vand.u32 %v896, 2147483648
  %v909 = vor.u32 1.1754944e-38, %v908
  %v910 = vsel %vm907, %v909, %v905
  %v911 = vmul.f32 1.0, %v910
  %v912 = vtanh.pop %v892
  %v913 = vxor.u32 %v892, 2147483648
  %v914 = vmul.f32 %v913, 1.442695
  %v915 = vpow.pop %v914
  %v916 = vadd.f32 %v915, 1.0
  %v917 = vrcp.pop %v916
  %v918 = vmul.f32 %v916, %v917
  %v919 = vsub.f32 1.0, %v918
  %v920 = vmul.f32 %v917, %v919
  %v921 = vadd.f32 %v917, %v920
  %vm922 = vweird.f32 %v916
  %vm923 = vweird.f32 %v917
  %vm924 = vmor %vm922, %vm923
  %v925 = vsel %vm924, %v917, %v921
  %v926 = vand.u32 2147483647, %v916
  %vm927 = vcmp.eq.f32.partialorder %v926, 8.507059e+37
  %v928 = vand.u32 %v916, 2147483648
  %v929 = vor.u32 1.1754944e-38, %v928
  %v930 = vsel %vm927, %v929, %v925
  %v931 = vmul.f32 1.0, %v930
  %v932 = vmul.f32 %v911, %v834
  %v933 = vmul.f32 %v911, %v912
  %935 = vrot.lane.b32.xlu0 %v933, 64
  %v936 = vpop.permute.xlu0 %935
  %v938 = vadd.f32 %v932, %v936
  %v939 = vtanh.pop %v938
  %v940 = vmul.f32 %v931, %v939
  %942 = vrot.lane.b32.xlu0 %v940, 64
  %v943 = vpop.permute.xlu0 %942
  %945 = vst.msk [vmem:[#allocation3 + $0x28] sm:$0xff] %vm423, %v943
  %946 = vst.msk [vmem:[#allocation3 + $0x50] sm:$0xff] %vm425, %v943
  %v947 = vld [vmem:[#allocation2 + $0x60] sm:$0xff]
  %v948 = vld [vmem:[#allocation2 + $0x68] sm:$0xff]
  %v949 = vld [vmem:[#allocation2 + $0x90] sm:$0xff]
  %v950 = vld [vmem:[#allocation2 + $0x98] sm:$0xff]
  %v951 = vsel %vm53, %v947, %v949
  %v952 = vsel %vm54, %v948, %v950
  %v953 = vsel %vm93, %v943, 0
  %955 = vmatpush.msra.mxu0 0.0
  %956 = vmatpush.msra.mxu0 0.0
  %957 = vmatpush.msra.mxu0 0.0
  %958 = vmatpush.msra.mxu0 0.0
  %959 = vmatpush.msra.mxu0 0.0
  %960 = vmatpush.msra.mxu0 0.0
  %961 = vmatpush.msra.mxu0 0.0
  %962 = vmatpush.msra.mxu0 0.0
  %963 = vmatpush.msra.mxu0 %v318
  %964 = vmatpush.msra.mxu0 %v316
  %965 = vmatpush.msra.mxu0 %v314
  %966 = vmatpush.msra.mxu0 %v312
  %967 = vmatpush.msra.mxu0 %v310
  %968 = vmatpush.msra.mxu0 %v308
  %969 = vmatpush.msra.mxu0 %v306
  %970 = vmatpush.msra.mxu0 %v304
  %971 = vmatmul.f32.gmra.mxu0 %v953
  %v972 = vpop.f32.mrf.mxu0
  %v973 = vadd.f32 0.0, %v972
  %974 = vdwg.mxu0
  %975 = vmatpush.msra.mxu0 0.0
  %976 = vmatpush.msra.mxu0 0.0
  %977 = vmatpush.msra.mxu0 0.0
  %978 = vmatpush.msra.mxu0 0.0
  %979 = vmatpush.msra.mxu0 0.0
  %980 = vmatpush.msra.mxu0 0.0
  %981 = vmatpush.msra.mxu0 0.0
  %982 = vmatpush.msra.mxu0 0.0
  %983 = vmatpush.msra.mxu0 %v319
  %984 = vmatpush.msra.mxu0 %v317
  %985 = vmatpush.msra.mxu0 %v315
  %986 = vmatpush.msra.mxu0 %v313
  %987 = vmatpush.msra.mxu0 %v311
  %988 = vmatpush.msra.mxu0 %v309
  %989 = vmatpush.msra.mxu0 %v307
  %990 = vmatpush.msra.mxu0 %v305
  %991 = vmatmul.f32.gmra.mxu0 %v953
  %v992 = vpop.f32.mrf.mxu0
  %v993 = vadd.f32 0.0, %v992
  %994 = vdwg.mxu0
  %v995 = vadd.f32 %v951, %v973
  %v996 = vadd.f32 %v952, %v993
  %v997 = vxor.u32 %v995, 2147483648
  %v998 = vmul.f32 %v997, 1.442695
  %v999 = vpow.pop %v998
  %v1000 = vadd.f32 %v999, 1.0
  %v1001 = vrcp.pop %v1000
  %v1002 = vmul.f32 %v1000, %v1001
  %v1003 = vsub.f32 1.0, %v1002
  %v1004 = vmul.f32 %v1001, %v1003
  %v1005 = vadd.f32 %v1001, %v1004
  %vm1006 = vweird.f32 %v1000
  %vm1007 = vweird.f32 %v1001
  %vm1008 = vmor %vm1006, %vm1007
  %v1009 = vsel %vm1008, %v1001, %v1005
  %v1010 = vand.u32 2147483647, %v1000
  %vm1011 = vcmp.eq.f32.partialorder %v1010, 8.507059e+37
  %v1012 = vand.u32 %v1000, 2147483648
  %v1013 = vor.u32 1.1754944e-38, %v1012
  %v1014 = vsel %vm1011, %v1013, %v1009
  %v1015 = vmul.f32 1.0, %v1014
  %v1016 = vtanh.pop %v996
  %v1017 = vxor.u32 %v996, 2147483648
  %v1018 = vmul.f32 %v1017, 1.442695
  %v1019 = vpow.pop %v1018
  %v1020 = vadd.f32 %v1019, 1.0
  %v1021 = vrcp.pop %v1020
  %v1022 = vmul.f32 %v1020, %v1021
  %v1023 = vsub.f32 1.0, %v1022
  %v1024 = vmul.f32 %v1021, %v1023
  %v1025 = vadd.f32 %v1021, %v1024
  %vm1026 = vweird.f32 %v1020
  %vm1027 = vweird.f32 %v1021
  %vm1028 = vmor %vm1026, %vm1027
  %v1029 = vsel %vm1028, %v1021, %v1025
  %v1030 = vand.u32 2147483647, %v1020
  %vm1031 = vcmp.eq.f32.partialorder %v1030, 8.507059e+37
  %v1032 = vand.u32 %v1020, 2147483648
  %v1033 = vor.u32 1.1754944e-38, %v1032
  %v1034 = vsel %vm1031, %v1033, %v1029
  %v1035 = vmul.f32 1.0, %v1034
  %v1036 = vmul.f32 %v1015, %v938
  %v1037 = vmul.f32 %v1015, %v1016
  %1039 = vrot.lane.b32.xlu0 %v1037, 64
  %v1040 = vpop.permute.xlu0 %1039
  %v1042 = vadd.f32 %v1036, %v1040
  %v1043 = vtanh.pop %v1042
  %v1044 = vmul.f32 %v1035, %v1043
  %1046 = vrot.lane.b32.xlu0 %v1044, 64
  %v1047 = vpop.permute.xlu0 %1046
  %1049 = vst.msk [vmem:[#allocation3 + $0x30] sm:$0xff] %vm423, %v1047
  %1050 = vst.msk [vmem:[#allocation3 + $0x48] sm:$0xff] %vm425, %v1047
  %v1051 = vld [vmem:[#allocation2 + $0x70] sm:$0xff]
  %v1052 = vld [vmem:[#allocation2 + $0x78] sm:$0xff]
  %v1053 = vld [vmem:[#allocation2 + $0x80] sm:$0xff]
  %v1054 = vld [vmem:[#allocation2 + $0x88] sm:$0xff]
  %v1055 = vsel %vm53, %v1051, %v1053
  %v1056 = vsel %vm54, %v1052, %v1054
  %v1057 = vsel %vm93, %v1047, 0
  %1059 = vmatpush.msra.mxu0 0.0
  %1060 = vmatpush.msra.mxu0 0.0
  %1061 = vmatpush.msra.mxu0 0.0
  %1062 = vmatpush.msra.mxu0 0.0
  %1063 = vmatpush.msra.mxu0 0.0
  %1064 = vmatpush.msra.mxu0 0.0
  %1065 = vmatpush.msra.mxu0 0.0
  %1066 = vmatpush.msra.mxu0 0.0
  %1067 = vmatpush.msra.mxu0 %v318
  %1068 = vmatpush.msra.mxu0 %v316
  %1069 = vmatpush.msra.mxu0 %v314
  %1070 = vmatpush.msra.mxu0 %v312
  %1071 = vmatpush.msra.mxu0 %v310
  %1072 = vmatpush.msra.mxu0 %v308
  %1073 = vmatpush.msra.mxu0 %v306
  %1074 = vmatpush.msra.mxu0 %v304
  %1075 = vmatmul.f32.gmra.mxu0 %v1057
  %v1076 = vpop.f32.mrf.mxu0
  %v1077 = vadd.f32 0.0, %v1076
  %1078 = vdwg.mxu0
  %1079 = vmatpush.msra.mxu0 0.0
  %1080 = vmatpush.msra.mxu0 0.0
  %1081 = vmatpush.msra.mxu0 0.0
  %1082 = vmatpush.msra.mxu0 0.0
  %1083 = vmatpush.msra.mxu0 0.0
  %1084 = vmatpush.msra.mxu0 0.0
  %1085 = vmatpush.msra.mxu0 0.0
  %1086 = vmatpush.msra.mxu0 0.0
  %1087 = vmatpush.msra.mxu0 %v319
  %1088 = vmatpush.msra.mxu0 %v317
  %1089 = vmatpush.msra.mxu0 %v315
  %1090 = vmatpush.msra.mxu0 %v313
  %1091 = vmatpush.msra.mxu0 %v311
  %1092 = vmatpush.msra.mxu0 %v309
  %1093 = vmatpush.msra.mxu0 %v307
  %1094 = vmatpush.msra.mxu0 %v305
  %1095 = vmatmul.f32.gmra.mxu0 %v1057
  %v1096 = vpop.f32.mrf.mxu0
  %v1097 = vadd.f32 0.0, %v1096
  %1098 = vdwg.mxu0
  %v1099 = vadd.f32 %v1055, %v1077
  %v1100 = vadd.f32 %v1056, %v1097
  %v1101 = vxor.u32 %v1099, 2147483648
  %v1102 = vmul.f32 %v1101, 1.442695
  %v1103 = vpow.pop %v1102
  %v1104 = vadd.f32 %v1103, 1.0
  %v1105 = vrcp.pop %v1104
  %v1106 = vmul.f32 %v1104, %v1105
  %v1107 = vsub.f32 1.0, %v1106
  %v1108 = vmul.f32 %v1105, %v1107
  %v1109 = vadd.f32 %v1105, %v1108
  %vm1110 = vweird.f32 %v1104
  %vm1111 = vweird.f32 %v1105
  %vm1112 = vmor %vm1110, %vm1111
  %v1113 = vsel %vm1112, %v1105, %v1109
  %v1114 = vand.u32 2147483647, %v1104
  %vm1115 = vcmp.eq.f32.partialorder %v1114, 8.507059e+37
  %v1116 = vand.u32 %v1104, 2147483648
  %v1117 = vor.u32 1.1754944e-38, %v1116
  %v1118 = vsel %vm1115, %v1117, %v1113
  %v1119 = vmul.f32 1.0, %v1118
  %v1120 = vtanh.pop %v1100
  %v1121 = vxor.u32 %v1100, 2147483648
  %v1122 = vmul.f32 %v1121, 1.442695
  %v1123 = vpow.pop %v1122
  %v1124 = vadd.f32 %v1123, 1.0
  %v1125 = vrcp.pop %v1124
  %v1126 = vmul.f32 %v1124, %v1125
  %v1127 = vsub.f32 1.0, %v1126
  %v1128 = vmul.f32 %v1125, %v1127
  %v1129 = vadd.f32 %v1125, %v1128
  %vm1130 = vweird.f32 %v1124
  %vm1131 = vweird.f32 %v1125
  %vm1132 = vmor %vm1130, %vm1131
  %v1133 = vsel %vm1132, %v1125, %v1129
  %v1134 = vand.u32 2147483647, %v1124
  %vm1135 = vcmp.eq.f32.partialorder %v1134, 8.507059e+37
  %v1136 = vand.u32 %v1124, 2147483648
  %v1137 = vor.u32 1.1754944e-38, %v1136
  %v1138 = vsel %vm1135, %v1137, %v1133
  %v1139 = vmul.f32 1.0, %v1138
  %v1140 = vmul.f32 %v1119, %v1042
  %v1141 = vmul.f32 %v1119, %v1120
  %1143 = vrot.lane.b32.xlu0 %v1141, 64
  %v1144 = vpop.permute.xlu0 %1143
  %v1146 = vadd.f32 %v1140, %v1144
  %v1147 = vtanh.pop %v1146
  %v1148 = vmul.f32 %v1139, %v1147
  %1150 = vrot.lane.b32.xlu0 %v1148, 64
  %v1151 = vpop.permute.xlu0 %1150
  %1153 = vst.msk [vmem:[#allocation3 + $0x38] sm:$0xff] %vm423, %v1151
  %1154 = vst.msk [vmem:[#allocation3 + $0x40] sm:$0xff] %vm425, %v1151
  %v1155 = vld [vmem:[#allocation2 + $0x80] sm:$0xff]
  %v1156 = vld [vmem:[#allocation2 + $0x88] sm:$0xff]
  %v1157 = vld [vmem:[#allocation2 + $0x70] sm:$0xff]
  %v1158 = vld [vmem:[#allocation2 + $0x78] sm:$0xff]
  %v1159 = vsel %vm53, %v1155, %v1157
  %v1160 = vsel %vm54, %v1156, %v1158
  %v1161 = vsel %vm93, %v1151, 0
  %1163 = vmatpush.msra.mxu0 0.0
  %1164 = vmatpush.msra.mxu0 0.0
  %1165 = vmatpush.msra.mxu0 0.0
  %1166 = vmatpush.msra.mxu0 0.0
  %1167 = vmatpush.msra.mxu0 0.0
  %1168 = vmatpush.msra.mxu0 0.0
  %1169 = vmatpush.msra.mxu0 0.0
  %1170 = vmatpush.msra.mxu0 0.0
  %1171 = vmatpush.msra.mxu0 %v318
  %1172 = vmatpush.msra.mxu0 %v316
  %1173 = vmatpush.msra.mxu0 %v314
  %1174 = vmatpush.msra.mxu0 %v312
  %1175 = vmatpush.msra.mxu0 %v310
  %1176 = vmatpush.msra.mxu0 %v308
  %1177 = vmatpush.msra.mxu0 %v306
  %1178 = vmatpush.msra.mxu0 %v304
  %1179 = vmatmul.f32.gmra.mxu0 %v1161
  %v1180 = vpop.f32.mrf.mxu0
  %v1181 = vadd.f32 0.0, %v1180
  %1182 = vdwg.mxu0
  %1183 = vmatpush.msra.mxu0 0.0
  %1184 = vmatpush.msra.mxu0 0.0
  %1185 = vmatpush.msra.mxu0 0.0
  %1186 = vmatpush.msra.mxu0 0.0
  %1187 = vmatpush.msra.mxu0 0.0
  %1188 = vmatpush.msra.mxu0 0.0
  %1189 = vmatpush.msra.mxu0 0.0
  %1190 = vmatpush.msra.mxu0 0.0
  %1191 = vmatpush.msra.mxu0 %v319
  %1192 = vmatpush.msra.mxu0 %v317
  %1193 = vmatpush.msra.mxu0 %v315
  %1194 = vmatpush.msra.mxu0 %v313
  %1195 = vmatpush.msra.mxu0 %v311
  %1196 = vmatpush.msra.mxu0 %v309
  %1197 = vmatpush.msra.mxu0 %v307
  %1198 = vmatpush.msra.mxu0 %v305
  %1199 = vmatmul.f32.gmra.mxu0 %v1161
  %v1200 = vpop.f32.mrf.mxu0
  %v1201 = vadd.f32 0.0, %v1200
  %1202 = vdwg.mxu0
  %v1203 = vadd.f32 %v1159, %v1181
  %v1204 = vadd.f32 %v1160, %v1201
  %v1205 = vxor.u32 %v1203, 2147483648
  %v1206 = vmul.f32 %v1205, 1.442695
  %v1207 = vpow.pop %v1206
  %v1208 = vadd.f32 %v1207, 1.0
  %v1209 = vrcp.pop %v1208
  %v1210 = vmul.f32 %v1208, %v1209
  %v1211 = vsub.f32 1.0, %v1210
  %v1212 = vmul.f32 %v1209, %v1211
  %v1213 = vadd.f32 %v1209, %v1212
  %vm1214 = vweird.f32 %v1208
  %vm1215 = vweird.f32 %v1209
  %vm1216 = vmor %vm1214, %vm1215
  %v1217 = vsel %vm1216, %v1209, %v1213
  %v1218 = vand.u32 2147483647, %v1208
  %vm1219 = vcmp.eq.f32.partialorder %v1218, 8.507059e+37
  %v1220 = vand.u32 %v1208, 2147483648
  %v1221 = vor.u32 1.1754944e-38, %v1220
  %v1222 = vsel %vm1219, %v1221, %v1217
  %v1223 = vmul.f32 1.0, %v1222
  %v1224 = vtanh.pop %v1204
  %v1225 = vxor.u32 %v1204, 2147483648
  %v1226 = vmul.f32 %v1225, 1.442695
  %v1227 = vpow.pop %v1226
  %v1228 = vadd.f32 %v1227, 1.0
  %v1229 = vrcp.pop %v1228
  %v1230 = vmul.f32 %v1228, %v1229
  %v1231 = vsub.f32 1.0, %v1230
  %v1232 = vmul.f32 %v1229, %v1231
  %v1233 = vadd.f32 %v1229, %v1232
  %vm1234 = vweird.f32 %v1228
  %vm1235 = vweird.f32 %v1229
  %vm1236 = vmor %vm1234, %vm1235
  %v1237 = vsel %vm1236, %v1229, %v1233
  %v1238 = vand.u32 2147483647, %v1228
  %vm1239 = vcmp.eq.f32.partialorder %v1238, 8.507059e+37
  %v1240 = vand.u32 %v1228, 2147483648
  %v1241 = vor.u32 1.1754944e-38, %v1240
  %v1242 = vsel %vm1239, %v1241, %v1237
  %v1243 = vmul.f32 1.0, %v1242
  %v1244 = vmul.f32 %v1223, %v1146
  %v1245 = vmul.f32 %v1223, %v1224
  %1247 = vrot.lane.b32.xlu0 %v1245, 64
  %v1248 = vpop.permute.xlu0 %1247
  %v1250 = vadd.f32 %v1244, %v1248
  %v1251 = vtanh.pop %v1250
  %v1252 = vmul.f32 %v1243, %v1251
  %1254 = vrot.lane.b32.xlu0 %v1252, 64
  %v1255 = vpop.permute.xlu0 %1254
  %1257 = vst.msk [vmem:[#allocation3 + $0x40] sm:$0xff] %vm423, %v1255
  %1258 = vst.msk [vmem:[#allocation3 + $0x38] sm:$0xff] %vm425, %v1255
  %v1259 = vld [vmem:[#allocation2 + $0x90] sm:$0xff]
  %v1260 = vld [vmem:[#allocation2 + $0x98] sm:$0xff]
  %v1261 = vld [vmem:[#allocation2 + $0x60] sm:$0xff]
  %v1262 = vld [vmem:[#allocation2 + $0x68] sm:$0xff]
  %v1263 = vsel %vm53, %v1259, %v1261
  %v1264 = vsel %vm54, %v1260, %v1262
  %v1265 = vsel %vm93, %v1255, 0
  %1267 = vmatpush.msra.mxu0 0.0
  %1268 = vmatpush.msra.mxu0 0.0
  %1269 = vmatpush.msra.mxu0 0.0
  %1270 = vmatpush.msra.mxu0 0.0
  %1271 = vmatpush.msra.mxu0 0.0
  %1272 = vmatpush.msra.mxu0 0.0
  %1273 = vmatpush.msra.mxu0 0.0
  %1274 = vmatpush.msra.mxu0 0.0
  %1275 = vmatpush.msra.mxu0 %v318
  %1276 = vmatpush.msra.mxu0 %v316
  %1277 = vmatpush.msra.mxu0 %v314
  %1278 = vmatpush.msra.mxu0 %v312
  %1279 = vmatpush.msra.mxu0 %v310
  %1280 = vmatpush.msra.mxu0 %v308
  %1281 = vmatpush.msra.mxu0 %v306
  %1282 = vmatpush.msra.mxu0 %v304
  %1283 = vmatmul.f32.gmra.mxu0 %v1265
  %v1284 = vpop.f32.mrf.mxu0
  %v1285 = vadd.f32 0.0, %v1284
  %1286 = vdwg.mxu0
  %1287 = vmatpush.msra.mxu0 0.0
  %1288 = vmatpush.msra.mxu0 0.0
  %1289 = vmatpush.msra.mxu0 0.0
  %1290 = vmatpush.msra.mxu0 0.0
  %1291 = vmatpush.msra.mxu0 0.0
  %1292 = vmatpush.msra.mxu0 0.0
  %1293 = vmatpush.msra.mxu0 0.0
  %1294 = vmatpush.msra.mxu0 0.0
  %1295 = vmatpush.msra.mxu0 %v319
  %1296 = vmatpush.msra.mxu0 %v317
  %1297 = vmatpush.msra.mxu0 %v315
  %1298 = vmatpush.msra.mxu0 %v313
  %1299 = vmatpush.msra.mxu0 %v311
  %1300 = vmatpush.msra.mxu0 %v309
  %1301 = vmatpush.msra.mxu0 %v307
  %1302 = vmatpush.msra.mxu0 %v305
  %1303 = vmatmul.f32.gmra.mxu0 %v1265
  %v1304 = vpop.f32.mrf.mxu0
  %v1305 = vadd.f32 0.0, %v1304
  %1306 = vdwg.mxu0
  %v1307 = vadd.f32 %v1263, %v1285
  %v1308 = vadd.f32 %v1264, %v1305
  %v1309 = vxor.u32 %v1307, 2147483648
  %v1310 = vmul.f32 %v1309, 1.442695
  %v1311 = vpow.pop %v1310
  %v1312 = vadd.f32 %v1311, 1.0
  %v1313 = vrcp.pop %v1312
  %v1314 = vmul.f32 %v1312, %v1313
  %v1315 = vsub.f32 1.0, %v1314
  %v1316 = vmul.f32 %v1313, %v1315
  %v1317 = vadd.f32 %v1313, %v1316
  %vm1318 = vweird.f32 %v1312
  %vm1319 = vweird.f32 %v1313
  %vm1320 = vmor %vm1318, %vm1319
  %v1321 = vsel %vm1320, %v1313, %v1317
  %v1322 = vand.u32 2147483647, %v1312
  %vm1323 = vcmp.eq.f32.partialorder %v1322, 8.507059e+37
  %v1324 = vand.u32 %v1312, 2147483648
  %v1325 = vor.u32 1.1754944e-38, %v1324
  %v1326 = vsel %vm1323, %v1325, %v1321
  %v1327 = vmul.f32 1.0, %v1326
  %v1328 = vtanh.pop %v1308
  %v1329 = vxor.u32 %v1308, 2147483648
  %v1330 = vmul.f32 %v1329, 1.442695
  %v1331 = vpow.pop %v1330
  %v1332 = vadd.f32 %v1331, 1.0
  %v1333 = vrcp.pop %v1332
  %v1334 = vmul.f32 %v1332, %v1333
  %v1335 = vsub.f32 1.0, %v1334
  %v1336 = vmul.f32 %v1333, %v1335
  %v1337 = vadd.f32 %v1333, %v1336
  %vm1338 = vweird.f32 %v1332
  %vm1339 = vweird.f32 %v1333
  %vm1340 = vmor %vm1338, %vm1339
  %v1341 = vsel %vm1340, %v1333, %v1337
  %v1342 = vand.u32 2147483647, %v1332
  %vm1343 = vcmp.eq.f32.partialorder %v1342, 8.507059e+37
  %v1344 = vand.u32 %v1332, 2147483648
  %v1345 = vor.u32 1.1754944e-38, %v1344
  %v1346 = vsel %vm1343, %v1345, %v1341
  %v1347 = vmul.f32 1.0, %v1346
  %v1348 = vmul.f32 %v1327, %v1250
  %v1349 = vmul.f32 %v1327, %v1328
  %1351 = vrot.lane.b32.xlu0 %v1349, 64
  %v1352 = vpop.permute.xlu0 %1351
  %v1354 = vadd.f32 %v1348, %v1352
  %v1355 = vtanh.pop %v1354
  %v1356 = vmul.f32 %v1347, %v1355
  %1358 = vrot.lane.b32.xlu0 %v1356, 64
  %v1359 = vpop.permute.xlu0 %1358
  %1361 = vst.msk [vmem:[#allocation3 + $0x48] sm:$0xff] %vm423, %v1359
  %1362 = vst.msk [vmem:[#allocation3 + $0x30] sm:$0xff] %vm425, %v1359
  %v1363 = vld [vmem:[#allocation2 + $0xa0] sm:$0xff]
  %v1364 = vld [vmem:[#allocation2 + $0xa8] sm:$0xff]
  %v1365 = vld [vmem:[#allocation2 + $0x50] sm:$0xff]
  %v1366 = vld [vmem:[#allocation2 + $0x58] sm:$0xff]
  %v1367 = vsel %vm53, %v1363, %v1365
  %v1368 = vsel %vm54, %v1364, %v1366
  %v1369 = vsel %vm93, %v1359, 0
  %1371 = vmatpush.msra.mxu0 0.0
  %1372 = vmatpush.msra.mxu0 0.0
  %1373 = vmatpush.msra.mxu0 0.0
  %1374 = vmatpush.msra.mxu0 0.0
  %1375 = vmatpush.msra.mxu0 0.0
  %1376 = vmatpush.msra.mxu0 0.0
  %1377 = vmatpush.msra.mxu0 0.0
  %1378 = vmatpush.msra.mxu0 0.0
  %1379 = vmatpush.msra.mxu0 %v318
  %1380 = vmatpush.msra.mxu0 %v316
  %1381 = vmatpush.msra.mxu0 %v314
  %1382 = vmatpush.msra.mxu0 %v312
  %1383 = vmatpush.msra.mxu0 %v310
  %1384 = vmatpush.msra.mxu0 %v308
  %1385 = vmatpush.msra.mxu0 %v306
  %1386 = vmatpush.msra.mxu0 %v304
  %1387 = vmatmul.f32.gmra.mxu0 %v1369
  %v1388 = vpop.f32.mrf.mxu0
  %v1389 = vadd.f32 0.0, %v1388
  %1390 = vdwg.mxu0
  %1391 = vmatpush.msra.mxu0 0.0
  %1392 = vmatpush.msra.mxu0 0.0
  %1393 = vmatpush.msra.mxu0 0.0
  %1394 = vmatpush.msra.mxu0 0.0
  %1395 = vmatpush.msra.mxu0 0.0
  %1396 = vmatpush.msra.mxu0 0.0
  %1397 = vmatpush.msra.mxu0 0.0
  %1398 = vmatpush.msra.mxu0 0.0
  %1399 = vmatpush.msra.mxu0 %v319
  %1400 = vmatpush.msra.mxu0 %v317
  %1401 = vmatpush.msra.mxu0 %v315
  %1402 = vmatpush.msra.mxu0 %v313
  %1403 = vmatpush.msra.mxu0 %v311
  %1404 = vmatpush.msra.mxu0 %v309
  %1405 = vmatpush.msra.mxu0 %v307
  %1406 = vmatpush.msra.mxu0 %v305
  %1407 = vmatmul.f32.gmra.mxu0 %v1369
  %v1408 = vpop.f32.mrf.mxu0
  %v1409 = vadd.f32 0.0, %v1408
  %1410 = vdwg.mxu0
  %v1411 = vadd.f32 %v1367, %v1389
  %v1412 = vadd.f32 %v1368, %v1409
  %v1413 = vxor.u32 %v1411, 2147483648
  %v1414 = vmul.f32 %v1413, 1.442695
  %v1415 = vpow.pop %v1414
  %v1416 = vadd.f32 %v1415, 1.0
  %v1417 = vrcp.pop %v1416
  %v1418 = vmul.f32 %v1416, %v1417
  %v1419 = vsub.f32 1.0, %v1418
  %v1420 = vmul.f32 %v1417, %v1419
  %v1421 = vadd.f32 %v1417, %v1420
  %vm1422 = vweird.f32 %v1416
  %vm1423 = vweird.f32 %v1417
  %vm1424 = vmor %vm1422, %vm1423
  %v1425 = vsel %vm1424, %v1417, %v1421
  %v1426 = vand.u32 2147483647, %v1416
  %vm1427 = vcmp.eq.f32.partialorder %v1426, 8.507059e+37
  %v1428 = vand.u32 %v1416, 2147483648
  %v1429 = vor.u32 1.1754944e-38, %v1428
  %v1430 = vsel %vm1427, %v1429, %v1425
  %v1431 = vmul.f32 1.0, %v1430
  %v1432 = vtanh.pop %v1412
  %v1433 = vxor.u32 %v1412, 2147483648
  %v1434 = vmul.f32 %v1433, 1.442695
  %v1435 = vpow.pop %v1434
  %v1436 = vadd.f32 %v1435, 1.0
  %v1437 = vrcp.pop %v1436
  %v1438 = vmul.f32 %v1436, %v1437
  %v1439 = vsub.f32 1.0, %v1438
  %v1440 = vmul.f32 %v1437, %v1439
  %v1441 = vadd.f32 %v1437, %v1440
  %vm1442 = vweird.f32 %v1436
  %vm1443 = vweird.f32 %v1437
  %vm1444 = vmor %vm1442, %vm1443
  %v1445 = vsel %vm1444, %v1437, %v1441
  %v1446 = vand.u32 2147483647, %v1436
  %vm1447 = vcmp.eq.f32.partialorder %v1446, 8.507059e+37
  %v1448 = vand.u32 %v1436, 2147483648
  %v1449 = vor.u32 1.1754944e-38, %v1448
  %v1450 = vsel %vm1447, %v1449, %v1445
  %v1451 = vmul.f32 1.0, %v1450
  %v1452 = vmul.f32 %v1431, %v1354
  %v1453 = vmul.f32 %v1431, %v1432
  %1455 = vrot.lane.b32.xlu0 %v1453, 64
  %v1456 = vpop.permute.xlu0 %1455
  %v1458 = vadd.f32 %v1452, %v1456
  %v1459 = vtanh.pop %v1458
  %v1460 = vmul.f32 %v1451, %v1459
  %1462 = vrot.lane.b32.xlu0 %v1460, 64
  %v1463 = vpop.permute.xlu0 %1462
  %1465 = vst.msk [vmem:[#allocation3 + $0x50] sm:$0xff] %vm423, %v1463
  %1466 = vst.msk [vmem:[#allocation3 + $0x28] sm:$0xff] %vm425, %v1463
  %v1467 = vld [vmem:[#allocation2 + $0xb0] sm:$0xff]
  %v1468 = vld [vmem:[#allocation2 + $0xb8] sm:$0xff]
  %v1469 = vld [vmem:[#allocation2 + $0x40] sm:$0xff]
  %v1470 = vld [vmem:[#allocation2 + $0x48] sm:$0xff]
  %v1471 = vsel %vm53, %v1467, %v1469
  %v1472 = vsel %vm54, %v1468, %v1470
  %v1473 = vsel %vm93, %v1463, 0
  %1475 = vmatpush.msra.mxu0 0.0
  %1476 = vmatpush.msra.mxu0 0.0
  %1477 = vmatpush.msra.mxu0 0.0
  %1478 = vmatpush.msra.mxu0 0.0
  %1479 = vmatpush.msra.mxu0 0.0
  %1480 = vmatpush.msra.mxu0 0.0
  %1481 = vmatpush.msra.mxu0 0.0
  %1482 = vmatpush.msra.mxu0 0.0
  %1483 = vmatpush.msra.mxu0 %v318
  %1484 = vmatpush.msra.mxu0 %v316
  %1485 = vmatpush.msra.mxu0 %v314
  %1486 = vmatpush.msra.mxu0 %v312
  %1487 = vmatpush.msra.mxu0 %v310
  %1488 = vmatpush.msra.mxu0 %v308
  %1489 = vmatpush.msra.mxu0 %v306
  %1490 = vmatpush.msra.mxu0 %v304
  %1491 = vmatmul.f32.gmra.mxu0 %v1473
  %v1492 = vpop.f32.mrf.mxu0
  %v1493 = vadd.f32 0.0, %v1492
  %1494 = vdwg.mxu0
  %1495 = vmatpush.msra.mxu0 0.0
  %1496 = vmatpush.msra.mxu0 0.0
  %1497 = vmatpush.msra.mxu0 0.0
  %1498 = vmatpush.msra.mxu0 0.0
  %1499 = vmatpush.msra.mxu0 0.0
  %1500 = vmatpush.msra.mxu0 0.0
  %1501 = vmatpush.msra.mxu0 0.0
  %1502 = vmatpush.msra.mxu0 0.0
  %1503 = vmatpush.msra.mxu0 %v319
  %1504 = vmatpush.msra.mxu0 %v317
  %1505 = vmatpush.msra.mxu0 %v315
  %1506 = vmatpush.msra.mxu0 %v313
  %1507 = vmatpush.msra.mxu0 %v311
  %1508 = vmatpush.msra.mxu0 %v309
  %1509 = vmatpush.msra.mxu0 %v307
  %1510 = vmatpush.msra.mxu0 %v305
  %1511 = vmatmul.f32.gmra.mxu0 %v1473
  %v1512 = vpop.f32.mrf.mxu0
  %v1513 = vadd.f32 0.0, %v1512
  %1514 = vdwg.mxu0
  %v1515 = vadd.f32 %v1471, %v1493
  %v1516 = vadd.f32 %v1472, %v1513
  %v1517 = vxor.u32 %v1515, 2147483648
  %v1518 = vmul.f32 %v1517, 1.442695
  %v1519 = vpow.pop %v1518
  %v1520 = vadd.f32 %v1519, 1.0
  %v1521 = vrcp.pop %v1520
  %v1522 = vmul.f32 %v1520, %v1521
  %v1523 = vsub.f32 1.0, %v1522
  %v1524 = vmul.f32 %v1521, %v1523
  %v1525 = vadd.f32 %v1521, %v1524
  %vm1526 = vweird.f32 %v1520
  %vm1527 = vweird.f32 %v1521
  %vm1528 = vmor %vm1526, %vm1527
  %v1529 = vsel %vm1528, %v1521, %v1525
  %v1530 = vand.u32 2147483647, %v1520
  %vm1531 = vcmp.eq.f32.partialorder %v1530, 8.507059e+37
  %v1532 = vand.u32 %v1520, 2147483648
  %v1533 = vor.u32 1.1754944e-38, %v1532
  %v1534 = vsel %vm1531, %v1533, %v1529
  %v1535 = vmul.f32 1.0, %v1534
  %v1536 = vtanh.pop %v1516
  %v1537 = vxor.u32 %v1516, 2147483648
  %v1538 = vmul.f32 %v1537, 1.442695
  %v1539 = vpow.pop %v1538
  %v1540 = vadd.f32 %v1539, 1.0
  %v1541 = vrcp.pop %v1540
  %v1542 = vmul.f32 %v1540, %v1541
  %v1543 = vsub.f32 1.0, %v1542
  %v1544 = vmul.f32 %v1541, %v1543
  %v1545 = vadd.f32 %v1541, %v1544
  %vm1546 = vweird.f32 %v1540
  %vm1547 = vweird.f32 %v1541
  %vm1548 = vmor %vm1546, %vm1547
  %v1549 = vsel %vm1548, %v1541, %v1545
  %v1550 = vand.u32 2147483647, %v1540
  %vm1551 = vcmp.eq.f32.partialorder %v1550, 8.507059e+37
  %v1552 = vand.u32 %v1540, 2147483648
  %v1553 = vor.u32 1.1754944e-38, %v1552
  %v1554 = vsel %vm1551, %v1553, %v1549
  %v1555 = vmul.f32 1.0, %v1554
  %v1556 = vmul.f32 %v1535, %v1458
  %v1557 = vmul.f32 %v1535, %v1536
  %1559 = vrot.lane.b32.xlu0 %v1557, 64
  %v1560 = vpop.permute.xlu0 %1559
  %v1562 = vadd.f32 %v1556, %v1560
  %v1563 = vtanh.pop %v1562
  %v1564 = vmul.f32 %v1555, %v1563
  %1566 = vrot.lane.b32.xlu0 %v1564, 64
  %v1567 = vpop.permute.xlu0 %1566
  %1569 = vst.msk [vmem:[#allocation3 + $0x58] sm:$0xff] %vm423, %v1567
  %1570 = vst.msk [vmem:[#allocation3 + $0x20] sm:$0xff] %vm425, %v1567
  %v1571 = vld [vmem:[#allocation2 + $0xc0] sm:$0xff]
  %v1572 = vld [vmem:[#allocation2 + $0xc8] sm:$0xff]
  %v1573 = vld [vmem:[#allocation2 + $0x30] sm:$0xff]
  %v1574 = vld [vmem:[#allocation2 + $0x38] sm:$0xff]
  %v1575 = vsel %vm53, %v1571, %v1573
  %v1576 = vsel %vm54, %v1572, %v1574
  %v1577 = vsel %vm93, %v1567, 0
  %1579 = vmatpush.msra.mxu0 0.0
  %1580 = vmatpush.msra.mxu0 0.0
  %1581 = vmatpush.msra.mxu0 0.0
  %1582 = vmatpush.msra.mxu0 0.0
  %1583 = vmatpush.msra.mxu0 0.0
  %1584 = vmatpush.msra.mxu0 0.0
  %1585 = vmatpush.msra.mxu0 0.0
  %1586 = vmatpush.msra.mxu0 0.0
  %1587 = vmatpush.msra.mxu0 %v318
  %1588 = vmatpush.msra.mxu0 %v316
  %1589 = vmatpush.msra.mxu0 %v314
  %1590 = vmatpush.msra.mxu0 %v312
  %1591 = vmatpush.msra.mxu0 %v310
  %1592 = vmatpush.msra.mxu0 %v308
  %1593 = vmatpush.msra.mxu0 %v306
  %1594 = vmatpush.msra.mxu0 %v304
  %1595 = vmatmul.f32.gmra.mxu0 %v1577
  %v1596 = vpop.f32.mrf.mxu0
  %v1597 = vadd.f32 0.0, %v1596
  %1598 = vdwg.mxu0
  %1599 = vmatpush.msra.mxu0 0.0
  %1600 = vmatpush.msra.mxu0 0.0
  %1601 = vmatpush.msra.mxu0 0.0
  %1602 = vmatpush.msra.mxu0 0.0
  %1603 = vmatpush.msra.mxu0 0.0
  %1604 = vmatpush.msra.mxu0 0.0
  %1605 = vmatpush.msra.mxu0 0.0
  %1606 = vmatpush.msra.mxu0 0.0
  %1607 = vmatpush.msra.mxu0 %v319
  %1608 = vmatpush.msra.mxu0 %v317
  %1609 = vmatpush.msra.mxu0 %v315
  %1610 = vmatpush.msra.mxu0 %v313
  %1611 = vmatpush.msra.mxu0 %v311
  %1612 = vmatpush.msra.mxu0 %v309
  %1613 = vmatpush.msra.mxu0 %v307
  %1614 = vmatpush.msra.mxu0 %v305
  %1615 = vmatmul.f32.gmra.mxu0 %v1577
  %v1616 = vpop.f32.mrf.mxu0
  %v1617 = vadd.f32 0.0, %v1616
  %1618 = vdwg.mxu0
  %v1619 = vadd.f32 %v1575, %v1597
  %v1620 = vadd.f32 %v1576, %v1617
  %v1621 = vxor.u32 %v1619, 2147483648
  %v1622 = vmul.f32 %v1621, 1.442695
  %v1623 = vpow.pop %v1622
  %v1624 = vadd.f32 %v1623, 1.0
  %v1625 = vrcp.pop %v1624
  %v1626 = vmul.f32 %v1624, %v1625
  %v1627 = vsub.f32 1.0, %v1626
  %v1628 = vmul.f32 %v1625, %v1627
  %v1629 = vadd.f32 %v1625, %v1628
  %vm1630 = vweird.f32 %v1624
  %vm1631 = vweird.f32 %v1625
  %vm1632 = vmor %vm1630, %vm1631
  %v1633 = vsel %vm1632, %v1625, %v1629
  %v1634 = vand.u32 2147483647, %v1624
  %vm1635 = vcmp.eq.f32.partialorder %v1634, 8.507059e+37
  %v1636 = vand.u32 %v1624, 2147483648
  %v1637 = vor.u32 1.1754944e-38, %v1636
  %v1638 = vsel %vm1635, %v1637, %v1633
  %v1639 = vmul.f32 1.0, %v1638
  %v1640 = vtanh.pop %v1620
  %v1641 = vxor.u32 %v1620, 2147483648
  %v1642 = vmul.f32 %v1641, 1.442695
  %v1643 = vpow.pop %v1642
  %v1644 = vadd.f32 %v1643, 1.0
  %v1645 = vrcp.pop %v1644
  %v1646 = vmul.f32 %v1644, %v1645
  %v1647 = vsub.f32 1.0, %v1646
  %v1648 = vmul.f32 %v1645, %v1647
  %v1649 = vadd.f32 %v1645, %v1648
  %vm1650 = vweird.f32 %v1644
  %vm1651 = vweird.f32 %v1645
  %vm1652 = vmor %vm1650, %vm1651
  %v1653 = vsel %vm1652, %v1645, %v1649
  %v1654 = vand.u32 2147483647, %v1644
  %vm1655 = vcmp.eq.f32.partialorder %v1654, 8.507059e+37
  %v1656 = vand.u32 %v1644, 2147483648
  %v1657 = vor.u32 1.1754944e-38, %v1656
  %v1658 = vsel %vm1655, %v1657, %v1653
  %v1659 = vmul.f32 1.0, %v1658
  %v1660 = vmul.f32 %v1639, %v1562
  %v1661 = vmul.f32 %v1639, %v1640
  %1663 = vrot.lane.b32.xlu0 %v1661, 64
  %v1664 = vpop.permute.xlu0 %1663
  %v1666 = vadd.f32 %v1660, %v1664
  %v1667 = vtanh.pop %v1666
  %v1668 = vmul.f32 %v1659, %v1667
  %1670 = vrot.lane.b32.xlu0 %v1668, 64
  %v1671 = vpop.permute.xlu0 %1670
  %1673 = vst.msk [vmem:[#allocation3 + $0x60] sm:$0xff] %vm423, %v1671
  %1674 = vst.msk [vmem:[#allocation3 + $0x18] sm:$0xff] %vm425, %v1671
  %v1675 = vld [vmem:[#allocation2 + $0xd0] sm:$0xff]
  %v1676 = vld [vmem:[#allocation2 + $0xd8] sm:$0xff]
  %v1677 = vld [vmem:[#allocation2 + $0x20] sm:$0xff]
  %v1678 = vld [vmem:[#allocation2 + $0x28] sm:$0xff]
  %v1679 = vsel %vm53, %v1675, %v1677
  %v1680 = vsel %vm54, %v1676, %v1678
  %v1681 = vsel %vm93, %v1671, 0
  %1683 = vmatpush.msra.mxu0 0.0
  %1684 = vmatpush.msra.mxu0 0.0
  %1685 = vmatpush.msra.mxu0 0.0
  %1686 = vmatpush.msra.mxu0 0.0
  %1687 = vmatpush.msra.mxu0 0.0
  %1688 = vmatpush.msra.mxu0 0.0
  %1689 = vmatpush.msra.mxu0 0.0
  %1690 = vmatpush.msra.mxu0 0.0
  %1691 = vmatpush.msra.mxu0 %v318
  %1692 = vmatpush.msra.mxu0 %v316
  %1693 = vmatpush.msra.mxu0 %v314
  %1694 = vmatpush.msra.mxu0 %v312
  %1695 = vmatpush.msra.mxu0 %v310
  %1696 = vmatpush.msra.mxu0 %v308
  %1697 = vmatpush.msra.mxu0 %v306
  %1698 = vmatpush.msra.mxu0 %v304
  %1699 = vmatmul.f32.gmra.mxu0 %v1681
  %v1700 = vpop.f32.mrf.mxu0
  %v1701 = vadd.f32 0.0, %v1700
  %1702 = vdwg.mxu0
  %1703 = vmatpush.msra.mxu0 0.0
  %1704 = vmatpush.msra.mxu0 0.0
  %1705 = vmatpush.msra.mxu0 0.0
  %1706 = vmatpush.msra.mxu0 0.0
  %1707 = vmatpush.msra.mxu0 0.0
  %1708 = vmatpush.msra.mxu0 0.0
  %1709 = vmatpush.msra.mxu0 0.0
  %1710 = vmatpush.msra.mxu0 0.0
  %1711 = vmatpush.msra.mxu0 %v319
  %1712 = vmatpush.msra.mxu0 %v317
  %1713 = vmatpush.msra.mxu0 %v315
  %1714 = vmatpush.msra.mxu0 %v313
  %1715 = vmatpush.msra.mxu0 %v311
  %1716 = vmatpush.msra.mxu0 %v309
  %1717 = vmatpush.msra.mxu0 %v307
  %1718 = vmatpush.msra.mxu0 %v305
  %1719 = vmatmul.f32.gmra.mxu0 %v1681
  %v1720 = vpop.f32.mrf.mxu0
  %v1721 = vadd.f32 0.0, %v1720
  %1722 = vdwg.mxu0
  %v1723 = vadd.f32 %v1679, %v1701
  %v1724 = vadd.f32 %v1680, %v1721
  %v1725 = vxor.u32 %v1723, 2147483648
  %v1726 = vmul.f32 %v1725, 1.442695
  %v1727 = vpow.pop %v1726
  %v1728 = vadd.f32 %v1727, 1.0
  %v1729 = vrcp.pop %v1728
  %v1730 = vmul.f32 %v1728, %v1729
  %v1731 = vsub.f32 1.0, %v1730
  %v1732 = vmul.f32 %v1729, %v1731
  %v1733 = vadd.f32 %v1729, %v1732
  %vm1734 = vweird.f32 %v1728
  %vm1735 = vweird.f32 %v1729
  %vm1736 = vmor %vm1734, %vm1735
  %v1737 = vsel %vm1736, %v1729, %v1733
  %v1738 = vand.u32 2147483647, %v1728
  %vm1739 = vcmp.eq.f32.partialorder %v1738, 8.507059e+37
  %v1740 = vand.u32 %v1728, 2147483648
  %v1741 = vor.u32 1.1754944e-38, %v1740
  %v1742 = vsel %vm1739, %v1741, %v1737
  %v1743 = vmul.f32 1.0, %v1742
  %v1744 = vtanh.pop %v1724
  %v1745 = vxor.u32 %v1724, 2147483648
  %v1746 = vmul.f32 %v1745, 1.442695
  %v1747 = vpow.pop %v1746
  %v1748 = vadd.f32 %v1747, 1.0
  %v1749 = vrcp.pop %v1748
  %v1750 = vmul.f32 %v1748, %v1749
  %v1751 = vsub.f32 1.0, %v1750
  %v1752 = vmul.f32 %v1749, %v1751
  %v1753 = vadd.f32 %v1749, %v1752
  %vm1754 = vweird.f32 %v1748
  %vm1755 = vweird.f32 %v1749
  %vm1756 = vmor %vm1754, %vm1755
  %v1757 = vsel %vm1756, %v1749, %v1753
  %v1758 = vand.u32 2147483647, %v1748
  %vm1759 = vcmp.eq.f32.partialorder %v1758, 8.507059e+37
  %v1760 = vand.u32 %v1748, 2147483648
  %v1761 = vor.u32 1.1754944e-38, %v1760
  %v1762 = vsel %vm1759, %v1761, %v1757
  %v1763 = vmul.f32 1.0, %v1762
  %v1764 = vmul.f32 %v1743, %v1666
  %v1765 = vmul.f32 %v1743, %v1744
  %1767 = vrot.lane.b32.xlu0 %v1765, 64
  %v1768 = vpop.permute.xlu0 %1767
  %v1770 = vadd.f32 %v1764, %v1768
  %v1771 = vtanh.pop %v1770
  %v1772 = vmul.f32 %v1763, %v1771
  %1774 = vrot.lane.b32.xlu0 %v1772, 64
  %v1775 = vpop.permute.xlu0 %1774
  %1777 = vst.msk [vmem:[#allocation3 + $0x68] sm:$0xff] %vm423, %v1775
  %1778 = vst.msk [vmem:[#allocation3 + $0x10] sm:$0xff] %vm425, %v1775
  %v1779 = vld [vmem:[#allocation2 + $0xe0] sm:$0xff]
  %v1780 = vld [vmem:[#allocation2 + $0xe8] sm:$0xff]
  %v1781 = vld [vmem:[#allocation2 + $0x10] sm:$0xff]
  %v1782 = vld [vmem:[#allocation2 + $0x18] sm:$0xff]
  %v1783 = vsel %vm53, %v1779, %v1781
  %v1784 = vsel %vm54, %v1780, %v1782
  %v1785 = vsel %vm93, %v1775, 0
  %1787 = vmatpush.msra.mxu0 0.0
  %1788 = vmatpush.msra.mxu0 0.0
  %1789 = vmatpush.msra.mxu0 0.0
  %1790 = vmatpush.msra.mxu0 0.0
  %1791 = vmatpush.msra.mxu0 0.0
  %1792 = vmatpush.msra.mxu0 0.0
  %1793 = vmatpush.msra.mxu0 0.0
  %1794 = vmatpush.msra.mxu0 0.0
  %1795 = vmatpush.msra.mxu0 %v318
  %1796 = vmatpush.msra.mxu0 %v316
  %1797 = vmatpush.msra.mxu0 %v314
  %1798 = vmatpush.msra.mxu0 %v312
  %1799 = vmatpush.msra.mxu0 %v310
  %1800 = vmatpush.msra.mxu0 %v308
  %1801 = vmatpush.msra.mxu0 %v306
  %1802 = vmatpush.msra.mxu0 %v304
  %1803 = vmatmul.f32.gmra.mxu0 %v1785
  %v1804 = vpop.f32.mrf.mxu0
  %v1805 = vadd.f32 0.0, %v1804
  %1806 = vdwg.mxu0
  %1807 = vmatpush.msra.mxu0 0.0
  %1808 = vmatpush.msra.mxu0 0.0
  %1809 = vmatpush.msra.mxu0 0.0
  %1810 = vmatpush.msra.mxu0 0.0
  %1811 = vmatpush.msra.mxu0 0.0
  %1812 = vmatpush.msra.mxu0 0.0
  %1813 = vmatpush.msra.mxu0 0.0
  %1814 = vmatpush.msra.mxu0 0.0
  %1815 = vmatpush.msra.mxu0 %v319
  %1816 = vmatpush.msra.mxu0 %v317
  %1817 = vmatpush.msra.mxu0 %v315
  %1818 = vmatpush.msra.mxu0 %v313
  %1819 = vmatpush.msra.mxu0 %v311
  %1820 = vmatpush.msra.mxu0 %v309
  %1821 = vmatpush.msra.mxu0 %v307
  %1822 = vmatpush.msra.mxu0 %v305
  %1823 = vmatmul.f32.gmra.mxu0 %v1785
  %v1824 = vpop.f32.mrf.mxu0
  %v1825 = vadd.f32 0.0, %v1824
  %1826 = vdwg.mxu0
  %v1827 = vadd.f32 %v1783, %v1805
  %v1828 = vadd.f32 %v1784, %v1825
  %v1829 = vxor.u32 %v1827, 2147483648
  %v1830 = vmul.f32 %v1829, 1.442695
  %v1831 = vpow.pop %v1830
  %v1832 = vadd.f32 %v1831, 1.0
  %v1833 = vrcp.pop %v1832
  %v1834 = vmul.f32 %v1832, %v1833
  %v1835 = vsub.f32 1.0, %v1834
  %v1836 = vmul.f32 %v1833, %v1835
  %v1837 = vadd.f32 %v1833, %v1836
  %vm1838 = vweird.f32 %v1832
  %vm1839 = vweird.f32 %v1833
  %vm1840 = vmor %vm1838, %vm1839
  %v1841 = vsel %vm1840, %v1833, %v1837
  %v1842 = vand.u32 2147483647, %v1832
  %vm1843 = vcmp.eq.f32.partialorder %v1842, 8.507059e+37
  %v1844 = vand.u32 %v1832, 2147483648
  %v1845 = vor.u32 1.1754944e-38, %v1844
  %v1846 = vsel %vm1843, %v1845, %v1841
  %v1847 = vmul.f32 1.0, %v1846
  %v1848 = vtanh.pop %v1828
  %v1849 = vxor.u32 %v1828, 2147483648
  %v1850 = vmul.f32 %v1849, 1.442695
  %v1851 = vpow.pop %v1850
  %v1852 = vadd.f32 %v1851, 1.0
  %v1853 = vrcp.pop %v1852
  %v1854 = vmul.f32 %v1852, %v1853
  %v1855 = vsub.f32 1.0, %v1854
  %v1856 = vmul.f32 %v1853, %v1855
  %v1857 = vadd.f32 %v1853, %v1856
  %vm1858 = vweird.f32 %v1852
  %vm1859 = vweird.f32 %v1853
  %vm1860 = vmor %vm1858, %vm1859
  %v1861 = vsel %vm1860, %v1853, %v1857
  %v1862 = vand.u32 2147483647, %v1852
  %vm1863 = vcmp.eq.f32.partialorder %v1862, 8.507059e+37
  %v1864 = vand.u32 %v1852, 2147483648
  %v1865 = vor.u32 1.1754944e-38, %v1864
  %v1866 = vsel %vm1863, %v1865, %v1861
  %v1867 = vmul.f32 1.0, %v1866
  %v1868 = vmul.f32 %v1847, %v1770
  %v1869 = vmul.f32 %v1847, %v1848
  %1871 = vrot.lane.b32.xlu0 %v1869, 64
  %v1872 = vpop.permute.xlu0 %1871
  %v1874 = vadd.f32 %v1868, %v1872
  %v1875 = vtanh.pop %v1874
  %v1876 = vmul.f32 %v1867, %v1875
  %1878 = vrot.lane.b32.xlu0 %v1876, 64
  %v1879 = vpop.permute.xlu0 %1878
  %1881 = vst.msk [vmem:[#allocation3 + $0x70] sm:$0xff] %vm423, %v1879
  %1882 = vst.msk [vmem:[#allocation3 + $0x8] sm:$0xff] %vm425, %v1879
  %v1883 = vld [vmem:[#allocation2 + $0xf0] sm:$0xff]
  %v1884 = vld [vmem:[#allocation2 + $0xf8] sm:$0xff]
  %v1885 = vld [vmem:[#allocation2] sm:$0xff]
  %v1886 = vld [vmem:[#allocation2 + $0x8] sm:$0xff]
  %v1887 = vsel %vm53, %v1883, %v1885
  %v1888 = vsel %vm54, %v1884, %v1886
  %v1889 = vsel %vm93, %v1879, 0
  %1891 = vmatpush.msra.mxu0 0.0
  %1892 = vmatpush.msra.mxu0 0.0
  %1893 = vmatpush.msra.mxu0 0.0
  %1894 = vmatpush.msra.mxu0 0.0
  %1895 = vmatpush.msra.mxu0 0.0
  %1896 = vmatpush.msra.mxu0 0.0
  %1897 = vmatpush.msra.mxu0 0.0
  %1898 = vmatpush.msra.mxu0 0.0
  %1899 = vmatpush.msra.mxu0 %v318
  %1900 = vmatpush.msra.mxu0 %v316
  %1901 = vmatpush.msra.mxu0 %v314
  %1902 = vmatpush.msra.mxu0 %v312
  %1903 = vmatpush.msra.mxu0 %v310
  %1904 = vmatpush.msra.mxu0 %v308
  %1905 = vmatpush.msra.mxu0 %v306
  %1906 = vmatpush.msra.mxu0 %v304
  %1907 = vmatmul.f32.gmra.mxu0 %v1889
  %v1908 = vpop.f32.mrf.mxu0
  %v1909 = vadd.f32 0.0, %v1908
  %1910 = vdwg.mxu0
  %1911 = vmatpush.msra.mxu0 0.0
  %1912 = vmatpush.msra.mxu0 0.0
  %1913 = vmatpush.msra.mxu0 0.0
  %1914 = vmatpush.msra.mxu0 0.0
  %1915 = vmatpush.msra.mxu0 0.0
  %1916 = vmatpush.msra.mxu0 0.0
  %1917 = vmatpush.msra.mxu0 0.0
  %1918 = vmatpush.msra.mxu0 0.0
  %1919 = vmatpush.msra.mxu0 %v319
  %1920 = vmatpush.msra.mxu0 %v317
  %1921 = vmatpush.msra.mxu0 %v315
  %1922 = vmatpush.msra.mxu0 %v313
  %1923 = vmatpush.msra.mxu0 %v311
  %1924 = vmatpush.msra.mxu0 %v309
  %1925 = vmatpush.msra.mxu0 %v307
  %1926 = vmatpush.msra.mxu0 %v305
  %1927 = vmatmul.f32.gmra.mxu0 %v1889
  %v1928 = vpop.f32.mrf.mxu0
  %v1929 = vadd.f32 0.0, %v1928
  %1930 = vdwg.mxu0
  %v1931 = vadd.f32 %v1887, %v1909
  %v1932 = vadd.f32 %v1888, %v1929
  %v1933 = vxor.u32 %v1931, 2147483648
  %v1934 = vmul.f32 %v1933, 1.442695
  %v1935 = vpow.pop %v1934
  %v1936 = vadd.f32 %v1935, 1.0
  %v1937 = vrcp.pop %v1936
  %v1938 = vmul.f32 %v1936, %v1937
  %v1939 = vsub.f32 1.0, %v1938
  %v1940 = vmul.f32 %v1937, %v1939
  %v1941 = vadd.f32 %v1937, %v1940
  %vm1942 = vweird.f32 %v1936
  %vm1943 = vweird.f32 %v1937
  %vm1944 = vmor %vm1942, %vm1943
  %v1945 = vsel %vm1944, %v1937, %v1941
  %v1946 = vand.u32 2147483647, %v1936
  %vm1947 = vcmp.eq.f32.partialorder %v1946, 8.507059e+37
  %v1948 = vand.u32 %v1936, 2147483648
  %v1949 = vor.u32 1.1754944e-38, %v1948
  %v1950 = vsel %vm1947, %v1949, %v1945
  %v1951 = vmul.f32 1.0, %v1950
  %v1952 = vtanh.pop %v1932
  %v1953 = vxor.u32 %v1932, 2147483648
  %v1954 = vmul.f32 %v1953, 1.442695
  %v1955 = vpow.pop %v1954
  %v1956 = vadd.f32 %v1955, 1.0
  %v1957 = vrcp.pop %v1956
  %v1958 = vmul.f32 %v1956, %v1957
  %v1959 = vsub.f32 1.0, %v1958
  %v1960 = vmul.f32 %v1957, %v1959
  %v1961 = vadd.f32 %v1957, %v1960
  %vm1962 = vweird.f32 %v1956
  %vm1963 = vweird.f32 %v1957
  %vm1964 = vmor %vm1962, %vm1963
  %v1965 = vsel %vm1964, %v1957, %v1961
  %v1966 = vand.u32 2147483647, %v1956
  %vm1967 = vcmp.eq.f32.partialorder %v1966, 8.507059e+37
  %v1968 = vand.u32 %v1956, 2147483648
  %v1969 = vor.u32 1.1754944e-38, %v1968
  %v1970 = vsel %vm1967, %v1969, %v1965
  %v1971 = vmul.f32 1.0, %v1970
  %v1972 = vmul.f32 %v1951, %v1874
  %v1973 = vmul.f32 %v1951, %v1952
  %1975 = vrot.lane.b32.xlu0 %v1973, 64
  %v1976 = vpop.permute.xlu0 %1975
  %v1978 = vadd.f32 %v1972, %v1976
  %v1979 = vtanh.pop %v1978
  %v1980 = vmul.f32 %v1971, %v1979
  %1982 = vrot.lane.b32.xlu0 %v1980, 64
  %v1983 = vpop.permute.xlu0 %1982
  %1985 = vst.msk [vmem:[#allocation3 + $0x78] sm:$0xff] %vm423, %v1983
  %1986 = vst.msk [vmem:[#allocation3] sm:$0xff] %vm425, %v1983
  %v1987 = vld [vmem:[#allocation3] sm:$0xff]
  %v1988 = vld [vmem:[#allocation3 + $0x8] sm:$0xff]
  %v1989 = vld [vmem:[#allocation3 + $0x10] sm:$0xff]
  %v1990 = vld [vmem:[#allocation3 + $0x18] sm:$0xff]
  %v1991 = vld [vmem:[#allocation3 + $0x20] sm:$0xff]
  %v1992 = vld [vmem:[#allocation3 + $0x28] sm:$0xff]
  %v1993 = vld [vmem:[#allocation3 + $0x30] sm:$0xff]
  %v1994 = vld [vmem:[#allocation3 + $0x38] sm:$0xff]
  %v1995 = vld [vmem:[#allocation3 + $0x40] sm:$0xff]
  %v1996 = vld [vmem:[#allocation3 + $0x48] sm:$0xff]
  %v1997 = vld [vmem:[#allocation3 + $0x50] sm:$0xff]
  %v1998 = vld [vmem:[#allocation3 + $0x58] sm:$0xff]
  %v1999 = vld [vmem:[#allocation3 + $0x60] sm:$0xff]
  %v2000 = vld [vmem:[#allocation3 + $0x68] sm:$0xff]
  %v2001 = vld [vmem:[#allocation3 + $0x70] sm:$0xff]
  %v2002 = vld [vmem:[#allocation3 + $0x78] sm:$0xff]
  %v2003 = vld [vmem:[%s4] sm:$0xff]
  %v2004 = vld [vmem:[%s4 + $0x8] sm:$0xff]
  %v2005 = vld [vmem:[%s4 + $0x10] sm:$0xff]
  %v2006 = vld [vmem:[%s4 + $0x18] sm:$0xff]
  %v2007 = vld [vmem:[%s4 + $0x20] sm:$0xff]
  %v2008 = vld [vmem:[%s4 + $0x28] sm:$0xff]
  %v2009 = vld [vmem:[%s4 + $0x30] sm:$0xff]
  %v2010 = vld [vmem:[%s4 + $0x38] sm:$0xff]
  %v2011 = vld [vmem:[%s4 + $0x40] sm:$0xff]
  %v2012 = vld [vmem:[%s4 + $0x48] sm:$0xff]
  %v2013 = vld [vmem:[%s4 + $0x50] sm:$0xff]
  %v2014 = vld [vmem:[%s4 + $0x58] sm:$0xff]
  %v2015 = vld [vmem:[%s4 + $0x60] sm:$0xff]
  %v2016 = vld [vmem:[%s4 + $0x68] sm:$0xff]
  %v2017 = vld [vmem:[%s4 + $0x70] sm:$0xff]
  %v2018 = vld [vmem:[%s4 + $0x78] sm:$0xff]
  %v2019 = vld [vmem:[%s6] sm:$0x3]
  %v2021 = vperm.slane %v2019, 0
  %v2022 = vperm.slane %v2019, 1
  %v2026 = vsel %vm93, %v1987, 0
  %v2029 = vsel %vm93, %v1988, 0
  %v2032 = vsel %vm93, %v1989, 0
  %v2035 = vsel %vm93, %v1990, 0
  %v2038 = vsel %vm93, %v1991, 0
  %v2041 = vsel %vm93, %v1992, 0
  %v2044 = vsel %vm93, %v1993, 0
  %v2047 = vsel %vm93, %v1994, 0
  %v2050 = vsel %vm93, %v1995, 0
  %v2053 = vsel %vm93, %v1996, 0
  %v2056 = vsel %vm93, %v1997, 0
  %v2059 = vsel %vm93, %v1998, 0
  %v2062 = vsel %vm93, %v1999, 0
  %v2065 = vsel %vm93, %v2000, 0
  %v2068 = vsel %vm93, %v2001, 0
  %v2071 = vsel %vm93, %v2002, 0
  %2073 = vmatpush.msra.mxu0 0.0
  %2074 = vmatpush.msra.mxu0 0.0
  %2075 = vmatpush.msra.mxu0 0.0
  %2076 = vmatpush.msra.mxu0 0.0
  %2077 = vmatpush.msra.mxu0 0.0
  %2078 = vmatpush.msra.mxu0 0.0
  %2079 = vmatpush.msra.mxu0 0.0
  %2080 = vmatpush.msra.mxu0 0.0
  %2081 = vmatpush.msra.mxu0 %v2017
  %2082 = vmatpush.msra.mxu0 %v2015
  %2083 = vmatpush.msra.mxu0 %v2013
  %2084 = vmatpush.msra.mxu0 %v2011
  %2085 = vmatpush.msra.mxu0 %v2009
  %2086 = vmatpush.msra.mxu0 %v2007
  %2087 = vmatpush.msra.mxu0 %v2005
  %2088 = vmatpush.msra.mxu0 %v2003
  %2089 = vmatmul.f32.gmra.mxu0 %v2026
  %v2090 = vpop.f32.mrf.mxu0
  %v2091 = vadd.f32 %v2021, %v2090
  %2092 = vmatmul.f32.gmra.mxu0 %v2029
  %v2093 = vpop.f32.mrf.mxu0
  %v2094 = vadd.f32 %v2021, %v2093
  %2095 = vmatmul.f32.gmra.mxu0 %v2032
  %v2096 = vpop.f32.mrf.mxu0
  %v2097 = vadd.f32 %v2021, %v2096
  %2098 = vmatmul.f32.gmra.mxu0 %v2035
  %v2099 = vpop.f32.mrf.mxu0
  %v2100 = vadd.f32 %v2021, %v2099
  %2101 = vmatmul.f32.gmra.mxu0 %v2038
  %v2102 = vpop.f32.mrf.mxu0
  %v2103 = vadd.f32 %v2021, %v2102
  %2104 = vmatmul.f32.gmra.mxu0 %v2041
  %v2105 = vpop.f32.mrf.mxu0
  %v2106 = vadd.f32 %v2021, %v2105
  %2107 = vmatmul.f32.gmra.mxu0 %v2044
  %v2108 = vpop.f32.mrf.mxu0
  %v2109 = vadd.f32 %v2021, %v2108
  %2110 = vmatmul.f32.gmra.mxu0 %v2047
  %v2111 = vpop.f32.mrf.mxu0
  %v2112 = vadd.f32 %v2021, %v2111
  %2113 = vmatmul.f32.gmra.mxu0 %v2050
  %v2114 = vpop.f32.mrf.mxu0
  %v2115 = vadd.f32 %v2021, %v2114
  %2116 = vmatmul.f32.gmra.mxu0 %v2053
  %v2117 = vpop.f32.mrf.mxu0
  %v2118 = vadd.f32 %v2021, %v2117
  %2119 = vmatmul.f32.gmra.mxu0 %v2056
  %v2120 = vpop.f32.mrf.mxu0
  %v2121 = vadd.f32 %v2021, %v2120
  %2122 = vmatmul.f32.gmra.mxu0 %v2059
  %v2123 = vpop.f32.mrf.mxu0
  %v2124 = vadd.f32 %v2021, %v2123
  %2125 = vmatmul.f32.gmra.mxu0 %v2062
  %v2126 = vpop.f32.mrf.mxu0
  %v2127 = vadd.f32 %v2021, %v2126
  %2128 = vmatmul.f32.gmra.mxu0 %v2065
  %v2129 = vpop.f32.mrf.mxu0
  %v2130 = vadd.f32 %v2021, %v2129
  %2131 = vmatmul.f32.gmra.mxu0 %v2068
  %v2132 = vpop.f32.mrf.mxu0
  %v2133 = vadd.f32 %v2021, %v2132
  %2134 = vmatmul.f32.gmra.mxu0 %v2071
  %v2135 = vpop.f32.mrf.mxu0
  %v2136 = vadd.f32 %v2021, %v2135
  %2137 = vdwg.mxu0
  %2138 = vmatpush.msra.mxu0 0.0
  %2139 = vmatpush.msra.mxu0 0.0
  %2140 = vmatpush.msra.mxu0 0.0
  %2141 = vmatpush.msra.mxu0 0.0
  %2142 = vmatpush.msra.mxu0 0.0
  %2143 = vmatpush.msra.mxu0 0.0
  %2144 = vmatpush.msra.mxu0 0.0
  %2145 = vmatpush.msra.mxu0 0.0
  %2146 = vmatpush.msra.mxu0 %v2018
  %2147 = vmatpush.msra.mxu0 %v2016
  %2148 = vmatpush.msra.mxu0 %v2014
  %2149 = vmatpush.msra.mxu0 %v2012
  %2150 = vmatpush.msra.mxu0 %v2010
  %2151 = vmatpush.msra.mxu0 %v2008
  %2152 = vmatpush.msra.mxu0 %v2006
  %2153 = vmatpush.msra.mxu0 %v2004
  %2154 = vmatmul.f32.gmra.mxu0 %v2026
  %v2155 = vpop.f32.mrf.mxu0
  %v2156 = vadd.f32 %v2022, %v2155
  %2157 = vmatmul.f32.gmra.mxu0 %v2029
  %v2158 = vpop.f32.mrf.mxu0
  %v2159 = vadd.f32 %v2022, %v2158
  %2160 = vmatmul.f32.gmra.mxu0 %v2032
  %v2161 = vpop.f32.mrf.mxu0
  %v2162 = vadd.f32 %v2022, %v2161
  %2163 = vmatmul.f32.gmra.mxu0 %v2035
  %v2164 = vpop.f32.mrf.mxu0
  %v2165 = vadd.f32 %v2022, %v2164
  %2166 = vmatmul.f32.gmra.mxu0 %v2038
  %v2167 = vpop.f32.mrf.mxu0
  %v2168 = vadd.f32 %v2022, %v2167
  %2169 = vmatmul.f32.gmra.mxu0 %v2041
  %v2170 = vpop.f32.mrf.mxu0
  %v2171 = vadd.f32 %v2022, %v2170
  %2172 = vmatmul.f32.gmra.mxu0 %v2044
  %v2173 = vpop.f32.mrf.mxu0
  %v2174 = vadd.f32 %v2022, %v2173
  %2175 = vmatmul.f32.gmra.mxu0 %v2047
  %v2176 = vpop.f32.mrf.mxu0
  %v2177 = vadd.f32 %v2022, %v2176
  %2178 = vmatmul.f32.gmra.mxu0 %v2050
  %v2179 = vpop.f32.mrf.mxu0
  %v2180 = vadd.f32 %v2022, %v2179
  %2181 = vmatmul.f32.gmra.mxu0 %v2053
  %v2182 = vpop.f32.mrf.mxu0
  %v2183 = vadd.f32 %v2022, %v2182
  %2184 = vmatmul.f32.gmra.mxu0 %v2056
  %v2185 = vpop.f32.mrf.mxu0
  %v2186 = vadd.f32 %v2022, %v2185
  %2187 = vmatmul.f32.gmra.mxu0 %v2059
  %v2188 = vpop.f32.mrf.mxu0
  %v2189 = vadd.f32 %v2022, %v2188
  %2190 = vmatmul.f32.gmra.mxu0 %v2062
  %v2191 = vpop.f32.mrf.mxu0
  %v2192 = vadd.f32 %v2022, %v2191
  %2193 = vmatmul.f32.gmra.mxu0 %v2065
  %v2194 = vpop.f32.mrf.mxu0
  %v2195 = vadd.f32 %v2022, %v2194
  %2196 = vmatmul.f32.gmra.mxu0 %v2068
  %v2197 = vpop.f32.mrf.mxu0
  %v2198 = vadd.f32 %v2022, %v2197
  %2199 = vmatmul.f32.gmra.mxu0 %v2071
  %v2200 = vpop.f32.mrf.mxu0
  %v2201 = vadd.f32 %v2022, %v2200
  %2202 = vdwg.mxu0
  %2203 = vst [vmem:[#allocation2] sm:$0xff] %v2091
  %2204 = vst [vmem:[#allocation2 + $0x8] sm:$0xff] %v2156
  %2205 = vst [vmem:[#allocation2 + $0x10] sm:$0xff] %v2094
  %2206 = vst [vmem:[#allocation2 + $0x18] sm:$0xff] %v2159
  %2207 = vst [vmem:[#allocation2 + $0x20] sm:$0xff] %v2097
  %2208 = vst [vmem:[#allocation2 + $0x28] sm:$0xff] %v2162
  %2209 = vst [vmem:[#allocation2 + $0x30] sm:$0xff] %v2100
  %2210 = vst [vmem:[#allocation2 + $0x38] sm:$0xff] %v2165
  %2211 = vst [vmem:[#allocation2 + $0x40] sm:$0xff] %v2103
  %2212 = vst [vmem:[#allocation2 + $0x48] sm:$0xff] %v2168
  %2213 = vst [vmem:[#allocation2 + $0x50] sm:$0xff] %v2106
  %2214 = vst [vmem:[#allocation2 + $0x58] sm:$0xff] %v2171
  %2215 = vst [vmem:[#allocation2 + $0x60] sm:$0xff] %v2109
  %2216 = vst [vmem:[#allocation2 + $0x68] sm:$0xff] %v2174
  %2217 = vst [vmem:[#allocation2 + $0x70] sm:$0xff] %v2112
  %2218 = vst [vmem:[#allocation2 + $0x78] sm:$0xff] %v2177
  %2219 = vst [vmem:[#allocation2 + $0x80] sm:$0xff] %v2115
  %2220 = vst [vmem:[#allocation2 + $0x88] sm:$0xff] %v2180
  %2221 = vst [vmem:[#allocation2 + $0x90] sm:$0xff] %v2118
  %2222 = vst [vmem:[#allocation2 + $0x98] sm:$0xff] %v2183
  %2223 = vst [vmem:[#allocation2 + $0xa0] sm:$0xff] %v2121
  %2224 = vst [vmem:[#allocation2 + $0xa8] sm:$0xff] %v2186
  %2225 = vst [vmem:[#allocation2 + $0xb0] sm:$0xff] %v2124
  %2226 = vst [vmem:[#allocation2 + $0xb8] sm:$0xff] %v2189
  %2227 = vst [vmem:[#allocation2 + $0xc0] sm:$0xff] %v2127
  %2228 = vst [vmem:[#allocation2 + $0xc8] sm:$0xff] %v2192
  %2229 = vst [vmem:[#allocation2 + $0xd0] sm:$0xff] %v2130
  %2230 = vst [vmem:[#allocation2 + $0xd8] sm:$0xff] %v2195
  %2231 = vst [vmem:[#allocation2 + $0xe0] sm:$0xff] %v2133
  %2232 = vst [vmem:[#allocation2 + $0xe8] sm:$0xff] %v2198
  %2233 = vst [vmem:[#allocation2 + $0xf0] sm:$0xff] %v2136
  %2234 = vst [vmem:[#allocation2 + $0xf8] sm:$0xff] %v2201
  %v2235 = vld [vmem:[%s5] sm:$0xff]
  %v2236 = vld [vmem:[%s5 + $0x8] sm:$0xff]
  %v2237 = vld [vmem:[%s5 + $0x10] sm:$0xff]
  %v2238 = vld [vmem:[%s5 + $0x18] sm:$0xff]
  %v2239 = vld [vmem:[%s5 + $0x20] sm:$0xff]
  %v2240 = vld [vmem:[%s5 + $0x28] sm:$0xff]
  %v2241 = vld [vmem:[%s5 + $0x30] sm:$0xff]
  %v2242 = vld [vmem:[%s5 + $0x38] sm:$0xff]
  %v2243 = vld [vmem:[%s5 + $0x40] sm:$0xff]
  %v2244 = vld [vmem:[%s5 + $0x48] sm:$0xff]
  %v2245 = vld [vmem:[%s5 + $0x50] sm:$0xff]
  %v2246 = vld [vmem:[%s5 + $0x58] sm:$0xff]
  %v2247 = vld [vmem:[%s5 + $0x60] sm:$0xff]
  %v2248 = vld [vmem:[%s5 + $0x68] sm:$0xff]
  %v2249 = vld [vmem:[%s5 + $0x70] sm:$0xff]
  %v2250 = vld [vmem:[%s5 + $0x78] sm:$0xff]
  %v2251 = vld [vmem:[#allocation2] sm:$0xff]
  %v2252 = vld [vmem:[#allocation2 + $0x8] sm:$0xff]
  %v2253 = vld [vmem:[#allocation2 + $0xf0] sm:$0xff]
  %v2254 = vld [vmem:[#allocation2 + $0xf8] sm:$0xff]
  %v2255 = vsel %vm53, %v2251, %v2253
  %v2256 = vsel %vm54, %v2252, %v2254
  %2257 = vmatpush.msra.mxu0 0.0
  %2258 = vmatpush.msra.mxu0 0.0
  %2259 = vmatpush.msra.mxu0 0.0
  %2260 = vmatpush.msra.mxu0 0.0
  %2261 = vmatpush.msra.mxu0 0.0
  %2262 = vmatpush.msra.mxu0 0.0
  %2263 = vmatpush.msra.mxu0 0.0
  %2264 = vmatpush.msra.mxu0 0.0
  %2265 = vmatpush.msra.mxu0 %v2249
  %2266 = vmatpush.msra.mxu0 %v2247
  %2267 = vmatpush.msra.mxu0 %v2245
  %2268 = vmatpush.msra.mxu0 %v2243
  %2269 = vmatpush.msra.mxu0 %v2241
  %2270 = vmatpush.msra.mxu0 %v2239
  %2271 = vmatpush.msra.mxu0 %v2237
  %2272 = vmatpush.msra.mxu0 %v2235
  %2273 = vmatmul.f32.gmra.mxu0 %v327
  %v2274 = vpop.f32.mrf.mxu0
  %v2275 = vadd.f32 0.0, %v2274
  %2276 = vdwg.mxu0
  %2277 = vmatpush.msra.mxu0 0.0
  %2278 = vmatpush.msra.mxu0 0.0
  %2279 = vmatpush.msra.mxu0 0.0
  %2280 = vmatpush.msra.mxu0 0.0
  %2281 = vmatpush.msra.mxu0 0.0
  %2282 = vmatpush.msra.mxu0 0.0
  %2283 = vmatpush.msra.mxu0 0.0
  %2284 = vmatpush.msra.mxu0 0.0
  %2285 = vmatpush.msra.mxu0 %v2250
  %2286 = vmatpush.msra.mxu0 %v2248
  %2287 = vmatpush.msra.mxu0 %v2246
  %2288 = vmatpush.msra.mxu0 %v2244
  %2289 = vmatpush.msra.mxu0 %v2242
  %2290 = vmatpush.msra.mxu0 %v2240
  %2291 = vmatpush.msra.mxu0 %v2238
  %2292 = vmatpush.msra.mxu0 %v2236
  %2293 = vmatmul.f32.gmra.mxu0 %v327
  %v2294 = vpop.f32.mrf.mxu0
  %v2295 = vadd.f32 0.0, %v2294
  %2296 = vdwg.mxu0
  %v2297 = vadd.f32 %v2255, %v2275
  %v2298 = vadd.f32 %v2256, %v2295
  %v2299 = vxor.u32 %v2297, 2147483648
  %v2300 = vmul.f32 %v2299, 1.442695
  %v2301 = vpow.pop %v2300
  %v2302 = vadd.f32 %v2301, 1.0
  %v2303 = vrcp.pop %v2302
  %v2304 = vmul.f32 %v2302, %v2303
  %v2305 = vsub.f32 1.0, %v2304
  %v2306 = vmul.f32 %v2303, %v2305
  %v2307 = vadd.f32 %v2303, %v2306
  %vm2308 = vweird.f32 %v2302
  %vm2309 = vweird.f32 %v2303
  %vm2310 = vmor %vm2308, %vm2309
  %v2311 = vsel %vm2310, %v2303, %v2307
  %v2312 = vand.u32 2147483647, %v2302
  %vm2313 = vcmp.eq.f32.partialorder %v2312, 8.507059e+37
  %v2314 = vand.u32 %v2302, 2147483648
  %v2315 = vor.u32 1.1754944e-38, %v2314
  %v2316 = vsel %vm2313, %v2315, %v2311
  %v2317 = vmul.f32 1.0, %v2316
  %v2318 = vtanh.pop %v2298
  %v2319 = vxor.u32 %v2298, 2147483648
  %v2320 = vmul.f32 %v2319, 1.442695
  %v2321 = vpow.pop %v2320
  %v2322 = vadd.f32 %v2321, 1.0
  %v2323 = vrcp.pop %v2322
  %v2324 = vmul.f32 %v2322, %v2323
  %v2325 = vsub.f32 1.0, %v2324
  %v2326 = vmul.f32 %v2323, %v2325
  %v2327 = vadd.f32 %v2323, %v2326
  %vm2328 = vweird.f32 %v2322
  %vm2329 = vweird.f32 %v2323
  %vm2330 = vmor %vm2328, %vm2329
  %v2331 = vsel %vm2330, %v2323, %v2327
  %v2332 = vand.u32 2147483647, %v2322
  %vm2333 = vcmp.eq.f32.partialorder %v2332, 8.507059e+37
  %v2334 = vand.u32 %v2322, 2147483648
  %v2335 = vor.u32 1.1754944e-38, %v2334
  %v2336 = vsel %vm2333, %v2335, %v2331
  %v2337 = vmul.f32 1.0, %v2336
  %v2338 = vmul.f32 %v2317, 0.0
  %v2339 = vmul.f32 %v2317, %v2318
  %2341 = vrot.lane.b32.xlu0 %v2339, 64
  %v2342 = vpop.permute.xlu0 %2341
  %v2344 = vadd.f32 %v2338, %v2342
  %v2345 = vtanh.pop %v2344
  %v2346 = vmul.f32 %v2337, %v2345
  %vm2347 = vcmask 785920
  %2348 = vst.msk [vmem:[%s7] sm:$0xff] %vm2347, %v2346
  %vm2349 = vcmask 1048320
  %2350 = vst.msk [vmem:[%s7 + $0x78] sm:$0xff] %vm2349, %v2346
  %v2351 = vld [vmem:[#allocation2 + $0x10] sm:$0xff]
  %v2352 = vld [vmem:[#allocation2 + $0x18] sm:$0xff]
  %v2353 = vld [vmem:[#allocation2 + $0xe0] sm:$0xff]
  %v2354 = vld [vmem:[#allocation2 + $0xe8] sm:$0xff]
  %v2355 = vsel %vm53, %v2351, %v2353
  %v2356 = vsel %vm54, %v2352, %v2354
  %2358 = vrot.lane.b32.xlu0 %v2346, 64
  %v2359 = vpop.permute.xlu0 %2358
  %v2360 = vsel %vm93, %v2359, 0
  %2362 = vmatpush.msra.mxu0 0.0
  %2363 = vmatpush.msra.mxu0 0.0
  %2364 = vmatpush.msra.mxu0 0.0
  %2365 = vmatpush.msra.mxu0 0.0
  %2366 = vmatpush.msra.mxu0 0.0
  %2367 = vmatpush.msra.mxu0 0.0
  %2368 = vmatpush.msra.mxu0 0.0
  %2369 = vmatpush.msra.mxu0 0.0
  %2370 = vmatpush.msra.mxu0 %v2249
  %2371 = vmatpush.msra.mxu0 %v2247
  %2372 = vmatpush.msra.mxu0 %v2245
  %2373 = vmatpush.msra.mxu0 %v2243
  %2374 = vmatpush.msra.mxu0 %v2241
  %2375 = vmatpush.msra.mxu0 %v2239
  %2376 = vmatpush.msra.mxu0 %v2237
  %2377 = vmatpush.msra.mxu0 %v2235
  %2378 = vmatmul.f32.gmra.mxu0 %v2360
  %v2379 = vpop.f32.mrf.mxu0
  %v2380 = vadd.f32 0.0, %v2379
  %2381 = vdwg.mxu0
  %2382 = vmatpush.msra.mxu0 0.0
  %2383 = vmatpush.msra.mxu0 0.0
  %2384 = vmatpush.msra.mxu0 0.0
  %2385 = vmatpush.msra.mxu0 0.0
  %2386 = vmatpush.msra.mxu0 0.0
  %2387 = vmatpush.msra.mxu0 0.0
  %2388 = vmatpush.msra.mxu0 0.0
  %2389 = vmatpush.msra.mxu0 0.0
  %2390 = vmatpush.msra.mxu0 %v2250
  %2391 = vmatpush.msra.mxu0 %v2248
  %2392 = vmatpush.msra.mxu0 %v2246
  %2393 = vmatpush.msra.mxu0 %v2244
  %2394 = vmatpush.msra.mxu0 %v2242
  %2395 = vmatpush.msra.mxu0 %v2240
  %2396 = vmatpush.msra.mxu0 %v2238
  %2397 = vmatpush.msra.mxu0 %v2236
  %2398 = vmatmul.f32.gmra.mxu0 %v2360
  %v2399 = vpop.f32.mrf.mxu0
  %v2400 = vadd.f32 0.0, %v2399
  %2401 = vdwg.mxu0
  %v2402 = vadd.f32 %v2355, %v2380
  %v2403 = vadd.f32 %v2356, %v2400
  %v2404 = vxor.u32 %v2402, 2147483648
  %v2405 = vmul.f32 %v2404, 1.442695
  %v2406 = vpow.pop %v2405
  %v2407 = vadd.f32 %v2406, 1.0
  %v2408 = vrcp.pop %v2407
  %v2409 = vmul.f32 %v2407, %v2408
  %v2410 = vsub.f32 1.0, %v2409
  %v2411 = vmul.f32 %v2408, %v2410
  %v2412 = vadd.f32 %v2408, %v2411
  %vm2413 = vweird.f32 %v2407
  %vm2414 = vweird.f32 %v2408
  %vm2415 = vmor %vm2413, %vm2414
  %v2416 = vsel %vm2415, %v2408, %v2412
  %v2417 = vand.u32 2147483647, %v2407
  %vm2418 = vcmp.eq.f32.partialorder %v2417, 8.507059e+37
  %v2419 = vand.u32 %v2407, 2147483648
  %v2420 = vor.u32 1.1754944e-38, %v2419
  %v2421 = vsel %vm2418, %v2420, %v2416
  %v2422 = vmul.f32 1.0, %v2421
  %v2423 = vtanh.pop %v2403
  %v2424 = vxor.u32 %v2403, 2147483648
  %v2425 = vmul.f32 %v2424, 1.442695
  %v2426 = vpow.pop %v2425
  %v2427 = vadd.f32 %v2426, 1.0
  %v2428 = vrcp.pop %v2427
  %v2429 = vmul.f32 %v2427, %v2428
  %v2430 = vsub.f32 1.0, %v2429
  %v2431 = vmul.f32 %v2428, %v2430
  %v2432 = vadd.f32 %v2428, %v2431
  %vm2433 = vweird.f32 %v2427
  %vm2434 = vweird.f32 %v2428
  %vm2435 = vmor %vm2433, %vm2434
  %v2436 = vsel %vm2435, %v2428, %v2432
  %v2437 = vand.u32 2147483647, %v2427
  %vm2438 = vcmp.eq.f32.partialorder %v2437, 8.507059e+37
  %v2439 = vand.u32 %v2427, 2147483648
  %v2440 = vor.u32 1.1754944e-38, %v2439
  %v2441 = vsel %vm2438, %v2440, %v2436
  %v2442 = vmul.f32 1.0, %v2441
  %v2443 = vmul.f32 %v2422, %v2344
  %v2444 = vmul.f32 %v2422, %v2423
  %2446 = vrot.lane.b32.xlu0 %v2444, 64
  %v2447 = vpop.permute.xlu0 %2446
  %v2449 = vadd.f32 %v2443, %v2447
  %v2450 = vtanh.pop %v2449
  %v2451 = vmul.f32 %v2442, %v2450
  %2452 = vst.msk [vmem:[%s7 + $0x8] sm:$0xff] %vm2347, %v2451
  %2453 = vst.msk [vmem:[%s7 + $0x70] sm:$0xff] %vm2349, %v2451
  %v2454 = vld [vmem:[#allocation2 + $0x20] sm:$0xff]
  %v2455 = vld [vmem:[#allocation2 + $0x28] sm:$0xff]
  %v2456 = vld [vmem:[#allocation2 + $0xd0] sm:$0xff]
  %v2457 = vld [vmem:[#allocation2 + $0xd8] sm:$0xff]
  %v2458 = vsel %vm53, %v2454, %v2456
  %v2459 = vsel %vm54, %v2455, %v2457
  %2461 = vrot.lane.b32.xlu0 %v2451, 64
  %v2462 = vpop.permute.xlu0 %2461
  %v2463 = vsel %vm93, %v2462, 0
  %2465 = vmatpush.msra.mxu0 0.0
  %2466 = vmatpush.msra.mxu0 0.0
  %2467 = vmatpush.msra.mxu0 0.0
  %2468 = vmatpush.msra.mxu0 0.0
  %2469 = vmatpush.msra.mxu0 0.0
  %2470 = vmatpush.msra.mxu0 0.0
  %2471 = vmatpush.msra.mxu0 0.0
  %2472 = vmatpush.msra.mxu0 0.0
  %2473 = vmatpush.msra.mxu0 %v2249
  %2474 = vmatpush.msra.mxu0 %v2247
  %2475 = vmatpush.msra.mxu0 %v2245
  %2476 = vmatpush.msra.mxu0 %v2243
  %2477 = vmatpush.msra.mxu0 %v2241
  %2478 = vmatpush.msra.mxu0 %v2239
  %2479 = vmatpush.msra.mxu0 %v2237
  %2480 = vmatpush.msra.mxu0 %v2235
  %2481 = vmatmul.f32.gmra.mxu0 %v2463
  %v2482 = vpop.f32.mrf.mxu0
  %v2483 = vadd.f32 0.0, %v2482
  %2484 = vdwg.mxu0
  %2485 = vmatpush.msra.mxu0 0.0
  %2486 = vmatpush.msra.mxu0 0.0
  %2487 = vmatpush.msra.mxu0 0.0
  %2488 = vmatpush.msra.mxu0 0.0
  %2489 = vmatpush.msra.mxu0 0.0
  %2490 = vmatpush.msra.mxu0 0.0
  %2491 = vmatpush.msra.mxu0 0.0
  %2492 = vmatpush.msra.mxu0 0.0
  %2493 = vmatpush.msra.mxu0 %v2250
  %2494 = vmatpush.msra.mxu0 %v2248
  %2495 = vmatpush.msra.mxu0 %v2246
  %2496 = vmatpush.msra.mxu0 %v2244
  %2497 = vmatpush.msra.mxu0 %v2242
  %2498 = vmatpush.msra.mxu0 %v2240
  %2499 = vmatpush.msra.mxu0 %v2238
  %2500 = vmatpush.msra.mxu0 %v2236
  %2501 = vmatmul.f32.gmra.mxu0 %v2463
  %v2502 = vpop.f32.mrf.mxu0
  %v2503 = vadd.f32 0.0, %v2502
  %2504 = vdwg.mxu0
  %v2505 = vadd.f32 %v2458, %v2483
  %v2506 = vadd.f32 %v2459, %v2503
  %v2507 = vxor.u32 %v2505, 2147483648
  %v2508 = vmul.f32 %v2507, 1.442695
  %v2509 = vpow.pop %v2508
  %v2510 = vadd.f32 %v2509, 1.0
  %v2511 = vrcp.pop %v2510
  %v2512 = vmul.f32 %v2510, %v2511
  %v2513 = vsub.f32 1.0, %v2512
  %v2514 = vmul.f32 %v2511, %v2513
  %v2515 = vadd.f32 %v2511, %v2514
  %vm2516 = vweird.f32 %v2510
  %vm2517 = vweird.f32 %v2511
  %vm2518 = vmor %vm2516, %vm2517
  %v2519 = vsel %vm2518, %v2511, %v2515
  %v2520 = vand.u32 2147483647, %v2510
  %vm2521 = vcmp.eq.f32.partialorder %v2520, 8.507059e+37
  %v2522 = vand.u32 %v2510, 2147483648
  %v2523 = vor.u32 1.1754944e-38, %v2522
  %v2524 = vsel %vm2521, %v2523, %v2519
  %v2525 = vmul.f32 1.0, %v2524
  %v2526 = vtanh.pop %v2506
  %v2527 = vxor.u32 %v2506, 2147483648
  %v2528 = vmul.f32 %v2527, 1.442695
  %v2529 = vpow.pop %v2528
  %v2530 = vadd.f32 %v2529, 1.0
  %v2531 = vrcp.pop %v2530
  %v2532 = vmul.f32 %v2530, %v2531
  %v2533 = vsub.f32 1.0, %v2532
  %v2534 = vmul.f32 %v2531, %v2533
  %v2535 = vadd.f32 %v2531, %v2534
  %vm2536 = vweird.f32 %v2530
  %vm2537 = vweird.f32 %v2531
  %vm2538 = vmor %vm2536, %vm2537
  %v2539 = vsel %vm2538, %v2531, %v2535
  %v2540 = vand.u32 2147483647, %v2530
  %vm2541 = vcmp.eq.f32.partialorder %v2540, 8.507059e+37
  %v2542 = vand.u32 %v2530, 2147483648
  %v2543 = vor.u32 1.1754944e-38, %v2542
  %v2544 = vsel %vm2541, %v2543, %v2539
  %v2545 = vmul.f32 1.0, %v2544
  %v2546 = vmul.f32 %v2525, %v2449
  %v2547 = vmul.f32 %v2525, %v2526
  %2549 = vrot.lane.b32.xlu0 %v2547, 64
  %v2550 = vpop.permute.xlu0 %2549
  %v2552 = vadd.f32 %v2546, %v2550
  %v2553 = vtanh.pop %v2552
  %v2554 = vmul.f32 %v2545, %v2553
  %2555 = vst.msk [vmem:[%s7 + $0x10] sm:$0xff] %vm2347, %v2554
  %2556 = vst.msk [vmem:[%s7 + $0x68] sm:$0xff] %vm2349, %v2554
  %v2557 = vld [vmem:[#allocation2 + $0x30] sm:$0xff]
  %v2558 = vld [vmem:[#allocation2 + $0x38] sm:$0xff]
  %v2559 = vld [vmem:[#allocation2 + $0xc0] sm:$0xff]
  %v2560 = vld [vmem:[#allocation2 + $0xc8] sm:$0xff]
  %v2561 = vsel %vm53, %v2557, %v2559
  %v2562 = vsel %vm54, %v2558, %v2560
  %2564 = vrot.lane.b32.xlu0 %v2554, 64
  %v2565 = vpop.permute.xlu0 %2564
  %v2566 = vsel %vm93, %v2565, 0
  %2568 = vmatpush.msra.mxu0 0.0
  %2569 = vmatpush.msra.mxu0 0.0
  %2570 = vmatpush.msra.mxu0 0.0
  %2571 = vmatpush.msra.mxu0 0.0
  %2572 = vmatpush.msra.mxu0 0.0
  %2573 = vmatpush.msra.mxu0 0.0
  %2574 = vmatpush.msra.mxu0 0.0
  %2575 = vmatpush.msra.mxu0 0.0
  %2576 = vmatpush.msra.mxu0 %v2249
  %2577 = vmatpush.msra.mxu0 %v2247
  %2578 = vmatpush.msra.mxu0 %v2245
  %2579 = vmatpush.msra.mxu0 %v2243
  %2580 = vmatpush.msra.mxu0 %v2241
  %2581 = vmatpush.msra.mxu0 %v2239
  %2582 = vmatpush.msra.mxu0 %v2237
  %2583 = vmatpush.msra.mxu0 %v2235
  %2584 = vmatmul.f32.gmra.mxu0 %v2566
  %v2585 = vpop.f32.mrf.mxu0
  %v2586 = vadd.f32 0.0, %v2585
  %2587 = vdwg.mxu0
  %2588 = vmatpush.msra.mxu0 0.0
  %2589 = vmatpush.msra.mxu0 0.0
  %2590 = vmatpush.msra.mxu0 0.0
  %2591 = vmatpush.msra.mxu0 0.0
  %2592 = vmatpush.msra.mxu0 0.0
  %2593 = vmatpush.msra.mxu0 0.0
  %2594 = vmatpush.msra.mxu0 0.0
  %2595 = vmatpush.msra.mxu0 0.0
  %2596 = vmatpush.msra.mxu0 %v2250
  %2597 = vmatpush.msra.mxu0 %v2248
  %2598 = vmatpush.msra.mxu0 %v2246
  %2599 = vmatpush.msra.mxu0 %v2244
  %2600 = vmatpush.msra.mxu0 %v2242
  %2601 = vmatpush.msra.mxu0 %v2240
  %2602 = vmatpush.msra.mxu0 %v2238
  %2603 = vmatpush.msra.mxu0 %v2236
  %2604 = vmatmul.f32.gmra.mxu0 %v2566
  %v2605 = vpop.f32.mrf.mxu0
  %v2606 = vadd.f32 0.0, %v2605
  %2607 = vdwg.mxu0
  %v2608 = vadd.f32 %v2561, %v2586
  %v2609 = vadd.f32 %v2562, %v2606
  %v2610 = vxor.u32 %v2608, 2147483648
  %v2611 = vmul.f32 %v2610, 1.442695
  %v2612 = vpow.pop %v2611
  %v2613 = vadd.f32 %v2612, 1.0
  %v2614 = vrcp.pop %v2613
  %v2615 = vmul.f32 %v2613, %v2614
  %v2616 = vsub.f32 1.0, %v2615
  %v2617 = vmul.f32 %v2614, %v2616
  %v2618 = vadd.f32 %v2614, %v2617
  %vm2619 = vweird.f32 %v2613
  %vm2620 = vweird.f32 %v2614
  %vm2621 = vmor %vm2619, %vm2620
  %v2622 = vsel %vm2621, %v2614, %v2618
  %v2623 = vand.u32 2147483647, %v2613
  %vm2624 = vcmp.eq.f32.partialorder %v2623, 8.507059e+37
  %v2625 = vand.u32 %v2613, 2147483648
  %v2626 = vor.u32 1.1754944e-38, %v2625
  %v2627 = vsel %vm2624, %v2626, %v2622
  %v2628 = vmul.f32 1.0, %v2627
  %v2629 = vtanh.pop %v2609
  %v2630 = vxor.u32 %v2609, 2147483648
  %v2631 = vmul.f32 %v2630, 1.442695
  %v2632 = vpow.pop %v2631
  %v2633 = vadd.f32 %v2632, 1.0
  %v2634 = vrcp.pop %v2633
  %v2635 = vmul.f32 %v2633, %v2634
  %v2636 = vsub.f32 1.0, %v2635
  %v2637 = vmul.f32 %v2634, %v2636
  %v2638 = vadd.f32 %v2634, %v2637
  %vm2639 = vweird.f32 %v2633
  %vm2640 = vweird.f32 %v2634
  %vm2641 = vmor %vm2639, %vm2640
  %v2642 = vsel %vm2641, %v2634, %v2638
  %v2643 = vand.u32 2147483647, %v2633
  %vm2644 = vcmp.eq.f32.partialorder %v2643, 8.507059e+37
  %v2645 = vand.u32 %v2633, 2147483648
  %v2646 = vor.u32 1.1754944e-38, %v2645
  %v2647 = vsel %vm2644, %v2646, %v2642
  %v2648 = vmul.f32 1.0, %v2647
  %v2649 = vmul.f32 %v2628, %v2552
  %v2650 = vmul.f32 %v2628, %v2629
  %2652 = vrot.lane.b32.xlu0 %v2650, 64
  %v2653 = vpop.permute.xlu0 %2652
  %v2655 = vadd.f32 %v2649, %v2653
  %v2656 = vtanh.pop %v2655
  %v2657 = vmul.f32 %v2648, %v2656
  %2658 = vst.msk [vmem:[%s7 + $0x18] sm:$0xff] %vm2347, %v2657
  %2659 = vst.msk [vmem:[%s7 + $0x60] sm:$0xff] %vm2349, %v2657
  %v2660 = vld [vmem:[#allocation2 + $0x40] sm:$0xff]
  %v2661 = vld [vmem:[#allocation2 + $0x48] sm:$0xff]
  %v2662 = vld [vmem:[#allocation2 + $0xb0] sm:$0xff]
  %v2663 = vld [vmem:[#allocation2 + $0xb8] sm:$0xff]
  %v2664 = vsel %vm53, %v2660, %v2662
  %v2665 = vsel %vm54, %v2661, %v2663
  %2667 = vrot.lane.b32.xlu0 %v2657, 64
  %v2668 = vpop.permute.xlu0 %2667
  %v2669 = vsel %vm93, %v2668, 0
  %2671 = vmatpush.msra.mxu0 0.0
  %2672 = vmatpush.msra.mxu0 0.0
  %2673 = vmatpush.msra.mxu0 0.0
  %2674 = vmatpush.msra.mxu0 0.0
  %2675 = vmatpush.msra.mxu0 0.0
  %2676 = vmatpush.msra.mxu0 0.0
  %2677 = vmatpush.msra.mxu0 0.0
  %2678 = vmatpush.msra.mxu0 0.0
  %2679 = vmatpush.msra.mxu0 %v2249
  %2680 = vmatpush.msra.mxu0 %v2247
  %2681 = vmatpush.msra.mxu0 %v2245
  %2682 = vmatpush.msra.mxu0 %v2243
  %2683 = vmatpush.msra.mxu0 %v2241
  %2684 = vmatpush.msra.mxu0 %v2239
  %2685 = vmatpush.msra.mxu0 %v2237
  %2686 = vmatpush.msra.mxu0 %v2235
  %2687 = vmatmul.f32.gmra.mxu0 %v2669
  %v2688 = vpop.f32.mrf.mxu0
  %v2689 = vadd.f32 0.0, %v2688
  %2690 = vdwg.mxu0
  %2691 = vmatpush.msra.mxu0 0.0
  %2692 = vmatpush.msra.mxu0 0.0
  %2693 = vmatpush.msra.mxu0 0.0
  %2694 = vmatpush.msra.mxu0 0.0
  %2695 = vmatpush.msra.mxu0 0.0
  %2696 = vmatpush.msra.mxu0 0.0
  %2697 = vmatpush.msra.mxu0 0.0
  %2698 = vmatpush.msra.mxu0 0.0
  %2699 = vmatpush.msra.mxu0 %v2250
  %2700 = vmatpush.msra.mxu0 %v2248
  %2701 = vmatpush.msra.mxu0 %v2246
  %2702 = vmatpush.msra.mxu0 %v2244
  %2703 = vmatpush.msra.mxu0 %v2242
  %2704 = vmatpush.msra.mxu0 %v2240
  %2705 = vmatpush.msra.mxu0 %v2238
  %2706 = vmatpush.msra.mxu0 %v2236
  %2707 = vmatmul.f32.gmra.mxu0 %v2669
  %v2708 = vpop.f32.mrf.mxu0
  %v2709 = vadd.f32 0.0, %v2708
  %2710 = vdwg.mxu0
  %v2711 = vadd.f32 %v2664, %v2689
  %v2712 = vadd.f32 %v2665, %v2709
  %v2713 = vxor.u32 %v2711, 2147483648
  %v2714 = vmul.f32 %v2713, 1.442695
  %v2715 = vpow.pop %v2714
  %v2716 = vadd.f32 %v2715, 1.0
  %v2717 = vrcp.pop %v2716
  %v2718 = vmul.f32 %v2716, %v2717
  %v2719 = vsub.f32 1.0, %v2718
  %v2720 = vmul.f32 %v2717, %v2719
  %v2721 = vadd.f32 %v2717, %v2720
  %vm2722 = vweird.f32 %v2716
  %vm2723 = vweird.f32 %v2717
  %vm2724 = vmor %vm2722, %vm2723
  %v2725 = vsel %vm2724, %v2717, %v2721
  %v2726 = vand.u32 2147483647, %v2716
  %vm2727 = vcmp.eq.f32.partialorder %v2726, 8.507059e+37
  %v2728 = vand.u32 %v2716, 2147483648
  %v2729 = vor.u32 1.1754944e-38, %v2728
  %v2730 = vsel %vm2727, %v2729, %v2725
  %v2731 = vmul.f32 1.0, %v2730
  %v2732 = vtanh.pop %v2712
  %v2733 = vxor.u32 %v2712, 2147483648
  %v2734 = vmul.f32 %v2733, 1.442695
  %v2735 = vpow.pop %v2734
  %v2736 = vadd.f32 %v2735, 1.0
  %v2737 = vrcp.pop %v2736
  %v2738 = vmul.f32 %v2736, %v2737
  %v2739 = vsub.f32 1.0, %v2738
  %v2740 = vmul.f32 %v2737, %v2739
  %v2741 = vadd.f32 %v2737, %v2740
  %vm2742 = vweird.f32 %v2736
  %vm2743 = vweird.f32 %v2737
  %vm2744 = vmor %vm2742, %vm2743
  %v2745 = vsel %vm2744, %v2737, %v2741
  %v2746 = vand.u32 2147483647, %v2736
  %vm2747 = vcmp.eq.f32.partialorder %v2746, 8.507059e+37
  %v2748 = vand.u32 %v2736, 2147483648
  %v2749 = vor.u32 1.1754944e-38, %v2748
  %v2750 = vsel %vm2747, %v2749, %v2745
  %v2751 = vmul.f32 1.0, %v2750
  %v2752 = vmul.f32 %v2731, %v2655
  %v2753 = vmul.f32 %v2731, %v2732
  %2755 = vrot.lane.b32.xlu0 %v2753, 64
  %v2756 = vpop.permute.xlu0 %2755
  %v2758 = vadd.f32 %v2752, %v2756
  %v2759 = vtanh.pop %v2758
  %v2760 = vmul.f32 %v2751, %v2759
  %2761 = vst.msk [vmem:[%s7 + $0x20] sm:$0xff] %vm2347, %v2760
  %2762 = vst.msk [vmem:[%s7 + $0x58] sm:$0xff] %vm2349, %v2760
  %v2763 = vld [vmem:[#allocation2 + $0x50] sm:$0xff]
  %v2764 = vld [vmem:[#allocation2 + $0x58] sm:$0xff]
  %v2765 = vld [vmem:[#allocation2 + $0xa0] sm:$0xff]
  %v2766 = vld [vmem:[#allocation2 + $0xa8] sm:$0xff]
  %v2767 = vsel %vm53, %v2763, %v2765
  %v2768 = vsel %vm54, %v2764, %v2766
  %2770 = vrot.lane.b32.xlu0 %v2760, 64
  %v2771 = vpop.permute.xlu0 %2770
  %v2772 = vsel %vm93, %v2771, 0
  %2774 = vmatpush.msra.mxu0 0.0
  %2775 = vmatpush.msra.mxu0 0.0
  %2776 = vmatpush.msra.mxu0 0.0
  %2777 = vmatpush.msra.mxu0 0.0
  %2778 = vmatpush.msra.mxu0 0.0
  %2779 = vmatpush.msra.mxu0 0.0
  %2780 = vmatpush.msra.mxu0 0.0
  %2781 = vmatpush.msra.mxu0 0.0
  %2782 = vmatpush.msra.mxu0 %v2249
  %2783 = vmatpush.msra.mxu0 %v2247
  %2784 = vmatpush.msra.mxu0 %v2245
  %2785 = vmatpush.msra.mxu0 %v2243
  %2786 = vmatpush.msra.mxu0 %v2241
  %2787 = vmatpush.msra.mxu0 %v2239
  %2788 = vmatpush.msra.mxu0 %v2237
  %2789 = vmatpush.msra.mxu0 %v2235
  %2790 = vmatmul.f32.gmra.mxu0 %v2772
  %v2791 = vpop.f32.mrf.mxu0
  %v2792 = vadd.f32 0.0, %v2791
  %2793 = vdwg.mxu0
  %2794 = vmatpush.msra.mxu0 0.0
  %2795 = vmatpush.msra.mxu0 0.0
  %2796 = vmatpush.msra.mxu0 0.0
  %2797 = vmatpush.msra.mxu0 0.0
  %2798 = vmatpush.msra.mxu0 0.0
  %2799 = vmatpush.msra.mxu0 0.0
  %2800 = vmatpush.msra.mxu0 0.0
  %2801 = vmatpush.msra.mxu0 0.0
  %2802 = vmatpush.msra.mxu0 %v2250
  %2803 = vmatpush.msra.mxu0 %v2248
  %2804 = vmatpush.msra.mxu0 %v2246
  %2805 = vmatpush.msra.mxu0 %v2244
  %2806 = vmatpush.msra.mxu0 %v2242
  %2807 = vmatpush.msra.mxu0 %v2240
  %2808 = vmatpush.msra.mxu0 %v2238
  %2809 = vmatpush.msra.mxu0 %v2236
  %2810 = vmatmul.f32.gmra.mxu0 %v2772
  %v2811 = vpop.f32.mrf.mxu0
  %v2812 = vadd.f32 0.0, %v2811
  %2813 = vdwg.mxu0
  %v2814 = vadd.f32 %v2767, %v2792
  %v2815 = vadd.f32 %v2768, %v2812
  %v2816 = vxor.u32 %v2814, 2147483648
  %v2817 = vmul.f32 %v2816, 1.442695
  %v2818 = vpow.pop %v2817
  %v2819 = vadd.f32 %v2818, 1.0
  %v2820 = vrcp.pop %v2819
  %v2821 = vmul.f32 %v2819, %v2820
  %v2822 = vsub.f32 1.0, %v2821
  %v2823 = vmul.f32 %v2820, %v2822
  %v2824 = vadd.f32 %v2820, %v2823
  %vm2825 = vweird.f32 %v2819
  %vm2826 = vweird.f32 %v2820
  %vm2827 = vmor %vm2825, %vm2826
  %v2828 = vsel %vm2827, %v2820, %v2824
  %v2829 = vand.u32 2147483647, %v2819
  %vm2830 = vcmp.eq.f32.partialorder %v2829, 8.507059e+37
  %v2831 = vand.u32 %v2819, 2147483648
  %v2832 = vor.u32 1.1754944e-38, %v2831
  %v2833 = vsel %vm2830, %v2832, %v2828
  %v2834 = vmul.f32 1.0, %v2833
  %v2835 = vtanh.pop %v2815
  %v2836 = vxor.u32 %v2815, 2147483648
  %v2837 = vmul.f32 %v2836, 1.442695
  %v2838 = vpow.pop %v2837
  %v2839 = vadd.f32 %v2838, 1.0
  %v2840 = vrcp.pop %v2839
  %v2841 = vmul.f32 %v2839, %v2840
  %v2842 = vsub.f32 1.0, %v2841
  %v2843 = vmul.f32 %v2840, %v2842
  %v2844 = vadd.f32 %v2840, %v2843
  %vm2845 = vweird.f32 %v2839
  %vm2846 = vweird.f32 %v2840
  %vm2847 = vmor %vm2845, %vm2846
  %v2848 = vsel %vm2847, %v2840, %v2844
  %v2849 = vand.u32 2147483647, %v2839
  %vm2850 = vcmp.eq.f32.partialorder %v2849, 8.507059e+37
  %v2851 = vand.u32 %v2839, 2147483648
  %v2852 = vor.u32 1.1754944e-38, %v2851
  %v2853 = vsel %vm2850, %v2852, %v2848
  %v2854 = vmul.f32 1.0, %v2853
  %v2855 = vmul.f32 %v2834, %v2758
  %v2856 = vmul.f32 %v2834, %v2835
  %2858 = vrot.lane.b32.xlu0 %v2856, 64
  %v2859 = vpop.permute.xlu0 %2858
  %v2861 = vadd.f32 %v2855, %v2859
  %v2862 = vtanh.pop %v2861
  %v2863 = vmul.f32 %v2854, %v2862
  %2864 = vst.msk [vmem:[%s7 + $0x28] sm:$0xff] %vm2347, %v2863
  %2865 = vst.msk [vmem:[%s7 + $0x50] sm:$0xff] %vm2349, %v2863
  %v2866 = vld [vmem:[#allocation2 + $0x60] sm:$0xff]
  %v2867 = vld [vmem:[#allocation2 + $0x68] sm:$0xff]
  %v2868 = vld [vmem:[#allocation2 + $0x90] sm:$0xff]
  %v2869 = vld [vmem:[#allocation2 + $0x98] sm:$0xff]
  %v2870 = vsel %vm53, %v2866, %v2868
  %v2871 = vsel %vm54, %v2867, %v2869
  %2873 = vrot.lane.b32.xlu0 %v2863, 64
  %v2874 = vpop.permute.xlu0 %2873
  %v2875 = vsel %vm93, %v2874, 0
  %2877 = vmatpush.msra.mxu0 0.0
  %2878 = vmatpush.msra.mxu0 0.0
  %2879 = vmatpush.msra.mxu0 0.0
  %2880 = vmatpush.msra.mxu0 0.0
  %2881 = vmatpush.msra.mxu0 0.0
  %2882 = vmatpush.msra.mxu0 0.0
  %2883 = vmatpush.msra.mxu0 0.0
  %2884 = vmatpush.msra.mxu0 0.0
  %2885 = vmatpush.msra.mxu0 %v2249
  %2886 = vmatpush.msra.mxu0 %v2247
  %2887 = vmatpush.msra.mxu0 %v2245
  %2888 = vmatpush.msra.mxu0 %v2243
  %2889 = vmatpush.msra.mxu0 %v2241
  %2890 = vmatpush.msra.mxu0 %v2239
  %2891 = vmatpush.msra.mxu0 %v2237
  %2892 = vmatpush.msra.mxu0 %v2235
  %2893 = vmatmul.f32.gmra.mxu0 %v2875
  %v2894 = vpop.f32.mrf.mxu0
  %v2895 = vadd.f32 0.0, %v2894
  %2896 = vdwg.mxu0
  %2897 = vmatpush.msra.mxu0 0.0
  %2898 = vmatpush.msra.mxu0 0.0
  %2899 = vmatpush.msra.mxu0 0.0
  %2900 = vmatpush.msra.mxu0 0.0
  %2901 = vmatpush.msra.mxu0 0.0
  %2902 = vmatpush.msra.mxu0 0.0
  %2903 = vmatpush.msra.mxu0 0.0
  %2904 = vmatpush.msra.mxu0 0.0
  %2905 = vmatpush.msra.mxu0 %v2250
  %2906 = vmatpush.msra.mxu0 %v2248
  %2907 = vmatpush.msra.mxu0 %v2246
  %2908 = vmatpush.msra.mxu0 %v2244
  %2909 = vmatpush.msra.mxu0 %v2242
  %2910 = vmatpush.msra.mxu0 %v2240
  %2911 = vmatpush.msra.mxu0 %v2238
  %2912 = vmatpush.msra.mxu0 %v2236
  %2913 = vmatmul.f32.gmra.mxu0 %v2875
  %v2914 = vpop.f32.mrf.mxu0
  %v2915 = vadd.f32 0.0, %v2914
  %2916 = vdwg.mxu0
  %v2917 = vadd.f32 %v2870, %v2895
  %v2918 = vadd.f32 %v2871, %v2915
  %v2919 = vxor.u32 %v2917, 2147483648
  %v2920 = vmul.f32 %v2919, 1.442695
  %v2921 = vpow.pop %v2920
  %v2922 = vadd.f32 %v2921, 1.0
  %v2923 = vrcp.pop %v2922
  %v2924 = vmul.f32 %v2922, %v2923
  %v2925 = vsub.f32 1.0, %v2924
  %v2926 = vmul.f32 %v2923, %v2925
  %v2927 = vadd.f32 %v2923, %v2926
  %vm2928 = vweird.f32 %v2922
  %vm2929 = vweird.f32 %v2923
  %vm2930 = vmor %vm2928, %vm2929
  %v2931 = vsel %vm2930, %v2923, %v2927
  %v2932 = vand.u32 2147483647, %v2922
  %vm2933 = vcmp.eq.f32.partialorder %v2932, 8.507059e+37
  %v2934 = vand.u32 %v2922, 2147483648
  %v2935 = vor.u32 1.1754944e-38, %v2934
  %v2936 = vsel %vm2933, %v2935, %v2931
  %v2937 = vmul.f32 1.0, %v2936
  %v2938 = vtanh.pop %v2918
  %v2939 = vxor.u32 %v2918, 2147483648
  %v2940 = vmul.f32 %v2939, 1.442695
  %v2941 = vpow.pop %v2940
  %v2942 = vadd.f32 %v2941, 1.0
  %v2943 = vrcp.pop %v2942
  %v2944 = vmul.f32 %v2942, %v2943
  %v2945 = vsub.f32 1.0, %v2944
  %v2946 = vmul.f32 %v2943, %v2945
  %v2947 = vadd.f32 %v2943, %v2946
  %vm2948 = vweird.f32 %v2942
  %vm2949 = vweird.f32 %v2943
  %vm2950 = vmor %vm2948, %vm2949
  %v2951 = vsel %vm2950, %v2943, %v2947
  %v2952 = vand.u32 2147483647, %v2942
  %vm2953 = vcmp.eq.f32.partialorder %v2952, 8.507059e+37
  %v2954 = vand.u32 %v2942, 2147483648
  %v2955 = vor.u32 1.1754944e-38, %v2954
  %v2956 = vsel %vm2953, %v2955, %v2951
  %v2957 = vmul.f32 1.0, %v2956
  %v2958 = vmul.f32 %v2937, %v2861
  %v2959 = vmul.f32 %v2937, %v2938
  %2961 = vrot.lane.b32.xlu0 %v2959, 64
  %v2962 = vpop.permute.xlu0 %2961
  %v2964 = vadd.f32 %v2958, %v2962
  %v2965 = vtanh.pop %v2964
  %v2966 = vmul.f32 %v2957, %v2965
  %2967 = vst.msk [vmem:[%s7 + $0x30] sm:$0xff] %vm2347, %v2966
  %2968 = vst.msk [vmem:[%s7 + $0x48] sm:$0xff] %vm2349, %v2966
  %v2969 = vld [vmem:[#allocation2 + $0x70] sm:$0xff]
  %v2970 = vld [vmem:[#allocation2 + $0x78] sm:$0xff]
  %v2971 = vld [vmem:[#allocation2 + $0x80] sm:$0xff]
  %v2972 = vld [vmem:[#allocation2 + $0x88] sm:$0xff]
  %v2973 = vsel %vm53, %v2969, %v2971
  %v2974 = vsel %vm54, %v2970, %v2972
  %2976 = vrot.lane.b32.xlu0 %v2966, 64
  %v2977 = vpop.permute.xlu0 %2976
  %v2978 = vsel %vm93, %v2977, 0
  %2980 = vmatpush.msra.mxu0 0.0
  %2981 = vmatpush.msra.mxu0 0.0
  %2982 = vmatpush.msra.mxu0 0.0
  %2983 = vmatpush.msra.mxu0 0.0
  %2984 = vmatpush.msra.mxu0 0.0
  %2985 = vmatpush.msra.mxu0 0.0
  %2986 = vmatpush.msra.mxu0 0.0
  %2987 = vmatpush.msra.mxu0 0.0
  %2988 = vmatpush.msra.mxu0 %v2249
  %2989 = vmatpush.msra.mxu0 %v2247
  %2990 = vmatpush.msra.mxu0 %v2245
  %2991 = vmatpush.msra.mxu0 %v2243
  %2992 = vmatpush.msra.mxu0 %v2241
  %2993 = vmatpush.msra.mxu0 %v2239
  %2994 = vmatpush.msra.mxu0 %v2237
  %2995 = vmatpush.msra.mxu0 %v2235
  %2996 = vmatmul.f32.gmra.mxu0 %v2978
  %v2997 = vpop.f32.mrf.mxu0
  %v2998 = vadd.f32 0.0, %v2997
  %2999 = vdwg.mxu0
  %3000 = vmatpush.msra.mxu0 0.0
  %3001 = vmatpush.msra.mxu0 0.0
  %3002 = vmatpush.msra.mxu0 0.0
  %3003 = vmatpush.msra.mxu0 0.0
  %3004 = vmatpush.msra.mxu0 0.0
  %3005 = vmatpush.msra.mxu0 0.0
  %3006 = vmatpush.msra.mxu0 0.0
  %3007 = vmatpush.msra.mxu0 0.0
  %3008 = vmatpush.msra.mxu0 %v2250
  %3009 = vmatpush.msra.mxu0 %v2248
  %3010 = vmatpush.msra.mxu0 %v2246
  %3011 = vmatpush.msra.mxu0 %v2244
  %3012 = vmatpush.msra.mxu0 %v2242
  %3013 = vmatpush.msra.mxu0 %v2240
  %3014 = vmatpush.msra.mxu0 %v2238
  %3015 = vmatpush.msra.mxu0 %v2236
  %3016 = vmatmul.f32.gmra.mxu0 %v2978
  %v3017 = vpop.f32.mrf.mxu0
  %v3018 = vadd.f32 0.0, %v3017
  %3019 = vdwg.mxu0
  %v3020 = vadd.f32 %v2973, %v2998
  %v3021 = vadd.f32 %v2974, %v3018
  %v3022 = vxor.u32 %v3020, 2147483648
  %v3023 = vmul.f32 %v3022, 1.442695
  %v3024 = vpow.pop %v3023
  %v3025 = vadd.f32 %v3024, 1.0
  %v3026 = vrcp.pop %v3025
  %v3027 = vmul.f32 %v3025, %v3026
  %v3028 = vsub.f32 1.0, %v3027
  %v3029 = vmul.f32 %v3026, %v3028
  %v3030 = vadd.f32 %v3026, %v3029
  %vm3031 = vweird.f32 %v3025
  %vm3032 = vweird.f32 %v3026
  %vm3033 = vmor %vm3031, %vm3032
  %v3034 = vsel %vm3033, %v3026, %v3030
  %v3035 = vand.u32 2147483647, %v3025
  %vm3036 = vcmp.eq.f32.partialorder %v3035, 8.507059e+37
  %v3037 = vand.u32 %v3025, 2147483648
  %v3038 = vor.u32 1.1754944e-38, %v3037
  %v3039 = vsel %vm3036, %v3038, %v3034
  %v3040 = vmul.f32 1.0, %v3039
  %v3041 = vtanh.pop %v3021
  %v3042 = vxor.u32 %v3021, 2147483648
  %v3043 = vmul.f32 %v3042, 1.442695
  %v3044 = vpow.pop %v3043
  %v3045 = vadd.f32 %v3044, 1.0
  %v3046 = vrcp.pop %v3045
  %v3047 = vmul.f32 %v3045, %v3046
  %v3048 = vsub.f32 1.0, %v3047
  %v3049 = vmul.f32 %v3046, %v3048
  %v3050 = vadd.f32 %v3046, %v3049
  %vm3051 = vweird.f32 %v3045
  %vm3052 = vweird.f32 %v3046
  %vm3053 = vmor %vm3051, %vm3052
  %v3054 = vsel %vm3053, %v3046, %v3050
  %v3055 = vand.u32 2147483647, %v3045
  %vm3056 = vcmp.eq.f32.partialorder %v3055, 8.507059e+37
  %v3057 = vand.u32 %v3045, 2147483648
  %v3058 = vor.u32 1.1754944e-38, %v3057
  %v3059 = vsel %vm3056, %v3058, %v3054
  %v3060 = vmul.f32 1.0, %v3059
  %v3061 = vmul.f32 %v3040, %v2964
  %v3062 = vmul.f32 %v3040, %v3041
  %3064 = vrot.lane.b32.xlu0 %v3062, 64
  %v3065 = vpop.permute.xlu0 %3064
  %v3067 = vadd.f32 %v3061, %v3065
  %v3068 = vtanh.pop %v3067
  %v3069 = vmul.f32 %v3060, %v3068
  %3070 = vst.msk [vmem:[%s7 + $0x38] sm:$0xff] %vm2347, %v3069
  %3071 = vst.msk [vmem:[%s7 + $0x40] sm:$0xff] %vm2349, %v3069
  %v3072 = vld [vmem:[#allocation2 + $0x80] sm:$0xff]
  %v3073 = vld [vmem:[#allocation2 + $0x88] sm:$0xff]
  %v3074 = vld [vmem:[#allocation2 + $0x70] sm:$0xff]
  %v3075 = vld [vmem:[#allocation2 + $0x78] sm:$0xff]
  %v3076 = vsel %vm53, %v3072, %v3074
  %v3077 = vsel %vm54, %v3073, %v3075
  %3079 = vrot.lane.b32.xlu0 %v3069, 64
  %v3080 = vpop.permute.xlu0 %3079
  %v3081 = vsel %vm93, %v3080, 0
  %3083 = vmatpush.msra.mxu0 0.0
  %3084 = vmatpush.msra.mxu0 0.0
  %3085 = vmatpush.msra.mxu0 0.0
  %3086 = vmatpush.msra.mxu0 0.0
  %3087 = vmatpush.msra.mxu0 0.0
  %3088 = vmatpush.msra.mxu0 0.0
  %3089 = vmatpush.msra.mxu0 0.0
  %3090 = vmatpush.msra.mxu0 0.0
  %3091 = vmatpush.msra.mxu0 %v2249
  %3092 = vmatpush.msra.mxu0 %v2247
  %3093 = vmatpush.msra.mxu0 %v2245
  %3094 = vmatpush.msra.mxu0 %v2243
  %3095 = vmatpush.msra.mxu0 %v2241
  %3096 = vmatpush.msra.mxu0 %v2239
  %3097 = vmatpush.msra.mxu0 %v2237
  %3098 = vmatpush.msra.mxu0 %v2235
  %3099 = vmatmul.f32.gmra.mxu0 %v3081
  %v3100 = vpop.f32.mrf.mxu0
  %v3101 = vadd.f32 0.0, %v3100
  %3102 = vdwg.mxu0
  %3103 = vmatpush.msra.mxu0 0.0
  %3104 = vmatpush.msra.mxu0 0.0
  %3105 = vmatpush.msra.mxu0 0.0
  %3106 = vmatpush.msra.mxu0 0.0
  %3107 = vmatpush.msra.mxu0 0.0
  %3108 = vmatpush.msra.mxu0 0.0
  %3109 = vmatpush.msra.mxu0 0.0
  %3110 = vmatpush.msra.mxu0 0.0
  %3111 = vmatpush.msra.mxu0 %v2250
  %3112 = vmatpush.msra.mxu0 %v2248
  %3113 = vmatpush.msra.mxu0 %v2246
  %3114 = vmatpush.msra.mxu0 %v2244
  %3115 = vmatpush.msra.mxu0 %v2242
  %3116 = vmatpush.msra.mxu0 %v2240
  %3117 = vmatpush.msra.mxu0 %v2238
  %3118 = vmatpush.msra.mxu0 %v2236
  %3119 = vmatmul.f32.gmra.mxu0 %v3081
  %v3120 = vpop.f32.mrf.mxu0
  %v3121 = vadd.f32 0.0, %v3120
  %3122 = vdwg.mxu0
  %v3123 = vadd.f32 %v3076, %v3101
  %v3124 = vadd.f32 %v3077, %v3121
  %v3125 = vxor.u32 %v3123, 2147483648
  %v3126 = vmul.f32 %v3125, 1.442695
  %v3127 = vpow.pop %v3126
  %v3128 = vadd.f32 %v3127, 1.0
  %v3129 = vrcp.pop %v3128
  %v3130 = vmul.f32 %v3128, %v3129
  %v3131 = vsub.f32 1.0, %v3130
  %v3132 = vmul.f32 %v3129, %v3131
  %v3133 = vadd.f32 %v3129, %v3132
  %vm3134 = vweird.f32 %v3128
  %vm3135 = vweird.f32 %v3129
  %vm3136 = vmor %vm3134, %vm3135
  %v3137 = vsel %vm3136, %v3129, %v3133
  %v3138 = vand.u32 2147483647, %v3128
  %vm3139 = vcmp.eq.f32.partialorder %v3138, 8.507059e+37
  %v3140 = vand.u32 %v3128, 2147483648
  %v3141 = vor.u32 1.1754944e-38, %v3140
  %v3142 = vsel %vm3139, %v3141, %v3137
  %v3143 = vmul.f32 1.0, %v3142
  %v3144 = vtanh.pop %v3124
  %v3145 = vxor.u32 %v3124, 2147483648
  %v3146 = vmul.f32 %v3145, 1.442695
  %v3147 = vpow.pop %v3146
  %v3148 = vadd.f32 %v3147, 1.0
  %v3149 = vrcp.pop %v3148
  %v3150 = vmul.f32 %v3148, %v3149
  %v3151 = vsub.f32 1.0, %v3150
  %v3152 = vmul.f32 %v3149, %v3151
  %v3153 = vadd.f32 %v3149, %v3152
  %vm3154 = vweird.f32 %v3148
  %vm3155 = vweird.f32 %v3149
  %vm3156 = vmor %vm3154, %vm3155
  %v3157 = vsel %vm3156, %v3149, %v3153
  %v3158 = vand.u32 2147483647, %v3148
  %vm3159 = vcmp.eq.f32.partialorder %v3158, 8.507059e+37
  %v3160 = vand.u32 %v3148, 2147483648
  %v3161 = vor.u32 1.1754944e-38, %v3160
  %v3162 = vsel %vm3159, %v3161, %v3157
  %v3163 = vmul.f32 1.0, %v3162
  %v3164 = vmul.f32 %v3143, %v3067
  %v3165 = vmul.f32 %v3143, %v3144
  %3167 = vrot.lane.b32.xlu0 %v3165, 64
  %v3168 = vpop.permute.xlu0 %3167
  %v3170 = vadd.f32 %v3164, %v3168
  %v3171 = vtanh.pop %v3170
  %v3172 = vmul.f32 %v3163, %v3171
  %3173 = vst.msk [vmem:[%s7 + $0x40] sm:$0xff] %vm2347, %v3172
  %3174 = vst.msk [vmem:[%s7 + $0x38] sm:$0xff] %vm2349, %v3172
  %v3175 = vld [vmem:[#allocation2 + $0x90] sm:$0xff]
  %v3176 = vld [vmem:[#allocation2 + $0x98] sm:$0xff]
  %v3177 = vld [vmem:[#allocation2 + $0x60] sm:$0xff]
  %v3178 = vld [vmem:[#allocation2 + $0x68] sm:$0xff]
  %v3179 = vsel %vm53, %v3175, %v3177
  %v3180 = vsel %vm54, %v3176, %v3178
  %3182 = vrot.lane.b32.xlu0 %v3172, 64
  %v3183 = vpop.permute.xlu0 %3182
  %v3184 = vsel %vm93, %v3183, 0
  %3186 = vmatpush.msra.mxu0 0.0
  %3187 = vmatpush.msra.mxu0 0.0
  %3188 = vmatpush.msra.mxu0 0.0
  %3189 = vmatpush.msra.mxu0 0.0
  %3190 = vmatpush.msra.mxu0 0.0
  %3191 = vmatpush.msra.mxu0 0.0
  %3192 = vmatpush.msra.mxu0 0.0
  %3193 = vmatpush.msra.mxu0 0.0
  %3194 = vmatpush.msra.mxu0 %v2249
  %3195 = vmatpush.msra.mxu0 %v2247
  %3196 = vmatpush.msra.mxu0 %v2245
  %3197 = vmatpush.msra.mxu0 %v2243
  %3198 = vmatpush.msra.mxu0 %v2241
  %3199 = vmatpush.msra.mxu0 %v2239
  %3200 = vmatpush.msra.mxu0 %v2237
  %3201 = vmatpush.msra.mxu0 %v2235
  %3202 = vmatmul.f32.gmra.mxu0 %v3184
  %v3203 = vpop.f32.mrf.mxu0
  %v3204 = vadd.f32 0.0, %v3203
  %3205 = vdwg.mxu0
  %3206 = vmatpush.msra.mxu0 0.0
  %3207 = vmatpush.msra.mxu0 0.0
  %3208 = vmatpush.msra.mxu0 0.0
  %3209 = vmatpush.msra.mxu0 0.0
  %3210 = vmatpush.msra.mxu0 0.0
  %3211 = vmatpush.msra.mxu0 0.0
  %3212 = vmatpush.msra.mxu0 0.0
  %3213 = vmatpush.msra.mxu0 0.0
  %3214 = vmatpush.msra.mxu0 %v2250
  %3215 = vmatpush.msra.mxu0 %v2248
  %3216 = vmatpush.msra.mxu0 %v2246
  %3217 = vmatpush.msra.mxu0 %v2244
  %3218 = vmatpush.msra.mxu0 %v2242
  %3219 = vmatpush.msra.mxu0 %v2240
  %3220 = vmatpush.msra.mxu0 %v2238
  %3221 = vmatpush.msra.mxu0 %v2236
  %3222 = vmatmul.f32.gmra.mxu0 %v3184
  %v3223 = vpop.f32.mrf.mxu0
  %v3224 = vadd.f32 0.0, %v3223
  %3225 = vdwg.mxu0
  %v3226 = vadd.f32 %v3179, %v3204
  %v3227 = vadd.f32 %v3180, %v3224
  %v3228 = vxor.u32 %v3226, 2147483648
  %v3229 = vmul.f32 %v3228, 1.442695
  %v3230 = vpow.pop %v3229
  %v3231 = vadd.f32 %v3230, 1.0
  %v3232 = vrcp.pop %v3231
  %v3233 = vmul.f32 %v3231, %v3232
  %v3234 = vsub.f32 1.0, %v3233
  %v3235 = vmul.f32 %v3232, %v3234
  %v3236 = vadd.f32 %v3232, %v3235
  %vm3237 = vweird.f32 %v3231
  %vm3238 = vweird.f32 %v3232
  %vm3239 = vmor %vm3237, %vm3238
  %v3240 = vsel %vm3239, %v3232, %v3236
  %v3241 = vand.u32 2147483647, %v3231
  %vm3242 = vcmp.eq.f32.partialorder %v3241, 8.507059e+37
  %v3243 = vand.u32 %v3231, 2147483648
  %v3244 = vor.u32 1.1754944e-38, %v3243
  %v3245 = vsel %vm3242, %v3244, %v3240
  %v3246 = vmul.f32 1.0, %v3245
  %v3247 = vtanh.pop %v3227
  %v3248 = vxor.u32 %v3227, 2147483648
  %v3249 = vmul.f32 %v3248, 1.442695
  %v3250 = vpow.pop %v3249
  %v3251 = vadd.f32 %v3250, 1.0
  %v3252 = vrcp.pop %v3251
  %v3253 = vmul.f32 %v3251, %v3252
  %v3254 = vsub.f32 1.0, %v3253
  %v3255 = vmul.f32 %v3252, %v3254
  %v3256 = vadd.f32 %v3252, %v3255
  %vm3257 = vweird.f32 %v3251
  %vm3258 = vweird.f32 %v3252
  %vm3259 = vmor %vm3257, %vm3258
  %v3260 = vsel %vm3259, %v3252, %v3256
  %v3261 = vand.u32 2147483647, %v3251
  %vm3262 = vcmp.eq.f32.partialorder %v3261, 8.507059e+37
  %v3263 = vand.u32 %v3251, 2147483648
  %v3264 = vor.u32 1.1754944e-38, %v3263
  %v3265 = vsel %vm3262, %v3264, %v3260
  %v3266 = vmul.f32 1.0, %v3265
  %v3267 = vmul.f32 %v3246, %v3170
  %v3268 = vmul.f32 %v3246, %v3247
  %3270 = vrot.lane.b32.xlu0 %v3268, 64
  %v3271 = vpop.permute.xlu0 %3270
  %v3273 = vadd.f32 %v3267, %v3271
  %v3274 = vtanh.pop %v3273
  %v3275 = vmul.f32 %v3266, %v3274
  %3276 = vst.msk [vmem:[%s7 + $0x48] sm:$0xff] %vm2347, %v3275
  %3277 = vst.msk [vmem:[%s7 + $0x30] sm:$0xff] %vm2349, %v3275
  %v3278 = vld [vmem:[#allocation2 + $0xa0] sm:$0xff]
  %v3279 = vld [vmem:[#allocation2 + $0xa8] sm:$0xff]
  %v3280 = vld [vmem:[#allocation2 + $0x50] sm:$0xff]
  %v3281 = vld [vmem:[#allocation2 + $0x58] sm:$0xff]
  %v3282 = vsel %vm53, %v3278, %v3280
  %v3283 = vsel %vm54, %v3279, %v3281
  %3285 = vrot.lane.b32.xlu0 %v3275, 64
  %v3286 = vpop.permute.xlu0 %3285
  %v3287 = vsel %vm93, %v3286, 0
  %3289 = vmatpush.msra.mxu0 0.0
  %3290 = vmatpush.msra.mxu0 0.0
  %3291 = vmatpush.msra.mxu0 0.0
  %3292 = vmatpush.msra.mxu0 0.0
  %3293 = vmatpush.msra.mxu0 0.0
  %3294 = vmatpush.msra.mxu0 0.0
  %3295 = vmatpush.msra.mxu0 0.0
  %3296 = vmatpush.msra.mxu0 0.0
  %3297 = vmatpush.msra.mxu0 %v2249
  %3298 = vmatpush.msra.mxu0 %v2247
  %3299 = vmatpush.msra.mxu0 %v2245
  %3300 = vmatpush.msra.mxu0 %v2243
  %3301 = vmatpush.msra.mxu0 %v2241
  %3302 = vmatpush.msra.mxu0 %v2239
  %3303 = vmatpush.msra.mxu0 %v2237
  %3304 = vmatpush.msra.mxu0 %v2235
  %3305 = vmatmul.f32.gmra.mxu0 %v3287
  %v3306 = vpop.f32.mrf.mxu0
  %v3307 = vadd.f32 0.0, %v3306
  %3308 = vdwg.mxu0
  %3309 = vmatpush.msra.mxu0 0.0
  %3310 = vmatpush.msra.mxu0 0.0
  %3311 = vmatpush.msra.mxu0 0.0
  %3312 = vmatpush.msra.mxu0 0.0
  %3313 = vmatpush.msra.mxu0 0.0
  %3314 = vmatpush.msra.mxu0 0.0
  %3315 = vmatpush.msra.mxu0 0.0
  %3316 = vmatpush.msra.mxu0 0.0
  %3317 = vmatpush.msra.mxu0 %v2250
  %3318 = vmatpush.msra.mxu0 %v2248
  %3319 = vmatpush.msra.mxu0 %v2246
  %3320 = vmatpush.msra.mxu0 %v2244
  %3321 = vmatpush.msra.mxu0 %v2242
  %3322 = vmatpush.msra.mxu0 %v2240
  %3323 = vmatpush.msra.mxu0 %v2238
  %3324 = vmatpush.msra.mxu0 %v2236
  %3325 = vmatmul.f32.gmra.mxu0 %v3287
  %v3326 = vpop.f32.mrf.mxu0
  %v3327 = vadd.f32 0.0, %v3326
  %3328 = vdwg.mxu0
  %v3329 = vadd.f32 %v3282, %v3307
  %v3330 = vadd.f32 %v3283, %v3327
  %v3331 = vxor.u32 %v3329, 2147483648
  %v3332 = vmul.f32 %v3331, 1.442695
  %v3333 = vpow.pop %v3332
  %v3334 = vadd.f32 %v3333, 1.0
  %v3335 = vrcp.pop %v3334
  %v3336 = vmul.f32 %v3334, %v3335
  %v3337 = vsub.f32 1.0, %v3336
  %v3338 = vmul.f32 %v3335, %v3337
  %v3339 = vadd.f32 %v3335, %v3338
  %vm3340 = vweird.f32 %v3334
  %vm3341 = vweird.f32 %v3335
  %vm3342 = vmor %vm3340, %vm3341
  %v3343 = vsel %vm3342, %v3335, %v3339
  %v3344 = vand.u32 2147483647, %v3334
  %vm3345 = vcmp.eq.f32.partialorder %v3344, 8.507059e+37
  %v3346 = vand.u32 %v3334, 2147483648
  %v3347 = vor.u32 1.1754944e-38, %v3346
  %v3348 = vsel %vm3345, %v3347, %v3343
  %v3349 = vmul.f32 1.0, %v3348
  %v3350 = vtanh.pop %v3330
  %v3351 = vxor.u32 %v3330, 2147483648
  %v3352 = vmul.f32 %v3351, 1.442695
  %v3353 = vpow.pop %v3352
  %v3354 = vadd.f32 %v3353, 1.0
  %v3355 = vrcp.pop %v3354
  %v3356 = vmul.f32 %v3354, %v3355
  %v3357 = vsub.f32 1.0, %v3356
  %v3358 = vmul.f32 %v3355, %v3357
  %v3359 = vadd.f32 %v3355, %v3358
  %vm3360 = vweird.f32 %v3354
  %vm3361 = vweird.f32 %v3355
  %vm3362 = vmor %vm3360, %vm3361
  %v3363 = vsel %vm3362, %v3355, %v3359
  %v3364 = vand.u32 2147483647, %v3354
  %vm3365 = vcmp.eq.f32.partialorder %v3364, 8.507059e+37
  %v3366 = vand.u32 %v3354, 2147483648
  %v3367 = vor.u32 1.1754944e-38, %v3366
  %v3368 = vsel %vm3365, %v3367, %v3363
  %v3369 = vmul.f32 1.0, %v3368
  %v3370 = vmul.f32 %v3349, %v3273
  %v3371 = vmul.f32 %v3349, %v3350
  %3373 = vrot.lane.b32.xlu0 %v3371, 64
  %v3374 = vpop.permute.xlu0 %3373
  %v3376 = vadd.f32 %v3370, %v3374
  %v3377 = vtanh.pop %v3376
  %v3378 = vmul.f32 %v3369, %v3377
  %3379 = vst.msk [vmem:[%s7 + $0x50] sm:$0xff] %vm2347, %v3378
  %3380 = vst.msk [vmem:[%s7 + $0x28] sm:$0xff] %vm2349, %v3378
  %v3381 = vld [vmem:[#allocation2 + $0xb0] sm:$0xff]
  %v3382 = vld [vmem:[#allocation2 + $0xb8] sm:$0xff]
  %v3383 = vld [vmem:[#allocation2 + $0x40] sm:$0xff]
  %v3384 = vld [vmem:[#allocation2 + $0x48] sm:$0xff]
  %v3385 = vsel %vm53, %v3381, %v3383
  %v3386 = vsel %vm54, %v3382, %v3384
  %3388 = vrot.lane.b32.xlu0 %v3378, 64
  %v3389 = vpop.permute.xlu0 %3388
  %v3390 = vsel %vm93, %v3389, 0
  %3392 = vmatpush.msra.mxu0 0.0
  %3393 = vmatpush.msra.mxu0 0.0
  %3394 = vmatpush.msra.mxu0 0.0
  %3395 = vmatpush.msra.mxu0 0.0
  %3396 = vmatpush.msra.mxu0 0.0
  %3397 = vmatpush.msra.mxu0 0.0
  %3398 = vmatpush.msra.mxu0 0.0
  %3399 = vmatpush.msra.mxu0 0.0
  %3400 = vmatpush.msra.mxu0 %v2249
  %3401 = vmatpush.msra.mxu0 %v2247
  %3402 = vmatpush.msra.mxu0 %v2245
  %3403 = vmatpush.msra.mxu0 %v2243
  %3404 = vmatpush.msra.mxu0 %v2241
  %3405 = vmatpush.msra.mxu0 %v2239
  %3406 = vmatpush.msra.mxu0 %v2237
  %3407 = vmatpush.msra.mxu0 %v2235
  %3408 = vmatmul.f32.gmra.mxu0 %v3390
  %v3409 = vpop.f32.mrf.mxu0
  %v3410 = vadd.f32 0.0, %v3409
  %3411 = vdwg.mxu0
  %3412 = vmatpush.msra.mxu0 0.0
  %3413 = vmatpush.msra.mxu0 0.0
  %3414 = vmatpush.msra.mxu0 0.0
  %3415 = vmatpush.msra.mxu0 0.0
  %3416 = vmatpush.msra.mxu0 0.0
  %3417 = vmatpush.msra.mxu0 0.0
  %3418 = vmatpush.msra.mxu0 0.0
  %3419 = vmatpush.msra.mxu0 0.0
  %3420 = vmatpush.msra.mxu0 %v2250
  %3421 = vmatpush.msra.mxu0 %v2248
  %3422 = vmatpush.msra.mxu0 %v2246
  %3423 = vmatpush.msra.mxu0 %v2244
  %3424 = vmatpush.msra.mxu0 %v2242
  %3425 = vmatpush.msra.mxu0 %v2240
  %3426 = vmatpush.msra.mxu0 %v2238
  %3427 = vmatpush.msra.mxu0 %v2236
  %3428 = vmatmul.f32.gmra.mxu0 %v3390
  %v3429 = vpop.f32.mrf.mxu0
  %v3430 = vadd.f32 0.0, %v3429
  %3431 = vdwg.mxu0
  %v3432 = vadd.f32 %v3385, %v3410
  %v3433 = vadd.f32 %v3386, %v3430
  %v3434 = vxor.u32 %v3432, 2147483648
  %v3435 = vmul.f32 %v3434, 1.442695
  %v3436 = vpow.pop %v3435
  %v3437 = vadd.f32 %v3436, 1.0
  %v3438 = vrcp.pop %v3437
  %v3439 = vmul.f32 %v3437, %v3438
  %v3440 = vsub.f32 1.0, %v3439
  %v3441 = vmul.f32 %v3438, %v3440
  %v3442 = vadd.f32 %v3438, %v3441
  %vm3443 = vweird.f32 %v3437
  %vm3444 = vweird.f32 %v3438
  %vm3445 = vmor %vm3443, %vm3444
  %v3446 = vsel %vm3445, %v3438, %v3442
  %v3447 = vand.u32 2147483647, %v3437
  %vm3448 = vcmp.eq.f32.partialorder %v3447, 8.507059e+37
  %v3449 = vand.u32 %v3437, 2147483648
  %v3450 = vor.u32 1.1754944e-38, %v3449
  %v3451 = vsel %vm3448, %v3450, %v3446
  %v3452 = vmul.f32 1.0, %v3451
  %v3453 = vtanh.pop %v3433
  %v3454 = vxor.u32 %v3433, 2147483648
  %v3455 = vmul.f32 %v3454, 1.442695
  %v3456 = vpow.pop %v3455
  %v3457 = vadd.f32 %v3456, 1.0
  %v3458 = vrcp.pop %v3457
  %v3459 = vmul.f32 %v3457, %v3458
  %v3460 = vsub.f32 1.0, %v3459
  %v3461 = vmul.f32 %v3458, %v3460
  %v3462 = vadd.f32 %v3458, %v3461
  %vm3463 = vweird.f32 %v3457
  %vm3464 = vweird.f32 %v3458
  %vm3465 = vmor %vm3463, %vm3464
  %v3466 = vsel %vm3465, %v3458, %v3462
  %v3467 = vand.u32 2147483647, %v3457
  %vm3468 = vcmp.eq.f32.partialorder %v3467, 8.507059e+37
  %v3469 = vand.u32 %v3457, 2147483648
  %v3470 = vor.u32 1.1754944e-38, %v3469
  %v3471 = vsel %vm3468, %v3470, %v3466
  %v3472 = vmul.f32 1.0, %v3471
  %v3473 = vmul.f32 %v3452, %v3376
  %v3474 = vmul.f32 %v3452, %v3453
  %3476 = vrot.lane.b32.xlu0 %v3474, 64
  %v3477 = vpop.permute.xlu0 %3476
  %v3479 = vadd.f32 %v3473, %v3477
  %v3480 = vtanh.pop %v3479
  %v3481 = vmul.f32 %v3472, %v3480
  %3482 = vst.msk [vmem:[%s7 + $0x58] sm:$0xff] %vm2347, %v3481
  %3483 = vst.msk [vmem:[%s7 + $0x20] sm:$0xff] %vm2349, %v3481
  %v3484 = vld [vmem:[#allocation2 + $0xc0] sm:$0xff]
  %v3485 = vld [vmem:[#allocation2 + $0xc8] sm:$0xff]
  %v3486 = vld [vmem:[#allocation2 + $0x30] sm:$0xff]
  %v3487 = vld [vmem:[#allocation2 + $0x38] sm:$0xff]
  %v3488 = vsel %vm53, %v3484, %v3486
  %v3489 = vsel %vm54, %v3485, %v3487
  %3491 = vrot.lane.b32.xlu0 %v3481, 64
  %v3492 = vpop.permute.xlu0 %3491
  %v3493 = vsel %vm93, %v3492, 0
  %3495 = vmatpush.msra.mxu0 0.0
  %3496 = vmatpush.msra.mxu0 0.0
  %3497 = vmatpush.msra.mxu0 0.0
  %3498 = vmatpush.msra.mxu0 0.0
  %3499 = vmatpush.msra.mxu0 0.0
  %3500 = vmatpush.msra.mxu0 0.0
  %3501 = vmatpush.msra.mxu0 0.0
  %3502 = vmatpush.msra.mxu0 0.0
  %3503 = vmatpush.msra.mxu0 %v2249
  %3504 = vmatpush.msra.mxu0 %v2247
  %3505 = vmatpush.msra.mxu0 %v2245
  %3506 = vmatpush.msra.mxu0 %v2243
  %3507 = vmatpush.msra.mxu0 %v2241
  %3508 = vmatpush.msra.mxu0 %v2239
  %3509 = vmatpush.msra.mxu0 %v2237
  %3510 = vmatpush.msra.mxu0 %v2235
  %3511 = vmatmul.f32.gmra.mxu0 %v3493
  %v3512 = vpop.f32.mrf.mxu0
  %v3513 = vadd.f32 0.0, %v3512
  %3514 = vdwg.mxu0
  %3515 = vmatpush.msra.mxu0 0.0
  %3516 = vmatpush.msra.mxu0 0.0
  %3517 = vmatpush.msra.mxu0 0.0
  %3518 = vmatpush.msra.mxu0 0.0
  %3519 = vmatpush.msra.mxu0 0.0
  %3520 = vmatpush.msra.mxu0 0.0
  %3521 = vmatpush.msra.mxu0 0.0
  %3522 = vmatpush.msra.mxu0 0.0
  %3523 = vmatpush.msra.mxu0 %v2250
  %3524 = vmatpush.msra.mxu0 %v2248
  %3525 = vmatpush.msra.mxu0 %v2246
  %3526 = vmatpush.msra.mxu0 %v2244
  %3527 = vmatpush.msra.mxu0 %v2242
  %3528 = vmatpush.msra.mxu0 %v2240
  %3529 = vmatpush.msra.mxu0 %v2238
  %3530 = vmatpush.msra.mxu0 %v2236
  %3531 = vmatmul.f32.gmra.mxu0 %v3493
  %v3532 = vpop.f32.mrf.mxu0
  %v3533 = vadd.f32 0.0, %v3532
  %3534 = vdwg.mxu0
  %v3535 = vadd.f32 %v3488, %v3513
  %v3536 = vadd.f32 %v3489, %v3533
  %v3537 = vxor.u32 %v3535, 2147483648
  %v3538 = vmul.f32 %v3537, 1.442695
  %v3539 = vpow.pop %v3538
  %v3540 = vadd.f32 %v3539, 1.0
  %v3541 = vrcp.pop %v3540
  %v3542 = vmul.f32 %v3540, %v3541
  %v3543 = vsub.f32 1.0, %v3542
  %v3544 = vmul.f32 %v3541, %v3543
  %v3545 = vadd.f32 %v3541, %v3544
  %vm3546 = vweird.f32 %v3540
  %vm3547 = vweird.f32 %v3541
  %vm3548 = vmor %vm3546, %vm3547
  %v3549 = vsel %vm3548, %v3541, %v3545
  %v3550 = vand.u32 2147483647, %v3540
  %vm3551 = vcmp.eq.f32.partialorder %v3550, 8.507059e+37
  %v3552 = vand.u32 %v3540, 2147483648
  %v3553 = vor.u32 1.1754944e-38, %v3552
  %v3554 = vsel %vm3551, %v3553, %v3549
  %v3555 = vmul.f32 1.0, %v3554
  %v3556 = vtanh.pop %v3536
  %v3557 = vxor.u32 %v3536, 2147483648
  %v3558 = vmul.f32 %v3557, 1.442695
  %v3559 = vpow.pop %v3558
  %v3560 = vadd.f32 %v3559, 1.0
  %v3561 = vrcp.pop %v3560
  %v3562 = vmul.f32 %v3560, %v3561
  %v3563 = vsub.f32 1.0, %v3562
  %v3564 = vmul.f32 %v3561, %v3563
  %v3565 = vadd.f32 %v3561, %v3564
  %vm3566 = vweird.f32 %v3560
  %vm3567 = vweird.f32 %v3561
  %vm3568 = vmor %vm3566, %vm3567
  %v3569 = vsel %vm3568, %v3561, %v3565
  %v3570 = vand.u32 2147483647, %v3560
  %vm3571 = vcmp.eq.f32.partialorder %v3570, 8.507059e+37
  %v3572 = vand.u32 %v3560, 2147483648
  %v3573 = vor.u32 1.1754944e-38, %v3572
  %v3574 = vsel %vm3571, %v3573, %v3569
  %v3575 = vmul.f32 1.0, %v3574
  %v3576 = vmul.f32 %v3555, %v3479
  %v3577 = vmul.f32 %v3555, %v3556
  %3579 = vrot.lane.b32.xlu0 %v3577, 64
  %v3580 = vpop.permute.xlu0 %3579
  %v3582 = vadd.f32 %v3576, %v3580
  %v3583 = vtanh.pop %v3582
  %v3584 = vmul.f32 %v3575, %v3583
  %3585 = vst.msk [vmem:[%s7 + $0x60] sm:$0xff] %vm2347, %v3584
  %3586 = vst.msk [vmem:[%s7 + $0x18] sm:$0xff] %vm2349, %v3584
  %v3587 = vld [vmem:[#allocation2 + $0xd0] sm:$0xff]
  %v3588 = vld [vmem:[#allocation2 + $0xd8] sm:$0xff]
  %v3589 = vld [vmem:[#allocation2 + $0x20] sm:$0xff]
  %v3590 = vld [vmem:[#allocation2 + $0x28] sm:$0xff]
  %v3591 = vsel %vm53, %v3587, %v3589
  %v3592 = vsel %vm54, %v3588, %v3590
  %3594 = vrot.lane.b32.xlu0 %v3584, 64
  %v3595 = vpop.permute.xlu0 %3594
  %v3596 = vsel %vm93, %v3595, 0
  %3598 = vmatpush.msra.mxu0 0.0
  %3599 = vmatpush.msra.mxu0 0.0
  %3600 = vmatpush.msra.mxu0 0.0
  %3601 = vmatpush.msra.mxu0 0.0
  %3602 = vmatpush.msra.mxu0 0.0
  %3603 = vmatpush.msra.mxu0 0.0
  %3604 = vmatpush.msra.mxu0 0.0
  %3605 = vmatpush.msra.mxu0 0.0
  %3606 = vmatpush.msra.mxu0 %v2249
  %3607 = vmatpush.msra.mxu0 %v2247
  %3608 = vmatpush.msra.mxu0 %v2245
  %3609 = vmatpush.msra.mxu0 %v2243
  %3610 = vmatpush.msra.mxu0 %v2241
  %3611 = vmatpush.msra.mxu0 %v2239
  %3612 = vmatpush.msra.mxu0 %v2237
  %3613 = vmatpush.msra.mxu0 %v2235
  %3614 = vmatmul.f32.gmra.mxu0 %v3596
  %v3615 = vpop.f32.mrf.mxu0
  %v3616 = vadd.f32 0.0, %v3615
  %3617 = vdwg.mxu0
  %3618 = vmatpush.msra.mxu0 0.0
  %3619 = vmatpush.msra.mxu0 0.0
  %3620 = vmatpush.msra.mxu0 0.0
  %3621 = vmatpush.msra.mxu0 0.0
  %3622 = vmatpush.msra.mxu0 0.0
  %3623 = vmatpush.msra.mxu0 0.0
  %3624 = vmatpush.msra.mxu0 0.0
  %3625 = vmatpush.msra.mxu0 0.0
  %3626 = vmatpush.msra.mxu0 %v2250
  %3627 = vmatpush.msra.mxu0 %v2248
  %3628 = vmatpush.msra.mxu0 %v2246
  %3629 = vmatpush.msra.mxu0 %v2244
  %3630 = vmatpush.msra.mxu0 %v2242
  %3631 = vmatpush.msra.mxu0 %v2240
  %3632 = vmatpush.msra.mxu0 %v2238
  %3633 = vmatpush.msra.mxu0 %v2236
  %3634 = vmatmul.f32.gmra.mxu0 %v3596
  %v3635 = vpop.f32.mrf.mxu0
  %v3636 = vadd.f32 0.0, %v3635
  %3637 = vdwg.mxu0
  %v3638 = vadd.f32 %v3591, %v3616
  %v3639 = vadd.f32 %v3592, %v3636
  %v3640 = vxor.u32 %v3638, 2147483648
  %v3641 = vmul.f32 %v3640, 1.442695
  %v3642 = vpow.pop %v3641
  %v3643 = vadd.f32 %v3642, 1.0
  %v3644 = vrcp.pop %v3643
  %v3645 = vmul.f32 %v3643, %v3644
  %v3646 = vsub.f32 1.0, %v3645
  %v3647 = vmul.f32 %v3644, %v3646
  %v3648 = vadd.f32 %v3644, %v3647
  %vm3649 = vweird.f32 %v3643
  %vm3650 = vweird.f32 %v3644
  %vm3651 = vmor %vm3649, %vm3650
  %v3652 = vsel %vm3651, %v3644, %v3648
  %v3653 = vand.u32 2147483647, %v3643
  %vm3654 = vcmp.eq.f32.partialorder %v3653, 8.507059e+37
  %v3655 = vand.u32 %v3643, 2147483648
  %v3656 = vor.u32 1.1754944e-38, %v3655
  %v3657 = vsel %vm3654, %v3656, %v3652
  %v3658 = vmul.f32 1.0, %v3657
  %v3659 = vtanh.pop %v3639
  %v3660 = vxor.u32 %v3639, 2147483648
  %v3661 = vmul.f32 %v3660, 1.442695
  %v3662 = vpow.pop %v3661
  %v3663 = vadd.f32 %v3662, 1.0
  %v3664 = vrcp.pop %v3663
  %v3665 = vmul.f32 %v3663, %v3664
  %v3666 = vsub.f32 1.0, %v3665
  %v3667 = vmul.f32 %v3664, %v3666
  %v3668 = vadd.f32 %v3664, %v3667
  %vm3669 = vweird.f32 %v3663
  %vm3670 = vweird.f32 %v3664
  %vm3671 = vmor %vm3669, %vm3670
  %v3672 = vsel %vm3671, %v3664, %v3668
  %v3673 = vand.u32 2147483647, %v3663
  %vm3674 = vcmp.eq.f32.partialorder %v3673, 8.507059e+37
  %v3675 = vand.u32 %v3663, 2147483648
  %v3676 = vor.u32 1.1754944e-38, %v3675
  %v3677 = vsel %vm3674, %v3676, %v3672
  %v3678 = vmul.f32 1.0, %v3677
  %v3679 = vmul.f32 %v3658, %v3582
  %v3680 = vmul.f32 %v3658, %v3659
  %3682 = vrot.lane.b32.xlu0 %v3680, 64
  %v3683 = vpop.permute.xlu0 %3682
  %v3685 = vadd.f32 %v3679, %v3683
  %v3686 = vtanh.pop %v3685
  %v3687 = vmul.f32 %v3678, %v3686
  %3688 = vst.msk [vmem:[%s7 + $0x68] sm:$0xff] %vm2347, %v3687
  %3689 = vst.msk [vmem:[%s7 + $0x10] sm:$0xff] %vm2349, %v3687
  %v3690 = vld [vmem:[#allocation2 + $0xe0] sm:$0xff]
  %v3691 = vld [vmem:[#allocation2 + $0xe8] sm:$0xff]
  %v3692 = vld [vmem:[#allocation2 + $0x10] sm:$0xff]
  %v3693 = vld [vmem:[#allocation2 + $0x18] sm:$0xff]
  %v3694 = vsel %vm53, %v3690, %v3692
  %v3695 = vsel %vm54, %v3691, %v3693
  %3697 = vrot.lane.b32.xlu0 %v3687, 64
  %v3698 = vpop.permute.xlu0 %3697
  %v3699 = vsel %vm93, %v3698, 0
  %3701 = vmatpush.msra.mxu0 0.0
  %3702 = vmatpush.msra.mxu0 0.0
  %3703 = vmatpush.msra.mxu0 0.0
  %3704 = vmatpush.msra.mxu0 0.0
  %3705 = vmatpush.msra.mxu0 0.0
  %3706 = vmatpush.msra.mxu0 0.0
  %3707 = vmatpush.msra.mxu0 0.0
  %3708 = vmatpush.msra.mxu0 0.0
  %3709 = vmatpush.msra.mxu0 %v2249
  %3710 = vmatpush.msra.mxu0 %v2247
  %3711 = vmatpush.msra.mxu0 %v2245
  %3712 = vmatpush.msra.mxu0 %v2243
  %3713 = vmatpush.msra.mxu0 %v2241
  %3714 = vmatpush.msra.mxu0 %v2239
  %3715 = vmatpush.msra.mxu0 %v2237
  %3716 = vmatpush.msra.mxu0 %v2235
  %3717 = vmatmul.f32.gmra.mxu0 %v3699
  %v3718 = vpop.f32.mrf.mxu0
  %v3719 = vadd.f32 0.0, %v3718
  %3720 = vdwg.mxu0
  %3721 = vmatpush.msra.mxu0 0.0
  %3722 = vmatpush.msra.mxu0 0.0
  %3723 = vmatpush.msra.mxu0 0.0
  %3724 = vmatpush.msra.mxu0 0.0
  %3725 = vmatpush.msra.mxu0 0.0
  %3726 = vmatpush.msra.mxu0 0.0
  %3727 = vmatpush.msra.mxu0 0.0
  %3728 = vmatpush.msra.mxu0 0.0
  %3729 = vmatpush.msra.mxu0 %v2250
  %3730 = vmatpush.msra.mxu0 %v2248
  %3731 = vmatpush.msra.mxu0 %v2246
  %3732 = vmatpush.msra.mxu0 %v2244
  %3733 = vmatpush.msra.mxu0 %v2242
  %3734 = vmatpush.msra.mxu0 %v2240
  %3735 = vmatpush.msra.mxu0 %v2238
  %3736 = vmatpush.msra.mxu0 %v2236
  %3737 = vmatmul.f32.gmra.mxu0 %v3699
  %v3738 = vpop.f32.mrf.mxu0
  %v3739 = vadd.f32 0.0, %v3738
  %3740 = vdwg.mxu0
  %v3741 = vadd.f32 %v3694, %v3719
  %v3742 = vadd.f32 %v3695, %v3739
  %v3743 = vxor.u32 %v3741, 2147483648
  %v3744 = vmul.f32 %v3743, 1.442695
  %v3745 = vpow.pop %v3744
  %v3746 = vadd.f32 %v3745, 1.0
  %v3747 = vrcp.pop %v3746
  %v3748 = vmul.f32 %v3746, %v3747
  %v3749 = vsub.f32 1.0, %v3748
  %v3750 = vmul.f32 %v3747, %v3749
  %v3751 = vadd.f32 %v3747, %v3750
  %vm3752 = vweird.f32 %v3746
  %vm3753 = vweird.f32 %v3747
  %vm3754 = vmor %vm3752, %vm3753
  %v3755 = vsel %vm3754, %v3747, %v3751
  %v3756 = vand.u32 2147483647, %v3746
  %vm3757 = vcmp.eq.f32.partialorder %v3756, 8.507059e+37
  %v3758 = vand.u32 %v3746, 2147483648
  %v3759 = vor.u32 1.1754944e-38, %v3758
  %v3760 = vsel %vm3757, %v3759, %v3755
  %v3761 = vmul.f32 1.0, %v3760
  %v3762 = vtanh.pop %v3742
  %v3763 = vxor.u32 %v3742, 2147483648
  %v3764 = vmul.f32 %v3763, 1.442695
  %v3765 = vpow.pop %v3764
  %v3766 = vadd.f32 %v3765, 1.0
  %v3767 = vrcp.pop %v3766
  %v3768 = vmul.f32 %v3766, %v3767
  %v3769 = vsub.f32 1.0, %v3768
  %v3770 = vmul.f32 %v3767, %v3769
  %v3771 = vadd.f32 %v3767, %v3770
  %vm3772 = vweird.f32 %v3766
  %vm3773 = vweird.f32 %v3767
  %vm3774 = vmor %vm3772, %vm3773
  %v3775 = vsel %vm3774, %v3767, %v3771
  %v3776 = vand.u32 2147483647, %v3766
  %vm3777 = vcmp.eq.f32.partialorder %v3776, 8.507059e+37
  %v3778 = vand.u32 %v3766, 2147483648
  %v3779 = vor.u32 1.1754944e-38, %v3778
  %v3780 = vsel %vm3777, %v3779, %v3775
  %v3781 = vmul.f32 1.0, %v3780
  %v3782 = vmul.f32 %v3761, %v3685
  %v3783 = vmul.f32 %v3761, %v3762
  %3785 = vrot.lane.b32.xlu0 %v3783, 64
  %v3786 = vpop.permute.xlu0 %3785
  %v3788 = vadd.f32 %v3782, %v3786
  %v3789 = vtanh.pop %v3788
  %v3790 = vmul.f32 %v3781, %v3789
  %3791 = vst.msk [vmem:[%s7 + $0x70] sm:$0xff] %vm2347, %v3790
  %3792 = vst.msk [vmem:[%s7 + $0x8] sm:$0xff] %vm2349, %v3790
  %v3793 = vld [vmem:[#allocation2 + $0xf0] sm:$0xff]
  %v3794 = vld [vmem:[#allocation2 + $0xf8] sm:$0xff]
  %v3795 = vld [vmem:[#allocation2] sm:$0xff]
  %v3796 = vld [vmem:[#allocation2 + $0x8] sm:$0xff]
  %v3797 = vsel %vm53, %v3793, %v3795
  %v3798 = vsel %vm54, %v3794, %v3796
  %3800 = vrot.lane.b32.xlu0 %v3790, 64
  %v3801 = vpop.permute.xlu0 %3800
  %v3802 = vsel %vm93, %v3801, 0
  %3804 = vmatpush.msra.mxu0 0.0
  %3805 = vmatpush.msra.mxu0 0.0
  %3806 = vmatpush.msra.mxu0 0.0
  %3807 = vmatpush.msra.mxu0 0.0
  %3808 = vmatpush.msra.mxu0 0.0
  %3809 = vmatpush.msra.mxu0 0.0
  %3810 = vmatpush.msra.mxu0 0.0
  %3811 = vmatpush.msra.mxu0 0.0
  %3812 = vmatpush.msra.mxu0 %v2249
  %3813 = vmatpush.msra.mxu0 %v2247
  %3814 = vmatpush.msra.mxu0 %v2245
  %3815 = vmatpush.msra.mxu0 %v2243
  %3816 = vmatpush.msra.mxu0 %v2241
  %3817 = vmatpush.msra.mxu0 %v2239
  %3818 = vmatpush.msra.mxu0 %v2237
  %3819 = vmatpush.msra.mxu0 %v2235
  %3820 = vmatmul.f32.gmra.mxu0 %v3802
  %v3821 = vpop.f32.mrf.mxu0
  %v3822 = vadd.f32 0.0, %v3821
  %3823 = vdwg.mxu0
  %3824 = vmatpush.msra.mxu0 0.0
  %3825 = vmatpush.msra.mxu0 0.0
  %3826 = vmatpush.msra.mxu0 0.0
  %3827 = vmatpush.msra.mxu0 0.0
  %3828 = vmatpush.msra.mxu0 0.0
  %3829 = vmatpush.msra.mxu0 0.0
  %3830 = vmatpush.msra.mxu0 0.0
  %3831 = vmatpush.msra.mxu0 0.0
  %3832 = vmatpush.msra.mxu0 %v2250
  %3833 = vmatpush.msra.mxu0 %v2248
  %3834 = vmatpush.msra.mxu0 %v2246
  %3835 = vmatpush.msra.mxu0 %v2244
  %3836 = vmatpush.msra.mxu0 %v2242
  %3837 = vmatpush.msra.mxu0 %v2240
  %3838 = vmatpush.msra.mxu0 %v2238
  %3839 = vmatpush.msra.mxu0 %v2236
  %3840 = vmatmul.f32.gmra.mxu0 %v3802
  %v3841 = vpop.f32.mrf.mxu0
  %v3842 = vadd.f32 0.0, %v3841
  %3843 = vdwg.mxu0
  %v3844 = vadd.f32 %v3797, %v3822
  %v3845 = vadd.f32 %v3798, %v3842
  %v3846 = vxor.u32 %v3844, 2147483648
  %v3847 = vmul.f32 %v3846, 1.442695
  %v3848 = vpow.pop %v3847
  %v3849 = vadd.f32 %v3848, 1.0
  %v3850 = vrcp.pop %v3849
  %v3851 = vmul.f32 %v3849, %v3850
  %v3852 = vsub.f32 1.0, %v3851
  %v3853 = vmul.f32 %v3850, %v3852
  %v3854 = vadd.f32 %v3850, %v3853
  %vm3855 = vweird.f32 %v3849
  %vm3856 = vweird.f32 %v3850
  %vm3857 = vmor %vm3855, %vm3856
  %v3858 = vsel %vm3857, %v3850, %v3854
  %v3859 = vand.u32 2147483647, %v3849
  %vm3860 = vcmp.eq.f32.partialorder %v3859, 8.507059e+37
  %v3861 = vand.u32 %v3849, 2147483648
  %v3862 = vor.u32 1.1754944e-38, %v3861
  %v3863 = vsel %vm3860, %v3862, %v3858
  %v3864 = vmul.f32 1.0, %v3863
  %v3865 = vtanh.pop %v3845
  %v3866 = vxor.u32 %v3845, 2147483648
  %v3867 = vmul.f32 %v3866, 1.442695
  %v3868 = vpow.pop %v3867
  %v3869 = vadd.f32 %v3868, 1.0
  %v3870 = vrcp.pop %v3869
  %v3871 = vmul.f32 %v3869, %v3870
  %v3872 = vsub.f32 1.0, %v3871
  %v3873 = vmul.f32 %v3870, %v3872
  %v3874 = vadd.f32 %v3870, %v3873
  %vm3875 = vweird.f32 %v3869
  %vm3876 = vweird.f32 %v3870
  %vm3877 = vmor %vm3875, %vm3876
  %v3878 = vsel %vm3877, %v3870, %v3874
  %v3879 = vand.u32 2147483647, %v3869
  %vm3880 = vcmp.eq.f32.partialorder %v3879, 8.507059e+37
  %v3881 = vand.u32 %v3869, 2147483648
  %v3882 = vor.u32 1.1754944e-38, %v3881
  %v3883 = vsel %vm3880, %v3882, %v3878
  %v3884 = vmul.f32 1.0, %v3883
  %v3885 = vmul.f32 %v3864, %v3788
  %v3886 = vmul.f32 %v3864, %v3865
  %3888 = vrot.lane.b32.xlu0 %v3886, 64
  %v3889 = vpop.permute.xlu0 %3888
  %v3891 = vadd.f32 %v3885, %v3889
  %v3892 = vtanh.pop %v3891
  %v3893 = vmul.f32 %v3884, %v3892
  %3894 = vst.msk [vmem:[%s7 + $0x78] sm:$0xff] %vm2347, %v3893
  %3895 = vst.msk [vmem:[%s7] sm:$0xff] %vm2349, %v3893
  %v3896 = vld [vmem:[#allocation3] sm:$0xff]
  %v3897 = vld [vmem:[#allocation3 + $0x8] sm:$0xff]
  %v3898 = vld [vmem:[#allocation3 + $0x10] sm:$0xff]
  %v3899 = vld [vmem:[#allocation3 + $0x18] sm:$0xff]
  %v3900 = vld [vmem:[#allocation3 + $0x20] sm:$0xff]
  %v3901 = vld [vmem:[#allocation3 + $0x28] sm:$0xff]
  %v3902 = vld [vmem:[#allocation3 + $0x30] sm:$0xff]
  %v3903 = vld [vmem:[#allocation3 + $0x38] sm:$0xff]
  %v3904 = vld [vmem:[#allocation3 + $0x40] sm:$0xff]
  %v3905 = vld [vmem:[#allocation3 + $0x48] sm:$0xff]
  %v3906 = vld [vmem:[#allocation3 + $0x50] sm:$0xff]
  %v3907 = vld [vmem:[#allocation3 + $0x58] sm:$0xff]
  %v3908 = vld [vmem:[#allocation3 + $0x60] sm:$0xff]
  %v3909 = vld [vmem:[#allocation3 + $0x68] sm:$0xff]
  %v3910 = vld [vmem:[#allocation3 + $0x70] sm:$0xff]
  %v3911 = vld [vmem:[#allocation3 + $0x78] sm:$0xff]
  %3912 = vst.msk [vmem:[%s7] sm:$0xff] %vm93, %v3896
  %3913 = vst.msk [vmem:[%s7 + $0x8] sm:$0xff] %vm93, %v3897
  %3914 = vst.msk [vmem:[%s7 + $0x10] sm:$0xff] %vm93, %v3898
  %3915 = vst.msk [vmem:[%s7 + $0x18] sm:$0xff] %vm93, %v3899
  %3916 = vst.msk [vmem:[%s7 + $0x20] sm:$0xff] %vm93, %v3900
  %3917 = vst.msk [vmem:[%s7 + $0x28] sm:$0xff] %vm93, %v3901
  %3918 = vst.msk [vmem:[%s7 + $0x30] sm:$0xff] %vm93, %v3902
  %3919 = vst.msk [vmem:[%s7 + $0x38] sm:$0xff] %vm93, %v3903
  %3920 = vst.msk [vmem:[%s7 + $0x40] sm:$0xff] %vm93, %v3904
  %3921 = vst.msk [vmem:[%s7 + $0x48] sm:$0xff] %vm93, %v3905
  %3922 = vst.msk [vmem:[%s7 + $0x50] sm:$0xff] %vm93, %v3906
  %3923 = vst.msk [vmem:[%s7 + $0x58] sm:$0xff] %vm93, %v3907
  %3924 = vst.msk [vmem:[%s7 + $0x60] sm:$0xff] %vm93, %v3908
  %3925 = vst.msk [vmem:[%s7 + $0x68] sm:$0xff] %vm93, %v3909
  %3926 = vst.msk [vmem:[%s7 + $0x70] sm:$0xff] %vm93, %v3910
  %3927 = vst.msk [vmem:[%s7 + $0x78] sm:$0xff] %vm93, %v3911
  // Predicated region
  $region30: #{qua_forward.5} parent=0 // pred_check
    _
  $region31: #{qua_forward.5} parent=0 // pred_check_branch
    %3929 = sbr.rel (0) target = $region33
  $region32: #{qua_forward.5} parent=0 // pred_region
    _
  $region33: #{qua_forward.5} parent=0 // pred_fallthru
    _
  // Predicated region
  $region34: #{qua_forward.5} parent=0 // pred_check
    _
  $region35: #{qua_forward.5} parent=0 // pred_check_branch
    %3931 = sbr.rel (0) target = $region37
  $region36: #{qua_forward.5} parent=0 // pred_region
    _
  $region37: #{qua_forward.5} parent=0 // pred_fallthru
    _

</llo_original>
